<compile_context>
chip_gen: v6e
topology: v6e:2x2x1
jax: 0.10.0
libtpu: 0.0.40
codegen_flags: <defaults>
</compile_context>

<pallas_src>
import functools

import jax
import jax.numpy as jnp
from jax.experimental import pallas as pl
from jax.experimental.pallas import tpu as pltpu


def _dialogue_rnn_kernel(
        P, T, Du, Dc, Ds, De,
        # inputs
        spk_ref,            # SMEM [T] int32 speaker index per step
        utter_ref,          # VMEM [T, Du] bf16
        ctx0_ref,           # [1, Dc] f32   SharedMemory.now()
        states0_ref,        # [P, Ds] f32
        emo0_ref,           # [P, De] f32
        w_in_big_ref,       # [Du, 3Dc + 2P*3Ds] bf16 (global W_ih | spk/lst W_u, block-concat)
        wg_hh_ref,          # [Dc, 3Dc] bf16
        wsl_c_ref,          # [Dc, 2P*3Ds] bf16
        wsl_hh_ref,         # [Ds, 2P*3Ds] bf16
        we_ih_ref,          # [Ds, P*3De] bf16
        we_hh_ref,          # [De, P*3De] bf16
        b_in_big_ref,       # [1, 3Dc + 2P*3Ds] f32 (r,z biases pre-folded)
        bg_hn_ref,          # [1, Dc] f32
        bsl_hn_ref,         # [2P, Ds] f32
        be_x_ref,           # [P, 3De] f32
        be_hn_ref,          # [P, De] f32
        # outputs
        outs_ref,           # [T, De] f32
        ctx_seq_ref,        # [T, Dc] f32
        states_out_ref,     # [P, Ds] f32
        emo_out_ref):       # [P, De] f32
    f32 = jnp.float32
    bf16 = jnp.bfloat16
    G, GE = 3 * Ds, 3 * De

    # ---- hoisted input-side matmul: all steps x all (speaker|listener) variants ----
    pre = jnp.dot(utter_ref[...], w_in_big_ref[...],
                  preferred_element_type=f32) + b_in_big_ref[...]     # [T, 3Dc + 2P*3Ds]
    pre_g = pre[:, :3 * Dc]      # [T, 3Dc]    global-GRU input gates
    pre_p = pre[:, 3 * Dc:]      # [T, 2P*3Ds] party input gates (spk_0..spk_{P-1} | lst_0..)

    ctx = ctx0_ref[...]          # [1, Dc]
    states = states0_ref[...]    # [P, Ds]
    emos = emo0_ref[...]         # [P, De]

    for t in range(T):           # T static & small -> fully unrolled
        spk = spk_ref[t]

        # ---- global context GRU: ctx = GRUCell(utter_t, ctx) ----
        gh = jnp.dot(ctx.astype(bf16), wg_hh_ref[...], preferred_element_type=f32)
        gx = pre_g[t:t + 1, :]
        r = jax.nn.sigmoid(gx[:, :Dc] + gh[:, :Dc])
        z = jax.nn.sigmoid(gx[:, Dc:2 * Dc] + gh[:, Dc:2 * Dc])
        n = jnp.tanh(gx[:, 2 * Dc:] + r * (gh[:, 2 * Dc:] + bg_hn_ref[...]))
        ctx = (1.0 - z) * n + z * ctx                                  # [1, Dc]
        ctx_seq_ref[t:t + 1, :] = ctx

        # ---- party GRUs (speak / listen), all P parties batched in sublanes ----
        # context contribution for all 2P variants in one wide (384-lane) dot
        gx_all = pre_p[t:t + 1, :] + jnp.dot(ctx.astype(bf16), wsl_c_ref[...],
                                             preferred_element_type=f32)  # [1, 2P*G]
        # hidden contribution for all parties x all variants in one dot
        gh_all = jnp.dot(states.astype(bf16), wsl_hh_ref[...],
                         preferred_element_type=f32)                       # [P, 2P*G]

        gx_rows, gh_rows, bn_rows = [], [], []
        for p in range(P):
            m = (spk == p).astype(f32)   # 1.0 if party p is the speaker, else 0.0
            gx_rows.append(m * gx_all[:, p * G:(p + 1) * G]
                           + (1.0 - m) * gx_all[:, (P + p) * G:(P + p + 1) * G])
            gh_rows.append(m * gh_all[p:p + 1, p * G:(p + 1) * G]
                           + (1.0 - m) * gh_all[p:p + 1, (P + p) * G:(P + p + 1) * G])
            bn_rows.append(m * bsl_hn_ref[p:p + 1, :]
                           + (1.0 - m) * bsl_hn_ref[P + p:P + p + 1, :])
        gx_p = jnp.concatenate(gx_rows, axis=0)     # [P, 3Ds]
        gh_p = jnp.concatenate(gh_rows, axis=0)     # [P, 3Ds]
        bn_p = jnp.concatenate(bn_rows, axis=0)     # [P, Ds]

        r = jax.nn.sigmoid(gx_p[:, :Ds] + gh_p[:, :Ds])
        z = jax.nn.sigmoid(gx_p[:, Ds:2 * Ds] + gh_p[:, Ds:2 * Ds])
        n = jnp.tanh(gx_p[:, 2 * Ds:] + r * (gh_p[:, 2 * Ds:] + bn_p))
        states = (1.0 - z) * n + z * states         # [P, Ds]

        # ---- emotion GRUs: emo_p = GRUCell(input=state_p, hidden=emo_p), batched ----
        gxe_all = jnp.dot(states.astype(bf16), we_ih_ref[...],
                          preferred_element_type=f32)                      # [P, P*GE]
        ghe_all = jnp.dot(emos.astype(bf16), we_hh_ref[...],
                          preferred_element_type=f32)                      # [P, P*GE]
        gxe = jnp.concatenate(
            [gxe_all[p:p + 1, p * GE:(p + 1) * GE] for p in range(P)], axis=0) + be_x_ref[...]
        ghe = jnp.concatenate(
            [ghe_all[p:p + 1, p * GE:(p + 1) * GE] for p in range(P)], axis=0)

        re = jax.nn.sigmoid(gxe[:, :De] + ghe[:, :De])
        ze = jax.nn.sigmoid(gxe[:, De:2 * De] + ghe[:, De:2 * De])
        ne = jnp.tanh(gxe[:, 2 * De:] + re * (ghe[:, 2 * De:] + be_hn_ref[...]))
        emos = (1.0 - ze) * ne + ze * emos          # [P, De]

        # DialgueRNN.forward returns the speaking party's emotion (exact select).
        # Note: a speaker index outside [0, P) silently yields zeros for that row.
        out = jnp.zeros((1, De), f32)
        for p in range(P):
            out = out + (spk == p).astype(f32) * emos[p:p + 1, :]
        outs_ref[t:t + 1, :] = out

    # coalesced final stores of the carried party state / emotion
    states_out_ref[...] = states
    emo_out_ref[...] = emos


def dialogue_rnn_forward(utters, speakers, ctx_mem, states, emotions, weights, biases):
    """Run T DialgueRNN.forward steps in one fused kernel invocation.

    utters:   [T, d_utter]
    speakers: [T] int speaker index per step (== argmax of the one-hot)
    ctx_mem:  [d_attention, d_context]  (SharedMemory state, now() == last row)
    states:   [P, d_state]
    emotions: [P, d_emotion]
    """
    T, d_utter = utters.shape
    P, d_state = states.shape
    d_emotion = emotions.shape[-1]
    d_context = ctx_mem.shape[-1]

    ctx_now = ctx_mem[-1:, :].astype(jnp.float32)      # SharedMemory.now()
    spk = speakers.reshape(T).astype(jnp.int32)

    kernel = functools.partial(_dialogue_rnn_kernel,
                               P, T, d_utter, d_context, d_state, d_emotion)

    vmem = functools.partial(pl.BlockSpec, memory_space=pltpu.MemorySpace.VMEM)
    smem = functools.partial(pl.BlockSpec, memory_space=pltpu.MemorySpace.SMEM)

    args = (spk,
            utters.astype(jnp.bfloat16),
            ctx_now,
            states.astype(jnp.float32),
            emotions.astype(jnp.float32),
            weights["w_in_big"], weights["wg_hh"], weights["wsl_c"],
            weights["wsl_hh"], weights["we_ih"], weights["we_hh"],
            biases["b_in_big"], biases["bg_hn"], biases["bsl_hn"],
            biases["be_x"], biases["be_hn"])

    in_specs = [smem()] + [vmem() for _ in range(len(args) - 1)]
    out_specs = (vmem(), vmem(), vmem(), vmem())

    outs, ctx_seq, new_states, new_emotions = pl.pallas_call(
        kernel,
        out_shape=(
            jax.ShapeDtypeStruct((T, d_emotion), jnp.float32),
            jax.ShapeDtypeStruct((T, d_context), jnp.float32),
            jax.ShapeDtypeStruct((P, d_state), jnp.float32),
            jax.ShapeDtypeStruct((P, d_emotion), jnp.float32),
        ),
        in_specs=in_specs,
        out_specs=out_specs,
    )(*args)

    # SharedMemory rolling update (host-side glue): keep the newest rows.
    new_ctx_mem = jnp.concatenate([ctx_mem, ctx_seq], axis=0)[-ctx_mem.shape[0]:]
    return outs, new_ctx_mem, new_states, new_emotions


def init_params(key, P, d_utter, d_context, d_state, d_emotion):
    """torch.nn.GRU-style init; weights gate-stacked [D_in, 3H] (r|z|n),
    block-concatenated along N for wide kernel dots, and cast to bf16 for the MXU."""
    def gru(k, d_in, d_h, leading=()):
        k1, k2, k3, k4 = jax.random.split(k, 4)
        bound = float(d_h) ** -0.5
        u = lambda kk, s: jax.random.uniform(kk, s, jnp.float32, -bound, bound)
        w_ih = u(k1, leading + (d_in, 3 * d_h))
        w_hh = u(k2, leading + (d_h, 3 * d_h))
        b_ih = u(k3, leading + (3 * d_h,))
        b_hh = u(k4, leading + (3 * d_h,))
        # pre-fold b_ih + b_hh for the r,z gates; b_hn stays separate (r scales it)
        b_x = b_ih.at[..., :2 * d_h].add(b_hh[..., :2 * d_h])
        b_hn = b_hh[..., 2 * d_h:]
        return w_ih, w_hh, b_x, b_hn

    kg, ks, kl, ke = jax.random.split(key, 4)
    wg_ih, wg_hh, bg_x, bg_hn = gru(kg, d_utter, d_context)                   # global_gru
    ws_ih, ws_hh, bs_x, bs_hn = gru(ks, d_utter + d_context, d_state, (P,))   # as_speaker
    wl_ih, wl_hh, bl_x, bl_hn = gru(kl, d_utter + d_context, d_state, (P,))   # as_listener
    we_ih, we_hh, be_x, be_hn = gru(ke, d_state, d_emotion, (P,))             # emote

    # Variant order: speaker_0..speaker_{P-1}, listener_0..listener_{P-1}
    w_sl_ih = jnp.concatenate([ws_ih, wl_ih], axis=0)        # [2P, Du+Dc, 3Ds]
    wsl_u = w_sl_ih[:, :d_utter, :]                          # [2P, Du, 3Ds]
    wsl_c = w_sl_ih[:, d_utter:, :]                          # [2P, Dc, 3Ds]
    wsl_hh = jnp.concatenate([ws_hh, wl_hh], axis=0)         # [2P, Ds, 3Ds]
    bsl_x = jnp.concatenate([bs_x, bl_x], axis=0)            # [2P, 3Ds]
    bsl_hn = jnp.concatenate([bs_hn, bl_hn], axis=0)         # [2P, Ds]

    def widen(w):  # [V, K, N] -> [K, V*N] block-concat along lanes
        return jnp.concatenate([w[v] for v in range(w.shape[0])], axis=1)

    wsl_u_wide = widen(wsl_u)                                # [Du, 2P*3Ds]
    wsl_c_wide = widen(wsl_c)                                # [Dc, 2P*3Ds]
    wsl_hh_wide = widen(wsl_hh)                              # [Ds, 2P*3Ds]
    we_ih_wide = widen(we_ih)                                # [Ds, P*3De]
    we_hh_wide = widen(we_hh)                                # [De, P*3De]

    # Hoisted input-side weight / bias: [global gates | party (spk|lst) gates]
    w_in_big = jnp.concatenate([wg_ih, wsl_u_wide], axis=1)  # [Du, 3Dc + 2P*3Ds]
    b_in_big = jnp.concatenate([bg_x.reshape(1, -1),
                                bsl_x.reshape(1, -1)], axis=1)

    bf = lambda x: x.astype(jnp.bfloat16)
    weights = {
        "w_in_big": bf(w_in_big), "wg_hh": bf(wg_hh),
        "wsl_c": bf(wsl_c_wide), "wsl_hh": bf(wsl_hh_wide),
        "we_ih": bf(we_ih_wide), "we_hh": bf(we_hh_wide),
    }
    biases = {
        "b_in_big": b_in_big,
        "bg_hn": bg_hn.reshape(1, d_context),
        "bsl_hn": bsl_hn,        # [2P, Ds]
        "be_x": be_x,            # [P, 3De]
        "be_hn": be_hn,          # [P, De]
    }
    return weights, biases


if __name__ == "__main__":
    P = 2                      # two parties / conversationalists
    d_utter = 32
    d_context = 32
    d_state = 32               # d_party
    d_emotion = 32
    d_attention = 8            # global-context memory length
    T = 8                      # utterances in the conversation

    key = jax.random.PRNGKey(0)
    k_params, k_utter = jax.random.split(key, 2)
    weights, biases = init_params(k_params, P, d_utter, d_context, d_state, d_emotion)

    utters = jax.random.normal(k_utter, (T, d_utter), jnp.float32)
    speakers = jnp.arange(T, dtype=jnp.int32) % P          # alternating speakers

    # module state after set_conversation() reset
    ctx_mem = jnp.zeros((d_attention, d_context), jnp.float32)
    states = jnp.zeros((P, d_state), jnp.float32)
    emotions = jnp.zeros((P, d_emotion), jnp.float32)

    outs, ctx_mem, states, emotions = dialogue_rnn_forward(
        utters, speakers, ctx_mem, states, emotions, weights, biases)
    jax.block_until_ready((outs, ctx_mem, states, emotions))

    assert outs.shape == (T, d_emotion)
    assert ctx_mem.shape == (d_attention, d_context)
    assert states.shape == (P, d_state)
    assert emotions.shape == (P, d_emotion)
    assert bool(jnp.all(jnp.isfinite(outs)))
    print("KERNEL_OK")
</pallas_src>

<mosaic_0001>
module attributes {stable_mosaic.version = 11 : i64} {
  func.func @_dialogue_rnn_kernel(%arg0: memref<8xi32, #tpu.memory_space<smem>>, %arg1: memref<8x32xbf16, #tpu.memory_space<vmem>>, %arg2: memref<1x32xf32, #tpu.memory_space<vmem>>, %arg3: memref<2x32xf32, #tpu.memory_space<vmem>>, %arg4: memref<2x32xf32, #tpu.memory_space<vmem>>, %arg5: memref<32x480xbf16, #tpu.memory_space<vmem>>, %arg6: memref<32x96xbf16, #tpu.memory_space<vmem>>, %arg7: memref<32x384xbf16, #tpu.memory_space<vmem>>, %arg8: memref<32x384xbf16, #tpu.memory_space<vmem>>, %arg9: memref<32x192xbf16, #tpu.memory_space<vmem>>, %arg10: memref<32x192xbf16, #tpu.memory_space<vmem>>, %arg11: memref<1x480xf32, #tpu.memory_space<vmem>>, %arg12: memref<1x32xf32, #tpu.memory_space<vmem>>, %arg13: memref<4x32xf32, #tpu.memory_space<vmem>>, %arg14: memref<2x96xf32, #tpu.memory_space<vmem>>, %arg15: memref<2x32xf32, #tpu.memory_space<vmem>>, %arg16: memref<8x32xf32, #tpu.memory_space<vmem>>, %arg17: memref<8x32xf32, #tpu.memory_space<vmem>>, %arg18: memref<2x32xf32, #tpu.memory_space<vmem>>, %arg19: memref<2x32xf32, #tpu.memory_space<vmem>>) attributes {dimension_semantics = [], scalar_prefetch = 0 : i64, scratch_operands = 0 : i64, tpu.core_type = #tpu.core_type<tc>} {
    %c0 = arith.constant 0 : index
    %c0_0 = arith.constant 0 : index
    %0 = vector.load %arg1[%c0, %c0_0] : memref<8x32xbf16, #tpu.memory_space<vmem>>, vector<8x32xbf16>
    %c0_1 = arith.constant 0 : index
    %c0_2 = arith.constant 0 : index
    %1 = vector.load %arg5[%c0_1, %c0_2] : memref<32x480xbf16, #tpu.memory_space<vmem>>, vector<32x480xbf16>
    %cst = arith.constant dense<0.000000e+00> : vector<8x480xf32>
    %2 = tpu.matmul %0, %1, %cst {dimension_numbers = #tpu.dot_dimension_numbers<[1], [0], [0], [1], [0, 0, 1, 1], [], []>} : vector<8x32xbf16>, vector<32x480xbf16>, vector<8x480xf32> -> vector<8x480xf32>
    %c0_3 = arith.constant 0 : index
    %c0_4 = arith.constant 0 : index
    %3 = vector.load %arg11[%c0_3, %c0_4] : memref<1x480xf32, #tpu.memory_space<vmem>>, vector<1x480xf32>
    %4 = vector.broadcast %3 : vector<1x480xf32> to vector<8x480xf32>
    %5 = arith.addf %2, %4 : vector<8x480xf32>
    %6 = vector.extract_strided_slice %5 {offsets = [0, 0], sizes = [8, 96], strides = [1, 1]} : vector<8x480xf32> to vector<8x96xf32>
    %7 = vector.extract_strided_slice %5 {offsets = [0, 96], sizes = [8, 384], strides = [1, 1]} : vector<8x480xf32> to vector<8x384xf32>
    %c0_5 = arith.constant 0 : index
    %c0_6 = arith.constant 0 : index
    %8 = vector.load %arg2[%c0_5, %c0_6] : memref<1x32xf32, #tpu.memory_space<vmem>>, vector<1x32xf32>
    %c0_7 = arith.constant 0 : index
    %c0_8 = arith.constant 0 : index
    %9 = vector.load %arg3[%c0_7, %c0_8] : memref<2x32xf32, #tpu.memory_space<vmem>>, vector<2x32xf32>
    %c0_9 = arith.constant 0 : index
    %c0_10 = arith.constant 0 : index
    %10 = vector.load %arg4[%c0_9, %c0_10] : memref<2x32xf32, #tpu.memory_space<vmem>>, vector<2x32xf32>
    %c0_11 = arith.constant 0 : index
    %11 = memref.load %arg0[%c0_11] : memref<8xi32, #tpu.memory_space<smem>>
    %12 = arith.truncf %8 : vector<1x32xf32> to vector<1x32xbf16>
    %c0_12 = arith.constant 0 : index
    %c0_13 = arith.constant 0 : index
    %13 = vector.load %arg6[%c0_12, %c0_13] : memref<32x96xbf16, #tpu.memory_space<vmem>>, vector<32x96xbf16>
    %cst_14 = arith.constant dense<0.000000e+00> : vector<1x96xf32>
    %14 = tpu.matmul %12, %13, %cst_14 {dimension_numbers = #tpu.dot_dimension_numbers<[1], [0], [0], [1], [0, 0, 1, 1], [], []>} : vector<1x32xbf16>, vector<32x96xbf16>, vector<1x96xf32> -> vector<1x96xf32>
    %15 = vector.extract_strided_slice %6 {offsets = [0, 0], sizes = [1, 96], strides = [1, 1]} : vector<8x96xf32> to vector<1x96xf32>
    %16 = vector.extract_strided_slice %15 {offsets = [0, 0], sizes = [1, 32], strides = [1, 1]} : vector<1x96xf32> to vector<1x32xf32>
    %17 = vector.extract_strided_slice %14 {offsets = [0, 0], sizes = [1, 32], strides = [1, 1]} : vector<1x96xf32> to vector<1x32xf32>
    %18 = arith.addf %16, %17 : vector<1x32xf32>
    %19 = arith.negf %18 : vector<1x32xf32>
    %20 = math.exp %19 : vector<1x32xf32>
    %cst_15 = arith.constant 1.000000e+00 : f32
    %21 = vector.broadcast %cst_15 : f32 to vector<1x32xf32>
    %22 = arith.addf %21, %20 : vector<1x32xf32>
    %23 = arith.divf %21, %22 : vector<1x32xf32>
    %24 = vector.extract_strided_slice %15 {offsets = [0, 32], sizes = [1, 32], strides = [1, 1]} : vector<1x96xf32> to vector<1x32xf32>
    %25 = vector.extract_strided_slice %14 {offsets = [0, 32], sizes = [1, 32], strides = [1, 1]} : vector<1x96xf32> to vector<1x32xf32>
    %26 = arith.addf %24, %25 : vector<1x32xf32>
    %27 = arith.negf %26 : vector<1x32xf32>
    %28 = math.exp %27 : vector<1x32xf32>
    %cst_16 = arith.constant 1.000000e+00 : f32
    %29 = vector.broadcast %cst_16 : f32 to vector<1x32xf32>
    %30 = arith.addf %29, %28 : vector<1x32xf32>
    %31 = arith.divf %29, %30 : vector<1x32xf32>
    %32 = vector.extract_strided_slice %15 {offsets = [0, 64], sizes = [1, 32], strides = [1, 1]} : vector<1x96xf32> to vector<1x32xf32>
    %33 = vector.extract_strided_slice %14 {offsets = [0, 64], sizes = [1, 32], strides = [1, 1]} : vector<1x96xf32> to vector<1x32xf32>
    %c0_17 = arith.constant 0 : index
    %c0_18 = arith.constant 0 : index
    %34 = vector.load %arg12[%c0_17, %c0_18] : memref<1x32xf32, #tpu.memory_space<vmem>>, vector<1x32xf32>
    %35 = arith.addf %33, %34 : vector<1x32xf32>
    %36 = arith.mulf %23, %35 : vector<1x32xf32>
    %37 = arith.addf %32, %36 : vector<1x32xf32>
    %38 = math.tanh %37 : vector<1x32xf32>
    %cst_19 = arith.constant 1.000000e+00 : f32
    %39 = vector.broadcast %cst_19 : f32 to vector<1x32xf32>
    %40 = arith.subf %39, %31 : vector<1x32xf32>
    %41 = arith.mulf %40, %38 : vector<1x32xf32>
    %42 = arith.mulf %31, %8 : vector<1x32xf32>
    %43 = arith.addf %41, %42 : vector<1x32xf32>
    %c0_20 = arith.constant 0 : index
    %c0_21 = arith.constant 0 : index
    %44 = vector.load %arg17[%c0_20, %c0_21] : memref<8x32xf32, #tpu.memory_space<vmem>>, vector<1x32xf32>
    tpu.vector_store %arg17[%c0_20, %c0_21], %43 {strides = array<i32>} : memref<8x32xf32, #tpu.memory_space<vmem>>, vector<1x32xf32>,
    %45 = vector.extract_strided_slice %7 {offsets = [0, 0], sizes = [1, 384], strides = [1, 1]} : vector<8x384xf32> to vector<1x384xf32>
    %46 = arith.truncf %43 : vector<1x32xf32> to vector<1x32xbf16>
    %c0_22 = arith.constant 0 : index
    %c0_23 = arith.constant 0 : index
    %47 = vector.load %arg7[%c0_22, %c0_23] : memref<32x384xbf16, #tpu.memory_space<vmem>>, vector<32x384xbf16>
    %cst_24 = arith.constant dense<0.000000e+00> : vector<1x384xf32>
    %48 = tpu.matmul %46, %47, %cst_24 {dimension_numbers = #tpu.dot_dimension_numbers<[1], [0], [0], [1], [0, 0, 1, 1], [], []>} : vector<1x32xbf16>, vector<32x384xbf16>, vector<1x384xf32> -> vector<1x384xf32>
    %49 = arith.addf %45, %48 : vector<1x384xf32>
    %50 = arith.truncf %9 : vector<2x32xf32> to vector<2x32xbf16>
    %c0_25 = arith.constant 0 : index
    %c0_26 = arith.constant 0 : index
    %51 = vector.load %arg8[%c0_25, %c0_26] : memref<32x384xbf16, #tpu.memory_space<vmem>>, vector<32x384xbf16>
    %cst_27 = arith.constant dense<0.000000e+00> : vector<2x384xf32>
    %52 = tpu.matmul %50, %51, %cst_27 {dimension_numbers = #tpu.dot_dimension_numbers<[1], [0], [0], [1], [0, 0, 1, 1], [], []>} : vector<2x32xbf16>, vector<32x384xbf16>, vector<2x384xf32> -> vector<2x384xf32>
    %c0_i32 = arith.constant 0 : i32
    %53 = arith.cmpi eq, %11, %c0_i32 : i32
    %54 = arith.extui %53 : i1 to i32
    %55 = arith.sitofp %54 : i32 to f32
    %56 = vector.extract_strided_slice %49 {offsets = [0, 0], sizes = [1, 96], strides = [1, 1]} : vector<1x384xf32> to vector<1x96xf32>
    %57 = vector.broadcast %55 : f32 to vector<1x96xf32>
    %58 = arith.mulf %57, %56 : vector<1x96xf32>
    %cst_28 = arith.constant 1.000000e+00 : f32
    %59 = arith.subf %cst_28, %55 : f32
    %60 = vector.extract_strided_slice %49 {offsets = [0, 192], sizes = [1, 96], strides = [1, 1]} : vector<1x384xf32> to vector<1x96xf32>
    %61 = vector.broadcast %59 : f32 to vector<1x96xf32>
    %62 = arith.mulf %61, %60 : vector<1x96xf32>
    %63 = arith.addf %58, %62 : vector<1x96xf32>
    %64 = vector.extract_strided_slice %52 {offsets = [0, 0], sizes = [1, 96], strides = [1, 1]} : vector<2x384xf32> to vector<1x96xf32>
    %65 = vector.broadcast %55 : f32 to vector<1x96xf32>
    %66 = arith.mulf %65, %64 : vector<1x96xf32>
    %cst_29 = arith.constant 1.000000e+00 : f32
    %67 = arith.subf %cst_29, %55 : f32
    %68 = vector.extract_strided_slice %52 {offsets = [0, 192], sizes = [1, 96], strides = [1, 1]} : vector<2x384xf32> to vector<1x96xf32>
    %69 = vector.broadcast %67 : f32 to vector<1x96xf32>
    %70 = arith.mulf %69, %68 : vector<1x96xf32>
    %71 = arith.addf %66, %70 : vector<1x96xf32>
    %c0_30 = arith.constant 0 : index
    %c0_31 = arith.constant 0 : index
    %72 = vector.load %arg13[%c0_30, %c0_31] : memref<4x32xf32, #tpu.memory_space<vmem>>, vector<1x32xf32>
    %73 = vector.broadcast %55 : f32 to vector<1x32xf32>
    %74 = arith.mulf %73, %72 : vector<1x32xf32>
    %cst_32 = arith.constant 1.000000e+00 : f32
    %75 = arith.subf %cst_32, %55 : f32
    %c2 = arith.constant 2 : index
    %c0_33 = arith.constant 0 : index
    %76 = vector.load %arg13[%c2, %c0_33] : memref<4x32xf32, #tpu.memory_space<vmem>>, vector<1x32xf32>
    %77 = vector.broadcast %75 : f32 to vector<1x32xf32>
    %78 = arith.mulf %77, %76 : vector<1x32xf32>
    %79 = arith.addf %74, %78 : vector<1x32xf32>
    %c1_i32 = arith.constant 1 : i32
    %80 = arith.cmpi eq, %11, %c1_i32 : i32
    %81 = arith.extui %80 : i1 to i32
    %82 = arith.sitofp %81 : i32 to f32
    %83 = vector.extract_strided_slice %49 {offsets = [0, 96], sizes = [1, 96], strides = [1, 1]} : vector<1x384xf32> to vector<1x96xf32>
    %84 = vector.broadcast %82 : f32 to vector<1x96xf32>
    %85 = arith.mulf %84, %83 : vector<1x96xf32>
    %cst_34 = arith.constant 1.000000e+00 : f32
    %86 = arith.subf %cst_34, %82 : f32
    %87 = vector.extract_strided_slice %49 {offsets = [0, 288], sizes = [1, 96], strides = [1, 1]} : vector<1x384xf32> to vector<1x96xf32>
    %88 = vector.broadcast %86 : f32 to vector<1x96xf32>
    %89 = arith.mulf %88, %87 : vector<1x96xf32>
    %90 = arith.addf %85, %89 : vector<1x96xf32>
    %91 = vector.extract_strided_slice %52 {offsets = [1, 96], sizes = [1, 96], strides = [1, 1]} : vector<2x384xf32> to vector<1x96xf32>
    %92 = vector.broadcast %82 : f32 to vector<1x96xf32>
    %93 = arith.mulf %92, %91 : vector<1x96xf32>
    %cst_35 = arith.constant 1.000000e+00 : f32
    %94 = arith.subf %cst_35, %82 : f32
    %95 = vector.extract_strided_slice %52 {offsets = [1, 288], sizes = [1, 96], strides = [1, 1]} : vector<2x384xf32> to vector<1x96xf32>
    %96 = vector.broadcast %94 : f32 to vector<1x96xf32>
    %97 = arith.mulf %96, %95 : vector<1x96xf32>
    %98 = arith.addf %93, %97 : vector<1x96xf32>
    %c1 = arith.constant 1 : index
    %c0_36 = arith.constant 0 : index
    %99 = vector.load %arg13[%c1, %c0_36] : memref<4x32xf32, #tpu.memory_space<vmem>>, vector<1x32xf32>
    %100 = vector.broadcast %82 : f32 to vector<1x32xf32>
    %101 = arith.mulf %100, %99 : vector<1x32xf32>
    %cst_37 = arith.constant 1.000000e+00 : f32
    %102 = arith.subf %cst_37, %82 : f32
    %c3 = arith.constant 3 : index
    %c0_38 = arith.constant 0 : index
    %103 = vector.load %arg13[%c3, %c0_38] : memref<4x32xf32, #tpu.memory_space<vmem>>, vector<1x32xf32>
    %104 = vector.broadcast %102 : f32 to vector<1x32xf32>
    %105 = arith.mulf %104, %103 : vector<1x32xf32>
    %106 = arith.addf %101, %105 : vector<1x32xf32>
    %107 = tpu.concatenate %63, %90 in 0 : vector<1x96xf32>, vector<1x96xf32> -> vector<2x96xf32>
    %108 = tpu.concatenate %71, %98 in 0 : vector<1x96xf32>, vector<1x96xf32> -> vector<2x96xf32>
    %109 = tpu.concatenate %79, %106 in 0 : vector<1x32xf32>, vector<1x32xf32> -> vector<2x32xf32>
    %110 = vector.extract_strided_slice %107 {offsets = [0, 0], sizes = [2, 32], strides = [1, 1]} : vector<2x96xf32> to vector<2x32xf32>
    %111 = vector.extract_strided_slice %108 {offsets = [0, 0], sizes = [2, 32], strides = [1, 1]} : vector<2x96xf32> to vector<2x32xf32>
    %112 = arith.addf %110, %111 : vector<2x32xf32>
    %113 = arith.negf %112 : vector<2x32xf32>
    %114 = math.exp %113 : vector<2x32xf32>
    %cst_39 = arith.constant 1.000000e+00 : f32
    %115 = vector.broadcast %cst_39 : f32 to vector<2x32xf32>
    %116 = arith.addf %115, %114 : vector<2x32xf32>
    %117 = arith.divf %115, %116 : vector<2x32xf32>
    %118 = vector.extract_strided_slice %107 {offsets = [0, 32], sizes = [2, 32], strides = [1, 1]} : vector<2x96xf32> to vector<2x32xf32>
    %119 = vector.extract_strided_slice %108 {offsets = [0, 32], sizes = [2, 32], strides = [1, 1]} : vector<2x96xf32> to vector<2x32xf32>
    %120 = arith.addf %118, %119 : vector<2x32xf32>
    %121 = arith.negf %120 : vector<2x32xf32>
    %122 = math.exp %121 : vector<2x32xf32>
    %cst_40 = arith.constant 1.000000e+00 : f32
    %123 = vector.broadcast %cst_40 : f32 to vector<2x32xf32>
    %124 = arith.addf %123, %122 : vector<2x32xf32>
    %125 = arith.divf %123, %124 : vector<2x32xf32>
    %126 = vector.extract_strided_slice %107 {offsets = [0, 64], sizes = [2, 32], strides = [1, 1]} : vector<2x96xf32> to vector<2x32xf32>
    %127 = vector.extract_strided_slice %108 {offsets = [0, 64], sizes = [2, 32], strides = [1, 1]} : vector<2x96xf32> to vector<2x32xf32>
    %128 = arith.addf %127, %109 : vector<2x32xf32>
    %129 = arith.mulf %117, %128 : vector<2x32xf32>
    %130 = arith.addf %126, %129 : vector<2x32xf32>
    %131 = math.tanh %130 : vector<2x32xf32>
    %cst_41 = arith.constant 1.000000e+00 : f32
    %132 = vector.broadcast %cst_41 : f32 to vector<2x32xf32>
    %133 = arith.subf %132, %125 : vector<2x32xf32>
    %134 = arith.mulf %133, %131 : vector<2x32xf32>
    %135 = arith.mulf %125, %9 : vector<2x32xf32>
    %136 = arith.addf %134, %135 : vector<2x32xf32>
    %137 = arith.truncf %136 : vector<2x32xf32> to vector<2x32xbf16>
    %c0_42 = arith.constant 0 : index
    %c0_43 = arith.constant 0 : index
    %138 = vector.load %arg9[%c0_42, %c0_43] : memref<32x192xbf16, #tpu.memory_space<vmem>>, vector<32x192xbf16>
    %cst_44 = arith.constant dense<0.000000e+00> : vector<2x192xf32>
    %139 = tpu.matmul %137, %138, %cst_44 {dimension_numbers = #tpu.dot_dimension_numbers<[1], [0], [0], [1], [0, 0, 1, 1], [], []>} : vector<2x32xbf16>, vector<32x192xbf16>, vector<2x192xf32> -> vector<2x192xf32>
    %140 = arith.truncf %10 : vector<2x32xf32> to vector<2x32xbf16>
    %c0_45 = arith.constant 0 : index
    %c0_46 = arith.constant 0 : index
    %141 = vector.load %arg10[%c0_45, %c0_46] : memref<32x192xbf16, #tpu.memory_space<vmem>>, vector<32x192xbf16>
    %cst_47 = arith.constant dense<0.000000e+00> : vector<2x192xf32>
    %142 = tpu.matmul %140, %141, %cst_47 {dimension_numbers = #tpu.dot_dimension_numbers<[1], [0], [0], [1], [0, 0, 1, 1], [], []>} : vector<2x32xbf16>, vector<32x192xbf16>, vector<2x192xf32> -> vector<2x192xf32>
    %143 = vector.extract_strided_slice %139 {offsets = [0, 0], sizes = [1, 96], strides = [1, 1]} : vector<2x192xf32> to vector<1x96xf32>
    %144 = vector.extract_strided_slice %139 {offsets = [1, 96], sizes = [1, 96], strides = [1, 1]} : vector<2x192xf32> to vector<1x96xf32>
    %145 = tpu.concatenate %143, %144 in 0 : vector<1x96xf32>, vector<1x96xf32> -> vector<2x96xf32>
    %c0_48 = arith.constant 0 : index
    %c0_49 = arith.constant 0 : index
    %146 = vector.load %arg14[%c0_48, %c0_49] : memref<2x96xf32, #tpu.memory_space<vmem>>, vector<2x96xf32>
    %147 = arith.addf %145, %146 : vector<2x96xf32>
    %148 = vector.extract_strided_slice %142 {offsets = [0, 0], sizes = [1, 96], strides = [1, 1]} : vector<2x192xf32> to vector<1x96xf32>
    %149 = vector.extract_strided_slice %142 {offsets = [1, 96], sizes = [1, 96], strides = [1, 1]} : vector<2x192xf32> to vector<1x96xf32>
    %150 = tpu.concatenate %148, %149 in 0 : vector<1x96xf32>, vector<1x96xf32> -> vector<2x96xf32>
    %151 = vector.extract_strided_slice %147 {offsets = [0, 0], sizes = [2, 32], strides = [1, 1]} : vector<2x96xf32> to vector<2x32xf32>
    %152 = vector.extract_strided_slice %150 {offsets = [0, 0], sizes = [2, 32], strides = [1, 1]} : vector<2x96xf32> to vector<2x32xf32>
    %153 = arith.addf %151, %152 : vector<2x32xf32>
    %154 = arith.negf %153 : vector<2x32xf32>
    %155 = math.exp %154 : vector<2x32xf32>
    %cst_50 = arith.constant 1.000000e+00 : f32
    %156 = vector.broadcast %cst_50 : f32 to vector<2x32xf32>
    %157 = arith.addf %156, %155 : vector<2x32xf32>
    %158 = arith.divf %156, %157 : vector<2x32xf32>
    %159 = vector.extract_strided_slice %147 {offsets = [0, 32], sizes = [2, 32], strides = [1, 1]} : vector<2x96xf32> to vector<2x32xf32>
    %160 = vector.extract_strided_slice %150 {offsets = [0, 32], sizes = [2, 32], strides = [1, 1]} : vector<2x96xf32> to vector<2x32xf32>
    %161 = arith.addf %159, %160 : vector<2x32xf32>
    %162 = arith.negf %161 : vector<2x32xf32>
    %163 = math.exp %162 : vector<2x32xf32>
    %cst_51 = arith.constant 1.000000e+00 : f32
    %164 = vector.broadcast %cst_51 : f32 to vector<2x32xf32>
    %165 = arith.addf %164, %163 : vector<2x32xf32>
    %166 = arith.divf %164, %165 : vector<2x32xf32>
    %167 = vector.extract_strided_slice %147 {offsets = [0, 64], sizes = [2, 32], strides = [1, 1]} : vector<2x96xf32> to vector<2x32xf32>
    %168 = vector.extract_strided_slice %150 {offsets = [0, 64], sizes = [2, 32], strides = [1, 1]} : vector<2x96xf32> to vector<2x32xf32>
    %c0_52 = arith.constant 0 : index
    %c0_53 = arith.constant 0 : index
    %169 = vector.load %arg15[%c0_52, %c0_53] : memref<2x32xf32, #tpu.memory_space<vmem>>, vector<2x32xf32>
    %170 = arith.addf %168, %169 : vector<2x32xf32>
    %171 = arith.mulf %158, %170 : vector<2x32xf32>
    %172 = arith.addf %167, %171 : vector<2x32xf32>
    %173 = math.tanh %172 : vector<2x32xf32>
    %cst_54 = arith.constant 1.000000e+00 : f32
    %174 = vector.broadcast %cst_54 : f32 to vector<2x32xf32>
    %175 = arith.subf %174, %166 : vector<2x32xf32>
    %176 = arith.mulf %175, %173 : vector<2x32xf32>
    %177 = arith.mulf %166, %10 : vector<2x32xf32>
    %178 = arith.addf %176, %177 : vector<2x32xf32>
    %cst_55 = arith.constant 0.000000e+00 : f32
    %179 = vector.broadcast %cst_55 : f32 to vector<1x32xf32>
    %c0_i32_56 = arith.constant 0 : i32
    %180 = arith.cmpi eq, %11, %c0_i32_56 : i32
    %181 = arith.extui %180 : i1 to i32
    %182 = arith.sitofp %181 : i32 to f32
    %183 = vector.extract_strided_slice %178 {offsets = [0, 0], sizes = [1, 32], strides = [1, 1]} : vector<2x32xf32> to vector<1x32xf32>
    %184 = vector.broadcast %182 : f32 to vector<1x32xf32>
    %185 = arith.mulf %184, %183 : vector<1x32xf32>
    %186 = arith.addf %179, %185 : vector<1x32xf32>
    %c1_i32_57 = arith.constant 1 : i32
    %187 = arith.cmpi eq, %11, %c1_i32_57 : i32
    %188 = arith.extui %187 : i1 to i32
    %189 = arith.sitofp %188 : i32 to f32
    %190 = vector.extract_strided_slice %178 {offsets = [1, 0], sizes = [1, 32], strides = [1, 1]} : vector<2x32xf32> to vector<1x32xf32>
    %191 = vector.broadcast %189 : f32 to vector<1x32xf32>
    %192 = arith.mulf %191, %190 : vector<1x32xf32>
    %193 = arith.addf %186, %192 : vector<1x32xf32>
    %c0_58 = arith.constant 0 : index
    %c0_59 = arith.constant 0 : index
    %194 = vector.load %arg16[%c0_58, %c0_59] : memref<8x32xf32, #tpu.memory_space<vmem>>, vector<1x32xf32>
    tpu.vector_store %arg16[%c0_58, %c0_59], %193 {strides = array<i32>} : memref<8x32xf32, #tpu.memory_space<vmem>>, vector<1x32xf32>,
    %c1_60 = arith.constant 1 : index
    %195 = memref.load %arg0[%c1_60] : memref<8xi32, #tpu.memory_space<smem>>
    %196 = arith.truncf %43 : vector<1x32xf32> to vector<1x32xbf16>
    %c0_61 = arith.constant 0 : index
    %c0_62 = arith.constant 0 : index
    %197 = vector.load %arg6[%c0_61, %c0_62] : memref<32x96xbf16, #tpu.memory_space<vmem>>, vector<32x96xbf16>
    %cst_63 = arith.constant dense<0.000000e+00> : vector<1x96xf32>
    %198 = tpu.matmul %196, %197, %cst_63 {dimension_numbers = #tpu.dot_dimension_numbers<[1], [0], [0], [1], [0, 0, 1, 1], [], []>} : vector<1x32xbf16>, vector<32x96xbf16>, vector<1x96xf32> -> vector<1x96xf32>
    %199 = vector.extract_strided_slice %6 {offsets = [1, 0], sizes = [1, 96], strides = [1, 1]} : vector<8x96xf32> to vector<1x96xf32>
    %200 = vector.extract_strided_slice %199 {offsets = [0, 0], sizes = [1, 32], strides = [1, 1]} : vector<1x96xf32> to vector<1x32xf32>
    %201 = vector.extract_strided_slice %198 {offsets = [0, 0], sizes = [1, 32], strides = [1, 1]} : vector<1x96xf32> to vector<1x32xf32>
    %202 = arith.addf %200, %201 : vector<1x32xf32>
    %203 = arith.negf %202 : vector<1x32xf32>
    %204 = math.exp %203 : vector<1x32xf32>
    %cst_64 = arith.constant 1.000000e+00 : f32
    %205 = vector.broadcast %cst_64 : f32 to vector<1x32xf32>
    %206 = arith.addf %205, %204 : vector<1x32xf32>
    %207 = arith.divf %205, %206 : vector<1x32xf32>
    %208 = vector.extract_strided_slice %199 {offsets = [0, 32], sizes = [1, 32], strides = [1, 1]} : vector<1x96xf32> to vector<1x32xf32>
    %209 = vector.extract_strided_slice %198 {offsets = [0, 32], sizes = [1, 32], strides = [1, 1]} : vector<1x96xf32> to vector<1x32xf32>
    %210 = arith.addf %208, %209 : vector<1x32xf32>
    %211 = arith.negf %210 : vector<1x32xf32>
    %212 = math.exp %211 : vector<1x32xf32>
    %cst_65 = arith.constant 1.000000e+00 : f32
    %213 = vector.broadcast %cst_65 : f32 to vector<1x32xf32>
    %214 = arith.addf %213, %212 : vector<1x32xf32>
    %215 = arith.divf %213, %214 : vector<1x32xf32>
    %216 = vector.extract_strided_slice %199 {offsets = [0, 64], sizes = [1, 32], strides = [1, 1]} : vector<1x96xf32> to vector<1x32xf32>
    %217 = vector.extract_strided_slice %198 {offsets = [0, 64], sizes = [1, 32], strides = [1, 1]} : vector<1x96xf32> to vector<1x32xf32>
    %c0_66 = arith.constant 0 : index
    %c0_67 = arith.constant 0 : index
    %218 = vector.load %arg12[%c0_66, %c0_67] : memref<1x32xf32, #tpu.memory_space<vmem>>, vector<1x32xf32>
    %219 = arith.addf %217, %218 : vector<1x32xf32>
    %220 = arith.mulf %207, %219 : vector<1x32xf32>
    %221 = arith.addf %216, %220 : vector<1x32xf32>
    %222 = math.tanh %221 : vector<1x32xf32>
    %cst_68 = arith.constant 1.000000e+00 : f32
    %223 = vector.broadcast %cst_68 : f32 to vector<1x32xf32>
    %224 = arith.subf %223, %215 : vector<1x32xf32>
    %225 = arith.mulf %224, %222 : vector<1x32xf32>
    %226 = arith.mulf %215, %43 : vector<1x32xf32>
    %227 = arith.addf %225, %226 : vector<1x32xf32>
    %c1_69 = arith.constant 1 : index
    %c0_70 = arith.constant 0 : index
    %228 = vector.load %arg17[%c1_69, %c0_70] : memref<8x32xf32, #tpu.memory_space<vmem>>, vector<1x32xf32>
    tpu.vector_store %arg17[%c1_69, %c0_70], %227 {strides = array<i32>} : memref<8x32xf32, #tpu.memory_space<vmem>>, vector<1x32xf32>,
    %229 = vector.extract_strided_slice %7 {offsets = [1, 0], sizes = [1, 384], strides = [1, 1]} : vector<8x384xf32> to vector<1x384xf32>
    %230 = arith.truncf %227 : vector<1x32xf32> to vector<1x32xbf16>
    %c0_71 = arith.constant 0 : index
    %c0_72 = arith.constant 0 : index
    %231 = vector.load %arg7[%c0_71, %c0_72] : memref<32x384xbf16, #tpu.memory_space<vmem>>, vector<32x384xbf16>
    %cst_73 = arith.constant dense<0.000000e+00> : vector<1x384xf32>
    %232 = tpu.matmul %230, %231, %cst_73 {dimension_numbers = #tpu.dot_dimension_numbers<[1], [0], [0], [1], [0, 0, 1, 1], [], []>} : vector<1x32xbf16>, vector<32x384xbf16>, vector<1x384xf32> -> vector<1x384xf32>
    %233 = arith.addf %229, %232 : vector<1x384xf32>
    %234 = arith.truncf %136 : vector<2x32xf32> to vector<2x32xbf16>
    %c0_74 = arith.constant 0 : index
    %c0_75 = arith.constant 0 : index
    %235 = vector.load %arg8[%c0_74, %c0_75] : memref<32x384xbf16, #tpu.memory_space<vmem>>, vector<32x384xbf16>
    %cst_76 = arith.constant dense<0.000000e+00> : vector<2x384xf32>
    %236 = tpu.matmul %234, %235, %cst_76 {dimension_numbers = #tpu.dot_dimension_numbers<[1], [0], [0], [1], [0, 0, 1, 1], [], []>} : vector<2x32xbf16>, vector<32x384xbf16>, vector<2x384xf32> -> vector<2x384xf32>
    %c0_i32_77 = arith.constant 0 : i32
    %237 = arith.cmpi eq, %195, %c0_i32_77 : i32
    %238 = arith.extui %237 : i1 to i32
    %239 = arith.sitofp %238 : i32 to f32
    %240 = vector.extract_strided_slice %233 {offsets = [0, 0], sizes = [1, 96], strides = [1, 1]} : vector<1x384xf32> to vector<1x96xf32>
    %241 = vector.broadcast %239 : f32 to vector<1x96xf32>
    %242 = arith.mulf %241, %240 : vector<1x96xf32>
    %cst_78 = arith.constant 1.000000e+00 : f32
    %243 = arith.subf %cst_78, %239 : f32
    %244 = vector.extract_strided_slice %233 {offsets = [0, 192], sizes = [1, 96], strides = [1, 1]} : vector<1x384xf32> to vector<1x96xf32>
    %245 = vector.broadcast %243 : f32 to vector<1x96xf32>
    %246 = arith.mulf %245, %244 : vector<1x96xf32>
    %247 = arith.addf %242, %246 : vector<1x96xf32>
    %248 = vector.extract_strided_slice %236 {offsets = [0, 0], sizes = [1, 96], strides = [1, 1]} : vector<2x384xf32> to vector<1x96xf32>
    %249 = vector.broadcast %239 : f32 to vector<1x96xf32>
    %250 = arith.mulf %249, %248 : vector<1x96xf32>
    %cst_79 = arith.constant 1.000000e+00 : f32
    %251 = arith.subf %cst_79, %239 : f32
    %252 = vector.extract_strided_slice %236 {offsets = [0, 192], sizes = [1, 96], strides = [1, 1]} : vector<2x384xf32> to vector<1x96xf32>
    %253 = vector.broadcast %251 : f32 to vector<1x96xf32>
    %254 = arith.mulf %253, %252 : vector<1x96xf32>
    %255 = arith.addf %250, %254 : vector<1x96xf32>
    %c0_80 = arith.constant 0 : index
    %c0_81 = arith.constant 0 : index
    %256 = vector.load %arg13[%c0_80, %c0_81] : memref<4x32xf32, #tpu.memory_space<vmem>>, vector<1x32xf32>
    %257 = vector.broadcast %239 : f32 to vector<1x32xf32>
    %258 = arith.mulf %257, %256 : vector<1x32xf32>
    %cst_82 = arith.constant 1.000000e+00 : f32
    %259 = arith.subf %cst_82, %239 : f32
    %c2_83 = arith.constant 2 : index
    %c0_84 = arith.constant 0 : index
    %260 = vector.load %arg13[%c2_83, %c0_84] : memref<4x32xf32, #tpu.memory_space<vmem>>, vector<1x32xf32>
    %261 = vector.broadcast %259 : f32 to vector<1x32xf32>
    %262 = arith.mulf %261, %260 : vector<1x32xf32>
    %263 = arith.addf %258, %262 : vector<1x32xf32>
    %c1_i32_85 = arith.constant 1 : i32
    %264 = arith.cmpi eq, %195, %c1_i32_85 : i32
    %265 = arith.extui %264 : i1 to i32
    %266 = arith.sitofp %265 : i32 to f32
    %267 = vector.extract_strided_slice %233 {offsets = [0, 96], sizes = [1, 96], strides = [1, 1]} : vector<1x384xf32> to vector<1x96xf32>
    %268 = vector.broadcast %266 : f32 to vector<1x96xf32>
    %269 = arith.mulf %268, %267 : vector<1x96xf32>
    %cst_86 = arith.constant 1.000000e+00 : f32
    %270 = arith.subf %cst_86, %266 : f32
    %271 = vector.extract_strided_slice %233 {offsets = [0, 288], sizes = [1, 96], strides = [1, 1]} : vector<1x384xf32> to vector<1x96xf32>
    %272 = vector.broadcast %270 : f32 to vector<1x96xf32>
    %273 = arith.mulf %272, %271 : vector<1x96xf32>
    %274 = arith.addf %269, %273 : vector<1x96xf32>
    %275 = vector.extract_strided_slice %236 {offsets = [1, 96], sizes = [1, 96], strides = [1, 1]} : vector<2x384xf32> to vector<1x96xf32>
    %276 = vector.broadcast %266 : f32 to vector<1x96xf32>
    %277 = arith.mulf %276, %275 : vector<1x96xf32>
    %cst_87 = arith.constant 1.000000e+00 : f32
    %278 = arith.subf %cst_87, %266 : f32
    %279 = vector.extract_strided_slice %236 {offsets = [1, 288], sizes = [1, 96], strides = [1, 1]} : vector<2x384xf32> to vector<1x96xf32>
    %280 = vector.broadcast %278 : f32 to vector<1x96xf32>
    %281 = arith.mulf %280, %279 : vector<1x96xf32>
    %282 = arith.addf %277, %281 : vector<1x96xf32>
    %c1_88 = arith.constant 1 : index
    %c0_89 = arith.constant 0 : index
    %283 = vector.load %arg13[%c1_88, %c0_89] : memref<4x32xf32, #tpu.memory_space<vmem>>, vector<1x32xf32>
    %284 = vector.broadcast %266 : f32 to vector<1x32xf32>
    %285 = arith.mulf %284, %283 : vector<1x32xf32>
    %cst_90 = arith.constant 1.000000e+00 : f32
    %286 = arith.subf %cst_90, %266 : f32
    %c3_91 = arith.constant 3 : index
    %c0_92 = arith.constant 0 : index
    %287 = vector.load %arg13[%c3_91, %c0_92] : memref<4x32xf32, #tpu.memory_space<vmem>>, vector<1x32xf32>
    %288 = vector.broadcast %286 : f32 to vector<1x32xf32>
    %289 = arith.mulf %288, %287 : vector<1x32xf32>
    %290 = arith.addf %285, %289 : vector<1x32xf32>
    %291 = tpu.concatenate %247, %274 in 0 : vector<1x96xf32>, vector<1x96xf32> -> vector<2x96xf32>
    %292 = tpu.concatenate %255, %282 in 0 : vector<1x96xf32>, vector<1x96xf32> -> vector<2x96xf32>
    %293 = tpu.concatenate %263, %290 in 0 : vector<1x32xf32>, vector<1x32xf32> -> vector<2x32xf32>
    %294 = vector.extract_strided_slice %291 {offsets = [0, 0], sizes = [2, 32], strides = [1, 1]} : vector<2x96xf32> to vector<2x32xf32>
    %295 = vector.extract_strided_slice %292 {offsets = [0, 0], sizes = [2, 32], strides = [1, 1]} : vector<2x96xf32> to vector<2x32xf32>
    %296 = arith.addf %294, %295 : vector<2x32xf32>
    %297 = arith.negf %296 : vector<2x32xf32>
    %298 = math.exp %297 : vector<2x32xf32>
    %cst_93 = arith.constant 1.000000e+00 : f32
    %299 = vector.broadcast %cst_93 : f32 to vector<2x32xf32>
    %300 = arith.addf %299, %298 : vector<2x32xf32>
    %301 = arith.divf %299, %300 : vector<2x32xf32>
    %302 = vector.extract_strided_slice %291 {offsets = [0, 32], sizes = [2, 32], strides = [1, 1]} : vector<2x96xf32> to vector<2x32xf32>
    %303 = vector.extract_strided_slice %292 {offsets = [0, 32], sizes = [2, 32], strides = [1, 1]} : vector<2x96xf32> to vector<2x32xf32>
    %304 = arith.addf %302, %303 : vector<2x32xf32>
    %305 = arith.negf %304 : vector<2x32xf32>
    %306 = math.exp %305 : vector<2x32xf32>
    %cst_94 = arith.constant 1.000000e+00 : f32
    %307 = vector.broadcast %cst_94 : f32 to vector<2x32xf32>
    %308 = arith.addf %307, %306 : vector<2x32xf32>
    %309 = arith.divf %307, %308 : vector<2x32xf32>
    %310 = vector.extract_strided_slice %291 {offsets = [0, 64], sizes = [2, 32], strides = [1, 1]} : vector<2x96xf32> to vector<2x32xf32>
    %311 = vector.extract_strided_slice %292 {offsets = [0, 64], sizes = [2, 32], strides = [1, 1]} : vector<2x96xf32> to vector<2x32xf32>
    %312 = arith.addf %311, %293 : vector<2x32xf32>
    %313 = arith.mulf %301, %312 : vector<2x32xf32>
    %314 = arith.addf %310, %313 : vector<2x32xf32>
    %315 = math.tanh %314 : vector<2x32xf32>
    %cst_95 = arith.constant 1.000000e+00 : f32
    %316 = vector.broadcast %cst_95 : f32 to vector<2x32xf32>
    %317 = arith.subf %316, %309 : vector<2x32xf32>
    %318 = arith.mulf %317, %315 : vector<2x32xf32>
    %319 = arith.mulf %309, %136 : vector<2x32xf32>
    %320 = arith.addf %318, %319 : vector<2x32xf32>
    %321 = arith.truncf %320 : vector<2x32xf32> to vector<2x32xbf16>
    %c0_96 = arith.constant 0 : index
    %c0_97 = arith.constant 0 : index
    %322 = vector.load %arg9[%c0_96, %c0_97] : memref<32x192xbf16, #tpu.memory_space<vmem>>, vector<32x192xbf16>
    %cst_98 = arith.constant dense<0.000000e+00> : vector<2x192xf32>
    %323 = tpu.matmul %321, %322, %cst_98 {dimension_numbers = #tpu.dot_dimension_numbers<[1], [0], [0], [1], [0, 0, 1, 1], [], []>} : vector<2x32xbf16>, vector<32x192xbf16>, vector<2x192xf32> -> vector<2x192xf32>
    %324 = arith.truncf %178 : vector<2x32xf32> to vector<2x32xbf16>
    %c0_99 = arith.constant 0 : index
    %c0_100 = arith.constant 0 : index
    %325 = vector.load %arg10[%c0_99, %c0_100] : memref<32x192xbf16, #tpu.memory_space<vmem>>, vector<32x192xbf16>
    %cst_101 = arith.constant dense<0.000000e+00> : vector<2x192xf32>
    %326 = tpu.matmul %324, %325, %cst_101 {dimension_numbers = #tpu.dot_dimension_numbers<[1], [0], [0], [1], [0, 0, 1, 1], [], []>} : vector<2x32xbf16>, vector<32x192xbf16>, vector<2x192xf32> -> vector<2x192xf32>
    %327 = vector.extract_strided_slice %323 {offsets = [0, 0], sizes = [1, 96], strides = [1, 1]} : vector<2x192xf32> to vector<1x96xf32>
    %328 = vector.extract_strided_slice %323 {offsets = [1, 96], sizes = [1, 96], strides = [1, 1]} : vector<2x192xf32> to vector<1x96xf32>
    %329 = tpu.concatenate %327, %328 in 0 : vector<1x96xf32>, vector<1x96xf32> -> vector<2x96xf32>
    %c0_102 = arith.constant 0 : index
    %c0_103 = arith.constant 0 : index
    %330 = vector.load %arg14[%c0_102, %c0_103] : memref<2x96xf32, #tpu.memory_space<vmem>>, vector<2x96xf32>
    %331 = arith.addf %329, %330 : vector<2x96xf32>
    %332 = vector.extract_strided_slice %326 {offsets = [0, 0], sizes = [1, 96], strides = [1, 1]} : vector<2x192xf32> to vector<1x96xf32>
    %333 = vector.extract_strided_slice %326 {offsets = [1, 96], sizes = [1, 96], strides = [1, 1]} : vector<2x192xf32> to vector<1x96xf32>
    %334 = tpu.concatenate %332, %333 in 0 : vector<1x96xf32>, vector<1x96xf32> -> vector<2x96xf32>
    %335 = vector.extract_strided_slice %331 {offsets = [0, 0], sizes = [2, 32], strides = [1, 1]} : vector<2x96xf32> to vector<2x32xf32>
    %336 = vector.extract_strided_slice %334 {offsets = [0, 0], sizes = [2, 32], strides = [1, 1]} : vector<2x96xf32> to vector<2x32xf32>
    %337 = arith.addf %335, %336 : vector<2x32xf32>
    %338 = arith.negf %337 : vector<2x32xf32>
    %339 = math.exp %338 : vector<2x32xf32>
    %cst_104 = arith.constant 1.000000e+00 : f32
    %340 = vector.broadcast %cst_104 : f32 to vector<2x32xf32>
    %341 = arith.addf %340, %339 : vector<2x32xf32>
    %342 = arith.divf %340, %341 : vector<2x32xf32>
    %343 = vector.extract_strided_slice %331 {offsets = [0, 32], sizes = [2, 32], strides = [1, 1]} : vector<2x96xf32> to vector<2x32xf32>
    %344 = vector.extract_strided_slice %334 {offsets = [0, 32], sizes = [2, 32], strides = [1, 1]} : vector<2x96xf32> to vector<2x32xf32>
    %345 = arith.addf %343, %344 : vector<2x32xf32>
    %346 = arith.negf %345 : vector<2x32xf32>
    %347 = math.exp %346 : vector<2x32xf32>
    %cst_105 = arith.constant 1.000000e+00 : f32
    %348 = vector.broadcast %cst_105 : f32 to vector<2x32xf32>
    %349 = arith.addf %348, %347 : vector<2x32xf32>
    %350 = arith.divf %348, %349 : vector<2x32xf32>
    %351 = vector.extract_strided_slice %331 {offsets = [0, 64], sizes = [2, 32], strides = [1, 1]} : vector<2x96xf32> to vector<2x32xf32>
    %352 = vector.extract_strided_slice %334 {offsets = [0, 64], sizes = [2, 32], strides = [1, 1]} : vector<2x96xf32> to vector<2x32xf32>
    %c0_106 = arith.constant 0 : index
    %c0_107 = arith.constant 0 : index
    %353 = vector.load %arg15[%c0_106, %c0_107] : memref<2x32xf32, #tpu.memory_space<vmem>>, vector<2x32xf32>
    %354 = arith.addf %352, %353 : vector<2x32xf32>
    %355 = arith.mulf %342, %354 : vector<2x32xf32>
    %356 = arith.addf %351, %355 : vector<2x32xf32>
    %357 = math.tanh %356 : vector<2x32xf32>
    %cst_108 = arith.constant 1.000000e+00 : f32
    %358 = vector.broadcast %cst_108 : f32 to vector<2x32xf32>
    %359 = arith.subf %358, %350 : vector<2x32xf32>
    %360 = arith.mulf %359, %357 : vector<2x32xf32>
    %361 = arith.mulf %350, %178 : vector<2x32xf32>
    %362 = arith.addf %360, %361 : vector<2x32xf32>
    %cst_109 = arith.constant 0.000000e+00 : f32
    %363 = vector.broadcast %cst_109 : f32 to vector<1x32xf32>
    %c0_i32_110 = arith.constant 0 : i32
    %364 = arith.cmpi eq, %195, %c0_i32_110 : i32
    %365 = arith.extui %364 : i1 to i32
    %366 = arith.sitofp %365 : i32 to f32
    %367 = vector.extract_strided_slice %362 {offsets = [0, 0], sizes = [1, 32], strides = [1, 1]} : vector<2x32xf32> to vector<1x32xf32>
    %368 = vector.broadcast %366 : f32 to vector<1x32xf32>
    %369 = arith.mulf %368, %367 : vector<1x32xf32>
    %370 = arith.addf %363, %369 : vector<1x32xf32>
    %c1_i32_111 = arith.constant 1 : i32
    %371 = arith.cmpi eq, %195, %c1_i32_111 : i32
    %372 = arith.extui %371 : i1 to i32
    %373 = arith.sitofp %372 : i32 to f32
    %374 = vector.extract_strided_slice %362 {offsets = [1, 0], sizes = [1, 32], strides = [1, 1]} : vector<2x32xf32> to vector<1x32xf32>
    %375 = vector.broadcast %373 : f32 to vector<1x32xf32>
    %376 = arith.mulf %375, %374 : vector<1x32xf32>
    %377 = arith.addf %370, %376 : vector<1x32xf32>
    %c1_112 = arith.constant 1 : index
    %c0_113 = arith.constant 0 : index
    %378 = vector.load %arg16[%c1_112, %c0_113] : memref<8x32xf32, #tpu.memory_space<vmem>>, vector<1x32xf32>
    tpu.vector_store %arg16[%c1_112, %c0_113], %377 {strides = array<i32>} : memref<8x32xf32, #tpu.memory_space<vmem>>, vector<1x32xf32>,
    %c2_114 = arith.constant 2 : index
    %379 = memref.load %arg0[%c2_114] : memref<8xi32, #tpu.memory_space<smem>>
    %380 = arith.truncf %227 : vector<1x32xf32> to vector<1x32xbf16>
    %c0_115 = arith.constant 0 : index
    %c0_116 = arith.constant 0 : index
    %381 = vector.load %arg6[%c0_115, %c0_116] : memref<32x96xbf16, #tpu.memory_space<vmem>>, vector<32x96xbf16>
    %cst_117 = arith.constant dense<0.000000e+00> : vector<1x96xf32>
    %382 = tpu.matmul %380, %381, %cst_117 {dimension_numbers = #tpu.dot_dimension_numbers<[1], [0], [0], [1], [0, 0, 1, 1], [], []>} : vector<1x32xbf16>, vector<32x96xbf16>, vector<1x96xf32> -> vector<1x96xf32>
    %383 = vector.extract_strided_slice %6 {offsets = [2, 0], sizes = [1, 96], strides = [1, 1]} : vector<8x96xf32> to vector<1x96xf32>
    %384 = vector.extract_strided_slice %383 {offsets = [0, 0], sizes = [1, 32], strides = [1, 1]} : vector<1x96xf32> to vector<1x32xf32>
    %385 = vector.extract_strided_slice %382 {offsets = [0, 0], sizes = [1, 32], strides = [1, 1]} : vector<1x96xf32> to vector<1x32xf32>
    %386 = arith.addf %384, %385 : vector<1x32xf32>
    %387 = arith.negf %386 : vector<1x32xf32>
    %388 = math.exp %387 : vector<1x32xf32>
    %cst_118 = arith.constant 1.000000e+00 : f32
    %389 = vector.broadcast %cst_118 : f32 to vector<1x32xf32>
    %390 = arith.addf %389, %388 : vector<1x32xf32>
    %391 = arith.divf %389, %390 : vector<1x32xf32>
    %392 = vector.extract_strided_slice %383 {offsets = [0, 32], sizes = [1, 32], strides = [1, 1]} : vector<1x96xf32> to vector<1x32xf32>
    %393 = vector.extract_strided_slice %382 {offsets = [0, 32], sizes = [1, 32], strides = [1, 1]} : vector<1x96xf32> to vector<1x32xf32>
    %394 = arith.addf %392, %393 : vector<1x32xf32>
    %395 = arith.negf %394 : vector<1x32xf32>
    %396 = math.exp %395 : vector<1x32xf32>
    %cst_119 = arith.constant 1.000000e+00 : f32
    %397 = vector.broadcast %cst_119 : f32 to vector<1x32xf32>
    %398 = arith.addf %397, %396 : vector<1x32xf32>
    %399 = arith.divf %397, %398 : vector<1x32xf32>
    %400 = vector.extract_strided_slice %383 {offsets = [0, 64], sizes = [1, 32], strides = [1, 1]} : vector<1x96xf32> to vector<1x32xf32>
    %401 = vector.extract_strided_slice %382 {offsets = [0, 64], sizes = [1, 32], strides = [1, 1]} : vector<1x96xf32> to vector<1x32xf32>
    %c0_120 = arith.constant 0 : index
    %c0_121 = arith.constant 0 : index
    %402 = vector.load %arg12[%c0_120, %c0_121] : memref<1x32xf32, #tpu.memory_space<vmem>>, vector<1x32xf32>
    %403 = arith.addf %401, %402 : vector<1x32xf32>
    %404 = arith.mulf %391, %403 : vector<1x32xf32>
    %405 = arith.addf %400, %404 : vector<1x32xf32>
    %406 = math.tanh %405 : vector<1x32xf32>
    %cst_122 = arith.constant 1.000000e+00 : f32
    %407 = vector.broadcast %cst_122 : f32 to vector<1x32xf32>
    %408 = arith.subf %407, %399 : vector<1x32xf32>
    %409 = arith.mulf %408, %406 : vector<1x32xf32>
    %410 = arith.mulf %399, %227 : vector<1x32xf32>
    %411 = arith.addf %409, %410 : vector<1x32xf32>
    %c2_123 = arith.constant 2 : index
    %c0_124 = arith.constant 0 : index
    %412 = vector.load %arg17[%c2_123, %c0_124] : memref<8x32xf32, #tpu.memory_space<vmem>>, vector<1x32xf32>
    tpu.vector_store %arg17[%c2_123, %c0_124], %411 {strides = array<i32>} : memref<8x32xf32, #tpu.memory_space<vmem>>, vector<1x32xf32>,
    %413 = vector.extract_strided_slice %7 {offsets = [2, 0], sizes = [1, 384], strides = [1, 1]} : vector<8x384xf32> to vector<1x384xf32>
    %414 = arith.truncf %411 : vector<1x32xf32> to vector<1x32xbf16>
    %c0_125 = arith.constant 0 : index
    %c0_126 = arith.constant 0 : index
    %415 = vector.load %arg7[%c0_125, %c0_126] : memref<32x384xbf16, #tpu.memory_space<vmem>>, vector<32x384xbf16>
    %cst_127 = arith.constant dense<0.000000e+00> : vector<1x384xf32>
    %416 = tpu.matmul %414, %415, %cst_127 {dimension_numbers = #tpu.dot_dimension_numbers<[1], [0], [0], [1], [0, 0, 1, 1], [], []>} : vector<1x32xbf16>, vector<32x384xbf16>, vector<1x384xf32> -> vector<1x384xf32>
    %417 = arith.addf %413, %416 : vector<1x384xf32>
    %418 = arith.truncf %320 : vector<2x32xf32> to vector<2x32xbf16>
    %c0_128 = arith.constant 0 : index
    %c0_129 = arith.constant 0 : index
    %419 = vector.load %arg8[%c0_128, %c0_129] : memref<32x384xbf16, #tpu.memory_space<vmem>>, vector<32x384xbf16>
    %cst_130 = arith.constant dense<0.000000e+00> : vector<2x384xf32>
    %420 = tpu.matmul %418, %419, %cst_130 {dimension_numbers = #tpu.dot_dimension_numbers<[1], [0], [0], [1], [0, 0, 1, 1], [], []>} : vector<2x32xbf16>, vector<32x384xbf16>, vector<2x384xf32> -> vector<2x384xf32>
    %c0_i32_131 = arith.constant 0 : i32
    %421 = arith.cmpi eq, %379, %c0_i32_131 : i32
    %422 = arith.extui %421 : i1 to i32
    %423 = arith.sitofp %422 : i32 to f32
    %424 = vector.extract_strided_slice %417 {offsets = [0, 0], sizes = [1, 96], strides = [1, 1]} : vector<1x384xf32> to vector<1x96xf32>
    %425 = vector.broadcast %423 : f32 to vector<1x96xf32>
    %426 = arith.mulf %425, %424 : vector<1x96xf32>
    %cst_132 = arith.constant 1.000000e+00 : f32
    %427 = arith.subf %cst_132, %423 : f32
    %428 = vector.extract_strided_slice %417 {offsets = [0, 192], sizes = [1, 96], strides = [1, 1]} : vector<1x384xf32> to vector<1x96xf32>
    %429 = vector.broadcast %427 : f32 to vector<1x96xf32>
    %430 = arith.mulf %429, %428 : vector<1x96xf32>
    %431 = arith.addf %426, %430 : vector<1x96xf32>
    %432 = vector.extract_strided_slice %420 {offsets = [0, 0], sizes = [1, 96], strides = [1, 1]} : vector<2x384xf32> to vector<1x96xf32>
    %433 = vector.broadcast %423 : f32 to vector<1x96xf32>
    %434 = arith.mulf %433, %432 : vector<1x96xf32>
    %cst_133 = arith.constant 1.000000e+00 : f32
    %435 = arith.subf %cst_133, %423 : f32
    %436 = vector.extract_strided_slice %420 {offsets = [0, 192], sizes = [1, 96], strides = [1, 1]} : vector<2x384xf32> to vector<1x96xf32>
    %437 = vector.broadcast %435 : f32 to vector<1x96xf32>
    %438 = arith.mulf %437, %436 : vector<1x96xf32>
    %439 = arith.addf %434, %438 : vector<1x96xf32>
    %c0_134 = arith.constant 0 : index
    %c0_135 = arith.constant 0 : index
    %440 = vector.load %arg13[%c0_134, %c0_135] : memref<4x32xf32, #tpu.memory_space<vmem>>, vector<1x32xf32>
    %441 = vector.broadcast %423 : f32 to vector<1x32xf32>
    %442 = arith.mulf %441, %440 : vector<1x32xf32>
    %cst_136 = arith.constant 1.000000e+00 : f32
    %443 = arith.subf %cst_136, %423 : f32
    %c2_137 = arith.constant 2 : index
    %c0_138 = arith.constant 0 : index
    %444 = vector.load %arg13[%c2_137, %c0_138] : memref<4x32xf32, #tpu.memory_space<vmem>>, vector<1x32xf32>
    %445 = vector.broadcast %443 : f32 to vector<1x32xf32>
    %446 = arith.mulf %445, %444 : vector<1x32xf32>
    %447 = arith.addf %442, %446 : vector<1x32xf32>
    %c1_i32_139 = arith.constant 1 : i32
    %448 = arith.cmpi eq, %379, %c1_i32_139 : i32
    %449 = arith.extui %448 : i1 to i32
    %450 = arith.sitofp %449 : i32 to f32
    %451 = vector.extract_strided_slice %417 {offsets = [0, 96], sizes = [1, 96], strides = [1, 1]} : vector<1x384xf32> to vector<1x96xf32>
    %452 = vector.broadcast %450 : f32 to vector<1x96xf32>
    %453 = arith.mulf %452, %451 : vector<1x96xf32>
    %cst_140 = arith.constant 1.000000e+00 : f32
    %454 = arith.subf %cst_140, %450 : f32
    %455 = vector.extract_strided_slice %417 {offsets = [0, 288], sizes = [1, 96], strides = [1, 1]} : vector<1x384xf32> to vector<1x96xf32>
    %456 = vector.broadcast %454 : f32 to vector<1x96xf32>
    %457 = arith.mulf %456, %455 : vector<1x96xf32>
    %458 = arith.addf %453, %457 : vector<1x96xf32>
    %459 = vector.extract_strided_slice %420 {offsets = [1, 96], sizes = [1, 96], strides = [1, 1]} : vector<2x384xf32> to vector<1x96xf32>
    %460 = vector.broadcast %450 : f32 to vector<1x96xf32>
    %461 = arith.mulf %460, %459 : vector<1x96xf32>
    %cst_141 = arith.constant 1.000000e+00 : f32
    %462 = arith.subf %cst_141, %450 : f32
    %463 = vector.extract_strided_slice %420 {offsets = [1, 288], sizes = [1, 96], strides = [1, 1]} : vector<2x384xf32> to vector<1x96xf32>
    %464 = vector.broadcast %462 : f32 to vector<1x96xf32>
    %465 = arith.mulf %464, %463 : vector<1x96xf32>
    %466 = arith.addf %461, %465 : vector<1x96xf32>
    %c1_142 = arith.constant 1 : index
    %c0_143 = arith.constant 0 : index
    %467 = vector.load %arg13[%c1_142, %c0_143] : memref<4x32xf32, #tpu.memory_space<vmem>>, vector<1x32xf32>
    %468 = vector.broadcast %450 : f32 to vector<1x32xf32>
    %469 = arith.mulf %468, %467 : vector<1x32xf32>
    %cst_144 = arith.constant 1.000000e+00 : f32
    %470 = arith.subf %cst_144, %450 : f32
    %c3_145 = arith.constant 3 : index
    %c0_146 = arith.constant 0 : index
    %471 = vector.load %arg13[%c3_145, %c0_146] : memref<4x32xf32, #tpu.memory_space<vmem>>, vector<1x32xf32>
    %472 = vector.broadcast %470 : f32 to vector<1x32xf32>
    %473 = arith.mulf %472, %471 : vector<1x32xf32>
    %474 = arith.addf %469, %473 : vector<1x32xf32>
    %475 = tpu.concatenate %431, %458 in 0 : vector<1x96xf32>, vector<1x96xf32> -> vector<2x96xf32>
    %476 = tpu.concatenate %439, %466 in 0 : vector<1x96xf32>, vector<1x96xf32> -> vector<2x96xf32>
    %477 = tpu.concatenate %447, %474 in 0 : vector<1x32xf32>, vector<1x32xf32> -> vector<2x32xf32>
    %478 = vector.extract_strided_slice %475 {offsets = [0, 0], sizes = [2, 32], strides = [1, 1]} : vector<2x96xf32> to vector<2x32xf32>
    %479 = vector.extract_strided_slice %476 {offsets = [0, 0], sizes = [2, 32], strides = [1, 1]} : vector<2x96xf32> to vector<2x32xf32>
    %480 = arith.addf %478, %479 : vector<2x32xf32>
    %481 = arith.negf %480 : vector<2x32xf32>
    %482 = math.exp %481 : vector<2x32xf32>
    %cst_147 = arith.constant 1.000000e+00 : f32
    %483 = vector.broadcast %cst_147 : f32 to vector<2x32xf32>
    %484 = arith.addf %483, %482 : vector<2x32xf32>
    %485 = arith.divf %483, %484 : vector<2x32xf32>
    %486 = vector.extract_strided_slice %475 {offsets = [0, 32], sizes = [2, 32], strides = [1, 1]} : vector<2x96xf32> to vector<2x32xf32>
    %487 = vector.extract_strided_slice %476 {offsets = [0, 32], sizes = [2, 32], strides = [1, 1]} : vector<2x96xf32> to vector<2x32xf32>
    %488 = arith.addf %486, %487 : vector<2x32xf32>
    %489 = arith.negf %488 : vector<2x32xf32>
    %490 = math.exp %489 : vector<2x32xf32>
    %cst_148 = arith.constant 1.000000e+00 : f32
    %491 = vector.broadcast %cst_148 : f32 to vector<2x32xf32>
    %492 = arith.addf %491, %490 : vector<2x32xf32>
    %493 = arith.divf %491, %492 : vector<2x32xf32>
    %494 = vector.extract_strided_slice %475 {offsets = [0, 64], sizes = [2, 32], strides = [1, 1]} : vector<2x96xf32> to vector<2x32xf32>
    %495 = vector.extract_strided_slice %476 {offsets = [0, 64], sizes = [2, 32], strides = [1, 1]} : vector<2x96xf32> to vector<2x32xf32>
    %496 = arith.addf %495, %477 : vector<2x32xf32>
    %497 = arith.mulf %485, %496 : vector<2x32xf32>
    %498 = arith.addf %494, %497 : vector<2x32xf32>
    %499 = math.tanh %498 : vector<2x32xf32>
    %cst_149 = arith.constant 1.000000e+00 : f32
    %500 = vector.broadcast %cst_149 : f32 to vector<2x32xf32>
    %501 = arith.subf %500, %493 : vector<2x32xf32>
    %502 = arith.mulf %501, %499 : vector<2x32xf32>
    %503 = arith.mulf %493, %320 : vector<2x32xf32>
    %504 = arith.addf %502, %503 : vector<2x32xf32>
    %505 = arith.truncf %504 : vector<2x32xf32> to vector<2x32xbf16>
    %c0_150 = arith.constant 0 : index
    %c0_151 = arith.constant 0 : index
    %506 = vector.load %arg9[%c0_150, %c0_151] : memref<32x192xbf16, #tpu.memory_space<vmem>>, vector<32x192xbf16>
    %cst_152 = arith.constant dense<0.000000e+00> : vector<2x192xf32>
    %507 = tpu.matmul %505, %506, %cst_152 {dimension_numbers = #tpu.dot_dimension_numbers<[1], [0], [0], [1], [0, 0, 1, 1], [], []>} : vector<2x32xbf16>, vector<32x192xbf16>, vector<2x192xf32> -> vector<2x192xf32>
    %508 = arith.truncf %362 : vector<2x32xf32> to vector<2x32xbf16>
    %c0_153 = arith.constant 0 : index
    %c0_154 = arith.constant 0 : index
    %509 = vector.load %arg10[%c0_153, %c0_154] : memref<32x192xbf16, #tpu.memory_space<vmem>>, vector<32x192xbf16>
    %cst_155 = arith.constant dense<0.000000e+00> : vector<2x192xf32>
    %510 = tpu.matmul %508, %509, %cst_155 {dimension_numbers = #tpu.dot_dimension_numbers<[1], [0], [0], [1], [0, 0, 1, 1], [], []>} : vector<2x32xbf16>, vector<32x192xbf16>, vector<2x192xf32> -> vector<2x192xf32>
    %511 = vector.extract_strided_slice %507 {offsets = [0, 0], sizes = [1, 96], strides = [1, 1]} : vector<2x192xf32> to vector<1x96xf32>
    %512 = vector.extract_strided_slice %507 {offsets = [1, 96], sizes = [1, 96], strides = [1, 1]} : vector<2x192xf32> to vector<1x96xf32>
    %513 = tpu.concatenate %511, %512 in 0 : vector<1x96xf32>, vector<1x96xf32> -> vector<2x96xf32>
    %c0_156 = arith.constant 0 : index
    %c0_157 = arith.constant 0 : index
    %514 = vector.load %arg14[%c0_156, %c0_157] : memref<2x96xf32, #tpu.memory_space<vmem>>, vector<2x96xf32>
    %515 = arith.addf %513, %514 : vector<2x96xf32>
    %516 = vector.extract_strided_slice %510 {offsets = [0, 0], sizes = [1, 96], strides = [1, 1]} : vector<2x192xf32> to vector<1x96xf32>
    %517 = vector.extract_strided_slice %510 {offsets = [1, 96], sizes = [1, 96], strides = [1, 1]} : vector<2x192xf32> to vector<1x96xf32>
    %518 = tpu.concatenate %516, %517 in 0 : vector<1x96xf32>, vector<1x96xf32> -> vector<2x96xf32>
    %519 = vector.extract_strided_slice %515 {offsets = [0, 0], sizes = [2, 32], strides = [1, 1]} : vector<2x96xf32> to vector<2x32xf32>
    %520 = vector.extract_strided_slice %518 {offsets = [0, 0], sizes = [2, 32], strides = [1, 1]} : vector<2x96xf32> to vector<2x32xf32>
    %521 = arith.addf %519, %520 : vector<2x32xf32>
    %522 = arith.negf %521 : vector<2x32xf32>
    %523 = math.exp %522 : vector<2x32xf32>
    %cst_158 = arith.constant 1.000000e+00 : f32
    %524 = vector.broadcast %cst_158 : f32 to vector<2x32xf32>
    %525 = arith.addf %524, %523 : vector<2x32xf32>
    %526 = arith.divf %524, %525 : vector<2x32xf32>
    %527 = vector.extract_strided_slice %515 {offsets = [0, 32], sizes = [2, 32], strides = [1, 1]} : vector<2x96xf32> to vector<2x32xf32>
    %528 = vector.extract_strided_slice %518 {offsets = [0, 32], sizes = [2, 32], strides = [1, 1]} : vector<2x96xf32> to vector<2x32xf32>
    %529 = arith.addf %527, %528 : vector<2x32xf32>
    %530 = arith.negf %529 : vector<2x32xf32>
    %531 = math.exp %530 : vector<2x32xf32>
    %cst_159 = arith.constant 1.000000e+00 : f32
    %532 = vector.broadcast %cst_159 : f32 to vector<2x32xf32>
    %533 = arith.addf %532, %531 : vector<2x32xf32>
    %534 = arith.divf %532, %533 : vector<2x32xf32>
    %535 = vector.extract_strided_slice %515 {offsets = [0, 64], sizes = [2, 32], strides = [1, 1]} : vector<2x96xf32> to vector<2x32xf32>
    %536 = vector.extract_strided_slice %518 {offsets = [0, 64], sizes = [2, 32], strides = [1, 1]} : vector<2x96xf32> to vector<2x32xf32>
    %c0_160 = arith.constant 0 : index
    %c0_161 = arith.constant 0 : index
    %537 = vector.load %arg15[%c0_160, %c0_161] : memref<2x32xf32, #tpu.memory_space<vmem>>, vector<2x32xf32>
    %538 = arith.addf %536, %537 : vector<2x32xf32>
    %539 = arith.mulf %526, %538 : vector<2x32xf32>
    %540 = arith.addf %535, %539 : vector<2x32xf32>
    %541 = math.tanh %540 : vector<2x32xf32>
    %cst_162 = arith.constant 1.000000e+00 : f32
    %542 = vector.broadcast %cst_162 : f32 to vector<2x32xf32>
    %543 = arith.subf %542, %534 : vector<2x32xf32>
    %544 = arith.mulf %543, %541 : vector<2x32xf32>
    %545 = arith.mulf %534, %362 : vector<2x32xf32>
    %546 = arith.addf %544, %545 : vector<2x32xf32>
    %cst_163 = arith.constant 0.000000e+00 : f32
    %547 = vector.broadcast %cst_163 : f32 to vector<1x32xf32>
    %c0_i32_164 = arith.constant 0 : i32
    %548 = arith.cmpi eq, %379, %c0_i32_164 : i32
    %549 = arith.extui %548 : i1 to i32
    %550 = arith.sitofp %549 : i32 to f32
    %551 = vector.extract_strided_slice %546 {offsets = [0, 0], sizes = [1, 32], strides = [1, 1]} : vector<2x32xf32> to vector<1x32xf32>
    %552 = vector.broadcast %550 : f32 to vector<1x32xf32>
    %553 = arith.mulf %552, %551 : vector<1x32xf32>
    %554 = arith.addf %547, %553 : vector<1x32xf32>
    %c1_i32_165 = arith.constant 1 : i32
    %555 = arith.cmpi eq, %379, %c1_i32_165 : i32
    %556 = arith.extui %555 : i1 to i32
    %557 = arith.sitofp %556 : i32 to f32
    %558 = vector.extract_strided_slice %546 {offsets = [1, 0], sizes = [1, 32], strides = [1, 1]} : vector<2x32xf32> to vector<1x32xf32>
    %559 = vector.broadcast %557 : f32 to vector<1x32xf32>
    %560 = arith.mulf %559, %558 : vector<1x32xf32>
    %561 = arith.addf %554, %560 : vector<1x32xf32>
    %c2_166 = arith.constant 2 : index
    %c0_167 = arith.constant 0 : index
    %562 = vector.load %arg16[%c2_166, %c0_167] : memref<8x32xf32, #tpu.memory_space<vmem>>, vector<1x32xf32>
    tpu.vector_store %arg16[%c2_166, %c0_167], %561 {strides = array<i32>} : memref<8x32xf32, #tpu.memory_space<vmem>>, vector<1x32xf32>,
    %c3_168 = arith.constant 3 : index
    %563 = memref.load %arg0[%c3_168] : memref<8xi32, #tpu.memory_space<smem>>
    %564 = arith.truncf %411 : vector<1x32xf32> to vector<1x32xbf16>
    %c0_169 = arith.constant 0 : index
    %c0_170 = arith.constant 0 : index
    %565 = vector.load %arg6[%c0_169, %c0_170] : memref<32x96xbf16, #tpu.memory_space<vmem>>, vector<32x96xbf16>
    %cst_171 = arith.constant dense<0.000000e+00> : vector<1x96xf32>
    %566 = tpu.matmul %564, %565, %cst_171 {dimension_numbers = #tpu.dot_dimension_numbers<[1], [0], [0], [1], [0, 0, 1, 1], [], []>} : vector<1x32xbf16>, vector<32x96xbf16>, vector<1x96xf32> -> vector<1x96xf32>
    %567 = vector.extract_strided_slice %6 {offsets = [3, 0], sizes = [1, 96], strides = [1, 1]} : vector<8x96xf32> to vector<1x96xf32>
    %568 = vector.extract_strided_slice %567 {offsets = [0, 0], sizes = [1, 32], strides = [1, 1]} : vector<1x96xf32> to vector<1x32xf32>
    %569 = vector.extract_strided_slice %566 {offsets = [0, 0], sizes = [1, 32], strides = [1, 1]} : vector<1x96xf32> to vector<1x32xf32>
    %570 = arith.addf %568, %569 : vector<1x32xf32>
    %571 = arith.negf %570 : vector<1x32xf32>
    %572 = math.exp %571 : vector<1x32xf32>
    %cst_172 = arith.constant 1.000000e+00 : f32
    %573 = vector.broadcast %cst_172 : f32 to vector<1x32xf32>
    %574 = arith.addf %573, %572 : vector<1x32xf32>
    %575 = arith.divf %573, %574 : vector<1x32xf32>
    %576 = vector.extract_strided_slice %567 {offsets = [0, 32], sizes = [1, 32], strides = [1, 1]} : vector<1x96xf32> to vector<1x32xf32>
    %577 = vector.extract_strided_slice %566 {offsets = [0, 32], sizes = [1, 32], strides = [1, 1]} : vector<1x96xf32> to vector<1x32xf32>
    %578 = arith.addf %576, %577 : vector<1x32xf32>
    %579 = arith.negf %578 : vector<1x32xf32>
    %580 = math.exp %579 : vector<1x32xf32>
    %cst_173 = arith.constant 1.000000e+00 : f32
    %581 = vector.broadcast %cst_173 : f32 to vector<1x32xf32>
    %582 = arith.addf %581, %580 : vector<1x32xf32>
    %583 = arith.divf %581, %582 : vector<1x32xf32>
    %584 = vector.extract_strided_slice %567 {offsets = [0, 64], sizes = [1, 32], strides = [1, 1]} : vector<1x96xf32> to vector<1x32xf32>
    %585 = vector.extract_strided_slice %566 {offsets = [0, 64], sizes = [1, 32], strides = [1, 1]} : vector<1x96xf32> to vector<1x32xf32>
    %c0_174 = arith.constant 0 : index
    %c0_175 = arith.constant 0 : index
    %586 = vector.load %arg12[%c0_174, %c0_175] : memref<1x32xf32, #tpu.memory_space<vmem>>, vector<1x32xf32>
    %587 = arith.addf %585, %586 : vector<1x32xf32>
    %588 = arith.mulf %575, %587 : vector<1x32xf32>
    %589 = arith.addf %584, %588 : vector<1x32xf32>
    %590 = math.tanh %589 : vector<1x32xf32>
    %cst_176 = arith.constant 1.000000e+00 : f32
    %591 = vector.broadcast %cst_176 : f32 to vector<1x32xf32>
    %592 = arith.subf %591, %583 : vector<1x32xf32>
    %593 = arith.mulf %592, %590 : vector<1x32xf32>
    %594 = arith.mulf %583, %411 : vector<1x32xf32>
    %595 = arith.addf %593, %594 : vector<1x32xf32>
    %c3_177 = arith.constant 3 : index
    %c0_178 = arith.constant 0 : index
    %596 = vector.load %arg17[%c3_177, %c0_178] : memref<8x32xf32, #tpu.memory_space<vmem>>, vector<1x32xf32>
    tpu.vector_store %arg17[%c3_177, %c0_178], %595 {strides = array<i32>} : memref<8x32xf32, #tpu.memory_space<vmem>>, vector<1x32xf32>,
    %597 = vector.extract_strided_slice %7 {offsets = [3, 0], sizes = [1, 384], strides = [1, 1]} : vector<8x384xf32> to vector<1x384xf32>
    %598 = arith.truncf %595 : vector<1x32xf32> to vector<1x32xbf16>
    %c0_179 = arith.constant 0 : index
    %c0_180 = arith.constant 0 : index
    %599 = vector.load %arg7[%c0_179, %c0_180] : memref<32x384xbf16, #tpu.memory_space<vmem>>, vector<32x384xbf16>
    %cst_181 = arith.constant dense<0.000000e+00> : vector<1x384xf32>
    %600 = tpu.matmul %598, %599, %cst_181 {dimension_numbers = #tpu.dot_dimension_numbers<[1], [0], [0], [1], [0, 0, 1, 1], [], []>} : vector<1x32xbf16>, vector<32x384xbf16>, vector<1x384xf32> -> vector<1x384xf32>
    %601 = arith.addf %597, %600 : vector<1x384xf32>
    %602 = arith.truncf %504 : vector<2x32xf32> to vector<2x32xbf16>
    %c0_182 = arith.constant 0 : index
    %c0_183 = arith.constant 0 : index
    %603 = vector.load %arg8[%c0_182, %c0_183] : memref<32x384xbf16, #tpu.memory_space<vmem>>, vector<32x384xbf16>
    %cst_184 = arith.constant dense<0.000000e+00> : vector<2x384xf32>
    %604 = tpu.matmul %602, %603, %cst_184 {dimension_numbers = #tpu.dot_dimension_numbers<[1], [0], [0], [1], [0, 0, 1, 1], [], []>} : vector<2x32xbf16>, vector<32x384xbf16>, vector<2x384xf32> -> vector<2x384xf32>
    %c0_i32_185 = arith.constant 0 : i32
    %605 = arith.cmpi eq, %563, %c0_i32_185 : i32
    %606 = arith.extui %605 : i1 to i32
    %607 = arith.sitofp %606 : i32 to f32
    %608 = vector.extract_strided_slice %601 {offsets = [0, 0], sizes = [1, 96], strides = [1, 1]} : vector<1x384xf32> to vector<1x96xf32>
    %609 = vector.broadcast %607 : f32 to vector<1x96xf32>
    %610 = arith.mulf %609, %608 : vector<1x96xf32>
    %cst_186 = arith.constant 1.000000e+00 : f32
    %611 = arith.subf %cst_186, %607 : f32
    %612 = vector.extract_strided_slice %601 {offsets = [0, 192], sizes = [1, 96], strides = [1, 1]} : vector<1x384xf32> to vector<1x96xf32>
    %613 = vector.broadcast %611 : f32 to vector<1x96xf32>
    %614 = arith.mulf %613, %612 : vector<1x96xf32>
    %615 = arith.addf %610, %614 : vector<1x96xf32>
    %616 = vector.extract_strided_slice %604 {offsets = [0, 0], sizes = [1, 96], strides = [1, 1]} : vector<2x384xf32> to vector<1x96xf32>
    %617 = vector.broadcast %607 : f32 to vector<1x96xf32>
    %618 = arith.mulf %617, %616 : vector<1x96xf32>
    %cst_187 = arith.constant 1.000000e+00 : f32
    %619 = arith.subf %cst_187, %607 : f32
    %620 = vector.extract_strided_slice %604 {offsets = [0, 192], sizes = [1, 96], strides = [1, 1]} : vector<2x384xf32> to vector<1x96xf32>
    %621 = vector.broadcast %619 : f32 to vector<1x96xf32>
    %622 = arith.mulf %621, %620 : vector<1x96xf32>
    %623 = arith.addf %618, %622 : vector<1x96xf32>
    %c0_188 = arith.constant 0 : index
    %c0_189 = arith.constant 0 : index
    %624 = vector.load %arg13[%c0_188, %c0_189] : memref<4x32xf32, #tpu.memory_space<vmem>>, vector<1x32xf32>
    %625 = vector.broadcast %607 : f32 to vector<1x32xf32>
    %626 = arith.mulf %625, %624 : vector<1x32xf32>
    %cst_190 = arith.constant 1.000000e+00 : f32
    %627 = arith.subf %cst_190, %607 : f32
    %c2_191 = arith.constant 2 : index
    %c0_192 = arith.constant 0 : index
    %628 = vector.load %arg13[%c2_191, %c0_192] : memref<4x32xf32, #tpu.memory_space<vmem>>, vector<1x32xf32>
    %629 = vector.broadcast %627 : f32 to vector<1x32xf32>
    %630 = arith.mulf %629, %628 : vector<1x32xf32>
    %631 = arith.addf %626, %630 : vector<1x32xf32>
    %c1_i32_193 = arith.constant 1 : i32
    %632 = arith.cmpi eq, %563, %c1_i32_193 : i32
    %633 = arith.extui %632 : i1 to i32
    %634 = arith.sitofp %633 : i32 to f32
    %635 = vector.extract_strided_slice %601 {offsets = [0, 96], sizes = [1, 96], strides = [1, 1]} : vector<1x384xf32> to vector<1x96xf32>
    %636 = vector.broadcast %634 : f32 to vector<1x96xf32>
    %637 = arith.mulf %636, %635 : vector<1x96xf32>
    %cst_194 = arith.constant 1.000000e+00 : f32
    %638 = arith.subf %cst_194, %634 : f32
    %639 = vector.extract_strided_slice %601 {offsets = [0, 288], sizes = [1, 96], strides = [1, 1]} : vector<1x384xf32> to vector<1x96xf32>
    %640 = vector.broadcast %638 : f32 to vector<1x96xf32>
    %641 = arith.mulf %640, %639 : vector<1x96xf32>
    %642 = arith.addf %637, %641 : vector<1x96xf32>
    %643 = vector.extract_strided_slice %604 {offsets = [1, 96], sizes = [1, 96], strides = [1, 1]} : vector<2x384xf32> to vector<1x96xf32>
    %644 = vector.broadcast %634 : f32 to vector<1x96xf32>
    %645 = arith.mulf %644, %643 : vector<1x96xf32>
    %cst_195 = arith.constant 1.000000e+00 : f32
    %646 = arith.subf %cst_195, %634 : f32
    %647 = vector.extract_strided_slice %604 {offsets = [1, 288], sizes = [1, 96], strides = [1, 1]} : vector<2x384xf32> to vector<1x96xf32>
    %648 = vector.broadcast %646 : f32 to vector<1x96xf32>
    %649 = arith.mulf %648, %647 : vector<1x96xf32>
    %650 = arith.addf %645, %649 : vector<1x96xf32>
    %c1_196 = arith.constant 1 : index
    %c0_197 = arith.constant 0 : index
    %651 = vector.load %arg13[%c1_196, %c0_197] : memref<4x32xf32, #tpu.memory_space<vmem>>, vector<1x32xf32>
    %652 = vector.broadcast %634 : f32 to vector<1x32xf32>
    %653 = arith.mulf %652, %651 : vector<1x32xf32>
    %cst_198 = arith.constant 1.000000e+00 : f32
    %654 = arith.subf %cst_198, %634 : f32
    %c3_199 = arith.constant 3 : index
    %c0_200 = arith.constant 0 : index
    %655 = vector.load %arg13[%c3_199, %c0_200] : memref<4x32xf32, #tpu.memory_space<vmem>>, vector<1x32xf32>
    %656 = vector.broadcast %654 : f32 to vector<1x32xf32>
    %657 = arith.mulf %656, %655 : vector<1x32xf32>
    %658 = arith.addf %653, %657 : vector<1x32xf32>
    %659 = tpu.concatenate %615, %642 in 0 : vector<1x96xf32>, vector<1x96xf32> -> vector<2x96xf32>
    %660 = tpu.concatenate %623, %650 in 0 : vector<1x96xf32>, vector<1x96xf32> -> vector<2x96xf32>
    %661 = tpu.concatenate %631, %658 in 0 : vector<1x32xf32>, vector<1x32xf32> -> vector<2x32xf32>
    %662 = vector.extract_strided_slice %659 {offsets = [0, 0], sizes = [2, 32], strides = [1, 1]} : vector<2x96xf32> to vector<2x32xf32>
    %663 = vector.extract_strided_slice %660 {offsets = [0, 0], sizes = [2, 32], strides = [1, 1]} : vector<2x96xf32> to vector<2x32xf32>
    %664 = arith.addf %662, %663 : vector<2x32xf32>
    %665 = arith.negf %664 : vector<2x32xf32>
    %666 = math.exp %665 : vector<2x32xf32>
    %cst_201 = arith.constant 1.000000e+00 : f32
    %667 = vector.broadcast %cst_201 : f32 to vector<2x32xf32>
    %668 = arith.addf %667, %666 : vector<2x32xf32>
    %669 = arith.divf %667, %668 : vector<2x32xf32>
    %670 = vector.extract_strided_slice %659 {offsets = [0, 32], sizes = [2, 32], strides = [1, 1]} : vector<2x96xf32> to vector<2x32xf32>
    %671 = vector.extract_strided_slice %660 {offsets = [0, 32], sizes = [2, 32], strides = [1, 1]} : vector<2x96xf32> to vector<2x32xf32>
    %672 = arith.addf %670, %671 : vector<2x32xf32>
    %673 = arith.negf %672 : vector<2x32xf32>
    %674 = math.exp %673 : vector<2x32xf32>
    %cst_202 = arith.constant 1.000000e+00 : f32
    %675 = vector.broadcast %cst_202 : f32 to vector<2x32xf32>
    %676 = arith.addf %675, %674 : vector<2x32xf32>
    %677 = arith.divf %675, %676 : vector<2x32xf32>
    %678 = vector.extract_strided_slice %659 {offsets = [0, 64], sizes = [2, 32], strides = [1, 1]} : vector<2x96xf32> to vector<2x32xf32>
    %679 = vector.extract_strided_slice %660 {offsets = [0, 64], sizes = [2, 32], strides = [1, 1]} : vector<2x96xf32> to vector<2x32xf32>
    %680 = arith.addf %679, %661 : vector<2x32xf32>
    %681 = arith.mulf %669, %680 : vector<2x32xf32>
    %682 = arith.addf %678, %681 : vector<2x32xf32>
    %683 = math.tanh %682 : vector<2x32xf32>
    %cst_203 = arith.constant 1.000000e+00 : f32
    %684 = vector.broadcast %cst_203 : f32 to vector<2x32xf32>
    %685 = arith.subf %684, %677 : vector<2x32xf32>
    %686 = arith.mulf %685, %683 : vector<2x32xf32>
    %687 = arith.mulf %677, %504 : vector<2x32xf32>
    %688 = arith.addf %686, %687 : vector<2x32xf32>
    %689 = arith.truncf %688 : vector<2x32xf32> to vector<2x32xbf16>
    %c0_204 = arith.constant 0 : index
    %c0_205 = arith.constant 0 : index
    %690 = vector.load %arg9[%c0_204, %c0_205] : memref<32x192xbf16, #tpu.memory_space<vmem>>, vector<32x192xbf16>
    %cst_206 = arith.constant dense<0.000000e+00> : vector<2x192xf32>
    %691 = tpu.matmul %689, %690, %cst_206 {dimension_numbers = #tpu.dot_dimension_numbers<[1], [0], [0], [1], [0, 0, 1, 1], [], []>} : vector<2x32xbf16>, vector<32x192xbf16>, vector<2x192xf32> -> vector<2x192xf32>
    %692 = arith.truncf %546 : vector<2x32xf32> to vector<2x32xbf16>
    %c0_207 = arith.constant 0 : index
    %c0_208 = arith.constant 0 : index
    %693 = vector.load %arg10[%c0_207, %c0_208] : memref<32x192xbf16, #tpu.memory_space<vmem>>, vector<32x192xbf16>
    %cst_209 = arith.constant dense<0.000000e+00> : vector<2x192xf32>
    %694 = tpu.matmul %692, %693, %cst_209 {dimension_numbers = #tpu.dot_dimension_numbers<[1], [0], [0], [1], [0, 0, 1, 1], [], []>} : vector<2x32xbf16>, vector<32x192xbf16>, vector<2x192xf32> -> vector<2x192xf32>
    %695 = vector.extract_strided_slice %691 {offsets = [0, 0], sizes = [1, 96], strides = [1, 1]} : vector<2x192xf32> to vector<1x96xf32>
    %696 = vector.extract_strided_slice %691 {offsets = [1, 96], sizes = [1, 96], strides = [1, 1]} : vector<2x192xf32> to vector<1x96xf32>
    %697 = tpu.concatenate %695, %696 in 0 : vector<1x96xf32>, vector<1x96xf32> -> vector<2x96xf32>
    %c0_210 = arith.constant 0 : index
    %c0_211 = arith.constant 0 : index
    %698 = vector.load %arg14[%c0_210, %c0_211] : memref<2x96xf32, #tpu.memory_space<vmem>>, vector<2x96xf32>
    %699 = arith.addf %697, %698 : vector<2x96xf32>
    %700 = vector.extract_strided_slice %694 {offsets = [0, 0], sizes = [1, 96], strides = [1, 1]} : vector<2x192xf32> to vector<1x96xf32>
    %701 = vector.extract_strided_slice %694 {offsets = [1, 96], sizes = [1, 96], strides = [1, 1]} : vector<2x192xf32> to vector<1x96xf32>
    %702 = tpu.concatenate %700, %701 in 0 : vector<1x96xf32>, vector<1x96xf32> -> vector<2x96xf32>
    %703 = vector.extract_strided_slice %699 {offsets = [0, 0], sizes = [2, 32], strides = [1, 1]} : vector<2x96xf32> to vector<2x32xf32>
    %704 = vector.extract_strided_slice %702 {offsets = [0, 0], sizes = [2, 32], strides = [1, 1]} : vector<2x96xf32> to vector<2x32xf32>
    %705 = arith.addf %703, %704 : vector<2x32xf32>
    %706 = arith.negf %705 : vector<2x32xf32>
    %707 = math.exp %706 : vector<2x32xf32>
    %cst_212 = arith.constant 1.000000e+00 : f32
    %708 = vector.broadcast %cst_212 : f32 to vector<2x32xf32>
    %709 = arith.addf %708, %707 : vector<2x32xf32>
    %710 = arith.divf %708, %709 : vector<2x32xf32>
    %711 = vector.extract_strided_slice %699 {offsets = [0, 32], sizes = [2, 32], strides = [1, 1]} : vector<2x96xf32> to vector<2x32xf32>
    %712 = vector.extract_strided_slice %702 {offsets = [0, 32], sizes = [2, 32], strides = [1, 1]} : vector<2x96xf32> to vector<2x32xf32>
    %713 = arith.addf %711, %712 : vector<2x32xf32>
    %714 = arith.negf %713 : vector<2x32xf32>
    %715 = math.exp %714 : vector<2x32xf32>
    %cst_213 = arith.constant 1.000000e+00 : f32
    %716 = vector.broadcast %cst_213 : f32 to vector<2x32xf32>
    %717 = arith.addf %716, %715 : vector<2x32xf32>
    %718 = arith.divf %716, %717 : vector<2x32xf32>
    %719 = vector.extract_strided_slice %699 {offsets = [0, 64], sizes = [2, 32], strides = [1, 1]} : vector<2x96xf32> to vector<2x32xf32>
    %720 = vector.extract_strided_slice %702 {offsets = [0, 64], sizes = [2, 32], strides = [1, 1]} : vector<2x96xf32> to vector<2x32xf32>
    %c0_214 = arith.constant 0 : index
    %c0_215 = arith.constant 0 : index
    %721 = vector.load %arg15[%c0_214, %c0_215] : memref<2x32xf32, #tpu.memory_space<vmem>>, vector<2x32xf32>
    %722 = arith.addf %720, %721 : vector<2x32xf32>
    %723 = arith.mulf %710, %722 : vector<2x32xf32>
    %724 = arith.addf %719, %723 : vector<2x32xf32>
    %725 = math.tanh %724 : vector<2x32xf32>
    %cst_216 = arith.constant 1.000000e+00 : f32
    %726 = vector.broadcast %cst_216 : f32 to vector<2x32xf32>
    %727 = arith.subf %726, %718 : vector<2x32xf32>
    %728 = arith.mulf %727, %725 : vector<2x32xf32>
    %729 = arith.mulf %718, %546 : vector<2x32xf32>
    %730 = arith.addf %728, %729 : vector<2x32xf32>
    %cst_217 = arith.constant 0.000000e+00 : f32
    %731 = vector.broadcast %cst_217 : f32 to vector<1x32xf32>
    %c0_i32_218 = arith.constant 0 : i32
    %732 = arith.cmpi eq, %563, %c0_i32_218 : i32
    %733 = arith.extui %732 : i1 to i32
    %734 = arith.sitofp %733 : i32 to f32
    %735 = vector.extract_strided_slice %730 {offsets = [0, 0], sizes = [1, 32], strides = [1, 1]} : vector<2x32xf32> to vector<1x32xf32>
    %736 = vector.broadcast %734 : f32 to vector<1x32xf32>
    %737 = arith.mulf %736, %735 : vector<1x32xf32>
    %738 = arith.addf %731, %737 : vector<1x32xf32>
    %c1_i32_219 = arith.constant 1 : i32
    %739 = arith.cmpi eq, %563, %c1_i32_219 : i32
    %740 = arith.extui %739 : i1 to i32
    %741 = arith.sitofp %740 : i32 to f32
    %742 = vector.extract_strided_slice %730 {offsets = [1, 0], sizes = [1, 32], strides = [1, 1]} : vector<2x32xf32> to vector<1x32xf32>
    %743 = vector.broadcast %741 : f32 to vector<1x32xf32>
    %744 = arith.mulf %743, %742 : vector<1x32xf32>
    %745 = arith.addf %738, %744 : vector<1x32xf32>
    %c3_220 = arith.constant 3 : index
    %c0_221 = arith.constant 0 : index
    %746 = vector.load %arg16[%c3_220, %c0_221] : memref<8x32xf32, #tpu.memory_space<vmem>>, vector<1x32xf32>
    tpu.vector_store %arg16[%c3_220, %c0_221], %745 {strides = array<i32>} : memref<8x32xf32, #tpu.memory_space<vmem>>, vector<1x32xf32>,
    %c4 = arith.constant 4 : index
    %747 = memref.load %arg0[%c4] : memref<8xi32, #tpu.memory_space<smem>>
    %748 = arith.truncf %595 : vector<1x32xf32> to vector<1x32xbf16>
    %c0_222 = arith.constant 0 : index
    %c0_223 = arith.constant 0 : index
    %749 = vector.load %arg6[%c0_222, %c0_223] : memref<32x96xbf16, #tpu.memory_space<vmem>>, vector<32x96xbf16>
    %cst_224 = arith.constant dense<0.000000e+00> : vector<1x96xf32>
    %750 = tpu.matmul %748, %749, %cst_224 {dimension_numbers = #tpu.dot_dimension_numbers<[1], [0], [0], [1], [0, 0, 1, 1], [], []>} : vector<1x32xbf16>, vector<32x96xbf16>, vector<1x96xf32> -> vector<1x96xf32>
    %751 = vector.extract_strided_slice %6 {offsets = [4, 0], sizes = [1, 96], strides = [1, 1]} : vector<8x96xf32> to vector<1x96xf32>
    %752 = vector.extract_strided_slice %751 {offsets = [0, 0], sizes = [1, 32], strides = [1, 1]} : vector<1x96xf32> to vector<1x32xf32>
    %753 = vector.extract_strided_slice %750 {offsets = [0, 0], sizes = [1, 32], strides = [1, 1]} : vector<1x96xf32> to vector<1x32xf32>
    %754 = arith.addf %752, %753 : vector<1x32xf32>
    %755 = arith.negf %754 : vector<1x32xf32>
    %756 = math.exp %755 : vector<1x32xf32>
    %cst_225 = arith.constant 1.000000e+00 : f32
    %757 = vector.broadcast %cst_225 : f32 to vector<1x32xf32>
    %758 = arith.addf %757, %756 : vector<1x32xf32>
    %759 = arith.divf %757, %758 : vector<1x32xf32>
    %760 = vector.extract_strided_slice %751 {offsets = [0, 32], sizes = [1, 32], strides = [1, 1]} : vector<1x96xf32> to vector<1x32xf32>
    %761 = vector.extract_strided_slice %750 {offsets = [0, 32], sizes = [1, 32], strides = [1, 1]} : vector<1x96xf32> to vector<1x32xf32>
    %762 = arith.addf %760, %761 : vector<1x32xf32>
    %763 = arith.negf %762 : vector<1x32xf32>
    %764 = math.exp %763 : vector<1x32xf32>
    %cst_226 = arith.constant 1.000000e+00 : f32
    %765 = vector.broadcast %cst_226 : f32 to vector<1x32xf32>
    %766 = arith.addf %765, %764 : vector<1x32xf32>
    %767 = arith.divf %765, %766 : vector<1x32xf32>
    %768 = vector.extract_strided_slice %751 {offsets = [0, 64], sizes = [1, 32], strides = [1, 1]} : vector<1x96xf32> to vector<1x32xf32>
    %769 = vector.extract_strided_slice %750 {offsets = [0, 64], sizes = [1, 32], strides = [1, 1]} : vector<1x96xf32> to vector<1x32xf32>
    %c0_227 = arith.constant 0 : index
    %c0_228 = arith.constant 0 : index
    %770 = vector.load %arg12[%c0_227, %c0_228] : memref<1x32xf32, #tpu.memory_space<vmem>>, vector<1x32xf32>
    %771 = arith.addf %769, %770 : vector<1x32xf32>
    %772 = arith.mulf %759, %771 : vector<1x32xf32>
    %773 = arith.addf %768, %772 : vector<1x32xf32>
    %774 = math.tanh %773 : vector<1x32xf32>
    %cst_229 = arith.constant 1.000000e+00 : f32
    %775 = vector.broadcast %cst_229 : f32 to vector<1x32xf32>
    %776 = arith.subf %775, %767 : vector<1x32xf32>
    %777 = arith.mulf %776, %774 : vector<1x32xf32>
    %778 = arith.mulf %767, %595 : vector<1x32xf32>
    %779 = arith.addf %777, %778 : vector<1x32xf32>
    %c4_230 = arith.constant 4 : index
    %c0_231 = arith.constant 0 : index
    %780 = vector.load %arg17[%c4_230, %c0_231] : memref<8x32xf32, #tpu.memory_space<vmem>>, vector<1x32xf32>
    tpu.vector_store %arg17[%c4_230, %c0_231], %779 {strides = array<i32>} : memref<8x32xf32, #tpu.memory_space<vmem>>, vector<1x32xf32>,
    %781 = vector.extract_strided_slice %7 {offsets = [4, 0], sizes = [1, 384], strides = [1, 1]} : vector<8x384xf32> to vector<1x384xf32>
    %782 = arith.truncf %779 : vector<1x32xf32> to vector<1x32xbf16>
    %c0_232 = arith.constant 0 : index
    %c0_233 = arith.constant 0 : index
    %783 = vector.load %arg7[%c0_232, %c0_233] : memref<32x384xbf16, #tpu.memory_space<vmem>>, vector<32x384xbf16>
    %cst_234 = arith.constant dense<0.000000e+00> : vector<1x384xf32>
    %784 = tpu.matmul %782, %783, %cst_234 {dimension_numbers = #tpu.dot_dimension_numbers<[1], [0], [0], [1], [0, 0, 1, 1], [], []>} : vector<1x32xbf16>, vector<32x384xbf16>, vector<1x384xf32> -> vector<1x384xf32>
    %785 = arith.addf %781, %784 : vector<1x384xf32>
    %786 = arith.truncf %688 : vector<2x32xf32> to vector<2x32xbf16>
    %c0_235 = arith.constant 0 : index
    %c0_236 = arith.constant 0 : index
    %787 = vector.load %arg8[%c0_235, %c0_236] : memref<32x384xbf16, #tpu.memory_space<vmem>>, vector<32x384xbf16>
    %cst_237 = arith.constant dense<0.000000e+00> : vector<2x384xf32>
    %788 = tpu.matmul %786, %787, %cst_237 {dimension_numbers = #tpu.dot_dimension_numbers<[1], [0], [0], [1], [0, 0, 1, 1], [], []>} : vector<2x32xbf16>, vector<32x384xbf16>, vector<2x384xf32> -> vector<2x384xf32>
    %c0_i32_238 = arith.constant 0 : i32
    %789 = arith.cmpi eq, %747, %c0_i32_238 : i32
    %790 = arith.extui %789 : i1 to i32
    %791 = arith.sitofp %790 : i32 to f32
    %792 = vector.extract_strided_slice %785 {offsets = [0, 0], sizes = [1, 96], strides = [1, 1]} : vector<1x384xf32> to vector<1x96xf32>
    %793 = vector.broadcast %791 : f32 to vector<1x96xf32>
    %794 = arith.mulf %793, %792 : vector<1x96xf32>
    %cst_239 = arith.constant 1.000000e+00 : f32
    %795 = arith.subf %cst_239, %791 : f32
    %796 = vector.extract_strided_slice %785 {offsets = [0, 192], sizes = [1, 96], strides = [1, 1]} : vector<1x384xf32> to vector<1x96xf32>
    %797 = vector.broadcast %795 : f32 to vector<1x96xf32>
    %798 = arith.mulf %797, %796 : vector<1x96xf32>
    %799 = arith.addf %794, %798 : vector<1x96xf32>
    %800 = vector.extract_strided_slice %788 {offsets = [0, 0], sizes = [1, 96], strides = [1, 1]} : vector<2x384xf32> to vector<1x96xf32>
    %801 = vector.broadcast %791 : f32 to vector<1x96xf32>
    %802 = arith.mulf %801, %800 : vector<1x96xf32>
    %cst_240 = arith.constant 1.000000e+00 : f32
    %803 = arith.subf %cst_240, %791 : f32
    %804 = vector.extract_strided_slice %788 {offsets = [0, 192], sizes = [1, 96], strides = [1, 1]} : vector<2x384xf32> to vector<1x96xf32>
    %805 = vector.broadcast %803 : f32 to vector<1x96xf32>
    %806 = arith.mulf %805, %804 : vector<1x96xf32>
    %807 = arith.addf %802, %806 : vector<1x96xf32>
    %c0_241 = arith.constant 0 : index
    %c0_242 = arith.constant 0 : index
    %808 = vector.load %arg13[%c0_241, %c0_242] : memref<4x32xf32, #tpu.memory_space<vmem>>, vector<1x32xf32>
    %809 = vector.broadcast %791 : f32 to vector<1x32xf32>
    %810 = arith.mulf %809, %808 : vector<1x32xf32>
    %cst_243 = arith.constant 1.000000e+00 : f32
    %811 = arith.subf %cst_243, %791 : f32
    %c2_244 = arith.constant 2 : index
    %c0_245 = arith.constant 0 : index
    %812 = vector.load %arg13[%c2_244, %c0_245] : memref<4x32xf32, #tpu.memory_space<vmem>>, vector<1x32xf32>
    %813 = vector.broadcast %811 : f32 to vector<1x32xf32>
    %814 = arith.mulf %813, %812 : vector<1x32xf32>
    %815 = arith.addf %810, %814 : vector<1x32xf32>
    %c1_i32_246 = arith.constant 1 : i32
    %816 = arith.cmpi eq, %747, %c1_i32_246 : i32
    %817 = arith.extui %816 : i1 to i32
    %818 = arith.sitofp %817 : i32 to f32
    %819 = vector.extract_strided_slice %785 {offsets = [0, 96], sizes = [1, 96], strides = [1, 1]} : vector<1x384xf32> to vector<1x96xf32>
    %820 = vector.broadcast %818 : f32 to vector<1x96xf32>
    %821 = arith.mulf %820, %819 : vector<1x96xf32>
    %cst_247 = arith.constant 1.000000e+00 : f32
    %822 = arith.subf %cst_247, %818 : f32
    %823 = vector.extract_strided_slice %785 {offsets = [0, 288], sizes = [1, 96], strides = [1, 1]} : vector<1x384xf32> to vector<1x96xf32>
    %824 = vector.broadcast %822 : f32 to vector<1x96xf32>
    %825 = arith.mulf %824, %823 : vector<1x96xf32>
    %826 = arith.addf %821, %825 : vector<1x96xf32>
    %827 = vector.extract_strided_slice %788 {offsets = [1, 96], sizes = [1, 96], strides = [1, 1]} : vector<2x384xf32> to vector<1x96xf32>
    %828 = vector.broadcast %818 : f32 to vector<1x96xf32>
    %829 = arith.mulf %828, %827 : vector<1x96xf32>
    %cst_248 = arith.constant 1.000000e+00 : f32
    %830 = arith.subf %cst_248, %818 : f32
    %831 = vector.extract_strided_slice %788 {offsets = [1, 288], sizes = [1, 96], strides = [1, 1]} : vector<2x384xf32> to vector<1x96xf32>
    %832 = vector.broadcast %830 : f32 to vector<1x96xf32>
    %833 = arith.mulf %832, %831 : vector<1x96xf32>
    %834 = arith.addf %829, %833 : vector<1x96xf32>
    %c1_249 = arith.constant 1 : index
    %c0_250 = arith.constant 0 : index
    %835 = vector.load %arg13[%c1_249, %c0_250] : memref<4x32xf32, #tpu.memory_space<vmem>>, vector<1x32xf32>
    %836 = vector.broadcast %818 : f32 to vector<1x32xf32>
    %837 = arith.mulf %836, %835 : vector<1x32xf32>
    %cst_251 = arith.constant 1.000000e+00 : f32
    %838 = arith.subf %cst_251, %818 : f32
    %c3_252 = arith.constant 3 : index
    %c0_253 = arith.constant 0 : index
    %839 = vector.load %arg13[%c3_252, %c0_253] : memref<4x32xf32, #tpu.memory_space<vmem>>, vector<1x32xf32>
    %840 = vector.broadcast %838 : f32 to vector<1x32xf32>
    %841 = arith.mulf %840, %839 : vector<1x32xf32>
    %842 = arith.addf %837, %841 : vector<1x32xf32>
    %843 = tpu.concatenate %799, %826 in 0 : vector<1x96xf32>, vector<1x96xf32> -> vector<2x96xf32>
    %844 = tpu.concatenate %807, %834 in 0 : vector<1x96xf32>, vector<1x96xf32> -> vector<2x96xf32>
    %845 = tpu.concatenate %815, %842 in 0 : vector<1x32xf32>, vector<1x32xf32> -> vector<2x32xf32>
    %846 = vector.extract_strided_slice %843 {offsets = [0, 0], sizes = [2, 32], strides = [1, 1]} : vector<2x96xf32> to vector<2x32xf32>
    %847 = vector.extract_strided_slice %844 {offsets = [0, 0], sizes = [2, 32], strides = [1, 1]} : vector<2x96xf32> to vector<2x32xf32>
    %848 = arith.addf %846, %847 : vector<2x32xf32>
    %849 = arith.negf %848 : vector<2x32xf32>
    %850 = math.exp %849 : vector<2x32xf32>
    %cst_254 = arith.constant 1.000000e+00 : f32
    %851 = vector.broadcast %cst_254 : f32 to vector<2x32xf32>
    %852 = arith.addf %851, %850 : vector<2x32xf32>
    %853 = arith.divf %851, %852 : vector<2x32xf32>
    %854 = vector.extract_strided_slice %843 {offsets = [0, 32], sizes = [2, 32], strides = [1, 1]} : vector<2x96xf32> to vector<2x32xf32>
    %855 = vector.extract_strided_slice %844 {offsets = [0, 32], sizes = [2, 32], strides = [1, 1]} : vector<2x96xf32> to vector<2x32xf32>
    %856 = arith.addf %854, %855 : vector<2x32xf32>
    %857 = arith.negf %856 : vector<2x32xf32>
    %858 = math.exp %857 : vector<2x32xf32>
    %cst_255 = arith.constant 1.000000e+00 : f32
    %859 = vector.broadcast %cst_255 : f32 to vector<2x32xf32>
    %860 = arith.addf %859, %858 : vector<2x32xf32>
    %861 = arith.divf %859, %860 : vector<2x32xf32>
    %862 = vector.extract_strided_slice %843 {offsets = [0, 64], sizes = [2, 32], strides = [1, 1]} : vector<2x96xf32> to vector<2x32xf32>
    %863 = vector.extract_strided_slice %844 {offsets = [0, 64], sizes = [2, 32], strides = [1, 1]} : vector<2x96xf32> to vector<2x32xf32>
    %864 = arith.addf %863, %845 : vector<2x32xf32>
    %865 = arith.mulf %853, %864 : vector<2x32xf32>
    %866 = arith.addf %862, %865 : vector<2x32xf32>
    %867 = math.tanh %866 : vector<2x32xf32>
    %cst_256 = arith.constant 1.000000e+00 : f32
    %868 = vector.broadcast %cst_256 : f32 to vector<2x32xf32>
    %869 = arith.subf %868, %861 : vector<2x32xf32>
    %870 = arith.mulf %869, %867 : vector<2x32xf32>
    %871 = arith.mulf %861, %688 : vector<2x32xf32>
    %872 = arith.addf %870, %871 : vector<2x32xf32>
    %873 = arith.truncf %872 : vector<2x32xf32> to vector<2x32xbf16>
    %c0_257 = arith.constant 0 : index
    %c0_258 = arith.constant 0 : index
    %874 = vector.load %arg9[%c0_257, %c0_258] : memref<32x192xbf16, #tpu.memory_space<vmem>>, vector<32x192xbf16>
    %cst_259 = arith.constant dense<0.000000e+00> : vector<2x192xf32>
    %875 = tpu.matmul %873, %874, %cst_259 {dimension_numbers = #tpu.dot_dimension_numbers<[1], [0], [0], [1], [0, 0, 1, 1], [], []>} : vector<2x32xbf16>, vector<32x192xbf16>, vector<2x192xf32> -> vector<2x192xf32>
    %876 = arith.truncf %730 : vector<2x32xf32> to vector<2x32xbf16>
    %c0_260 = arith.constant 0 : index
    %c0_261 = arith.constant 0 : index
    %877 = vector.load %arg10[%c0_260, %c0_261] : memref<32x192xbf16, #tpu.memory_space<vmem>>, vector<32x192xbf16>
    %cst_262 = arith.constant dense<0.000000e+00> : vector<2x192xf32>
    %878 = tpu.matmul %876, %877, %cst_262 {dimension_numbers = #tpu.dot_dimension_numbers<[1], [0], [0], [1], [0, 0, 1, 1], [], []>} : vector<2x32xbf16>, vector<32x192xbf16>, vector<2x192xf32> -> vector<2x192xf32>
    %879 = vector.extract_strided_slice %875 {offsets = [0, 0], sizes = [1, 96], strides = [1, 1]} : vector<2x192xf32> to vector<1x96xf32>
    %880 = vector.extract_strided_slice %875 {offsets = [1, 96], sizes = [1, 96], strides = [1, 1]} : vector<2x192xf32> to vector<1x96xf32>
    %881 = tpu.concatenate %879, %880 in 0 : vector<1x96xf32>, vector<1x96xf32> -> vector<2x96xf32>
    %c0_263 = arith.constant 0 : index
    %c0_264 = arith.constant 0 : index
    %882 = vector.load %arg14[%c0_263, %c0_264] : memref<2x96xf32, #tpu.memory_space<vmem>>, vector<2x96xf32>
    %883 = arith.addf %881, %882 : vector<2x96xf32>
    %884 = vector.extract_strided_slice %878 {offsets = [0, 0], sizes = [1, 96], strides = [1, 1]} : vector<2x192xf32> to vector<1x96xf32>
    %885 = vector.extract_strided_slice %878 {offsets = [1, 96], sizes = [1, 96], strides = [1, 1]} : vector<2x192xf32> to vector<1x96xf32>
    %886 = tpu.concatenate %884, %885 in 0 : vector<1x96xf32>, vector<1x96xf32> -> vector<2x96xf32>
    %887 = vector.extract_strided_slice %883 {offsets = [0, 0], sizes = [2, 32], strides = [1, 1]} : vector<2x96xf32> to vector<2x32xf32>
    %888 = vector.extract_strided_slice %886 {offsets = [0, 0], sizes = [2, 32], strides = [1, 1]} : vector<2x96xf32> to vector<2x32xf32>
    %889 = arith.addf %887, %888 : vector<2x32xf32>
    %890 = arith.negf %889 : vector<2x32xf32>
    %891 = math.exp %890 : vector<2x32xf32>
    %cst_265 = arith.constant 1.000000e+00 : f32
    %892 = vector.broadcast %cst_265 : f32 to vector<2x32xf32>
    %893 = arith.addf %892, %891 : vector<2x32xf32>
    %894 = arith.divf %892, %893 : vector<2x32xf32>
    %895 = vector.extract_strided_slice %883 {offsets = [0, 32], sizes = [2, 32], strides = [1, 1]} : vector<2x96xf32> to vector<2x32xf32>
    %896 = vector.extract_strided_slice %886 {offsets = [0, 32], sizes = [2, 32], strides = [1, 1]} : vector<2x96xf32> to vector<2x32xf32>
    %897 = arith.addf %895, %896 : vector<2x32xf32>
    %898 = arith.negf %897 : vector<2x32xf32>
    %899 = math.exp %898 : vector<2x32xf32>
    %cst_266 = arith.constant 1.000000e+00 : f32
    %900 = vector.broadcast %cst_266 : f32 to vector<2x32xf32>
    %901 = arith.addf %900, %899 : vector<2x32xf32>
    %902 = arith.divf %900, %901 : vector<2x32xf32>
    %903 = vector.extract_strided_slice %883 {offsets = [0, 64], sizes = [2, 32], strides = [1, 1]} : vector<2x96xf32> to vector<2x32xf32>
    %904 = vector.extract_strided_slice %886 {offsets = [0, 64], sizes = [2, 32], strides = [1, 1]} : vector<2x96xf32> to vector<2x32xf32>
    %c0_267 = arith.constant 0 : index
    %c0_268 = arith.constant 0 : index
    %905 = vector.load %arg15[%c0_267, %c0_268] : memref<2x32xf32, #tpu.memory_space<vmem>>, vector<2x32xf32>
    %906 = arith.addf %904, %905 : vector<2x32xf32>
    %907 = arith.mulf %894, %906 : vector<2x32xf32>
    %908 = arith.addf %903, %907 : vector<2x32xf32>
    %909 = math.tanh %908 : vector<2x32xf32>
    %cst_269 = arith.constant 1.000000e+00 : f32
    %910 = vector.broadcast %cst_269 : f32 to vector<2x32xf32>
    %911 = arith.subf %910, %902 : vector<2x32xf32>
    %912 = arith.mulf %911, %909 : vector<2x32xf32>
    %913 = arith.mulf %902, %730 : vector<2x32xf32>
    %914 = arith.addf %912, %913 : vector<2x32xf32>
    %cst_270 = arith.constant 0.000000e+00 : f32
    %915 = vector.broadcast %cst_270 : f32 to vector<1x32xf32>
    %c0_i32_271 = arith.constant 0 : i32
    %916 = arith.cmpi eq, %747, %c0_i32_271 : i32
    %917 = arith.extui %916 : i1 to i32
    %918 = arith.sitofp %917 : i32 to f32
    %919 = vector.extract_strided_slice %914 {offsets = [0, 0], sizes = [1, 32], strides = [1, 1]} : vector<2x32xf32> to vector<1x32xf32>
    %920 = vector.broadcast %918 : f32 to vector<1x32xf32>
    %921 = arith.mulf %920, %919 : vector<1x32xf32>
    %922 = arith.addf %915, %921 : vector<1x32xf32>
    %c1_i32_272 = arith.constant 1 : i32
    %923 = arith.cmpi eq, %747, %c1_i32_272 : i32
    %924 = arith.extui %923 : i1 to i32
    %925 = arith.sitofp %924 : i32 to f32
    %926 = vector.extract_strided_slice %914 {offsets = [1, 0], sizes = [1, 32], strides = [1, 1]} : vector<2x32xf32> to vector<1x32xf32>
    %927 = vector.broadcast %925 : f32 to vector<1x32xf32>
    %928 = arith.mulf %927, %926 : vector<1x32xf32>
    %929 = arith.addf %922, %928 : vector<1x32xf32>
    %c4_273 = arith.constant 4 : index
    %c0_274 = arith.constant 0 : index
    %930 = vector.load %arg16[%c4_273, %c0_274] : memref<8x32xf32, #tpu.memory_space<vmem>>, vector<1x32xf32>
    tpu.vector_store %arg16[%c4_273, %c0_274], %929 {strides = array<i32>} : memref<8x32xf32, #tpu.memory_space<vmem>>, vector<1x32xf32>,
    %c5 = arith.constant 5 : index
    %931 = memref.load %arg0[%c5] : memref<8xi32, #tpu.memory_space<smem>>
    %932 = arith.truncf %779 : vector<1x32xf32> to vector<1x32xbf16>
    %c0_275 = arith.constant 0 : index
    %c0_276 = arith.constant 0 : index
    %933 = vector.load %arg6[%c0_275, %c0_276] : memref<32x96xbf16, #tpu.memory_space<vmem>>, vector<32x96xbf16>
    %cst_277 = arith.constant dense<0.000000e+00> : vector<1x96xf32>
    %934 = tpu.matmul %932, %933, %cst_277 {dimension_numbers = #tpu.dot_dimension_numbers<[1], [0], [0], [1], [0, 0, 1, 1], [], []>} : vector<1x32xbf16>, vector<32x96xbf16>, vector<1x96xf32> -> vector<1x96xf32>
    %935 = vector.extract_strided_slice %6 {offsets = [5, 0], sizes = [1, 96], strides = [1, 1]} : vector<8x96xf32> to vector<1x96xf32>
    %936 = vector.extract_strided_slice %935 {offsets = [0, 0], sizes = [1, 32], strides = [1, 1]} : vector<1x96xf32> to vector<1x32xf32>
    %937 = vector.extract_strided_slice %934 {offsets = [0, 0], sizes = [1, 32], strides = [1, 1]} : vector<1x96xf32> to vector<1x32xf32>
    %938 = arith.addf %936, %937 : vector<1x32xf32>
    %939 = arith.negf %938 : vector<1x32xf32>
    %940 = math.exp %939 : vector<1x32xf32>
    %cst_278 = arith.constant 1.000000e+00 : f32
    %941 = vector.broadcast %cst_278 : f32 to vector<1x32xf32>
    %942 = arith.addf %941, %940 : vector<1x32xf32>
    %943 = arith.divf %941, %942 : vector<1x32xf32>
    %944 = vector.extract_strided_slice %935 {offsets = [0, 32], sizes = [1, 32], strides = [1, 1]} : vector<1x96xf32> to vector<1x32xf32>
    %945 = vector.extract_strided_slice %934 {offsets = [0, 32], sizes = [1, 32], strides = [1, 1]} : vector<1x96xf32> to vector<1x32xf32>
    %946 = arith.addf %944, %945 : vector<1x32xf32>
    %947 = arith.negf %946 : vector<1x32xf32>
    %948 = math.exp %947 : vector<1x32xf32>
    %cst_279 = arith.constant 1.000000e+00 : f32
    %949 = vector.broadcast %cst_279 : f32 to vector<1x32xf32>
    %950 = arith.addf %949, %948 : vector<1x32xf32>
    %951 = arith.divf %949, %950 : vector<1x32xf32>
    %952 = vector.extract_strided_slice %935 {offsets = [0, 64], sizes = [1, 32], strides = [1, 1]} : vector<1x96xf32> to vector<1x32xf32>
    %953 = vector.extract_strided_slice %934 {offsets = [0, 64], sizes = [1, 32], strides = [1, 1]} : vector<1x96xf32> to vector<1x32xf32>
    %c0_280 = arith.constant 0 : index
    %c0_281 = arith.constant 0 : index
    %954 = vector.load %arg12[%c0_280, %c0_281] : memref<1x32xf32, #tpu.memory_space<vmem>>, vector<1x32xf32>
    %955 = arith.addf %953, %954 : vector<1x32xf32>
    %956 = arith.mulf %943, %955 : vector<1x32xf32>
    %957 = arith.addf %952, %956 : vector<1x32xf32>
    %958 = math.tanh %957 : vector<1x32xf32>
    %cst_282 = arith.constant 1.000000e+00 : f32
    %959 = vector.broadcast %cst_282 : f32 to vector<1x32xf32>
    %960 = arith.subf %959, %951 : vector<1x32xf32>
    %961 = arith.mulf %960, %958 : vector<1x32xf32>
    %962 = arith.mulf %951, %779 : vector<1x32xf32>
    %963 = arith.addf %961, %962 : vector<1x32xf32>
    %c5_283 = arith.constant 5 : index
    %c0_284 = arith.constant 0 : index
    %964 = vector.load %arg17[%c5_283, %c0_284] : memref<8x32xf32, #tpu.memory_space<vmem>>, vector<1x32xf32>
    tpu.vector_store %arg17[%c5_283, %c0_284], %963 {strides = array<i32>} : memref<8x32xf32, #tpu.memory_space<vmem>>, vector<1x32xf32>,
    %965 = vector.extract_strided_slice %7 {offsets = [5, 0], sizes = [1, 384], strides = [1, 1]} : vector<8x384xf32> to vector<1x384xf32>
    %966 = arith.truncf %963 : vector<1x32xf32> to vector<1x32xbf16>
    %c0_285 = arith.constant 0 : index
    %c0_286 = arith.constant 0 : index
    %967 = vector.load %arg7[%c0_285, %c0_286] : memref<32x384xbf16, #tpu.memory_space<vmem>>, vector<32x384xbf16>
    %cst_287 = arith.constant dense<0.000000e+00> : vector<1x384xf32>
    %968 = tpu.matmul %966, %967, %cst_287 {dimension_numbers = #tpu.dot_dimension_numbers<[1], [0], [0], [1], [0, 0, 1, 1], [], []>} : vector<1x32xbf16>, vector<32x384xbf16>, vector<1x384xf32> -> vector<1x384xf32>
    %969 = arith.addf %965, %968 : vector<1x384xf32>
    %970 = arith.truncf %872 : vector<2x32xf32> to vector<2x32xbf16>
    %c0_288 = arith.constant 0 : index
    %c0_289 = arith.constant 0 : index
    %971 = vector.load %arg8[%c0_288, %c0_289] : memref<32x384xbf16, #tpu.memory_space<vmem>>, vector<32x384xbf16>
    %cst_290 = arith.constant dense<0.000000e+00> : vector<2x384xf32>
    %972 = tpu.matmul %970, %971, %cst_290 {dimension_numbers = #tpu.dot_dimension_numbers<[1], [0], [0], [1], [0, 0, 1, 1], [], []>} : vector<2x32xbf16>, vector<32x384xbf16>, vector<2x384xf32> -> vector<2x384xf32>
    %c0_i32_291 = arith.constant 0 : i32
    %973 = arith.cmpi eq, %931, %c0_i32_291 : i32
    %974 = arith.extui %973 : i1 to i32
    %975 = arith.sitofp %974 : i32 to f32
    %976 = vector.extract_strided_slice %969 {offsets = [0, 0], sizes = [1, 96], strides = [1, 1]} : vector<1x384xf32> to vector<1x96xf32>
    %977 = vector.broadcast %975 : f32 to vector<1x96xf32>
    %978 = arith.mulf %977, %976 : vector<1x96xf32>
    %cst_292 = arith.constant 1.000000e+00 : f32
    %979 = arith.subf %cst_292, %975 : f32
    %980 = vector.extract_strided_slice %969 {offsets = [0, 192], sizes = [1, 96], strides = [1, 1]} : vector<1x384xf32> to vector<1x96xf32>
    %981 = vector.broadcast %979 : f32 to vector<1x96xf32>
    %982 = arith.mulf %981, %980 : vector<1x96xf32>
    %983 = arith.addf %978, %982 : vector<1x96xf32>
    %984 = vector.extract_strided_slice %972 {offsets = [0, 0], sizes = [1, 96], strides = [1, 1]} : vector<2x384xf32> to vector<1x96xf32>
    %985 = vector.broadcast %975 : f32 to vector<1x96xf32>
    %986 = arith.mulf %985, %984 : vector<1x96xf32>
    %cst_293 = arith.constant 1.000000e+00 : f32
    %987 = arith.subf %cst_293, %975 : f32
    %988 = vector.extract_strided_slice %972 {offsets = [0, 192], sizes = [1, 96], strides = [1, 1]} : vector<2x384xf32> to vector<1x96xf32>
    %989 = vector.broadcast %987 : f32 to vector<1x96xf32>
    %990 = arith.mulf %989, %988 : vector<1x96xf32>
    %991 = arith.addf %986, %990 : vector<1x96xf32>
    %c0_294 = arith.constant 0 : index
    %c0_295 = arith.constant 0 : index
    %992 = vector.load %arg13[%c0_294, %c0_295] : memref<4x32xf32, #tpu.memory_space<vmem>>, vector<1x32xf32>
    %993 = vector.broadcast %975 : f32 to vector<1x32xf32>
    %994 = arith.mulf %993, %992 : vector<1x32xf32>
    %cst_296 = arith.constant 1.000000e+00 : f32
    %995 = arith.subf %cst_296, %975 : f32
    %c2_297 = arith.constant 2 : index
    %c0_298 = arith.constant 0 : index
    %996 = vector.load %arg13[%c2_297, %c0_298] : memref<4x32xf32, #tpu.memory_space<vmem>>, vector<1x32xf32>
    %997 = vector.broadcast %995 : f32 to vector<1x32xf32>
    %998 = arith.mulf %997, %996 : vector<1x32xf32>
    %999 = arith.addf %994, %998 : vector<1x32xf32>
    %c1_i32_299 = arith.constant 1 : i32
    %1000 = arith.cmpi eq, %931, %c1_i32_299 : i32
    %1001 = arith.extui %1000 : i1 to i32
    %1002 = arith.sitofp %1001 : i32 to f32
    %1003 = vector.extract_strided_slice %969 {offsets = [0, 96], sizes = [1, 96], strides = [1, 1]} : vector<1x384xf32> to vector<1x96xf32>
    %1004 = vector.broadcast %1002 : f32 to vector<1x96xf32>
    %1005 = arith.mulf %1004, %1003 : vector<1x96xf32>
    %cst_300 = arith.constant 1.000000e+00 : f32
    %1006 = arith.subf %cst_300, %1002 : f32
    %1007 = vector.extract_strided_slice %969 {offsets = [0, 288], sizes = [1, 96], strides = [1, 1]} : vector<1x384xf32> to vector<1x96xf32>
    %1008 = vector.broadcast %1006 : f32 to vector<1x96xf32>
    %1009 = arith.mulf %1008, %1007 : vector<1x96xf32>
    %1010 = arith.addf %1005, %1009 : vector<1x96xf32>
    %1011 = vector.extract_strided_slice %972 {offsets = [1, 96], sizes = [1, 96], strides = [1, 1]} : vector<2x384xf32> to vector<1x96xf32>
    %1012 = vector.broadcast %1002 : f32 to vector<1x96xf32>
    %1013 = arith.mulf %1012, %1011 : vector<1x96xf32>
    %cst_301 = arith.constant 1.000000e+00 : f32
    %1014 = arith.subf %cst_301, %1002 : f32
    %1015 = vector.extract_strided_slice %972 {offsets = [1, 288], sizes = [1, 96], strides = [1, 1]} : vector<2x384xf32> to vector<1x96xf32>
    %1016 = vector.broadcast %1014 : f32 to vector<1x96xf32>
    %1017 = arith.mulf %1016, %1015 : vector<1x96xf32>
    %1018 = arith.addf %1013, %1017 : vector<1x96xf32>
    %c1_302 = arith.constant 1 : index
    %c0_303 = arith.constant 0 : index
    %1019 = vector.load %arg13[%c1_302, %c0_303] : memref<4x32xf32, #tpu.memory_space<vmem>>, vector<1x32xf32>
    %1020 = vector.broadcast %1002 : f32 to vector<1x32xf32>
    %1021 = arith.mulf %1020, %1019 : vector<1x32xf32>
    %cst_304 = arith.constant 1.000000e+00 : f32
    %1022 = arith.subf %cst_304, %1002 : f32
    %c3_305 = arith.constant 3 : index
    %c0_306 = arith.constant 0 : index
    %1023 = vector.load %arg13[%c3_305, %c0_306] : memref<4x32xf32, #tpu.memory_space<vmem>>, vector<1x32xf32>
    %1024 = vector.broadcast %1022 : f32 to vector<1x32xf32>
    %1025 = arith.mulf %1024, %1023 : vector<1x32xf32>
    %1026 = arith.addf %1021, %1025 : vector<1x32xf32>
    %1027 = tpu.concatenate %983, %1010 in 0 : vector<1x96xf32>, vector<1x96xf32> -> vector<2x96xf32>
    %1028 = tpu.concatenate %991, %1018 in 0 : vector<1x96xf32>, vector<1x96xf32> -> vector<2x96xf32>
    %1029 = tpu.concatenate %999, %1026 in 0 : vector<1x32xf32>, vector<1x32xf32> -> vector<2x32xf32>
    %1030 = vector.extract_strided_slice %1027 {offsets = [0, 0], sizes = [2, 32], strides = [1, 1]} : vector<2x96xf32> to vector<2x32xf32>
    %1031 = vector.extract_strided_slice %1028 {offsets = [0, 0], sizes = [2, 32], strides = [1, 1]} : vector<2x96xf32> to vector<2x32xf32>
    %1032 = arith.addf %1030, %1031 : vector<2x32xf32>
    %1033 = arith.negf %1032 : vector<2x32xf32>
    %1034 = math.exp %1033 : vector<2x32xf32>
    %cst_307 = arith.constant 1.000000e+00 : f32
    %1035 = vector.broadcast %cst_307 : f32 to vector<2x32xf32>
    %1036 = arith.addf %1035, %1034 : vector<2x32xf32>
    %1037 = arith.divf %1035, %1036 : vector<2x32xf32>
    %1038 = vector.extract_strided_slice %1027 {offsets = [0, 32], sizes = [2, 32], strides = [1, 1]} : vector<2x96xf32> to vector<2x32xf32>
    %1039 = vector.extract_strided_slice %1028 {offsets = [0, 32], sizes = [2, 32], strides = [1, 1]} : vector<2x96xf32> to vector<2x32xf32>
    %1040 = arith.addf %1038, %1039 : vector<2x32xf32>
    %1041 = arith.negf %1040 : vector<2x32xf32>
    %1042 = math.exp %1041 : vector<2x32xf32>
    %cst_308 = arith.constant 1.000000e+00 : f32
    %1043 = vector.broadcast %cst_308 : f32 to vector<2x32xf32>
    %1044 = arith.addf %1043, %1042 : vector<2x32xf32>
    %1045 = arith.divf %1043, %1044 : vector<2x32xf32>
    %1046 = vector.extract_strided_slice %1027 {offsets = [0, 64], sizes = [2, 32], strides = [1, 1]} : vector<2x96xf32> to vector<2x32xf32>
    %1047 = vector.extract_strided_slice %1028 {offsets = [0, 64], sizes = [2, 32], strides = [1, 1]} : vector<2x96xf32> to vector<2x32xf32>
    %1048 = arith.addf %1047, %1029 : vector<2x32xf32>
    %1049 = arith.mulf %1037, %1048 : vector<2x32xf32>
    %1050 = arith.addf %1046, %1049 : vector<2x32xf32>
    %1051 = math.tanh %1050 : vector<2x32xf32>
    %cst_309 = arith.constant 1.000000e+00 : f32
    %1052 = vector.broadcast %cst_309 : f32 to vector<2x32xf32>
    %1053 = arith.subf %1052, %1045 : vector<2x32xf32>
    %1054 = arith.mulf %1053, %1051 : vector<2x32xf32>
    %1055 = arith.mulf %1045, %872 : vector<2x32xf32>
    %1056 = arith.addf %1054, %1055 : vector<2x32xf32>
    %1057 = arith.truncf %1056 : vector<2x32xf32> to vector<2x32xbf16>
    %c0_310 = arith.constant 0 : index
    %c0_311 = arith.constant 0 : index
    %1058 = vector.load %arg9[%c0_310, %c0_311] : memref<32x192xbf16, #tpu.memory_space<vmem>>, vector<32x192xbf16>
    %cst_312 = arith.constant dense<0.000000e+00> : vector<2x192xf32>
    %1059 = tpu.matmul %1057, %1058, %cst_312 {dimension_numbers = #tpu.dot_dimension_numbers<[1], [0], [0], [1], [0, 0, 1, 1], [], []>} : vector<2x32xbf16>, vector<32x192xbf16>, vector<2x192xf32> -> vector<2x192xf32>
    %1060 = arith.truncf %914 : vector<2x32xf32> to vector<2x32xbf16>
    %c0_313 = arith.constant 0 : index
    %c0_314 = arith.constant 0 : index
    %1061 = vector.load %arg10[%c0_313, %c0_314] : memref<32x192xbf16, #tpu.memory_space<vmem>>, vector<32x192xbf16>
    %cst_315 = arith.constant dense<0.000000e+00> : vector<2x192xf32>
    %1062 = tpu.matmul %1060, %1061, %cst_315 {dimension_numbers = #tpu.dot_dimension_numbers<[1], [0], [0], [1], [0, 0, 1, 1], [], []>} : vector<2x32xbf16>, vector<32x192xbf16>, vector<2x192xf32> -> vector<2x192xf32>
    %1063 = vector.extract_strided_slice %1059 {offsets = [0, 0], sizes = [1, 96], strides = [1, 1]} : vector<2x192xf32> to vector<1x96xf32>
    %1064 = vector.extract_strided_slice %1059 {offsets = [1, 96], sizes = [1, 96], strides = [1, 1]} : vector<2x192xf32> to vector<1x96xf32>
    %1065 = tpu.concatenate %1063, %1064 in 0 : vector<1x96xf32>, vector<1x96xf32> -> vector<2x96xf32>
    %c0_316 = arith.constant 0 : index
    %c0_317 = arith.constant 0 : index
    %1066 = vector.load %arg14[%c0_316, %c0_317] : memref<2x96xf32, #tpu.memory_space<vmem>>, vector<2x96xf32>
    %1067 = arith.addf %1065, %1066 : vector<2x96xf32>
    %1068 = vector.extract_strided_slice %1062 {offsets = [0, 0], sizes = [1, 96], strides = [1, 1]} : vector<2x192xf32> to vector<1x96xf32>
    %1069 = vector.extract_strided_slice %1062 {offsets = [1, 96], sizes = [1, 96], strides = [1, 1]} : vector<2x192xf32> to vector<1x96xf32>
    %1070 = tpu.concatenate %1068, %1069 in 0 : vector<1x96xf32>, vector<1x96xf32> -> vector<2x96xf32>
    %1071 = vector.extract_strided_slice %1067 {offsets = [0, 0], sizes = [2, 32], strides = [1, 1]} : vector<2x96xf32> to vector<2x32xf32>
    %1072 = vector.extract_strided_slice %1070 {offsets = [0, 0], sizes = [2, 32], strides = [1, 1]} : vector<2x96xf32> to vector<2x32xf32>
    %1073 = arith.addf %1071, %1072 : vector<2x32xf32>
    %1074 = arith.negf %1073 : vector<2x32xf32>
    %1075 = math.exp %1074 : vector<2x32xf32>
    %cst_318 = arith.constant 1.000000e+00 : f32
    %1076 = vector.broadcast %cst_318 : f32 to vector<2x32xf32>
    %1077 = arith.addf %1076, %1075 : vector<2x32xf32>
    %1078 = arith.divf %1076, %1077 : vector<2x32xf32>
    %1079 = vector.extract_strided_slice %1067 {offsets = [0, 32], sizes = [2, 32], strides = [1, 1]} : vector<2x96xf32> to vector<2x32xf32>
    %1080 = vector.extract_strided_slice %1070 {offsets = [0, 32], sizes = [2, 32], strides = [1, 1]} : vector<2x96xf32> to vector<2x32xf32>
    %1081 = arith.addf %1079, %1080 : vector<2x32xf32>
    %1082 = arith.negf %1081 : vector<2x32xf32>
    %1083 = math.exp %1082 : vector<2x32xf32>
    %cst_319 = arith.constant 1.000000e+00 : f32
    %1084 = vector.broadcast %cst_319 : f32 to vector<2x32xf32>
    %1085 = arith.addf %1084, %1083 : vector<2x32xf32>
    %1086 = arith.divf %1084, %1085 : vector<2x32xf32>
    %1087 = vector.extract_strided_slice %1067 {offsets = [0, 64], sizes = [2, 32], strides = [1, 1]} : vector<2x96xf32> to vector<2x32xf32>
    %1088 = vector.extract_strided_slice %1070 {offsets = [0, 64], sizes = [2, 32], strides = [1, 1]} : vector<2x96xf32> to vector<2x32xf32>
    %c0_320 = arith.constant 0 : index
    %c0_321 = arith.constant 0 : index
    %1089 = vector.load %arg15[%c0_320, %c0_321] : memref<2x32xf32, #tpu.memory_space<vmem>>, vector<2x32xf32>
    %1090 = arith.addf %1088, %1089 : vector<2x32xf32>
    %1091 = arith.mulf %1078, %1090 : vector<2x32xf32>
    %1092 = arith.addf %1087, %1091 : vector<2x32xf32>
    %1093 = math.tanh %1092 : vector<2x32xf32>
    %cst_322 = arith.constant 1.000000e+00 : f32
    %1094 = vector.broadcast %cst_322 : f32 to vector<2x32xf32>
    %1095 = arith.subf %1094, %1086 : vector<2x32xf32>
    %1096 = arith.mulf %1095, %1093 : vector<2x32xf32>
    %1097 = arith.mulf %1086, %914 : vector<2x32xf32>
    %1098 = arith.addf %1096, %1097 : vector<2x32xf32>
    %cst_323 = arith.constant 0.000000e+00 : f32
    %1099 = vector.broadcast %cst_323 : f32 to vector<1x32xf32>
    %c0_i32_324 = arith.constant 0 : i32
    %1100 = arith.cmpi eq, %931, %c0_i32_324 : i32
    %1101 = arith.extui %1100 : i1 to i32
    %1102 = arith.sitofp %1101 : i32 to f32
    %1103 = vector.extract_strided_slice %1098 {offsets = [0, 0], sizes = [1, 32], strides = [1, 1]} : vector<2x32xf32> to vector<1x32xf32>
    %1104 = vector.broadcast %1102 : f32 to vector<1x32xf32>
    %1105 = arith.mulf %1104, %1103 : vector<1x32xf32>
    %1106 = arith.addf %1099, %1105 : vector<1x32xf32>
    %c1_i32_325 = arith.constant 1 : i32
    %1107 = arith.cmpi eq, %931, %c1_i32_325 : i32
    %1108 = arith.extui %1107 : i1 to i32
    %1109 = arith.sitofp %1108 : i32 to f32
    %1110 = vector.extract_strided_slice %1098 {offsets = [1, 0], sizes = [1, 32], strides = [1, 1]} : vector<2x32xf32> to vector<1x32xf32>
    %1111 = vector.broadcast %1109 : f32 to vector<1x32xf32>
    %1112 = arith.mulf %1111, %1110 : vector<1x32xf32>
    %1113 = arith.addf %1106, %1112 : vector<1x32xf32>
    %c5_326 = arith.constant 5 : index
    %c0_327 = arith.constant 0 : index
    %1114 = vector.load %arg16[%c5_326, %c0_327] : memref<8x32xf32, #tpu.memory_space<vmem>>, vector<1x32xf32>
    tpu.vector_store %arg16[%c5_326, %c0_327], %1113 {strides = array<i32>} : memref<8x32xf32, #tpu.memory_space<vmem>>, vector<1x32xf32>,
    %c6 = arith.constant 6 : index
    %1115 = memref.load %arg0[%c6] : memref<8xi32, #tpu.memory_space<smem>>
    %1116 = arith.truncf %963 : vector<1x32xf32> to vector<1x32xbf16>
    %c0_328 = arith.constant 0 : index
    %c0_329 = arith.constant 0 : index
    %1117 = vector.load %arg6[%c0_328, %c0_329] : memref<32x96xbf16, #tpu.memory_space<vmem>>, vector<32x96xbf16>
    %cst_330 = arith.constant dense<0.000000e+00> : vector<1x96xf32>
    %1118 = tpu.matmul %1116, %1117, %cst_330 {dimension_numbers = #tpu.dot_dimension_numbers<[1], [0], [0], [1], [0, 0, 1, 1], [], []>} : vector<1x32xbf16>, vector<32x96xbf16>, vector<1x96xf32> -> vector<1x96xf32>
    %1119 = vector.extract_strided_slice %6 {offsets = [6, 0], sizes = [1, 96], strides = [1, 1]} : vector<8x96xf32> to vector<1x96xf32>
    %1120 = vector.extract_strided_slice %1119 {offsets = [0, 0], sizes = [1, 32], strides = [1, 1]} : vector<1x96xf32> to vector<1x32xf32>
    %1121 = vector.extract_strided_slice %1118 {offsets = [0, 0], sizes = [1, 32], strides = [1, 1]} : vector<1x96xf32> to vector<1x32xf32>
    %1122 = arith.addf %1120, %1121 : vector<1x32xf32>
    %1123 = arith.negf %1122 : vector<1x32xf32>
    %1124 = math.exp %1123 : vector<1x32xf32>
    %cst_331 = arith.constant 1.000000e+00 : f32
    %1125 = vector.broadcast %cst_331 : f32 to vector<1x32xf32>
    %1126 = arith.addf %1125, %1124 : vector<1x32xf32>
    %1127 = arith.divf %1125, %1126 : vector<1x32xf32>
    %1128 = vector.extract_strided_slice %1119 {offsets = [0, 32], sizes = [1, 32], strides = [1, 1]} : vector<1x96xf32> to vector<1x32xf32>
    %1129 = vector.extract_strided_slice %1118 {offsets = [0, 32], sizes = [1, 32], strides = [1, 1]} : vector<1x96xf32> to vector<1x32xf32>
    %1130 = arith.addf %1128, %1129 : vector<1x32xf32>
    %1131 = arith.negf %1130 : vector<1x32xf32>
    %1132 = math.exp %1131 : vector<1x32xf32>
    %cst_332 = arith.constant 1.000000e+00 : f32
    %1133 = vector.broadcast %cst_332 : f32 to vector<1x32xf32>
    %1134 = arith.addf %1133, %1132 : vector<1x32xf32>
    %1135 = arith.divf %1133, %1134 : vector<1x32xf32>
    %1136 = vector.extract_strided_slice %1119 {offsets = [0, 64], sizes = [1, 32], strides = [1, 1]} : vector<1x96xf32> to vector<1x32xf32>
    %1137 = vector.extract_strided_slice %1118 {offsets = [0, 64], sizes = [1, 32], strides = [1, 1]} : vector<1x96xf32> to vector<1x32xf32>
    %c0_333 = arith.constant 0 : index
    %c0_334 = arith.constant 0 : index
    %1138 = vector.load %arg12[%c0_333, %c0_334] : memref<1x32xf32, #tpu.memory_space<vmem>>, vector<1x32xf32>
    %1139 = arith.addf %1137, %1138 : vector<1x32xf32>
    %1140 = arith.mulf %1127, %1139 : vector<1x32xf32>
    %1141 = arith.addf %1136, %1140 : vector<1x32xf32>
    %1142 = math.tanh %1141 : vector<1x32xf32>
    %cst_335 = arith.constant 1.000000e+00 : f32
    %1143 = vector.broadcast %cst_335 : f32 to vector<1x32xf32>
    %1144 = arith.subf %1143, %1135 : vector<1x32xf32>
    %1145 = arith.mulf %1144, %1142 : vector<1x32xf32>
    %1146 = arith.mulf %1135, %963 : vector<1x32xf32>
    %1147 = arith.addf %1145, %1146 : vector<1x32xf32>
    %c6_336 = arith.constant 6 : index
    %c0_337 = arith.constant 0 : index
    %1148 = vector.load %arg17[%c6_336, %c0_337] : memref<8x32xf32, #tpu.memory_space<vmem>>, vector<1x32xf32>
    tpu.vector_store %arg17[%c6_336, %c0_337], %1147 {strides = array<i32>} : memref<8x32xf32, #tpu.memory_space<vmem>>, vector<1x32xf32>,
    %1149 = vector.extract_strided_slice %7 {offsets = [6, 0], sizes = [1, 384], strides = [1, 1]} : vector<8x384xf32> to vector<1x384xf32>
    %1150 = arith.truncf %1147 : vector<1x32xf32> to vector<1x32xbf16>
    %c0_338 = arith.constant 0 : index
    %c0_339 = arith.constant 0 : index
    %1151 = vector.load %arg7[%c0_338, %c0_339] : memref<32x384xbf16, #tpu.memory_space<vmem>>, vector<32x384xbf16>
    %cst_340 = arith.constant dense<0.000000e+00> : vector<1x384xf32>
    %1152 = tpu.matmul %1150, %1151, %cst_340 {dimension_numbers = #tpu.dot_dimension_numbers<[1], [0], [0], [1], [0, 0, 1, 1], [], []>} : vector<1x32xbf16>, vector<32x384xbf16>, vector<1x384xf32> -> vector<1x384xf32>
    %1153 = arith.addf %1149, %1152 : vector<1x384xf32>
    %1154 = arith.truncf %1056 : vector<2x32xf32> to vector<2x32xbf16>
    %c0_341 = arith.constant 0 : index
    %c0_342 = arith.constant 0 : index
    %1155 = vector.load %arg8[%c0_341, %c0_342] : memref<32x384xbf16, #tpu.memory_space<vmem>>, vector<32x384xbf16>
    %cst_343 = arith.constant dense<0.000000e+00> : vector<2x384xf32>
    %1156 = tpu.matmul %1154, %1155, %cst_343 {dimension_numbers = #tpu.dot_dimension_numbers<[1], [0], [0], [1], [0, 0, 1, 1], [], []>} : vector<2x32xbf16>, vector<32x384xbf16>, vector<2x384xf32> -> vector<2x384xf32>
    %c0_i32_344 = arith.constant 0 : i32
    %1157 = arith.cmpi eq, %1115, %c0_i32_344 : i32
    %1158 = arith.extui %1157 : i1 to i32
    %1159 = arith.sitofp %1158 : i32 to f32
    %1160 = vector.extract_strided_slice %1153 {offsets = [0, 0], sizes = [1, 96], strides = [1, 1]} : vector<1x384xf32> to vector<1x96xf32>
    %1161 = vector.broadcast %1159 : f32 to vector<1x96xf32>
    %1162 = arith.mulf %1161, %1160 : vector<1x96xf32>
    %cst_345 = arith.constant 1.000000e+00 : f32
    %1163 = arith.subf %cst_345, %1159 : f32
    %1164 = vector.extract_strided_slice %1153 {offsets = [0, 192], sizes = [1, 96], strides = [1, 1]} : vector<1x384xf32> to vector<1x96xf32>
    %1165 = vector.broadcast %1163 : f32 to vector<1x96xf32>
    %1166 = arith.mulf %1165, %1164 : vector<1x96xf32>
    %1167 = arith.addf %1162, %1166 : vector<1x96xf32>
    %1168 = vector.extract_strided_slice %1156 {offsets = [0, 0], sizes = [1, 96], strides = [1, 1]} : vector<2x384xf32> to vector<1x96xf32>
    %1169 = vector.broadcast %1159 : f32 to vector<1x96xf32>
    %1170 = arith.mulf %1169, %1168 : vector<1x96xf32>
    %cst_346 = arith.constant 1.000000e+00 : f32
    %1171 = arith.subf %cst_346, %1159 : f32
    %1172 = vector.extract_strided_slice %1156 {offsets = [0, 192], sizes = [1, 96], strides = [1, 1]} : vector<2x384xf32> to vector<1x96xf32>
    %1173 = vector.broadcast %1171 : f32 to vector<1x96xf32>
    %1174 = arith.mulf %1173, %1172 : vector<1x96xf32>
    %1175 = arith.addf %1170, %1174 : vector<1x96xf32>
    %c0_347 = arith.constant 0 : index
    %c0_348 = arith.constant 0 : index
    %1176 = vector.load %arg13[%c0_347, %c0_348] : memref<4x32xf32, #tpu.memory_space<vmem>>, vector<1x32xf32>
    %1177 = vector.broadcast %1159 : f32 to vector<1x32xf32>
    %1178 = arith.mulf %1177, %1176 : vector<1x32xf32>
    %cst_349 = arith.constant 1.000000e+00 : f32
    %1179 = arith.subf %cst_349, %1159 : f32
    %c2_350 = arith.constant 2 : index
    %c0_351 = arith.constant 0 : index
    %1180 = vector.load %arg13[%c2_350, %c0_351] : memref<4x32xf32, #tpu.memory_space<vmem>>, vector<1x32xf32>
    %1181 = vector.broadcast %1179 : f32 to vector<1x32xf32>
    %1182 = arith.mulf %1181, %1180 : vector<1x32xf32>
    %1183 = arith.addf %1178, %1182 : vector<1x32xf32>
    %c1_i32_352 = arith.constant 1 : i32
    %1184 = arith.cmpi eq, %1115, %c1_i32_352 : i32
    %1185 = arith.extui %1184 : i1 to i32
    %1186 = arith.sitofp %1185 : i32 to f32
    %1187 = vector.extract_strided_slice %1153 {offsets = [0, 96], sizes = [1, 96], strides = [1, 1]} : vector<1x384xf32> to vector<1x96xf32>
    %1188 = vector.broadcast %1186 : f32 to vector<1x96xf32>
    %1189 = arith.mulf %1188, %1187 : vector<1x96xf32>
    %cst_353 = arith.constant 1.000000e+00 : f32
    %1190 = arith.subf %cst_353, %1186 : f32
    %1191 = vector.extract_strided_slice %1153 {offsets = [0, 288], sizes = [1, 96], strides = [1, 1]} : vector<1x384xf32> to vector<1x96xf32>
    %1192 = vector.broadcast %1190 : f32 to vector<1x96xf32>
    %1193 = arith.mulf %1192, %1191 : vector<1x96xf32>
    %1194 = arith.addf %1189, %1193 : vector<1x96xf32>
    %1195 = vector.extract_strided_slice %1156 {offsets = [1, 96], sizes = [1, 96], strides = [1, 1]} : vector<2x384xf32> to vector<1x96xf32>
    %1196 = vector.broadcast %1186 : f32 to vector<1x96xf32>
    %1197 = arith.mulf %1196, %1195 : vector<1x96xf32>
    %cst_354 = arith.constant 1.000000e+00 : f32
    %1198 = arith.subf %cst_354, %1186 : f32
    %1199 = vector.extract_strided_slice %1156 {offsets = [1, 288], sizes = [1, 96], strides = [1, 1]} : vector<2x384xf32> to vector<1x96xf32>
    %1200 = vector.broadcast %1198 : f32 to vector<1x96xf32>
    %1201 = arith.mulf %1200, %1199 : vector<1x96xf32>
    %1202 = arith.addf %1197, %1201 : vector<1x96xf32>
    %c1_355 = arith.constant 1 : index
    %c0_356 = arith.constant 0 : index
    %1203 = vector.load %arg13[%c1_355, %c0_356] : memref<4x32xf32, #tpu.memory_space<vmem>>, vector<1x32xf32>
    %1204 = vector.broadcast %1186 : f32 to vector<1x32xf32>
    %1205 = arith.mulf %1204, %1203 : vector<1x32xf32>
    %cst_357 = arith.constant 1.000000e+00 : f32
    %1206 = arith.subf %cst_357, %1186 : f32
    %c3_358 = arith.constant 3 : index
    %c0_359 = arith.constant 0 : index
    %1207 = vector.load %arg13[%c3_358, %c0_359] : memref<4x32xf32, #tpu.memory_space<vmem>>, vector<1x32xf32>
    %1208 = vector.broadcast %1206 : f32 to vector<1x32xf32>
    %1209 = arith.mulf %1208, %1207 : vector<1x32xf32>
    %1210 = arith.addf %1205, %1209 : vector<1x32xf32>
    %1211 = tpu.concatenate %1167, %1194 in 0 : vector<1x96xf32>, vector<1x96xf32> -> vector<2x96xf32>
    %1212 = tpu.concatenate %1175, %1202 in 0 : vector<1x96xf32>, vector<1x96xf32> -> vector<2x96xf32>
    %1213 = tpu.concatenate %1183, %1210 in 0 : vector<1x32xf32>, vector<1x32xf32> -> vector<2x32xf32>
    %1214 = vector.extract_strided_slice %1211 {offsets = [0, 0], sizes = [2, 32], strides = [1, 1]} : vector<2x96xf32> to vector<2x32xf32>
    %1215 = vector.extract_strided_slice %1212 {offsets = [0, 0], sizes = [2, 32], strides = [1, 1]} : vector<2x96xf32> to vector<2x32xf32>
    %1216 = arith.addf %1214, %1215 : vector<2x32xf32>
    %1217 = arith.negf %1216 : vector<2x32xf32>
    %1218 = math.exp %1217 : vector<2x32xf32>
    %cst_360 = arith.constant 1.000000e+00 : f32
    %1219 = vector.broadcast %cst_360 : f32 to vector<2x32xf32>
    %1220 = arith.addf %1219, %1218 : vector<2x32xf32>
    %1221 = arith.divf %1219, %1220 : vector<2x32xf32>
    %1222 = vector.extract_strided_slice %1211 {offsets = [0, 32], sizes = [2, 32], strides = [1, 1]} : vector<2x96xf32> to vector<2x32xf32>
    %1223 = vector.extract_strided_slice %1212 {offsets = [0, 32], sizes = [2, 32], strides = [1, 1]} : vector<2x96xf32> to vector<2x32xf32>
    %1224 = arith.addf %1222, %1223 : vector<2x32xf32>
    %1225 = arith.negf %1224 : vector<2x32xf32>
    %1226 = math.exp %1225 : vector<2x32xf32>
    %cst_361 = arith.constant 1.000000e+00 : f32
    %1227 = vector.broadcast %cst_361 : f32 to vector<2x32xf32>
    %1228 = arith.addf %1227, %1226 : vector<2x32xf32>
    %1229 = arith.divf %1227, %1228 : vector<2x32xf32>
    %1230 = vector.extract_strided_slice %1211 {offsets = [0, 64], sizes = [2, 32], strides = [1, 1]} : vector<2x96xf32> to vector<2x32xf32>
    %1231 = vector.extract_strided_slice %1212 {offsets = [0, 64], sizes = [2, 32], strides = [1, 1]} : vector<2x96xf32> to vector<2x32xf32>
    %1232 = arith.addf %1231, %1213 : vector<2x32xf32>
    %1233 = arith.mulf %1221, %1232 : vector<2x32xf32>
    %1234 = arith.addf %1230, %1233 : vector<2x32xf32>
    %1235 = math.tanh %1234 : vector<2x32xf32>
    %cst_362 = arith.constant 1.000000e+00 : f32
    %1236 = vector.broadcast %cst_362 : f32 to vector<2x32xf32>
    %1237 = arith.subf %1236, %1229 : vector<2x32xf32>
    %1238 = arith.mulf %1237, %1235 : vector<2x32xf32>
    %1239 = arith.mulf %1229, %1056 : vector<2x32xf32>
    %1240 = arith.addf %1238, %1239 : vector<2x32xf32>
    %1241 = arith.truncf %1240 : vector<2x32xf32> to vector<2x32xbf16>
    %c0_363 = arith.constant 0 : index
    %c0_364 = arith.constant 0 : index
    %1242 = vector.load %arg9[%c0_363, %c0_364] : memref<32x192xbf16, #tpu.memory_space<vmem>>, vector<32x192xbf16>
    %cst_365 = arith.constant dense<0.000000e+00> : vector<2x192xf32>
    %1243 = tpu.matmul %1241, %1242, %cst_365 {dimension_numbers = #tpu.dot_dimension_numbers<[1], [0], [0], [1], [0, 0, 1, 1], [], []>} : vector<2x32xbf16>, vector<32x192xbf16>, vector<2x192xf32> -> vector<2x192xf32>
    %1244 = arith.truncf %1098 : vector<2x32xf32> to vector<2x32xbf16>
    %c0_366 = arith.constant 0 : index
    %c0_367 = arith.constant 0 : index
    %1245 = vector.load %arg10[%c0_366, %c0_367] : memref<32x192xbf16, #tpu.memory_space<vmem>>, vector<32x192xbf16>
    %cst_368 = arith.constant dense<0.000000e+00> : vector<2x192xf32>
    %1246 = tpu.matmul %1244, %1245, %cst_368 {dimension_numbers = #tpu.dot_dimension_numbers<[1], [0], [0], [1], [0, 0, 1, 1], [], []>} : vector<2x32xbf16>, vector<32x192xbf16>, vector<2x192xf32> -> vector<2x192xf32>
    %1247 = vector.extract_strided_slice %1243 {offsets = [0, 0], sizes = [1, 96], strides = [1, 1]} : vector<2x192xf32> to vector<1x96xf32>
    %1248 = vector.extract_strided_slice %1243 {offsets = [1, 96], sizes = [1, 96], strides = [1, 1]} : vector<2x192xf32> to vector<1x96xf32>
    %1249 = tpu.concatenate %1247, %1248 in 0 : vector<1x96xf32>, vector<1x96xf32> -> vector<2x96xf32>
    %c0_369 = arith.constant 0 : index
    %c0_370 = arith.constant 0 : index
    %1250 = vector.load %arg14[%c0_369, %c0_370] : memref<2x96xf32, #tpu.memory_space<vmem>>, vector<2x96xf32>
    %1251 = arith.addf %1249, %1250 : vector<2x96xf32>
    %1252 = vector.extract_strided_slice %1246 {offsets = [0, 0], sizes = [1, 96], strides = [1, 1]} : vector<2x192xf32> to vector<1x96xf32>
    %1253 = vector.extract_strided_slice %1246 {offsets = [1, 96], sizes = [1, 96], strides = [1, 1]} : vector<2x192xf32> to vector<1x96xf32>
    %1254 = tpu.concatenate %1252, %1253 in 0 : vector<1x96xf32>, vector<1x96xf32> -> vector<2x96xf32>
    %1255 = vector.extract_strided_slice %1251 {offsets = [0, 0], sizes = [2, 32], strides = [1, 1]} : vector<2x96xf32> to vector<2x32xf32>
    %1256 = vector.extract_strided_slice %1254 {offsets = [0, 0], sizes = [2, 32], strides = [1, 1]} : vector<2x96xf32> to vector<2x32xf32>
    %1257 = arith.addf %1255, %1256 : vector<2x32xf32>
    %1258 = arith.negf %1257 : vector<2x32xf32>
    %1259 = math.exp %1258 : vector<2x32xf32>
    %cst_371 = arith.constant 1.000000e+00 : f32
    %1260 = vector.broadcast %cst_371 : f32 to vector<2x32xf32>
    %1261 = arith.addf %1260, %1259 : vector<2x32xf32>
    %1262 = arith.divf %1260, %1261 : vector<2x32xf32>
    %1263 = vector.extract_strided_slice %1251 {offsets = [0, 32], sizes = [2, 32], strides = [1, 1]} : vector<2x96xf32> to vector<2x32xf32>
    %1264 = vector.extract_strided_slice %1254 {offsets = [0, 32], sizes = [2, 32], strides = [1, 1]} : vector<2x96xf32> to vector<2x32xf32>
    %1265 = arith.addf %1263, %1264 : vector<2x32xf32>
    %1266 = arith.negf %1265 : vector<2x32xf32>
    %1267 = math.exp %1266 : vector<2x32xf32>
    %cst_372 = arith.constant 1.000000e+00 : f32
    %1268 = vector.broadcast %cst_372 : f32 to vector<2x32xf32>
    %1269 = arith.addf %1268, %1267 : vector<2x32xf32>
    %1270 = arith.divf %1268, %1269 : vector<2x32xf32>
    %1271 = vector.extract_strided_slice %1251 {offsets = [0, 64], sizes = [2, 32], strides = [1, 1]} : vector<2x96xf32> to vector<2x32xf32>
    %1272 = vector.extract_strided_slice %1254 {offsets = [0, 64], sizes = [2, 32], strides = [1, 1]} : vector<2x96xf32> to vector<2x32xf32>
    %c0_373 = arith.constant 0 : index
    %c0_374 = arith.constant 0 : index
    %1273 = vector.load %arg15[%c0_373, %c0_374] : memref<2x32xf32, #tpu.memory_space<vmem>>, vector<2x32xf32>
    %1274 = arith.addf %1272, %1273 : vector<2x32xf32>
    %1275 = arith.mulf %1262, %1274 : vector<2x32xf32>
    %1276 = arith.addf %1271, %1275 : vector<2x32xf32>
    %1277 = math.tanh %1276 : vector<2x32xf32>
    %cst_375 = arith.constant 1.000000e+00 : f32
    %1278 = vector.broadcast %cst_375 : f32 to vector<2x32xf32>
    %1279 = arith.subf %1278, %1270 : vector<2x32xf32>
    %1280 = arith.mulf %1279, %1277 : vector<2x32xf32>
    %1281 = arith.mulf %1270, %1098 : vector<2x32xf32>
    %1282 = arith.addf %1280, %1281 : vector<2x32xf32>
    %cst_376 = arith.constant 0.000000e+00 : f32
    %1283 = vector.broadcast %cst_376 : f32 to vector<1x32xf32>
    %c0_i32_377 = arith.constant 0 : i32
    %1284 = arith.cmpi eq, %1115, %c0_i32_377 : i32
    %1285 = arith.extui %1284 : i1 to i32
    %1286 = arith.sitofp %1285 : i32 to f32
    %1287 = vector.extract_strided_slice %1282 {offsets = [0, 0], sizes = [1, 32], strides = [1, 1]} : vector<2x32xf32> to vector<1x32xf32>
    %1288 = vector.broadcast %1286 : f32 to vector<1x32xf32>
    %1289 = arith.mulf %1288, %1287 : vector<1x32xf32>
    %1290 = arith.addf %1283, %1289 : vector<1x32xf32>
    %c1_i32_378 = arith.constant 1 : i32
    %1291 = arith.cmpi eq, %1115, %c1_i32_378 : i32
    %1292 = arith.extui %1291 : i1 to i32
    %1293 = arith.sitofp %1292 : i32 to f32
    %1294 = vector.extract_strided_slice %1282 {offsets = [1, 0], sizes = [1, 32], strides = [1, 1]} : vector<2x32xf32> to vector<1x32xf32>
    %1295 = vector.broadcast %1293 : f32 to vector<1x32xf32>
    %1296 = arith.mulf %1295, %1294 : vector<1x32xf32>
    %1297 = arith.addf %1290, %1296 : vector<1x32xf32>
    %c6_379 = arith.constant 6 : index
    %c0_380 = arith.constant 0 : index
    %1298 = vector.load %arg16[%c6_379, %c0_380] : memref<8x32xf32, #tpu.memory_space<vmem>>, vector<1x32xf32>
    tpu.vector_store %arg16[%c6_379, %c0_380], %1297 {strides = array<i32>} : memref<8x32xf32, #tpu.memory_space<vmem>>, vector<1x32xf32>,
    %c7 = arith.constant 7 : index
    %1299 = memref.load %arg0[%c7] : memref<8xi32, #tpu.memory_space<smem>>
    %1300 = arith.truncf %1147 : vector<1x32xf32> to vector<1x32xbf16>
    %c0_381 = arith.constant 0 : index
    %c0_382 = arith.constant 0 : index
    %1301 = vector.load %arg6[%c0_381, %c0_382] : memref<32x96xbf16, #tpu.memory_space<vmem>>, vector<32x96xbf16>
    %cst_383 = arith.constant dense<0.000000e+00> : vector<1x96xf32>
    %1302 = tpu.matmul %1300, %1301, %cst_383 {dimension_numbers = #tpu.dot_dimension_numbers<[1], [0], [0], [1], [0, 0, 1, 1], [], []>} : vector<1x32xbf16>, vector<32x96xbf16>, vector<1x96xf32> -> vector<1x96xf32>
    %1303 = vector.extract_strided_slice %6 {offsets = [7, 0], sizes = [1, 96], strides = [1, 1]} : vector<8x96xf32> to vector<1x96xf32>
    %1304 = vector.extract_strided_slice %1303 {offsets = [0, 0], sizes = [1, 32], strides = [1, 1]} : vector<1x96xf32> to vector<1x32xf32>
    %1305 = vector.extract_strided_slice %1302 {offsets = [0, 0], sizes = [1, 32], strides = [1, 1]} : vector<1x96xf32> to vector<1x32xf32>
    %1306 = arith.addf %1304, %1305 : vector<1x32xf32>
    %1307 = arith.negf %1306 : vector<1x32xf32>
    %1308 = math.exp %1307 : vector<1x32xf32>
    %cst_384 = arith.constant 1.000000e+00 : f32
    %1309 = vector.broadcast %cst_384 : f32 to vector<1x32xf32>
    %1310 = arith.addf %1309, %1308 : vector<1x32xf32>
    %1311 = arith.divf %1309, %1310 : vector<1x32xf32>
    %1312 = vector.extract_strided_slice %1303 {offsets = [0, 32], sizes = [1, 32], strides = [1, 1]} : vector<1x96xf32> to vector<1x32xf32>
    %1313 = vector.extract_strided_slice %1302 {offsets = [0, 32], sizes = [1, 32], strides = [1, 1]} : vector<1x96xf32> to vector<1x32xf32>
    %1314 = arith.addf %1312, %1313 : vector<1x32xf32>
    %1315 = arith.negf %1314 : vector<1x32xf32>
    %1316 = math.exp %1315 : vector<1x32xf32>
    %cst_385 = arith.constant 1.000000e+00 : f32
    %1317 = vector.broadcast %cst_385 : f32 to vector<1x32xf32>
    %1318 = arith.addf %1317, %1316 : vector<1x32xf32>
    %1319 = arith.divf %1317, %1318 : vector<1x32xf32>
    %1320 = vector.extract_strided_slice %1303 {offsets = [0, 64], sizes = [1, 32], strides = [1, 1]} : vector<1x96xf32> to vector<1x32xf32>
    %1321 = vector.extract_strided_slice %1302 {offsets = [0, 64], sizes = [1, 32], strides = [1, 1]} : vector<1x96xf32> to vector<1x32xf32>
    %c0_386 = arith.constant 0 : index
    %c0_387 = arith.constant 0 : index
    %1322 = vector.load %arg12[%c0_386, %c0_387] : memref<1x32xf32, #tpu.memory_space<vmem>>, vector<1x32xf32>
    %1323 = arith.addf %1321, %1322 : vector<1x32xf32>
    %1324 = arith.mulf %1311, %1323 : vector<1x32xf32>
    %1325 = arith.addf %1320, %1324 : vector<1x32xf32>
    %1326 = math.tanh %1325 : vector<1x32xf32>
    %cst_388 = arith.constant 1.000000e+00 : f32
    %1327 = vector.broadcast %cst_388 : f32 to vector<1x32xf32>
    %1328 = arith.subf %1327, %1319 : vector<1x32xf32>
    %1329 = arith.mulf %1328, %1326 : vector<1x32xf32>
    %1330 = arith.mulf %1319, %1147 : vector<1x32xf32>
    %1331 = arith.addf %1329, %1330 : vector<1x32xf32>
    %c7_389 = arith.constant 7 : index
    %c0_390 = arith.constant 0 : index
    %1332 = vector.load %arg17[%c7_389, %c0_390] : memref<8x32xf32, #tpu.memory_space<vmem>>, vector<1x32xf32>
    tpu.vector_store %arg17[%c7_389, %c0_390], %1331 {strides = array<i32>} : memref<8x32xf32, #tpu.memory_space<vmem>>, vector<1x32xf32>,
    %1333 = vector.extract_strided_slice %7 {offsets = [7, 0], sizes = [1, 384], strides = [1, 1]} : vector<8x384xf32> to vector<1x384xf32>
    %1334 = arith.truncf %1331 : vector<1x32xf32> to vector<1x32xbf16>
    %c0_391 = arith.constant 0 : index
    %c0_392 = arith.constant 0 : index
    %1335 = vector.load %arg7[%c0_391, %c0_392] : memref<32x384xbf16, #tpu.memory_space<vmem>>, vector<32x384xbf16>
    %cst_393 = arith.constant dense<0.000000e+00> : vector<1x384xf32>
    %1336 = tpu.matmul %1334, %1335, %cst_393 {dimension_numbers = #tpu.dot_dimension_numbers<[1], [0], [0], [1], [0, 0, 1, 1], [], []>} : vector<1x32xbf16>, vector<32x384xbf16>, vector<1x384xf32> -> vector<1x384xf32>
    %1337 = arith.addf %1333, %1336 : vector<1x384xf32>
    %1338 = arith.truncf %1240 : vector<2x32xf32> to vector<2x32xbf16>
    %c0_394 = arith.constant 0 : index
    %c0_395 = arith.constant 0 : index
    %1339 = vector.load %arg8[%c0_394, %c0_395] : memref<32x384xbf16, #tpu.memory_space<vmem>>, vector<32x384xbf16>
    %cst_396 = arith.constant dense<0.000000e+00> : vector<2x384xf32>
    %1340 = tpu.matmul %1338, %1339, %cst_396 {dimension_numbers = #tpu.dot_dimension_numbers<[1], [0], [0], [1], [0, 0, 1, 1], [], []>} : vector<2x32xbf16>, vector<32x384xbf16>, vector<2x384xf32> -> vector<2x384xf32>
    %c0_i32_397 = arith.constant 0 : i32
    %1341 = arith.cmpi eq, %1299, %c0_i32_397 : i32
    %1342 = arith.extui %1341 : i1 to i32
    %1343 = arith.sitofp %1342 : i32 to f32
    %1344 = vector.extract_strided_slice %1337 {offsets = [0, 0], sizes = [1, 96], strides = [1, 1]} : vector<1x384xf32> to vector<1x96xf32>
    %1345 = vector.broadcast %1343 : f32 to vector<1x96xf32>
    %1346 = arith.mulf %1345, %1344 : vector<1x96xf32>
    %cst_398 = arith.constant 1.000000e+00 : f32
    %1347 = arith.subf %cst_398, %1343 : f32
    %1348 = vector.extract_strided_slice %1337 {offsets = [0, 192], sizes = [1, 96], strides = [1, 1]} : vector<1x384xf32> to vector<1x96xf32>
    %1349 = vector.broadcast %1347 : f32 to vector<1x96xf32>
    %1350 = arith.mulf %1349, %1348 : vector<1x96xf32>
    %1351 = arith.addf %1346, %1350 : vector<1x96xf32>
    %1352 = vector.extract_strided_slice %1340 {offsets = [0, 0], sizes = [1, 96], strides = [1, 1]} : vector<2x384xf32> to vector<1x96xf32>
    %1353 = vector.broadcast %1343 : f32 to vector<1x96xf32>
    %1354 = arith.mulf %1353, %1352 : vector<1x96xf32>
    %cst_399 = arith.constant 1.000000e+00 : f32
    %1355 = arith.subf %cst_399, %1343 : f32
    %1356 = vector.extract_strided_slice %1340 {offsets = [0, 192], sizes = [1, 96], strides = [1, 1]} : vector<2x384xf32> to vector<1x96xf32>
    %1357 = vector.broadcast %1355 : f32 to vector<1x96xf32>
    %1358 = arith.mulf %1357, %1356 : vector<1x96xf32>
    %1359 = arith.addf %1354, %1358 : vector<1x96xf32>
    %c0_400 = arith.constant 0 : index
    %c0_401 = arith.constant 0 : index
    %1360 = vector.load %arg13[%c0_400, %c0_401] : memref<4x32xf32, #tpu.memory_space<vmem>>, vector<1x32xf32>
    %1361 = vector.broadcast %1343 : f32 to vector<1x32xf32>
    %1362 = arith.mulf %1361, %1360 : vector<1x32xf32>
    %cst_402 = arith.constant 1.000000e+00 : f32
    %1363 = arith.subf %cst_402, %1343 : f32
    %c2_403 = arith.constant 2 : index
    %c0_404 = arith.constant 0 : index
    %1364 = vector.load %arg13[%c2_403, %c0_404] : memref<4x32xf32, #tpu.memory_space<vmem>>, vector<1x32xf32>
    %1365 = vector.broadcast %1363 : f32 to vector<1x32xf32>
    %1366 = arith.mulf %1365, %1364 : vector<1x32xf32>
    %1367 = arith.addf %1362, %1366 : vector<1x32xf32>
    %c1_i32_405 = arith.constant 1 : i32
    %1368 = arith.cmpi eq, %1299, %c1_i32_405 : i32
    %1369 = arith.extui %1368 : i1 to i32
    %1370 = arith.sitofp %1369 : i32 to f32
    %1371 = vector.extract_strided_slice %1337 {offsets = [0, 96], sizes = [1, 96], strides = [1, 1]} : vector<1x384xf32> to vector<1x96xf32>
    %1372 = vector.broadcast %1370 : f32 to vector<1x96xf32>
    %1373 = arith.mulf %1372, %1371 : vector<1x96xf32>
    %cst_406 = arith.constant 1.000000e+00 : f32
    %1374 = arith.subf %cst_406, %1370 : f32
    %1375 = vector.extract_strided_slice %1337 {offsets = [0, 288], sizes = [1, 96], strides = [1, 1]} : vector<1x384xf32> to vector<1x96xf32>
    %1376 = vector.broadcast %1374 : f32 to vector<1x96xf32>
    %1377 = arith.mulf %1376, %1375 : vector<1x96xf32>
    %1378 = arith.addf %1373, %1377 : vector<1x96xf32>
    %1379 = vector.extract_strided_slice %1340 {offsets = [1, 96], sizes = [1, 96], strides = [1, 1]} : vector<2x384xf32> to vector<1x96xf32>
    %1380 = vector.broadcast %1370 : f32 to vector<1x96xf32>
    %1381 = arith.mulf %1380, %1379 : vector<1x96xf32>
    %cst_407 = arith.constant 1.000000e+00 : f32
    %1382 = arith.subf %cst_407, %1370 : f32
    %1383 = vector.extract_strided_slice %1340 {offsets = [1, 288], sizes = [1, 96], strides = [1, 1]} : vector<2x384xf32> to vector<1x96xf32>
    %1384 = vector.broadcast %1382 : f32 to vector<1x96xf32>
    %1385 = arith.mulf %1384, %1383 : vector<1x96xf32>
    %1386 = arith.addf %1381, %1385 : vector<1x96xf32>
    %c1_408 = arith.constant 1 : index
    %c0_409 = arith.constant 0 : index
    %1387 = vector.load %arg13[%c1_408, %c0_409] : memref<4x32xf32, #tpu.memory_space<vmem>>, vector<1x32xf32>
    %1388 = vector.broadcast %1370 : f32 to vector<1x32xf32>
    %1389 = arith.mulf %1388, %1387 : vector<1x32xf32>
    %cst_410 = arith.constant 1.000000e+00 : f32
    %1390 = arith.subf %cst_410, %1370 : f32
    %c3_411 = arith.constant 3 : index
    %c0_412 = arith.constant 0 : index
    %1391 = vector.load %arg13[%c3_411, %c0_412] : memref<4x32xf32, #tpu.memory_space<vmem>>, vector<1x32xf32>
    %1392 = vector.broadcast %1390 : f32 to vector<1x32xf32>
    %1393 = arith.mulf %1392, %1391 : vector<1x32xf32>
    %1394 = arith.addf %1389, %1393 : vector<1x32xf32>
    %1395 = tpu.concatenate %1351, %1378 in 0 : vector<1x96xf32>, vector<1x96xf32> -> vector<2x96xf32>
    %1396 = tpu.concatenate %1359, %1386 in 0 : vector<1x96xf32>, vector<1x96xf32> -> vector<2x96xf32>
    %1397 = tpu.concatenate %1367, %1394 in 0 : vector<1x32xf32>, vector<1x32xf32> -> vector<2x32xf32>
    %1398 = vector.extract_strided_slice %1395 {offsets = [0, 0], sizes = [2, 32], strides = [1, 1]} : vector<2x96xf32> to vector<2x32xf32>
    %1399 = vector.extract_strided_slice %1396 {offsets = [0, 0], sizes = [2, 32], strides = [1, 1]} : vector<2x96xf32> to vector<2x32xf32>
    %1400 = arith.addf %1398, %1399 : vector<2x32xf32>
    %1401 = arith.negf %1400 : vector<2x32xf32>
    %1402 = math.exp %1401 : vector<2x32xf32>
    %cst_413 = arith.constant 1.000000e+00 : f32
    %1403 = vector.broadcast %cst_413 : f32 to vector<2x32xf32>
    %1404 = arith.addf %1403, %1402 : vector<2x32xf32>
    %1405 = arith.divf %1403, %1404 : vector<2x32xf32>
    %1406 = vector.extract_strided_slice %1395 {offsets = [0, 32], sizes = [2, 32], strides = [1, 1]} : vector<2x96xf32> to vector<2x32xf32>
    %1407 = vector.extract_strided_slice %1396 {offsets = [0, 32], sizes = [2, 32], strides = [1, 1]} : vector<2x96xf32> to vector<2x32xf32>
    %1408 = arith.addf %1406, %1407 : vector<2x32xf32>
    %1409 = arith.negf %1408 : vector<2x32xf32>
    %1410 = math.exp %1409 : vector<2x32xf32>
    %cst_414 = arith.constant 1.000000e+00 : f32
    %1411 = vector.broadcast %cst_414 : f32 to vector<2x32xf32>
    %1412 = arith.addf %1411, %1410 : vector<2x32xf32>
    %1413 = arith.divf %1411, %1412 : vector<2x32xf32>
    %1414 = vector.extract_strided_slice %1395 {offsets = [0, 64], sizes = [2, 32], strides = [1, 1]} : vector<2x96xf32> to vector<2x32xf32>
    %1415 = vector.extract_strided_slice %1396 {offsets = [0, 64], sizes = [2, 32], strides = [1, 1]} : vector<2x96xf32> to vector<2x32xf32>
    %1416 = arith.addf %1415, %1397 : vector<2x32xf32>
    %1417 = arith.mulf %1405, %1416 : vector<2x32xf32>
    %1418 = arith.addf %1414, %1417 : vector<2x32xf32>
    %1419 = math.tanh %1418 : vector<2x32xf32>
    %cst_415 = arith.constant 1.000000e+00 : f32
    %1420 = vector.broadcast %cst_415 : f32 to vector<2x32xf32>
    %1421 = arith.subf %1420, %1413 : vector<2x32xf32>
    %1422 = arith.mulf %1421, %1419 : vector<2x32xf32>
    %1423 = arith.mulf %1413, %1240 : vector<2x32xf32>
    %1424 = arith.addf %1422, %1423 : vector<2x32xf32>
    %1425 = arith.truncf %1424 : vector<2x32xf32> to vector<2x32xbf16>
    %c0_416 = arith.constant 0 : index
    %c0_417 = arith.constant 0 : index
    %1426 = vector.load %arg9[%c0_416, %c0_417] : memref<32x192xbf16, #tpu.memory_space<vmem>>, vector<32x192xbf16>
    %cst_418 = arith.constant dense<0.000000e+00> : vector<2x192xf32>
    %1427 = tpu.matmul %1425, %1426, %cst_418 {dimension_numbers = #tpu.dot_dimension_numbers<[1], [0], [0], [1], [0, 0, 1, 1], [], []>} : vector<2x32xbf16>, vector<32x192xbf16>, vector<2x192xf32> -> vector<2x192xf32>
    %1428 = arith.truncf %1282 : vector<2x32xf32> to vector<2x32xbf16>
    %c0_419 = arith.constant 0 : index
    %c0_420 = arith.constant 0 : index
    %1429 = vector.load %arg10[%c0_419, %c0_420] : memref<32x192xbf16, #tpu.memory_space<vmem>>, vector<32x192xbf16>
    %cst_421 = arith.constant dense<0.000000e+00> : vector<2x192xf32>
    %1430 = tpu.matmul %1428, %1429, %cst_421 {dimension_numbers = #tpu.dot_dimension_numbers<[1], [0], [0], [1], [0, 0, 1, 1], [], []>} : vector<2x32xbf16>, vector<32x192xbf16>, vector<2x192xf32> -> vector<2x192xf32>
    %1431 = vector.extract_strided_slice %1427 {offsets = [0, 0], sizes = [1, 96], strides = [1, 1]} : vector<2x192xf32> to vector<1x96xf32>
    %1432 = vector.extract_strided_slice %1427 {offsets = [1, 96], sizes = [1, 96], strides = [1, 1]} : vector<2x192xf32> to vector<1x96xf32>
    %1433 = tpu.concatenate %1431, %1432 in 0 : vector<1x96xf32>, vector<1x96xf32> -> vector<2x96xf32>
    %c0_422 = arith.constant 0 : index
    %c0_423 = arith.constant 0 : index
    %1434 = vector.load %arg14[%c0_422, %c0_423] : memref<2x96xf32, #tpu.memory_space<vmem>>, vector<2x96xf32>
    %1435 = arith.addf %1433, %1434 : vector<2x96xf32>
    %1436 = vector.extract_strided_slice %1430 {offsets = [0, 0], sizes = [1, 96], strides = [1, 1]} : vector<2x192xf32> to vector<1x96xf32>
    %1437 = vector.extract_strided_slice %1430 {offsets = [1, 96], sizes = [1, 96], strides = [1, 1]} : vector<2x192xf32> to vector<1x96xf32>
    %1438 = tpu.concatenate %1436, %1437 in 0 : vector<1x96xf32>, vector<1x96xf32> -> vector<2x96xf32>
    %1439 = vector.extract_strided_slice %1435 {offsets = [0, 0], sizes = [2, 32], strides = [1, 1]} : vector<2x96xf32> to vector<2x32xf32>
    %1440 = vector.extract_strided_slice %1438 {offsets = [0, 0], sizes = [2, 32], strides = [1, 1]} : vector<2x96xf32> to vector<2x32xf32>
    %1441 = arith.addf %1439, %1440 : vector<2x32xf32>
    %1442 = arith.negf %1441 : vector<2x32xf32>
    %1443 = math.exp %1442 : vector<2x32xf32>
    %cst_424 = arith.constant 1.000000e+00 : f32
    %1444 = vector.broadcast %cst_424 : f32 to vector<2x32xf32>
    %1445 = arith.addf %1444, %1443 : vector<2x32xf32>
    %1446 = arith.divf %1444, %1445 : vector<2x32xf32>
    %1447 = vector.extract_strided_slice %1435 {offsets = [0, 32], sizes = [2, 32], strides = [1, 1]} : vector<2x96xf32> to vector<2x32xf32>
    %1448 = vector.extract_strided_slice %1438 {offsets = [0, 32], sizes = [2, 32], strides = [1, 1]} : vector<2x96xf32> to vector<2x32xf32>
    %1449 = arith.addf %1447, %1448 : vector<2x32xf32>
    %1450 = arith.negf %1449 : vector<2x32xf32>
    %1451 = math.exp %1450 : vector<2x32xf32>
    %cst_425 = arith.constant 1.000000e+00 : f32
    %1452 = vector.broadcast %cst_425 : f32 to vector<2x32xf32>
    %1453 = arith.addf %1452, %1451 : vector<2x32xf32>
    %1454 = arith.divf %1452, %1453 : vector<2x32xf32>
    %1455 = vector.extract_strided_slice %1435 {offsets = [0, 64], sizes = [2, 32], strides = [1, 1]} : vector<2x96xf32> to vector<2x32xf32>
    %1456 = vector.extract_strided_slice %1438 {offsets = [0, 64], sizes = [2, 32], strides = [1, 1]} : vector<2x96xf32> to vector<2x32xf32>
    %c0_426 = arith.constant 0 : index
    %c0_427 = arith.constant 0 : index
    %1457 = vector.load %arg15[%c0_426, %c0_427] : memref<2x32xf32, #tpu.memory_space<vmem>>, vector<2x32xf32>
    %1458 = arith.addf %1456, %1457 : vector<2x32xf32>
    %1459 = arith.mulf %1446, %1458 : vector<2x32xf32>
    %1460 = arith.addf %1455, %1459 : vector<2x32xf32>
    %1461 = math.tanh %1460 : vector<2x32xf32>
    %cst_428 = arith.constant 1.000000e+00 : f32
    %1462 = vector.broadcast %cst_428 : f32 to vector<2x32xf32>
    %1463 = arith.subf %1462, %1454 : vector<2x32xf32>
    %1464 = arith.mulf %1463, %1461 : vector<2x32xf32>
    %1465 = arith.mulf %1454, %1282 : vector<2x32xf32>
    %1466 = arith.addf %1464, %1465 : vector<2x32xf32>
    %cst_429 = arith.constant 0.000000e+00 : f32
    %1467 = vector.broadcast %cst_429 : f32 to vector<1x32xf32>
    %c0_i32_430 = arith.constant 0 : i32
    %1468 = arith.cmpi eq, %1299, %c0_i32_430 : i32
    %1469 = arith.extui %1468 : i1 to i32
    %1470 = arith.sitofp %1469 : i32 to f32
    %1471 = vector.extract_strided_slice %1466 {offsets = [0, 0], sizes = [1, 32], strides = [1, 1]} : vector<2x32xf32> to vector<1x32xf32>
    %1472 = vector.broadcast %1470 : f32 to vector<1x32xf32>
    %1473 = arith.mulf %1472, %1471 : vector<1x32xf32>
    %1474 = arith.addf %1467, %1473 : vector<1x32xf32>
    %c1_i32_431 = arith.constant 1 : i32
    %1475 = arith.cmpi eq, %1299, %c1_i32_431 : i32
    %1476 = arith.extui %1475 : i1 to i32
    %1477 = arith.sitofp %1476 : i32 to f32
    %1478 = vector.extract_strided_slice %1466 {offsets = [1, 0], sizes = [1, 32], strides = [1, 1]} : vector<2x32xf32> to vector<1x32xf32>
    %1479 = vector.broadcast %1477 : f32 to vector<1x32xf32>
    %1480 = arith.mulf %1479, %1478 : vector<1x32xf32>
    %1481 = arith.addf %1474, %1480 : vector<1x32xf32>
    %c7_432 = arith.constant 7 : index
    %c0_433 = arith.constant 0 : index
    %1482 = vector.load %arg16[%c7_432, %c0_433] : memref<8x32xf32, #tpu.memory_space<vmem>>, vector<1x32xf32>
    tpu.vector_store %arg16[%c7_432, %c0_433], %1481 {strides = array<i32>} : memref<8x32xf32, #tpu.memory_space<vmem>>, vector<1x32xf32>,
    %c0_434 = arith.constant 0 : index
    %c0_435 = arith.constant 0 : index
    %1483 = vector.load %arg18[%c0_434, %c0_435] : memref<2x32xf32, #tpu.memory_space<vmem>>, vector<2x32xf32>
    tpu.vector_store %arg18[%c0_434, %c0_435], %1424 {strides = array<i32>} : memref<2x32xf32, #tpu.memory_space<vmem>>, vector<2x32xf32>,
    %c0_436 = arith.constant 0 : index
    %c0_437 = arith.constant 0 : index
    %1484 = vector.load %arg19[%c0_436, %c0_437] : memref<2x32xf32, #tpu.memory_space<vmem>>, vector<2x32xf32>
    tpu.vector_store %arg19[%c0_436, %c0_437], %1466 {strides = array<i32>} : memref<2x32xf32, #tpu.memory_space<vmem>>, vector<2x32xf32>,
    return
  }
}

</mosaic_0001>

<llo_original>
// kernel: tpu_custom_call.1
$region0: #{tpu_custom_call.1}
  #allocation0 [shape = 'u32[]', space=smem, size = 0x4, offset = 0x4, fixed_abs, tag = 'smem constant byte address 0x4 - core index']
  #allocation1 [shape = 'u32[144,128]{1,0:T(1,128)}', space=vmem, size = 0x12000, scoped, tag = 'internal scratch']
  %s0 = inlined_call_operand.hbm [shape: s32[8], index: 0, kind: input, shape index: {}]
  %s1 = inlined_call_operand.hbm [shape: bf16[8,32], index: 1, kind: input, shape index: {}]
  %s2 = inlined_call_operand.hbm [shape: f32[1,32], index: 2, kind: input, shape index: {}]
  %s3 = inlined_call_operand.hbm [shape: f32[2,32], index: 3, kind: input, shape index: {}]
  %s4 = inlined_call_operand.hbm [shape: f32[2,32], index: 4, kind: input, shape index: {}]
  %s5 = inlined_call_operand.hbm [shape: bf16[32,480], index: 5, kind: input, shape index: {}]
  %s6 = inlined_call_operand.hbm [shape: bf16[32,96], index: 6, kind: input, shape index: {}]
  %s7 = inlined_call_operand.hbm [shape: bf16[32,384], index: 7, kind: input, shape index: {}]
  %s8 = inlined_call_operand.hbm [shape: bf16[32,384], index: 8, kind: input, shape index: {}]
  %s9 = inlined_call_operand.hbm [shape: bf16[32,192], index: 9, kind: input, shape index: {}]
  %s10 = inlined_call_operand.hbm [shape: bf16[32,192], index: 10, kind: input, shape index: {}]
  %s11 = inlined_call_operand.vmem [shape: f32[1,480], index: 11, kind: input, shape index: {}]
  %s12 = inlined_call_operand.vmem [shape: f32[1,32], index: 12, kind: input, shape index: {}]
  %s13 = inlined_call_operand.vmem [shape: f32[4,32], index: 13, kind: input, shape index: {}]
  %s14 = inlined_call_operand.vmem [shape: f32[2,96], index: 14, kind: input, shape index: {}]
  %s15 = inlined_call_operand.vmem [shape: f32[2,32], index: 15, kind: input, shape index: {}]
  %s16 = inlined_call_operand.hbm [shape: f32[8,32], index: 16, kind: output, shape index: {0}]
  %s17 = inlined_call_operand.hbm [shape: f32[8,32], index: 17, kind: output, shape index: {1}]
  %s18 = inlined_call_operand.hbm [shape: f32[2,32], index: 18, kind: output, shape index: {2}]
  %s19 = inlined_call_operand.hbm [shape: f32[2,32], index: 19, kind: output, shape index: {3}]
  %20 = xla_tuple %s16, %s17, %s18, %s19
  %s21 = sld [smem:[#allocation0]]
  $region142: #{tpu_custom_call.1} parent=0
    _
  %s23 = ssub.s32 1, %s21
  %s24 = scalar_select 0, %s23, %s21
  $region1: #{tpu_custom_call.1} parent=0
    #allocation2 [shape = 'u8[512]{0}', space=smem, size = 0x200, scoped, tag = 'input window, operand 0, single buffered']
    #allocation3 [shape = 's32[1]{0}', space=sflag, size = 0x4, scoped, tag = 'scoped memory for tpu_custom_call.1']
    #allocation4 [shape = 's32[1]{0}', space=sflag, size = 0x4, scoped, tag = 'scoped memory for tpu_custom_call.1']
    #allocation5 [shape = 's32[1]{0}', space=sflag, size = 0x4, scoped, tag = 'scoped memory for tpu_custom_call.1']
    #allocation6 [shape = 'u8[2048]{0}', space=vmem, size = 0x800, scoped, tag = 'input window, operand 1, single buffered']
    #allocation7 [shape = 'u8[512]{0}', space=vmem, size = 0x400, scoped, tag = 'input window, operand 2, single buffered']
    #allocation8 [shape = 's32[1]{0}', space=sflag, size = 0x4, scoped, tag = 'scoped memory for tpu_custom_call.1']
    #allocation9 [shape = 'u8[1024]{0}', space=vmem, size = 0x400, scoped, tag = 'input window, operand 3, single buffered']
    #allocation10 [shape = 'u8[1024]{0}', space=vmem, size = 0x400, scoped, tag = 'input window, operand 4, single buffered']
    #allocation11 [shape = 's32[1]{0}', space=sflag, size = 0x4, scoped, tag = 'scoped memory for tpu_custom_call.1']
    #allocation12 [shape = 'u8[32768]{0}', space=vmem, size = 0x8000, scoped, tag = 'input window, operand 5, single buffered']
    #allocation13 [shape = 'u8[8192]{0}', space=vmem, size = 0x2000, scoped, tag = 'input window, operand 6, single buffered']
    #allocation14 [shape = 's32[1]{0}', space=sflag, size = 0x4, scoped, tag = 'scoped memory for tpu_custom_call.1']
    #allocation15 [shape = 'u8[24576]{0}', space=vmem, size = 0x6000, scoped, tag = 'input window, operand 7, single buffered']
    #allocation16 [shape = 'u8[24576]{0}', space=vmem, size = 0x6000, scoped, tag = 'input window, operand 8, single buffered']
    #allocation17 [shape = 's32[1]{0}', space=sflag, size = 0x4, scoped, tag = 'scoped memory for tpu_custom_call.1']
    #allocation18 [shape = 'u8[16384]{0}', space=vmem, size = 0x4000, scoped, tag = 'input window, operand 9, single buffered']
    #allocation19 [shape = 'u8[16384]{0}', space=vmem, size = 0x4000, scoped, tag = 'input window, operand 10, single buffered']
    #allocation20 [shape = 's32[1]{0}', space=sflag, size = 0x4, scoped, tag = 'scoped memory for tpu_custom_call.1']
    #allocation21 [shape = 'u8[4096]{0}', space=vmem, size = 0x1000, scoped, tag = 'output window, operand 0, single buffered']
    #allocation22 [shape = 'u8[4096]{0}', space=vmem, size = 0x1000, scoped, tag = 'output window, operand 1, single buffered']
    #allocation23 [shape = 's32[1]{0}', space=sflag, size = 0x4, scoped, tag = 'scoped memory for tpu_custom_call.1']
    #allocation24 [shape = 'u8[1024]{0}', space=vmem, size = 0x400, scoped, tag = 'output window, operand 2, single buffered']
    #allocation25 [shape = 'u8[1024]{0}', space=vmem, size = 0x400, scoped, tag = 'output window, operand 3, single buffered']
    #allocation26 [shape = 's32[1]{0}', space=sflag, size = 0x4, scoped, tag = 'scoped memory for tpu_custom_call.1']
    %25 = vsyncpa [#allocation5], 0
    %26 = vsyncpa [#allocation3], 0
    %27 = vsyncpa [#allocation8], 0
    %28 = vsyncpa [#allocation11], 0
    %29 = vsyncpa [#allocation14], 0
    %30 = vsyncpa [#allocation17], 0
    %31 = vsyncpa [#allocation20], 0
    %32 = vsyncpa [#allocation4], 0
    %33 = vsyncpa [#allocation23], 0
    %34 = vsyncpa [#allocation26], 0
    // Predicated region
    $region2: #{tpu_custom_call.1} parent=1 // pred_check
      _
    $region3: #{tpu_custom_call.1} parent=1 // pred_check_branch
      %36 = sbr.rel (0) target = $region5
    $region4: #{tpu_custom_call.1} parent=1 // pred_region
      %s38 = ssub.s32 16, 16
      %39 = vsyncadd [#allocation5], %s38
      %42 = dma.hbm_to_smem %s0, 16, [#allocation2], [#allocation5]
    $region5: #{tpu_custom_call.1} parent=1 // pred_fallthru
      _
    // Predicated region
    $region6: #{tpu_custom_call.1} parent=1 // pred_check
      _
    $region7: #{tpu_custom_call.1} parent=1 // pred_check_branch
      %44 = sbr.rel (0) target = $region9
    $region8: #{tpu_custom_call.1} parent=1 // pred_region
      %s46 = ssub.s32 64, 64
      %47 = vsyncadd [#allocation3], %s46
      %s49 = sshll.u32 [#allocation6], 4
      %s50 = int_to_ptr.vmem [resolvable:$true] %s49
      %52 = dma.hbm_to_vmem [thread:$0]  %s1, 64, %s50, [#allocation3]
    $region9: #{tpu_custom_call.1} parent=1 // pred_fallthru
      _
    // Predicated region
    $region10: #{tpu_custom_call.1} parent=1 // pred_check
      _
    $region11: #{tpu_custom_call.1} parent=1 // pred_check_branch
      %54 = sbr.rel (0) target = $region13
    $region12: #{tpu_custom_call.1} parent=1 // pred_region
      %s56 = ssub.s32 16, 16
      %57 = vsyncadd [#allocation8], %s56
      %s59 = sshll.u32 [#allocation7], 4
      %s60 = int_to_ptr.vmem [resolvable:$true] %s59
      %62 = dma.hbm_to_vmem [thread:$0]  %s2, 16, %s60, [#allocation8]
    $region13: #{tpu_custom_call.1} parent=1 // pred_fallthru
      _
    // Predicated region
    $region14: #{tpu_custom_call.1} parent=1 // pred_check
      _
    $region15: #{tpu_custom_call.1} parent=1 // pred_check_branch
      %64 = sbr.rel (0) target = $region17
    $region16: #{tpu_custom_call.1} parent=1 // pred_region
      %s66 = ssub.s32 32, 32
      %67 = vsyncadd [#allocation8], %s66
      %s69 = sshll.u32 [#allocation9], 4
      %s70 = int_to_ptr.vmem [resolvable:$true] %s69
      %72 = dma.hbm_to_vmem [thread:$0]  %s3, 32, %s70, [#allocation8]
    $region17: #{tpu_custom_call.1} parent=1 // pred_fallthru
      _
    // Predicated region
    $region18: #{tpu_custom_call.1} parent=1 // pred_check
      _
    $region19: #{tpu_custom_call.1} parent=1 // pred_check_branch
      %74 = sbr.rel (0) target = $region21
    $region20: #{tpu_custom_call.1} parent=1 // pred_region
      %s76 = ssub.s32 32, 32
      %77 = vsyncadd [#allocation11], %s76
      %s79 = sshll.u32 [#allocation10], 4
      %s80 = int_to_ptr.vmem [resolvable:$true] %s79
      %82 = dma.hbm_to_vmem [thread:$0]  %s4, 32, %s80, [#allocation11]
    $region21: #{tpu_custom_call.1} parent=1 // pred_fallthru
      _
    // Predicated region
    $region22: #{tpu_custom_call.1} parent=1 // pred_check
      _
    $region23: #{tpu_custom_call.1} parent=1 // pred_check_branch
      %84 = sbr.rel (0) target = $region25
    $region24: #{tpu_custom_call.1} parent=1 // pred_region
      %s86 = ssub.s32 1024, 1024
      %87 = vsyncadd [#allocation11], %s86
      %s88 = sshll.u32 [#allocation12], 4
      %s89 = int_to_ptr.vmem [resolvable:$true] %s88
      %94 = dma.hbm_to_vmem [thread:$0]  %s5, 1024, %s89, [#allocation11], 256, 256, 16
    $region25: #{tpu_custom_call.1} parent=1 // pred_fallthru
      _
    // Predicated region
    $region26: #{tpu_custom_call.1} parent=1 // pred_check
      _
    $region27: #{tpu_custom_call.1} parent=1 // pred_check_branch
      %96 = sbr.rel (0) target = $region29
    $region28: #{tpu_custom_call.1} parent=1 // pred_region
      %s98 = ssub.s32 256, 256
      %99 = vsyncadd [#allocation14], %s98
      %s100 = sshll.u32 [#allocation13], 4
      %s101 = int_to_ptr.vmem [resolvable:$true] %s100
      %106 = dma.hbm_to_vmem [thread:$0]  %s6, 256, %s101, [#allocation14], 64, 64, 4
    $region29: #{tpu_custom_call.1} parent=1 // pred_fallthru
      _
    // Predicated region
    $region30: #{tpu_custom_call.1} parent=1 // pred_check
      _
    $region31: #{tpu_custom_call.1} parent=1 // pred_check_branch
      %108 = sbr.rel (0) target = $region33
    $region32: #{tpu_custom_call.1} parent=1 // pred_region
      %s110 = ssub.s32 768, 768
      %111 = vsyncadd [#allocation14], %s110
      %s112 = sshll.u32 [#allocation15], 4
      %s113 = int_to_ptr.vmem [resolvable:$true] %s112
      %118 = dma.hbm_to_vmem [thread:$0]  %s7, 768, %s113, [#allocation14], 192, 192, 12
    $region33: #{tpu_custom_call.1} parent=1 // pred_fallthru
      _
    // Predicated region
    $region34: #{tpu_custom_call.1} parent=1 // pred_check
      _
    $region35: #{tpu_custom_call.1} parent=1 // pred_check_branch
      %120 = sbr.rel (0) target = $region37
    $region36: #{tpu_custom_call.1} parent=1 // pred_region
      %s122 = ssub.s32 768, 768
      %123 = vsyncadd [#allocation17], %s122
      %s124 = sshll.u32 [#allocation16], 4
      %s125 = int_to_ptr.vmem [resolvable:$true] %s124
      %130 = dma.hbm_to_vmem [thread:$0]  %s8, 768, %s125, [#allocation17], 192, 192, 12
    $region37: #{tpu_custom_call.1} parent=1 // pred_fallthru
      _
    // Predicated region
    $region38: #{tpu_custom_call.1} parent=1 // pred_check
      _
    $region39: #{tpu_custom_call.1} parent=1 // pred_check_branch
      %132 = sbr.rel (0) target = $region41
    $region40: #{tpu_custom_call.1} parent=1 // pred_region
      %s134 = ssub.s32 512, 512
      %135 = vsyncadd [#allocation17], %s134
      %s136 = sshll.u32 [#allocation18], 4
      %s137 = int_to_ptr.vmem [resolvable:$true] %s136
      %142 = dma.hbm_to_vmem [thread:$0]  %s9, 512, %s137, [#allocation17], 128, 128, 8
    $region41: #{tpu_custom_call.1} parent=1 // pred_fallthru
      _
    // Predicated region
    $region42: #{tpu_custom_call.1} parent=1 // pred_check
      _
    $region43: #{tpu_custom_call.1} parent=1 // pred_check_branch
      %144 = sbr.rel (0) target = $region45
    $region44: #{tpu_custom_call.1} parent=1 // pred_region
      %s146 = ssub.s32 512, 512
      %147 = vsyncadd [#allocation20], %s146
      %s148 = sshll.u32 [#allocation19], 4
      %s149 = int_to_ptr.vmem [resolvable:$true] %s148
      %154 = dma.hbm_to_vmem [thread:$0]  %s10, 512, %s149, [#allocation20], 128, 128, 8
    $region45: #{tpu_custom_call.1} parent=1 // pred_fallthru
      _
    // Predicated region
    $region46: #{tpu_custom_call.1} parent=1 // pred_check
      _
    $region47: #{tpu_custom_call.1} parent=1 // pred_check_branch
      %156 = sbr.rel (0) target = $region49
    $region48: #{tpu_custom_call.1} parent=1 // pred_region
      _
    $region49: #{tpu_custom_call.1} parent=1 // pred_fallthru
      _
    // Predicated region
    $region50: #{tpu_custom_call.1} parent=1 // pred_check
      _
    $region51: #{tpu_custom_call.1} parent=1 // pred_check_branch
      %158 = sbr.rel (0) target = $region53
    $region52: #{tpu_custom_call.1} parent=1 // pred_region
      _
    $region53: #{tpu_custom_call.1} parent=1 // pred_fallthru
      _
    // Predicated region
    $region54: #{tpu_custom_call.1} parent=1 // pred_check
      _
    $region55: #{tpu_custom_call.1} parent=1 // pred_check_branch
      %160 = sbr.rel (0) target = $region57
    $region56: #{tpu_custom_call.1} parent=1 // pred_region
      _
    $region57: #{tpu_custom_call.1} parent=1 // pred_fallthru
      _
    // Predicated region
    $region58: #{tpu_custom_call.1} parent=1 // pred_check
      _
    $region59: #{tpu_custom_call.1} parent=1 // pred_check_branch
      %162 = sbr.rel (0) target = $region61
    $region60: #{tpu_custom_call.1} parent=1 // pred_region
      _
    $region61: #{tpu_custom_call.1} parent=1 // pred_fallthru
      _
    // Predicated region
    $region62: #{tpu_custom_call.1} parent=1 // pred_check
      _
    $region63: #{tpu_custom_call.1} parent=1 // pred_check_branch
      %164 = sbr.rel (0) target = $region65
    $region64: #{tpu_custom_call.1} parent=1 // pred_region
      _
    $region65: #{tpu_custom_call.1} parent=1 // pred_fallthru
      _
    // Predicated region
    $region66: #{tpu_custom_call.1} parent=1 // pred_check
      _
    $region67: #{tpu_custom_call.1} parent=1 // pred_check_branch
      %166 = sbr.rel (0) target = $region69
    $region68: #{tpu_custom_call.1} parent=1 // pred_region
      %167 = dma.done [#allocation5], 16
    $region69: #{tpu_custom_call.1} parent=1 // pred_fallthru
      _
    // Predicated region
    $region70: #{tpu_custom_call.1} parent=1 // pred_check
      _
    $region71: #{tpu_custom_call.1} parent=1 // pred_check_branch
      %169 = sbr.rel (0) target = $region73
    $region72: #{tpu_custom_call.1} parent=1 // pred_region
      %170 = dma.done [#allocation3], 64
    $region73: #{tpu_custom_call.1} parent=1 // pred_fallthru
      _
    // Predicated region
    $region74: #{tpu_custom_call.1} parent=1 // pred_check
      _
    $region75: #{tpu_custom_call.1} parent=1 // pred_check_branch
      %172 = sbr.rel (0) target = $region77
    $region76: #{tpu_custom_call.1} parent=1 // pred_region
      %173 = dma.done [#allocation8], 16
    $region77: #{tpu_custom_call.1} parent=1 // pred_fallthru
      _
    // Predicated region
    $region78: #{tpu_custom_call.1} parent=1 // pred_check
      _
    $region79: #{tpu_custom_call.1} parent=1 // pred_check_branch
      %175 = sbr.rel (0) target = $region81
    $region80: #{tpu_custom_call.1} parent=1 // pred_region
      %176 = dma.done [#allocation8], 32
    $region81: #{tpu_custom_call.1} parent=1 // pred_fallthru
      _
    // Predicated region
    $region82: #{tpu_custom_call.1} parent=1 // pred_check
      _
    $region83: #{tpu_custom_call.1} parent=1 // pred_check_branch
      %178 = sbr.rel (0) target = $region85
    $region84: #{tpu_custom_call.1} parent=1 // pred_region
      %179 = dma.done [#allocation11], 32
    $region85: #{tpu_custom_call.1} parent=1 // pred_fallthru
      _
    // Predicated region
    $region86: #{tpu_custom_call.1} parent=1 // pred_check
      _
    $region87: #{tpu_custom_call.1} parent=1 // pred_check_branch
      %181 = sbr.rel (0) target = $region89
    $region88: #{tpu_custom_call.1} parent=1 // pred_region
      %182 = dma.done [#allocation11], 1024
    $region89: #{tpu_custom_call.1} parent=1 // pred_fallthru
      _
    // Predicated region
    $region90: #{tpu_custom_call.1} parent=1 // pred_check
      _
    $region91: #{tpu_custom_call.1} parent=1 // pred_check_branch
      %184 = sbr.rel (0) target = $region93
    $region92: #{tpu_custom_call.1} parent=1 // pred_region
      %185 = dma.done [#allocation14], 256
    $region93: #{tpu_custom_call.1} parent=1 // pred_fallthru
      _
    // Predicated region
    $region94: #{tpu_custom_call.1} parent=1 // pred_check
      _
    $region95: #{tpu_custom_call.1} parent=1 // pred_check_branch
      %187 = sbr.rel (0) target = $region97
    $region96: #{tpu_custom_call.1} parent=1 // pred_region
      %188 = dma.done [#allocation14], 768
    $region97: #{tpu_custom_call.1} parent=1 // pred_fallthru
      _
    // Predicated region
    $region98: #{tpu_custom_call.1} parent=1 // pred_check
      _
    $region99: #{tpu_custom_call.1} parent=1 // pred_check_branch
      %190 = sbr.rel (0) target = $region101
    $region100: #{tpu_custom_call.1} parent=1 // pred_region
      %191 = dma.done [#allocation17], 768
    $region101: #{tpu_custom_call.1} parent=1 // pred_fallthru
      _
    // Predicated region
    $region102: #{tpu_custom_call.1} parent=1 // pred_check
      _
    $region103: #{tpu_custom_call.1} parent=1 // pred_check_branch
      %193 = sbr.rel (0) target = $region105
    $region104: #{tpu_custom_call.1} parent=1 // pred_region
      %194 = dma.done [#allocation17], 512
    $region105: #{tpu_custom_call.1} parent=1 // pred_fallthru
      _
    // Predicated region
    $region106: #{tpu_custom_call.1} parent=1 // pred_check
      _
    $region107: #{tpu_custom_call.1} parent=1 // pred_check_branch
      %196 = sbr.rel (0) target = $region109
    $region108: #{tpu_custom_call.1} parent=1 // pred_region
      %197 = dma.done [#allocation20], 512
    $region109: #{tpu_custom_call.1} parent=1 // pred_fallthru
      _
    %198 = sfence
    %v200 = vld [vmem:[#allocation6] sm:$0xf]
    %v201 = vld [vmem:[#allocation12] sm:$0xff]
    %v202 = vld [vmem:[#allocation12 + $0x8] sm:$0xff]
    %v203 = vld [vmem:[#allocation12 + $0x10] sm:$0xff]
    %v204 = vld [vmem:[#allocation12 + $0x18] sm:$0xff]
    %v205 = vld [vmem:[#allocation12 + $0x20] sm:$0xff]
    %v206 = vld [vmem:[#allocation12 + $0x28] sm:$0xff]
    %v207 = vld [vmem:[#allocation12 + $0x30] sm:$0xff]
    %v208 = vld [vmem:[#allocation12 + $0x38] sm:$0xff]
    %v209 = vld [vmem:[%s11] sm:$0xf]
    %v211 = vlaneseq
    %v212 = vshrl.u32 %v211, 7
    %v213 = vsub.s32 0, %v212
    %v214 = vrot.slane %v209, %v213
    %v215 = vlaneseq
    %v216 = vshrl.u32 %v215, 7
    %v217 = vsub.s32 1, %v216
    %v218 = vrot.slane %v209, %v217
    %v219 = vlaneseq
    %v220 = vshrl.u32 %v219, 7
    %v221 = vsub.s32 2, %v220
    %v222 = vrot.slane %v209, %v221
    %v223 = vlaneseq
    %v224 = vshrl.u32 %v223, 7
    %v225 = vsub.s32 3, %v224
    %v226 = vrot.slane %v209, %v225
    %v239 = vunpack.c.l.b16 %v201
    %v240 = vunpack.c.h.b16 %v201
    %v241 = vunpack.c.l.b16 %v202
    %v242 = vunpack.c.h.b16 %v202
    %v243 = vunpack.c.l.b16 %v203
    %v244 = vunpack.c.h.b16 %v203
    %v245 = vunpack.c.l.b16 %v204
    %v246 = vunpack.c.h.b16 %v204
    %v247 = vunpack.c.l.b16 %v205
    %v248 = vunpack.c.h.b16 %v205
    %v249 = vunpack.c.l.b16 %v206
    %v250 = vunpack.c.h.b16 %v206
    %v251 = vunpack.c.l.b16 %v207
    %v252 = vunpack.c.h.b16 %v207
    %v253 = vunpack.c.l.b16 %v208
    %v254 = vunpack.c.h.b16 %v208
    %v255 = vpack.c.b16 %v243, %v239
    %v256 = vpack.c.b16 %v244, %v240
    %v257 = vpack.c.b16 %v245, %v241
    %v258 = vpack.c.b16 %v246, %v242
    %v259 = vpack.c.b16 %v251, %v247
    %v260 = vpack.c.b16 %v252, %v248
    %v261 = vpack.c.b16 %v253, %v249
    %v262 = vpack.c.b16 %v254, %v250
    %vm271 = vcmask 261120
    %v273 = vsel %vm271, %v200, 0
    %275 = vmatprep.subr.bf16.mxu0 0
    %276 = vmatpush1.bf16.msra.mxu0 0
    %277 = vmatprep.subr.bf16.mxu0 0
    %278 = vmatpush1.bf16.msra.mxu0 0
    %279 = vmatprep.subr.bf16.mxu0 0
    %280 = vmatpush1.bf16.msra.mxu0 0
    %281 = vmatprep.subr.bf16.mxu0 0
    %282 = vmatpush1.bf16.msra.mxu0 0
    %283 = vmatprep.subr.bf16.mxu0 0
    %284 = vmatpush1.bf16.msra.mxu0 0
    %285 = vmatprep.subr.bf16.mxu0 0
    %286 = vmatpush1.bf16.msra.mxu0 0
    %287 = vmatprep.subr.bf16.mxu0 %v260
    %288 = vmatpush1.bf16.msra.mxu0 %v259
    %289 = vmatprep.subr.bf16.mxu0 %v256
    %290 = vmatpush1.bf16.msra.mxu0 %v255
    %291 = vmatprep.subr.bf16.mxu0 0
    %292 = vmatpush2.bf16.msra.mxu0 0
    %293 = vmatprep.subr.bf16.mxu0 0
    %294 = vmatpush2.bf16.msra.mxu0 0
    %295 = vmatprep.subr.bf16.mxu0 0
    %296 = vmatpush2.bf16.msra.mxu0 0
    %297 = vmatprep.subr.bf16.mxu0 0
    %298 = vmatpush2.bf16.msra.mxu0 0
    %299 = vmatprep.subr.bf16.mxu0 0
    %300 = vmatpush2.bf16.msra.mxu0 0
    %301 = vmatprep.subr.bf16.mxu0 0
    %302 = vmatpush2.bf16.msra.mxu0 0
    %303 = vmatprep.subr.bf16.mxu0 0
    %304 = vmatpush2.bf16.msra.mxu0 0
    %305 = vmatprep.subr.bf16.mxu0 0
    %306 = vmatpush2.bf16.msra.mxu0 0
    %307 = vmatprep.mubr.bf16.mxu0 0
    %308 = vmatmul.mubr.bf16.gmra.mxu0 %v273
    %v309 = vpop.f32.mrf.mxu0
    %v310 = vadd.f32 %v214, %v309
    %v311 = vpop.f32.mrf.mxu0
    %v312 = vadd.f32 %v218, %v311
    %v313 = vpop.f32.mrf.mxu0
    %v314 = vpop.f32.mrf.mxu0
    %315 = vdwg.mxu0
    %316 = vmatprep.subr.bf16.mxu0 0
    %317 = vmatpush1.bf16.msra.mxu0 0
    %318 = vmatprep.subr.bf16.mxu0 0
    %319 = vmatpush1.bf16.msra.mxu0 0
    %320 = vmatprep.subr.bf16.mxu0 0
    %321 = vmatpush1.bf16.msra.mxu0 0
    %322 = vmatprep.subr.bf16.mxu0 0
    %323 = vmatpush1.bf16.msra.mxu0 0
    %324 = vmatprep.subr.bf16.mxu0 0
    %325 = vmatpush1.bf16.msra.mxu0 0
    %326 = vmatprep.subr.bf16.mxu0 0
    %327 = vmatpush1.bf16.msra.mxu0 0
    %328 = vmatprep.subr.bf16.mxu0 %v262
    %329 = vmatpush1.bf16.msra.mxu0 %v261
    %330 = vmatprep.subr.bf16.mxu0 %v258
    %331 = vmatpush1.bf16.msra.mxu0 %v257
    %332 = vmatprep.subr.bf16.mxu0 0
    %333 = vmatpush2.bf16.msra.mxu0 0
    %334 = vmatprep.subr.bf16.mxu0 0
    %335 = vmatpush2.bf16.msra.mxu0 0
    %336 = vmatprep.subr.bf16.mxu0 0
    %337 = vmatpush2.bf16.msra.mxu0 0
    %338 = vmatprep.subr.bf16.mxu0 0
    %339 = vmatpush2.bf16.msra.mxu0 0
    %340 = vmatprep.subr.bf16.mxu0 0
    %341 = vmatpush2.bf16.msra.mxu0 0
    %342 = vmatprep.subr.bf16.mxu0 0
    %343 = vmatpush2.bf16.msra.mxu0 0
    %344 = vmatprep.subr.bf16.mxu0 0
    %345 = vmatpush2.bf16.msra.mxu0 0
    %346 = vmatprep.subr.bf16.mxu0 0
    %347 = vmatpush2.bf16.msra.mxu0 0
    %348 = vmatprep.mubr.bf16.mxu0 0
    %349 = vmatmul.mubr.bf16.gmra.mxu0 %v273
    %v350 = vpop.f32.mrf.mxu0
    %v351 = vadd.f32 %v222, %v350
    %v352 = vpop.f32.mrf.mxu0
    %v353 = vadd.f32 %v226, %v352
    %v354 = vpop.f32.mrf.mxu0
    %v355 = vpop.f32.mrf.mxu0
    %356 = vdwg.mxu0
    %v357 = vld [vmem:[#allocation7] sm:$0x1]
    %v358 = vld [vmem:[#allocation9] sm:$0x3]
    %v359 = vld [vmem:[#allocation10] sm:$0x3]
    %s360 = sld [smem:[#allocation2]]
    %v361 = vpack.c.bf16 %v357, %v357
    %v362 = vld [vmem:[#allocation13] sm:$0xf]
    %v363 = vld [vmem:[#allocation13 + $0x4] sm:$0xf]
    %v364 = vld [vmem:[#allocation13 + $0x8] sm:$0xf]
    %v365 = vld [vmem:[#allocation13 + $0xc] sm:$0xf]
    %v370 = vunpack.c.l.b16 %v362
    %v371 = vunpack.c.l.b16 %v363
    %v372 = vunpack.c.l.b16 %v364
    %v373 = vunpack.c.l.b16 %v365
    %v374 = vpack.c.b16 %v371, %v370
    %v375 = vpack.c.b16 %v373, %v372
    %v379 = vsel %vm271, %v361, 0
    %381 = vmatprep.subr.bf16.mxu0 0
    %382 = vmatpush1.bf16.msra.mxu0 0
    %383 = vmatprep.subr.bf16.mxu0 0
    %384 = vmatpush1.bf16.msra.mxu0 0
    %385 = vmatprep.subr.bf16.mxu0 0
    %386 = vmatpush1.bf16.msra.mxu0 0
    %387 = vmatprep.subr.bf16.mxu0 0
    %388 = vmatpush1.bf16.msra.mxu0 0
    %389 = vmatprep.subr.bf16.mxu0 0
    %390 = vmatpush1.bf16.msra.mxu0 0
    %391 = vmatprep.subr.bf16.mxu0 0
    %392 = vmatpush1.bf16.msra.mxu0 0
    %393 = vmatprep.subr.bf16.mxu0 0
    %394 = vmatpush1.bf16.msra.mxu0 %v375
    %395 = vmatprep.subr.bf16.mxu0 0
    %396 = vmatpush1.bf16.msra.mxu0 %v374
    %397 = vmatprep.subr.bf16.mxu0 0
    %398 = vmatpush2.bf16.msra.mxu0 0
    %399 = vmatprep.subr.bf16.mxu0 0
    %400 = vmatpush2.bf16.msra.mxu0 0
    %401 = vmatprep.subr.bf16.mxu0 0
    %402 = vmatpush2.bf16.msra.mxu0 0
    %403 = vmatprep.subr.bf16.mxu0 0
    %404 = vmatpush2.bf16.msra.mxu0 0
    %405 = vmatprep.subr.bf16.mxu0 0
    %406 = vmatpush2.bf16.msra.mxu0 0
    %407 = vmatprep.subr.bf16.mxu0 0
    %408 = vmatpush2.bf16.msra.mxu0 0
    %409 = vmatprep.subr.bf16.mxu0 0
    %410 = vmatpush2.bf16.msra.mxu0 0
    %411 = vmatprep.subr.bf16.mxu0 0
    %412 = vmatpush2.bf16.msra.mxu0 0
    %413 = vmatprep.mubr.bf16.mxu0 0
    %414 = vmatmul.mubr.bf16.gmra.mxu0 %v379
    %v415 = vpop.f32.mrf.mxu0
    %v416 = vadd.f32 0.0, %v415
    %v417 = vpop.f32.mrf.mxu0
    %v418 = vpop.f32.mrf.mxu0
    %v419 = vpop.f32.mrf.mxu0
    %420 = vdwg.mxu0
    %v421 = vadd.f32 %v310, %v416
    %v422 = vxor.u32 %v421, 2147483648
    %v423 = vmul.f32 %v422, 1.442695
    %v424 = vpow.pop %v423
    %v425 = vadd.f32 %v424, 1.0
    %v426 = vrcp.pop %v425
    %v427 = vmul.f32 1.0, %v426
    %v428 = vld [vmem:[%s12] sm:$0x1]
    %v430 = vlaneseq
    %v431 = vshrl.u32 %v430, 7
    %v432 = vsub.s32 0, %v431
    %v433 = vrot.slane %v428, %v432
    %434 = vrot.lane.b32.xlu0 %v433, 64
    %v435 = vpop.permute.xlu0 %434
    %v437 = vadd.f32 %v416, %v435
    %439 = vrot.lane.b32.xlu0 %v437, 64
    %v440 = vpop.permute.xlu0 %439
    %v442 = vmul.f32 %v427, %v440
    %444 = vrot.lane.b32.xlu0 %v442, 64
    %v445 = vpop.permute.xlu0 %444
    %v447 = vadd.f32 %v310, %v445
    %v448 = vtanh.pop %v447
    %v449 = vsub.f32 1.0, %v427
    %451 = vrot.lane.b32.xlu0 %v448, 96
    %v452 = vpop.permute.xlu0 %451
    %v454 = vmul.f32 %v449, %v452
    %v456 = vlaneseq
    %v457 = vshrl.u32 %v456, 7
    %v458 = vsub.s32 0, %v457
    %v459 = vrot.slane %v357, %v458
    %460 = vrot.lane.b32.xlu0 %v459, 32
    %v461 = vpop.permute.xlu0 %460
    %v463 = vmul.f32 %v427, %v461
    %v464 = vadd.f32 %v454, %v463
    %466 = vrot.lane.b32.xlu0 %v464, 96
    %v467 = vpop.permute.xlu0 %466
    %vm469 = vcmask 253952
    %470 = vst.msk [vmem:[#allocation22] sm:$0x1] %vm469, %v467
    %v471 = vpack.c.bf16 %v464, %v464
    %v472 = vld [vmem:[#allocation15] sm:$0xff]
    %v473 = vld [vmem:[#allocation15 + $0x8] sm:$0xf]
    %v474 = vld [vmem:[#allocation15 + $0xc] sm:$0xff]
    %v475 = vld [vmem:[#allocation15 + $0x14] sm:$0xf]
    %v476 = vld [vmem:[#allocation15 + $0x18] sm:$0xff]
    %v477 = vld [vmem:[#allocation15 + $0x20] sm:$0xf]
    %v478 = vld [vmem:[#allocation15 + $0x24] sm:$0xff]
    %v479 = vld [vmem:[#allocation15 + $0x2c] sm:$0xf]
    %481 = vrot.lane.b32.xlu0 %v471, 96
    %v482 = vpop.permute.xlu0 %481
    %v491 = vunpack.c.l.b16 %v472
    %v492 = vunpack.c.h.b16 %v472
    %v493 = vunpack.c.l.b16 %v473
    %v494 = vunpack.c.l.b16 %v474
    %v495 = vunpack.c.h.b16 %v474
    %v496 = vunpack.c.l.b16 %v475
    %v497 = vunpack.c.l.b16 %v476
    %v498 = vunpack.c.h.b16 %v476
    %v499 = vunpack.c.l.b16 %v477
    %v500 = vunpack.c.l.b16 %v478
    %v501 = vunpack.c.h.b16 %v478
    %v502 = vunpack.c.l.b16 %v479
    %v503 = vpack.c.b16 %v494, %v491
    %v504 = vpack.c.b16 %v495, %v492
    %v505 = vpack.c.b16 %v496, %v493
    %v506 = vpack.c.b16 %v500, %v497
    %v507 = vpack.c.b16 %v501, %v498
    %v508 = vpack.c.b16 %v502, %v499
    %v516 = vsel %vm271, %v482, 0
    %518 = vmatprep.subr.bf16.mxu0 0
    %519 = vmatpush1.bf16.msra.mxu0 0
    %520 = vmatprep.subr.bf16.mxu0 0
    %521 = vmatpush1.bf16.msra.mxu0 0
    %522 = vmatprep.subr.bf16.mxu0 0
    %523 = vmatpush1.bf16.msra.mxu0 0
    %524 = vmatprep.subr.bf16.mxu0 0
    %525 = vmatpush1.bf16.msra.mxu0 0
    %526 = vmatprep.subr.bf16.mxu0 0
    %527 = vmatpush1.bf16.msra.mxu0 0
    %528 = vmatprep.subr.bf16.mxu0 0
    %529 = vmatpush1.bf16.msra.mxu0 0
    %530 = vmatprep.subr.bf16.mxu0 %v507
    %531 = vmatpush1.bf16.msra.mxu0 %v506
    %532 = vmatprep.subr.bf16.mxu0 %v504
    %533 = vmatpush1.bf16.msra.mxu0 %v503
    %534 = vmatprep.subr.bf16.mxu0 0
    %535 = vmatpush2.bf16.msra.mxu0 0
    %536 = vmatprep.subr.bf16.mxu0 0
    %537 = vmatpush2.bf16.msra.mxu0 0
    %538 = vmatprep.subr.bf16.mxu0 0
    %539 = vmatpush2.bf16.msra.mxu0 0
    %540 = vmatprep.subr.bf16.mxu0 0
    %541 = vmatpush2.bf16.msra.mxu0 0
    %542 = vmatprep.subr.bf16.mxu0 0
    %543 = vmatpush2.bf16.msra.mxu0 0
    %544 = vmatprep.subr.bf16.mxu0 0
    %545 = vmatpush2.bf16.msra.mxu0 0
    %546 = vmatprep.subr.bf16.mxu0 0
    %547 = vmatpush2.bf16.msra.mxu0 0
    %548 = vmatprep.subr.bf16.mxu0 0
    %549 = vmatpush2.bf16.msra.mxu0 0
    %550 = vmatprep.mubr.bf16.mxu0 0
    %551 = vmatmul.mubr.bf16.gmra.mxu0 %v516
    %v552 = vpop.f32.mrf.mxu0
    %v553 = vadd.f32 0.0, %v552
    %v554 = vpop.f32.mrf.mxu0
    %v555 = vadd.f32 0.0, %v554
    %v556 = vpop.f32.mrf.mxu0
    %v557 = vpop.f32.mrf.mxu0
    %558 = vdwg.mxu0
    %559 = vmatprep.subr.bf16.mxu0 0
    %560 = vmatpush1.bf16.msra.mxu0 0
    %561 = vmatprep.subr.bf16.mxu0 0
    %562 = vmatpush1.bf16.msra.mxu0 0
    %563 = vmatprep.subr.bf16.mxu0 0
    %564 = vmatpush1.bf16.msra.mxu0 0
    %565 = vmatprep.subr.bf16.mxu0 0
    %566 = vmatpush1.bf16.msra.mxu0 0
    %567 = vmatprep.subr.bf16.mxu0 0
    %568 = vmatpush1.bf16.msra.mxu0 0
    %569 = vmatprep.subr.bf16.mxu0 0
    %570 = vmatpush1.bf16.msra.mxu0 0
    %571 = vmatprep.subr.bf16.mxu0 0
    %572 = vmatpush1.bf16.msra.mxu0 %v508
    %573 = vmatprep.subr.bf16.mxu0 0
    %574 = vmatpush1.bf16.msra.mxu0 %v505
    %575 = vmatprep.subr.bf16.mxu0 0
    %576 = vmatpush2.bf16.msra.mxu0 0
    %577 = vmatprep.subr.bf16.mxu0 0
    %578 = vmatpush2.bf16.msra.mxu0 0
    %579 = vmatprep.subr.bf16.mxu0 0
    %580 = vmatpush2.bf16.msra.mxu0 0
    %581 = vmatprep.subr.bf16.mxu0 0
    %582 = vmatpush2.bf16.msra.mxu0 0
    %583 = vmatprep.subr.bf16.mxu0 0
    %584 = vmatpush2.bf16.msra.mxu0 0
    %585 = vmatprep.subr.bf16.mxu0 0
    %586 = vmatpush2.bf16.msra.mxu0 0
    %587 = vmatprep.subr.bf16.mxu0 0
    %588 = vmatpush2.bf16.msra.mxu0 0
    %589 = vmatprep.subr.bf16.mxu0 0
    %590 = vmatpush2.bf16.msra.mxu0 0
    %591 = vmatprep.mubr.bf16.mxu0 0
    %592 = vmatmul.mubr.bf16.gmra.mxu0 %v516
    %v593 = vpop.f32.mrf.mxu0
    %v594 = vadd.f32 0.0, %v593
    %v595 = vpop.f32.mrf.mxu0
    %v596 = vpop.f32.mrf.mxu0
    %v597 = vpop.f32.mrf.mxu0
    %598 = vdwg.mxu0
    %602 = vrot.lane.b32.xlu0 %v553, 96
    %v603 = vpop.permute.xlu0 %602
    %604 = vrot.lane.b32.xlu0 %v555, 96
    %v605 = vpop.permute.xlu0 %604
    %606 = vrot.lane.b32.xlu0 %v594, 96
    %v607 = vpop.permute.xlu0 %606
    %vm608 = vcmask 785408
    %v609 = vsel %vm608, %v603, %v605
    %v610 = vsel %vm608, %v605, %v607
    %v615 = vadd.f32 %v310, %v603
    %v616 = vadd.f32 %v312, %v609
    %v617 = vadd.f32 %v351, %v610
    %v618 = vadd.f32 %v353, %v607
    %v619 = vpack.c.bf16 %v358, %v358
    %v620 = vld [vmem:[#allocation16] sm:$0xff]
    %v621 = vld [vmem:[#allocation16 + $0x8] sm:$0xf]
    %v622 = vld [vmem:[#allocation16 + $0xc] sm:$0xff]
    %v623 = vld [vmem:[#allocation16 + $0x14] sm:$0xf]
    %v624 = vld [vmem:[#allocation16 + $0x18] sm:$0xff]
    %v625 = vld [vmem:[#allocation16 + $0x20] sm:$0xf]
    %v626 = vld [vmem:[#allocation16 + $0x24] sm:$0xff]
    %v627 = vld [vmem:[#allocation16 + $0x2c] sm:$0xf]
    %v636 = vunpack.c.l.b16 %v620
    %v637 = vunpack.c.h.b16 %v620
    %v638 = vunpack.c.l.b16 %v621
    %v639 = vunpack.c.l.b16 %v622
    %v640 = vunpack.c.h.b16 %v622
    %v641 = vunpack.c.l.b16 %v623
    %v642 = vunpack.c.l.b16 %v624
    %v643 = vunpack.c.h.b16 %v624
    %v644 = vunpack.c.l.b16 %v625
    %v645 = vunpack.c.l.b16 %v626
    %v646 = vunpack.c.h.b16 %v626
    %v647 = vunpack.c.l.b16 %v627
    %v648 = vpack.c.b16 %v639, %v636
    %v649 = vpack.c.b16 %v640, %v637
    %v650 = vpack.c.b16 %v641, %v638
    %v651 = vpack.c.b16 %v645, %v642
    %v652 = vpack.c.b16 %v646, %v643
    %v653 = vpack.c.b16 %v647, %v644
    %v661 = vsel %vm271, %v619, 0
    %663 = vmatprep.subr.bf16.mxu0 0
    %664 = vmatpush1.bf16.msra.mxu0 0
    %665 = vmatprep.subr.bf16.mxu0 0
    %666 = vmatpush1.bf16.msra.mxu0 0
    %667 = vmatprep.subr.bf16.mxu0 0
    %668 = vmatpush1.bf16.msra.mxu0 0
    %669 = vmatprep.subr.bf16.mxu0 0
    %670 = vmatpush1.bf16.msra.mxu0 0
    %671 = vmatprep.subr.bf16.mxu0 0
    %672 = vmatpush1.bf16.msra.mxu0 0
    %673 = vmatprep.subr.bf16.mxu0 0
    %674 = vmatpush1.bf16.msra.mxu0 0
    %675 = vmatprep.subr.bf16.mxu0 %v652
    %676 = vmatpush1.bf16.msra.mxu0 %v651
    %677 = vmatprep.subr.bf16.mxu0 %v649
    %678 = vmatpush1.bf16.msra.mxu0 %v648
    %679 = vmatprep.subr.bf16.mxu0 0
    %680 = vmatpush2.bf16.msra.mxu0 0
    %681 = vmatprep.subr.bf16.mxu0 0
    %682 = vmatpush2.bf16.msra.mxu0 0
    %683 = vmatprep.subr.bf16.mxu0 0
    %684 = vmatpush2.bf16.msra.mxu0 0
    %685 = vmatprep.subr.bf16.mxu0 0
    %686 = vmatpush2.bf16.msra.mxu0 0
    %687 = vmatprep.subr.bf16.mxu0 0
    %688 = vmatpush2.bf16.msra.mxu0 0
    %689 = vmatprep.subr.bf16.mxu0 0
    %690 = vmatpush2.bf16.msra.mxu0 0
    %691 = vmatprep.subr.bf16.mxu0 0
    %692 = vmatpush2.bf16.msra.mxu0 0
    %693 = vmatprep.subr.bf16.mxu0 0
    %694 = vmatpush2.bf16.msra.mxu0 0
    %695 = vmatprep.mubr.bf16.mxu0 0
    %696 = vmatmul.mubr.bf16.gmra.mxu0 %v661
    %v697 = vpop.f32.mrf.mxu0
    %v698 = vadd.f32 0.0, %v697
    %v699 = vpop.f32.mrf.mxu0
    %v700 = vadd.f32 0.0, %v699
    %v701 = vpop.f32.mrf.mxu0
    %v702 = vpop.f32.mrf.mxu0
    %703 = vdwg.mxu0
    %704 = vmatprep.subr.bf16.mxu0 0
    %705 = vmatpush1.bf16.msra.mxu0 0
    %706 = vmatprep.subr.bf16.mxu0 0
    %707 = vmatpush1.bf16.msra.mxu0 0
    %708 = vmatprep.subr.bf16.mxu0 0
    %709 = vmatpush1.bf16.msra.mxu0 0
    %710 = vmatprep.subr.bf16.mxu0 0
    %711 = vmatpush1.bf16.msra.mxu0 0
    %712 = vmatprep.subr.bf16.mxu0 0
    %713 = vmatpush1.bf16.msra.mxu0 0
    %714 = vmatprep.subr.bf16.mxu0 0
    %715 = vmatpush1.bf16.msra.mxu0 0
    %716 = vmatprep.subr.bf16.mxu0 0
    %717 = vmatpush1.bf16.msra.mxu0 %v653
    %718 = vmatprep.subr.bf16.mxu0 0
    %719 = vmatpush1.bf16.msra.mxu0 %v650
    %720 = vmatprep.subr.bf16.mxu0 0
    %721 = vmatpush2.bf16.msra.mxu0 0
    %722 = vmatprep.subr.bf16.mxu0 0
    %723 = vmatpush2.bf16.msra.mxu0 0
    %724 = vmatprep.subr.bf16.mxu0 0
    %725 = vmatpush2.bf16.msra.mxu0 0
    %726 = vmatprep.subr.bf16.mxu0 0
    %727 = vmatpush2.bf16.msra.mxu0 0
    %728 = vmatprep.subr.bf16.mxu0 0
    %729 = vmatpush2.bf16.msra.mxu0 0
    %730 = vmatprep.subr.bf16.mxu0 0
    %731 = vmatpush2.bf16.msra.mxu0 0
    %732 = vmatprep.subr.bf16.mxu0 0
    %733 = vmatpush2.bf16.msra.mxu0 0
    %734 = vmatprep.subr.bf16.mxu0 0
    %735 = vmatpush2.bf16.msra.mxu0 0
    %736 = vmatprep.mubr.bf16.mxu0 0
    %737 = vmatmul.mubr.bf16.gmra.mxu0 %v661
    %v738 = vpop.f32.mrf.mxu0
    %v739 = vadd.f32 0.0, %v738
    %v740 = vpop.f32.mrf.mxu0
    %v741 = vpop.f32.mrf.mxu0
    %v742 = vpop.f32.mrf.mxu0
    %743 = vdwg.mxu0
    %p744 = scmp.eq.s32.totalorder %s360, 0
    %s745 = scalar_select %p744, 1, 0
    %s746 = scvt.s32.f32 %s745
    %v747 = vstv %s746
    %v748 = vmul.f32 %v747, %v615
    %v749 = vmul.f32 %v747, %v616
    %s750 = ssub.f32 1.0, %s746
    %v751 = vstv %s750
    %v752 = vmul.f32 %v751, %v617
    %754 = vrot.lane.b32.xlu0 %v752, 64
    %v755 = vpop.permute.xlu0 %754
    %v757 = vadd.f32 %v748, %v755
    %v758 = vadd.f32 %v749, %v755
    %v759 = vmul.f32 %v747, %v698
    %v760 = vmul.f32 %v751, %v700
    %v761 = vmul.f32 %v751, %v739
    %764 = vrot.lane.b32.xlu0 %v760, 64
    %v765 = vpop.permute.xlu0 %764
    %766 = vrot.lane.b32.xlu0 %v761, 64
    %v767 = vpop.permute.xlu0 %766
    %vm768 = vcmask 523264
    %v769 = vsel %vm768, %v765, %v767
    %v771 = vadd.f32 %v759, %v769
    %v772 = vld [vmem:[%s13] sm:$0x1]
    %v773 = vmul.f32 %v747, %v772
    %v774 = vld [vmem:[%s13 + $0x2] sm:$0x1]
    %v775 = vmul.f32 %v751, %v774
    %v776 = vadd.f32 %v773, %v775
    %p777 = scmp.eq.s32.totalorder %s360, 1
    %s778 = scalar_select %p777, 1, 0
    %s779 = scvt.s32.f32 %s778
    %v780 = vstv %s779
    %v781 = vmul.f32 %v780, %v616
    %v782 = vmul.f32 %v780, %v617
    %s783 = ssub.f32 1.0, %s779
    %v784 = vstv %s783
    %v785 = vmul.f32 %v784, %v618
    %787 = vrot.lane.b32.xlu0 %v785, 64
    %v788 = vpop.permute.xlu0 %787
    %v790 = vadd.f32 %v781, %v788
    %v791 = vadd.f32 %v782, %v788
    %v792 = vmul.f32 %v780, %v698
    %v793 = vmul.f32 %v780, %v700
    %v794 = vmul.f32 %v784, %v739
    %796 = vrot.lane.b32.xlu0 %v794, 64
    %v797 = vpop.permute.xlu0 %796
    %v799 = vadd.f32 %v792, %v797
    %v800 = vadd.f32 %v793, %v797
    %v801 = vld [vmem:[%s13 + $0x1] sm:$0x1]
    %v802 = vmul.f32 %v780, %v801
    %v803 = vld [vmem:[%s13 + $0x3] sm:$0x1]
    %v804 = vmul.f32 %v784, %v803
    %v805 = vadd.f32 %v802, %v804
    %v808 = vrot.slane %v790, 7
    %v809 = vrot.slane %v791, 7
    %810 = vrot.lane.b32.xlu0 %v808, 32
    %v811 = vpop.permute.xlu0 %810
    %812 = vrot.lane.b32.xlu0 %v809, 32
    %v813 = vpop.permute.xlu0 %812
    %v814 = vsel %vm271, %v811, %v813
    %vm817 = vcmask 1040384
    %v818 = vsel %vm817, %v757, %v811
    %v819 = vsel %vm817, %v758, %v814
    %822 = vrot.lane.b32.xlu0 %v799, 32
    %v823 = vpop.permute.xlu0 %822
    %824 = vrot.lane.b32.xlu0 %v800, 32
    %v825 = vpop.permute.xlu0 %824
    %v826 = vsel %vm271, %v823, %v825
    %v828 = vsel %vm817, %v771, %v826
    %v830 = vrot.slane %v805, 7
    %v832 = vsel %vm817, %v776, %v830
    %834 = vrot.lane.b32.xlu0 %v828, 96
    %v835 = vpop.permute.xlu0 %834
    %v837 = vadd.f32 %v818, %v835
    %v838 = vxor.u32 %v837, 2147483648
    %v839 = vmul.f32 %v838, 1.442695
    %v840 = vpow.pop %v839
    %v841 = vadd.f32 %v840, 1.0
    %v842 = vrcp.pop %v841
    %v843 = vmul.f32 1.0, %v842
    %v844 = vadd.f32 %v819, %v835
    %v845 = vxor.u32 %v844, 2147483648
    %v846 = vmul.f32 %v845, 1.442695
    %v847 = vpow.pop %v846
    %v848 = vadd.f32 %v847, 1.0
    %v849 = vrcp.pop %v848
    %v850 = vmul.f32 1.0, %v849
    %852 = vrot.lane.b32.xlu0 %v832, 64
    %v853 = vpop.permute.xlu0 %852
    %v855 = vadd.f32 %v828, %v853
    %857 = vrot.lane.b32.xlu0 %v855, 32
    %v858 = vpop.permute.xlu0 %857
    %v860 = vmul.f32 %v843, %v858
    %862 = vrot.lane.b32.xlu0 %v860, 64
    %v863 = vpop.permute.xlu0 %862
    %v865 = vadd.f32 %v819, %v863
    %v866 = vtanh.pop %v865
    %v867 = vsub.f32 1.0, %v850
    %869 = vrot.lane.b32.xlu0 %v866, 96
    %v870 = vpop.permute.xlu0 %869
    %v872 = vmul.f32 %v867, %v870
    %v873 = vmul.f32 %v850, %v358
    %v874 = vadd.f32 %v872, %v873
    %v875 = vpack.c.bf16 %v874, %v874
    %v876 = vld [vmem:[#allocation18] sm:$0xff]
    %v877 = vld [vmem:[#allocation18 + $0x8] sm:$0xff]
    %v878 = vld [vmem:[#allocation18 + $0x10] sm:$0xff]
    %v879 = vld [vmem:[#allocation18 + $0x18] sm:$0xff]
    %v884 = vunpack.c.l.b16 %v876
    %v885 = vunpack.c.h.b16 %v876
    %v886 = vunpack.c.l.b16 %v877
    %v887 = vunpack.c.h.b16 %v877
    %v888 = vunpack.c.l.b16 %v878
    %v889 = vunpack.c.h.b16 %v878
    %v890 = vunpack.c.l.b16 %v879
    %v891 = vunpack.c.h.b16 %v879
    %v892 = vpack.c.b16 %v886, %v884
    %v893 = vpack.c.b16 %v887, %v885
    %v894 = vpack.c.b16 %v890, %v888
    %v895 = vpack.c.b16 %v891, %v889
    %v901 = vsel %vm271, %v875, 0
    %903 = vmatprep.subr.bf16.mxu0 0
    %904 = vmatpush1.bf16.msra.mxu0 0
    %905 = vmatprep.subr.bf16.mxu0 0
    %906 = vmatpush1.bf16.msra.mxu0 0
    %907 = vmatprep.subr.bf16.mxu0 0
    %908 = vmatpush1.bf16.msra.mxu0 0
    %909 = vmatprep.subr.bf16.mxu0 0
    %910 = vmatpush1.bf16.msra.mxu0 0
    %911 = vmatprep.subr.bf16.mxu0 0
    %912 = vmatpush1.bf16.msra.mxu0 0
    %913 = vmatprep.subr.bf16.mxu0 0
    %914 = vmatpush1.bf16.msra.mxu0 0
    %915 = vmatprep.subr.bf16.mxu0 %v895
    %916 = vmatpush1.bf16.msra.mxu0 %v894
    %917 = vmatprep.subr.bf16.mxu0 %v893
    %918 = vmatpush1.bf16.msra.mxu0 %v892
    %919 = vmatprep.subr.bf16.mxu0 0
    %920 = vmatpush2.bf16.msra.mxu0 0
    %921 = vmatprep.subr.bf16.mxu0 0
    %922 = vmatpush2.bf16.msra.mxu0 0
    %923 = vmatprep.subr.bf16.mxu0 0
    %924 = vmatpush2.bf16.msra.mxu0 0
    %925 = vmatprep.subr.bf16.mxu0 0
    %926 = vmatpush2.bf16.msra.mxu0 0
    %927 = vmatprep.subr.bf16.mxu0 0
    %928 = vmatpush2.bf16.msra.mxu0 0
    %929 = vmatprep.subr.bf16.mxu0 0
    %930 = vmatpush2.bf16.msra.mxu0 0
    %931 = vmatprep.subr.bf16.mxu0 0
    %932 = vmatpush2.bf16.msra.mxu0 0
    %933 = vmatprep.subr.bf16.mxu0 0
    %934 = vmatpush2.bf16.msra.mxu0 0
    %935 = vmatprep.mubr.bf16.mxu0 0
    %936 = vmatmul.mubr.bf16.gmra.mxu0 %v901
    %v937 = vpop.f32.mrf.mxu0
    %v938 = vadd.f32 0.0, %v937
    %v939 = vpop.f32.mrf.mxu0
    %v940 = vadd.f32 0.0, %v939
    %v941 = vpop.f32.mrf.mxu0
    %v942 = vpop.f32.mrf.mxu0
    %943 = vdwg.mxu0
    %v944 = vpack.c.bf16 %v359, %v359
    %v945 = vld [vmem:[#allocation19] sm:$0xff]
    %v946 = vld [vmem:[#allocation19 + $0x8] sm:$0xff]
    %v947 = vld [vmem:[#allocation19 + $0x10] sm:$0xff]
    %v948 = vld [vmem:[#allocation19 + $0x18] sm:$0xff]
    %v953 = vunpack.c.l.b16 %v945
    %v954 = vunpack.c.h.b16 %v945
    %v955 = vunpack.c.l.b16 %v946
    %v956 = vunpack.c.h.b16 %v946
    %v957 = vunpack.c.l.b16 %v947
    %v958 = vunpack.c.h.b16 %v947
    %v959 = vunpack.c.l.b16 %v948
    %v960 = vunpack.c.h.b16 %v948
    %v961 = vpack.c.b16 %v955, %v953
    %v962 = vpack.c.b16 %v956, %v954
    %v963 = vpack.c.b16 %v959, %v957
    %v964 = vpack.c.b16 %v960, %v958
    %v970 = vsel %vm271, %v944, 0
    %972 = vmatprep.subr.bf16.mxu0 0
    %973 = vmatpush1.bf16.msra.mxu0 0
    %974 = vmatprep.subr.bf16.mxu0 0
    %975 = vmatpush1.bf16.msra.mxu0 0
    %976 = vmatprep.subr.bf16.mxu0 0
    %977 = vmatpush1.bf16.msra.mxu0 0
    %978 = vmatprep.subr.bf16.mxu0 0
    %979 = vmatpush1.bf16.msra.mxu0 0
    %980 = vmatprep.subr.bf16.mxu0 0
    %981 = vmatpush1.bf16.msra.mxu0 0
    %982 = vmatprep.subr.bf16.mxu0 0
    %983 = vmatpush1.bf16.msra.mxu0 0
    %984 = vmatprep.subr.bf16.mxu0 %v964
    %985 = vmatpush1.bf16.msra.mxu0 %v963
    %986 = vmatprep.subr.bf16.mxu0 %v962
    %987 = vmatpush1.bf16.msra.mxu0 %v961
    %988 = vmatprep.subr.bf16.mxu0 0
    %989 = vmatpush2.bf16.msra.mxu0 0
    %990 = vmatprep.subr.bf16.mxu0 0
    %991 = vmatpush2.bf16.msra.mxu0 0
    %992 = vmatprep.subr.bf16.mxu0 0
    %993 = vmatpush2.bf16.msra.mxu0 0
    %994 = vmatprep.subr.bf16.mxu0 0
    %995 = vmatpush2.bf16.msra.mxu0 0
    %996 = vmatprep.subr.bf16.mxu0 0
    %997 = vmatpush2.bf16.msra.mxu0 0
    %998 = vmatprep.subr.bf16.mxu0 0
    %999 = vmatpush2.bf16.msra.mxu0 0
    %1000 = vmatprep.subr.bf16.mxu0 0
    %1001 = vmatpush2.bf16.msra.mxu0 0
    %1002 = vmatprep.subr.bf16.mxu0 0
    %1003 = vmatpush2.bf16.msra.mxu0 0
    %1004 = vmatprep.mubr.bf16.mxu0 0
    %1005 = vmatmul.mubr.bf16.gmra.mxu0 %v970
    %v1006 = vpop.f32.mrf.mxu0
    %v1007 = vadd.f32 0.0, %v1006
    %v1008 = vpop.f32.mrf.mxu0
    %v1009 = vadd.f32 0.0, %v1008
    %v1010 = vpop.f32.mrf.mxu0
    %v1011 = vpop.f32.mrf.mxu0
    %1012 = vdwg.mxu0
    %1015 = vrot.lane.b32.xlu0 %v938, 32
    %v1016 = vpop.permute.xlu0 %1015
    %1017 = vrot.lane.b32.xlu0 %v940, 32
    %v1018 = vpop.permute.xlu0 %1017
    %v1019 = vsel %vm271, %v1016, %v1018
    %v1021 = vsel %vm817, %v938, %v1019
    %v1022 = vld [vmem:[%s14] sm:$0x3]
    %v1023 = vadd.f32 %v1021, %v1022
    %1026 = vrot.lane.b32.xlu0 %v1007, 32
    %v1027 = vpop.permute.xlu0 %1026
    %1028 = vrot.lane.b32.xlu0 %v1009, 32
    %v1029 = vpop.permute.xlu0 %1028
    %v1030 = vsel %vm271, %v1027, %v1029
    %v1032 = vsel %vm817, %v1007, %v1030
    %v1033 = vadd.f32 %v1023, %v1032
    %v1034 = vxor.u32 %v1033, 2147483648
    %v1035 = vmul.f32 %v1034, 1.442695
    %v1036 = vpow.pop %v1035
    %v1037 = vadd.f32 %v1036, 1.0
    %v1038 = vrcp.pop %v1037
    %v1039 = vmul.f32 1.0, %v1038
    %v1040 = vld [vmem:[%s15] sm:$0x3]
    %1042 = vrot.lane.b32.xlu0 %v1040, 64
    %v1043 = vpop.permute.xlu0 %1042
    %v1045 = vadd.f32 %v1032, %v1043
    %1047 = vrot.lane.b32.xlu0 %v1045, 64
    %v1048 = vpop.permute.xlu0 %1047
    %v1050 = vmul.f32 %v1039, %v1048
    %1052 = vrot.lane.b32.xlu0 %v1050, 64
    %v1053 = vpop.permute.xlu0 %1052
    %v1055 = vadd.f32 %v1023, %v1053
    %v1056 = vtanh.pop %v1055
    %v1057 = vsub.f32 1.0, %v1039
    %1059 = vrot.lane.b32.xlu0 %v1056, 96
    %v1060 = vpop.permute.xlu0 %1059
    %v1062 = vmul.f32 %v1057, %v1060
    %1064 = vrot.lane.b32.xlu0 %v359, 32
    %v1065 = vpop.permute.xlu0 %1064
    %v1067 = vmul.f32 %v1039, %v1065
    %v1068 = vadd.f32 %v1062, %v1067
    %v1069 = vmul.f32 %v747, %v1068
    %v1070 = vadd.f32 %v1069, 0.0
    %v1071 = vmul.f32 %v780, %v1068
    %v1073 = vrot.slane %v1071, 1
    %v1075 = vadd.f32 %v1070, %v1073
    %1077 = vrot.lane.b32.xlu0 %v1075, 96
    %v1078 = vpop.permute.xlu0 %1077
    %1080 = vst.msk [vmem:[#allocation21] sm:$0x1] %vm469, %v1078
    %s1081 = sld [smem:[#allocation2 + $0x1]]
    %v1082 = vld [vmem:[#allocation13] sm:$0xf]
    %v1083 = vld [vmem:[#allocation13 + $0x4] sm:$0xf]
    %v1084 = vld [vmem:[#allocation13 + $0x8] sm:$0xf]
    %v1085 = vld [vmem:[#allocation13 + $0xc] sm:$0xf]
    %v1090 = vunpack.c.l.b16 %v1082
    %v1091 = vunpack.c.l.b16 %v1083
    %v1092 = vunpack.c.l.b16 %v1084
    %v1093 = vunpack.c.l.b16 %v1085
    %v1094 = vpack.c.b16 %v1091, %v1090
    %v1095 = vpack.c.b16 %v1093, %v1092
    %1098 = vmatprep.subr.bf16.mxu0 0
    %1099 = vmatpush1.bf16.msra.mxu0 0
    %1100 = vmatprep.subr.bf16.mxu0 0
    %1101 = vmatpush1.bf16.msra.mxu0 0
    %1102 = vmatprep.subr.bf16.mxu0 0
    %1103 = vmatpush1.bf16.msra.mxu0 0
    %1104 = vmatprep.subr.bf16.mxu0 0
    %1105 = vmatpush1.bf16.msra.mxu0 0
    %1106 = vmatprep.subr.bf16.mxu0 0
    %1107 = vmatpush1.bf16.msra.mxu0 0
    %1108 = vmatprep.subr.bf16.mxu0 0
    %1109 = vmatpush1.bf16.msra.mxu0 0
    %1110 = vmatprep.subr.bf16.mxu0 0
    %1111 = vmatpush1.bf16.msra.mxu0 %v1095
    %1112 = vmatprep.subr.bf16.mxu0 0
    %1113 = vmatpush1.bf16.msra.mxu0 %v1094
    %1114 = vmatprep.subr.bf16.mxu0 0
    %1115 = vmatpush2.bf16.msra.mxu0 0
    %1116 = vmatprep.subr.bf16.mxu0 0
    %1117 = vmatpush2.bf16.msra.mxu0 0
    %1118 = vmatprep.subr.bf16.mxu0 0
    %1119 = vmatpush2.bf16.msra.mxu0 0
    %1120 = vmatprep.subr.bf16.mxu0 0
    %1121 = vmatpush2.bf16.msra.mxu0 0
    %1122 = vmatprep.subr.bf16.mxu0 0
    %1123 = vmatpush2.bf16.msra.mxu0 0
    %1124 = vmatprep.subr.bf16.mxu0 0
    %1125 = vmatpush2.bf16.msra.mxu0 0
    %1126 = vmatprep.subr.bf16.mxu0 0
    %1127 = vmatpush2.bf16.msra.mxu0 0
    %1128 = vmatprep.subr.bf16.mxu0 0
    %1129 = vmatpush2.bf16.msra.mxu0 0
    %1130 = vmatprep.mubr.bf16.mxu0 0
    %1131 = vmatmul.mubr.bf16.gmra.mxu0 %v516
    %v1132 = vpop.f32.mrf.mxu0
    %v1133 = vadd.f32 0.0, %v1132
    %v1134 = vpop.f32.mrf.mxu0
    %v1135 = vpop.f32.mrf.mxu0
    %v1136 = vpop.f32.mrf.mxu0
    %1137 = vdwg.mxu0
    %v1139 = vrot.slane %v1133, 7
    %v1141 = vadd.f32 %v310, %v1139
    %v1142 = vxor.u32 %v1141, 2147483648
    %v1143 = vmul.f32 %v1142, 1.442695
    %v1144 = vpow.pop %v1143
    %v1145 = vadd.f32 %v1144, 1.0
    %v1146 = vrcp.pop %v1145
    %v1147 = vmul.f32 1.0, %v1146
    %v1148 = vld [vmem:[%s12] sm:$0x1]
    %v1150 = vlaneseq
    %v1151 = vshrl.u32 %v1150, 7
    %v1152 = vsub.s32 0, %v1151
    %v1153 = vrot.slane %v1148, %v1152
    %1154 = vrot.lane.b32.xlu0 %v1153, 64
    %v1155 = vpop.permute.xlu0 %1154
    %v1157 = vadd.f32 %v1133, %v1155
    %v1159 = vrot.slane %v1157, 7
    %1160 = vrot.lane.b32.xlu0 %v1159, 64
    %v1161 = vpop.permute.xlu0 %1160
    %v1163 = vmul.f32 %v1147, %v1161
    %1165 = vrot.lane.b32.xlu0 %v1163, 64
    %v1166 = vpop.permute.xlu0 %1165
    %v1168 = vadd.f32 %v310, %v1166
    %v1169 = vtanh.pop %v1168
    %v1170 = vsub.f32 1.0, %v1147
    %1172 = vrot.lane.b32.xlu0 %v1169, 96
    %v1173 = vpop.permute.xlu0 %1172
    %v1175 = vmul.f32 %v1170, %v1173
    %v1176 = vrot.slane %v464, 7
    %v1178 = vmul.f32 %v1147, %v1176
    %v1179 = vadd.f32 %v1175, %v1178
    %1181 = vrot.lane.b32.xlu0 %v1179, 96
    %v1182 = vpop.permute.xlu0 %1181
    %vm1184 = vcmask 254977
    %1185 = vst.msk [vmem:[#allocation22] sm:$0x2] %vm1184, %v1182
    %v1186 = vpack.c.bf16 %v1179, %v1179
    %v1187 = vld [vmem:[#allocation15] sm:$0xff]
    %v1188 = vld [vmem:[#allocation15 + $0x8] sm:$0xf]
    %v1189 = vld [vmem:[#allocation15 + $0xc] sm:$0xff]
    %v1190 = vld [vmem:[#allocation15 + $0x14] sm:$0xf]
    %v1191 = vld [vmem:[#allocation15 + $0x18] sm:$0xff]
    %v1192 = vld [vmem:[#allocation15 + $0x20] sm:$0xf]
    %v1193 = vld [vmem:[#allocation15 + $0x24] sm:$0xff]
    %v1194 = vld [vmem:[#allocation15 + $0x2c] sm:$0xf]
    %v1196 = vshrl.u32 %v1186, 16
    %1198 = vrot.lane.b32.xlu0 %v1196, 96
    %v1199 = vpop.permute.xlu0 %1198
    %v1208 = vunpack.c.l.b16 %v1187
    %v1209 = vunpack.c.h.b16 %v1187
    %v1210 = vunpack.c.l.b16 %v1188
    %v1211 = vunpack.c.l.b16 %v1189
    %v1212 = vunpack.c.h.b16 %v1189
    %v1213 = vunpack.c.l.b16 %v1190
    %v1214 = vunpack.c.l.b16 %v1191
    %v1215 = vunpack.c.h.b16 %v1191
    %v1216 = vunpack.c.l.b16 %v1192
    %v1217 = vunpack.c.l.b16 %v1193
    %v1218 = vunpack.c.h.b16 %v1193
    %v1219 = vunpack.c.l.b16 %v1194
    %v1220 = vpack.c.b16 %v1211, %v1208
    %v1221 = vpack.c.b16 %v1212, %v1209
    %v1222 = vpack.c.b16 %v1213, %v1210
    %v1223 = vpack.c.b16 %v1217, %v1214
    %v1224 = vpack.c.b16 %v1218, %v1215
    %v1225 = vpack.c.b16 %v1219, %v1216
    %v1233 = vsel %vm271, %v1199, 0
    %1235 = vmatprep.subr.bf16.mxu0 0
    %1236 = vmatpush1.bf16.msra.mxu0 0
    %1237 = vmatprep.subr.bf16.mxu0 0
    %1238 = vmatpush1.bf16.msra.mxu0 0
    %1239 = vmatprep.subr.bf16.mxu0 0
    %1240 = vmatpush1.bf16.msra.mxu0 0
    %1241 = vmatprep.subr.bf16.mxu0 0
    %1242 = vmatpush1.bf16.msra.mxu0 0
    %1243 = vmatprep.subr.bf16.mxu0 0
    %1244 = vmatpush1.bf16.msra.mxu0 0
    %1245 = vmatprep.subr.bf16.mxu0 0
    %1246 = vmatpush1.bf16.msra.mxu0 0
    %1247 = vmatprep.subr.bf16.mxu0 %v1224
    %1248 = vmatpush1.bf16.msra.mxu0 %v1223
    %1249 = vmatprep.subr.bf16.mxu0 %v1221
    %1250 = vmatpush1.bf16.msra.mxu0 %v1220
    %1251 = vmatprep.subr.bf16.mxu0 0
    %1252 = vmatpush2.bf16.msra.mxu0 0
    %1253 = vmatprep.subr.bf16.mxu0 0
    %1254 = vmatpush2.bf16.msra.mxu0 0
    %1255 = vmatprep.subr.bf16.mxu0 0
    %1256 = vmatpush2.bf16.msra.mxu0 0
    %1257 = vmatprep.subr.bf16.mxu0 0
    %1258 = vmatpush2.bf16.msra.mxu0 0
    %1259 = vmatprep.subr.bf16.mxu0 0
    %1260 = vmatpush2.bf16.msra.mxu0 0
    %1261 = vmatprep.subr.bf16.mxu0 0
    %1262 = vmatpush2.bf16.msra.mxu0 0
    %1263 = vmatprep.subr.bf16.mxu0 0
    %1264 = vmatpush2.bf16.msra.mxu0 0
    %1265 = vmatprep.subr.bf16.mxu0 0
    %1266 = vmatpush2.bf16.msra.mxu0 0
    %1267 = vmatprep.mubr.bf16.mxu0 0
    %1268 = vmatmul.mubr.bf16.gmra.mxu0 %v1233
    %v1269 = vpop.f32.mrf.mxu0
    %v1270 = vadd.f32 0.0, %v1269
    %v1271 = vpop.f32.mrf.mxu0
    %v1272 = vadd.f32 0.0, %v1271
    %v1273 = vpop.f32.mrf.mxu0
    %v1274 = vpop.f32.mrf.mxu0
    %1275 = vdwg.mxu0
    %1276 = vmatprep.subr.bf16.mxu0 0
    %1277 = vmatpush1.bf16.msra.mxu0 0
    %1278 = vmatprep.subr.bf16.mxu0 0
    %1279 = vmatpush1.bf16.msra.mxu0 0
    %1280 = vmatprep.subr.bf16.mxu0 0
    %1281 = vmatpush1.bf16.msra.mxu0 0
    %1282 = vmatprep.subr.bf16.mxu0 0
    %1283 = vmatpush1.bf16.msra.mxu0 0
    %1284 = vmatprep.subr.bf16.mxu0 0
    %1285 = vmatpush1.bf16.msra.mxu0 0
    %1286 = vmatprep.subr.bf16.mxu0 0
    %1287 = vmatpush1.bf16.msra.mxu0 0
    %1288 = vmatprep.subr.bf16.mxu0 0
    %1289 = vmatpush1.bf16.msra.mxu0 %v1225
    %1290 = vmatprep.subr.bf16.mxu0 0
    %1291 = vmatpush1.bf16.msra.mxu0 %v1222
    %1292 = vmatprep.subr.bf16.mxu0 0
    %1293 = vmatpush2.bf16.msra.mxu0 0
    %1294 = vmatprep.subr.bf16.mxu0 0
    %1295 = vmatpush2.bf16.msra.mxu0 0
    %1296 = vmatprep.subr.bf16.mxu0 0
    %1297 = vmatpush2.bf16.msra.mxu0 0
    %1298 = vmatprep.subr.bf16.mxu0 0
    %1299 = vmatpush2.bf16.msra.mxu0 0
    %1300 = vmatprep.subr.bf16.mxu0 0
    %1301 = vmatpush2.bf16.msra.mxu0 0
    %1302 = vmatprep.subr.bf16.mxu0 0
    %1303 = vmatpush2.bf16.msra.mxu0 0
    %1304 = vmatprep.subr.bf16.mxu0 0
    %1305 = vmatpush2.bf16.msra.mxu0 0
    %1306 = vmatprep.subr.bf16.mxu0 0
    %1307 = vmatpush2.bf16.msra.mxu0 0
    %1308 = vmatprep.mubr.bf16.mxu0 0
    %1309 = vmatmul.mubr.bf16.gmra.mxu0 %v1233
    %v1310 = vpop.f32.mrf.mxu0
    %v1311 = vadd.f32 0.0, %v1310
    %v1312 = vpop.f32.mrf.mxu0
    %v1313 = vpop.f32.mrf.mxu0
    %v1314 = vpop.f32.mrf.mxu0
    %1315 = vdwg.mxu0
    %v1319 = vrot.slane %v1270, 7
    %v1320 = vrot.slane %v1272, 7
    %v1321 = vrot.slane %v1311, 7
    %1322 = vrot.lane.b32.xlu0 %v1319, 96
    %v1323 = vpop.permute.xlu0 %1322
    %1324 = vrot.lane.b32.xlu0 %v1320, 96
    %v1325 = vpop.permute.xlu0 %1324
    %1326 = vrot.lane.b32.xlu0 %v1321, 96
    %v1327 = vpop.permute.xlu0 %1326
    %v1328 = vsel %vm608, %v1323, %v1325
    %v1329 = vsel %vm608, %v1325, %v1327
    %v1334 = vadd.f32 %v310, %v1323
    %v1335 = vadd.f32 %v312, %v1328
    %v1336 = vadd.f32 %v351, %v1329
    %v1337 = vadd.f32 %v353, %v1327
    %v1338 = vld [vmem:[#allocation16] sm:$0xff]
    %v1339 = vld [vmem:[#allocation16 + $0x8] sm:$0xf]
    %v1340 = vld [vmem:[#allocation16 + $0xc] sm:$0xff]
    %v1341 = vld [vmem:[#allocation16 + $0x14] sm:$0xf]
    %v1342 = vld [vmem:[#allocation16 + $0x18] sm:$0xff]
    %v1343 = vld [vmem:[#allocation16 + $0x20] sm:$0xf]
    %v1344 = vld [vmem:[#allocation16 + $0x24] sm:$0xff]
    %v1345 = vld [vmem:[#allocation16 + $0x2c] sm:$0xf]
    %v1354 = vunpack.c.l.b16 %v1338
    %v1355 = vunpack.c.h.b16 %v1338
    %v1356 = vunpack.c.l.b16 %v1339
    %v1357 = vunpack.c.l.b16 %v1340
    %v1358 = vunpack.c.h.b16 %v1340
    %v1359 = vunpack.c.l.b16 %v1341
    %v1360 = vunpack.c.l.b16 %v1342
    %v1361 = vunpack.c.h.b16 %v1342
    %v1362 = vunpack.c.l.b16 %v1343
    %v1363 = vunpack.c.l.b16 %v1344
    %v1364 = vunpack.c.h.b16 %v1344
    %v1365 = vunpack.c.l.b16 %v1345
    %v1366 = vpack.c.b16 %v1357, %v1354
    %v1367 = vpack.c.b16 %v1358, %v1355
    %v1368 = vpack.c.b16 %v1359, %v1356
    %v1369 = vpack.c.b16 %v1363, %v1360
    %v1370 = vpack.c.b16 %v1364, %v1361
    %v1371 = vpack.c.b16 %v1365, %v1362
    %1378 = vmatprep.subr.bf16.mxu0 0
    %1379 = vmatpush1.bf16.msra.mxu0 0
    %1380 = vmatprep.subr.bf16.mxu0 0
    %1381 = vmatpush1.bf16.msra.mxu0 0
    %1382 = vmatprep.subr.bf16.mxu0 0
    %1383 = vmatpush1.bf16.msra.mxu0 0
    %1384 = vmatprep.subr.bf16.mxu0 0
    %1385 = vmatpush1.bf16.msra.mxu0 0
    %1386 = vmatprep.subr.bf16.mxu0 0
    %1387 = vmatpush1.bf16.msra.mxu0 0
    %1388 = vmatprep.subr.bf16.mxu0 0
    %1389 = vmatpush1.bf16.msra.mxu0 0
    %1390 = vmatprep.subr.bf16.mxu0 %v1370
    %1391 = vmatpush1.bf16.msra.mxu0 %v1369
    %1392 = vmatprep.subr.bf16.mxu0 %v1367
    %1393 = vmatpush1.bf16.msra.mxu0 %v1366
    %1394 = vmatprep.subr.bf16.mxu0 0
    %1395 = vmatpush2.bf16.msra.mxu0 0
    %1396 = vmatprep.subr.bf16.mxu0 0
    %1397 = vmatpush2.bf16.msra.mxu0 0
    %1398 = vmatprep.subr.bf16.mxu0 0
    %1399 = vmatpush2.bf16.msra.mxu0 0
    %1400 = vmatprep.subr.bf16.mxu0 0
    %1401 = vmatpush2.bf16.msra.mxu0 0
    %1402 = vmatprep.subr.bf16.mxu0 0
    %1403 = vmatpush2.bf16.msra.mxu0 0
    %1404 = vmatprep.subr.bf16.mxu0 0
    %1405 = vmatpush2.bf16.msra.mxu0 0
    %1406 = vmatprep.subr.bf16.mxu0 0
    %1407 = vmatpush2.bf16.msra.mxu0 0
    %1408 = vmatprep.subr.bf16.mxu0 0
    %1409 = vmatpush2.bf16.msra.mxu0 0
    %1410 = vmatprep.mubr.bf16.mxu0 0
    %1411 = vmatmul.mubr.bf16.gmra.mxu0 %v901
    %v1412 = vpop.f32.mrf.mxu0
    %v1413 = vadd.f32 0.0, %v1412
    %v1414 = vpop.f32.mrf.mxu0
    %v1415 = vadd.f32 0.0, %v1414
    %v1416 = vpop.f32.mrf.mxu0
    %v1417 = vpop.f32.mrf.mxu0
    %1418 = vdwg.mxu0
    %1419 = vmatprep.subr.bf16.mxu0 0
    %1420 = vmatpush1.bf16.msra.mxu0 0
    %1421 = vmatprep.subr.bf16.mxu0 0
    %1422 = vmatpush1.bf16.msra.mxu0 0
    %1423 = vmatprep.subr.bf16.mxu0 0
    %1424 = vmatpush1.bf16.msra.mxu0 0
    %1425 = vmatprep.subr.bf16.mxu0 0
    %1426 = vmatpush1.bf16.msra.mxu0 0
    %1427 = vmatprep.subr.bf16.mxu0 0
    %1428 = vmatpush1.bf16.msra.mxu0 0
    %1429 = vmatprep.subr.bf16.mxu0 0
    %1430 = vmatpush1.bf16.msra.mxu0 0
    %1431 = vmatprep.subr.bf16.mxu0 0
    %1432 = vmatpush1.bf16.msra.mxu0 %v1371
    %1433 = vmatprep.subr.bf16.mxu0 0
    %1434 = vmatpush1.bf16.msra.mxu0 %v1368
    %1435 = vmatprep.subr.bf16.mxu0 0
    %1436 = vmatpush2.bf16.msra.mxu0 0
    %1437 = vmatprep.subr.bf16.mxu0 0
    %1438 = vmatpush2.bf16.msra.mxu0 0
    %1439 = vmatprep.subr.bf16.mxu0 0
    %1440 = vmatpush2.bf16.msra.mxu0 0
    %1441 = vmatprep.subr.bf16.mxu0 0
    %1442 = vmatpush2.bf16.msra.mxu0 0
    %1443 = vmatprep.subr.bf16.mxu0 0
    %1444 = vmatpush2.bf16.msra.mxu0 0
    %1445 = vmatprep.subr.bf16.mxu0 0
    %1446 = vmatpush2.bf16.msra.mxu0 0
    %1447 = vmatprep.subr.bf16.mxu0 0
    %1448 = vmatpush2.bf16.msra.mxu0 0
    %1449 = vmatprep.subr.bf16.mxu0 0
    %1450 = vmatpush2.bf16.msra.mxu0 0
    %1451 = vmatprep.mubr.bf16.mxu0 0
    %1452 = vmatmul.mubr.bf16.gmra.mxu0 %v901
    %v1453 = vpop.f32.mrf.mxu0
    %v1454 = vadd.f32 0.0, %v1453
    %v1455 = vpop.f32.mrf.mxu0
    %v1456 = vpop.f32.mrf.mxu0
    %v1457 = vpop.f32.mrf.mxu0
    %1458 = vdwg.mxu0
    %p1459 = scmp.eq.s32.totalorder %s1081, 0
    %s1460 = scalar_select %p1459, 1, 0
    %s1461 = scvt.s32.f32 %s1460
    %v1462 = vstv %s1461
    %v1463 = vmul.f32 %v1462, %v1334
    %v1464 = vmul.f32 %v1462, %v1335
    %s1465 = ssub.f32 1.0, %s1461
    %v1466 = vstv %s1465
    %v1467 = vmul.f32 %v1466, %v1336
    %1469 = vrot.lane.b32.xlu0 %v1467, 64
    %v1470 = vpop.permute.xlu0 %1469
    %v1472 = vadd.f32 %v1463, %v1470
    %v1473 = vadd.f32 %v1464, %v1470
    %v1474 = vmul.f32 %v1462, %v1413
    %v1475 = vmul.f32 %v1466, %v1415
    %v1476 = vmul.f32 %v1466, %v1454
    %1479 = vrot.lane.b32.xlu0 %v1475, 64
    %v1480 = vpop.permute.xlu0 %1479
    %1481 = vrot.lane.b32.xlu0 %v1476, 64
    %v1482 = vpop.permute.xlu0 %1481
    %v1483 = vsel %vm768, %v1480, %v1482
    %v1485 = vadd.f32 %v1474, %v1483
    %v1486 = vld [vmem:[%s13] sm:$0x1]
    %v1487 = vmul.f32 %v1462, %v1486
    %v1488 = vld [vmem:[%s13 + $0x2] sm:$0x1]
    %v1489 = vmul.f32 %v1466, %v1488
    %v1490 = vadd.f32 %v1487, %v1489
    %p1491 = scmp.eq.s32.totalorder %s1081, 1
    %s1492 = scalar_select %p1491, 1, 0
    %s1493 = scvt.s32.f32 %s1492
    %v1494 = vstv %s1493
    %v1495 = vmul.f32 %v1494, %v1335
    %v1496 = vmul.f32 %v1494, %v1336
    %s1497 = ssub.f32 1.0, %s1493
    %v1498 = vstv %s1497
    %v1499 = vmul.f32 %v1498, %v1337
    %1501 = vrot.lane.b32.xlu0 %v1499, 64
    %v1502 = vpop.permute.xlu0 %1501
    %v1504 = vadd.f32 %v1495, %v1502
    %v1505 = vadd.f32 %v1496, %v1502
    %v1506 = vmul.f32 %v1494, %v1413
    %v1507 = vmul.f32 %v1494, %v1415
    %v1508 = vmul.f32 %v1498, %v1454
    %1510 = vrot.lane.b32.xlu0 %v1508, 64
    %v1511 = vpop.permute.xlu0 %1510
    %v1513 = vadd.f32 %v1506, %v1511
    %v1514 = vadd.f32 %v1507, %v1511
    %v1515 = vld [vmem:[%s13 + $0x1] sm:$0x1]
    %v1516 = vmul.f32 %v1494, %v1515
    %v1517 = vld [vmem:[%s13 + $0x3] sm:$0x1]
    %v1518 = vmul.f32 %v1498, %v1517
    %v1519 = vadd.f32 %v1516, %v1518
    %v1522 = vrot.slane %v1472, 1
    %v1523 = vrot.slane %v1473, 1
    %1528 = vrot.lane.b32.xlu0 %v1504, 32
    %v1529 = vpop.permute.xlu0 %1528
    %1530 = vrot.lane.b32.xlu0 %v1505, 32
    %v1531 = vpop.permute.xlu0 %1530
    %v1532 = vsel %vm271, %v1529, %v1531
    %v1535 = vsel %vm817, %v1522, %v1529
    %v1536 = vsel %vm817, %v1523, %v1532
    %1539 = vrot.lane.b32.xlu0 %v1513, 32
    %v1540 = vpop.permute.xlu0 %1539
    %1541 = vrot.lane.b32.xlu0 %v1514, 32
    %v1542 = vpop.permute.xlu0 %1541
    %v1543 = vsel %vm271, %v1540, %v1542
    %v1545 = vsel %vm817, %v1485, %v1543
    %v1547 = vrot.slane %v1519, 7
    %v1549 = vsel %vm817, %v1490, %v1547
    %1551 = vrot.lane.b32.xlu0 %v1545, 96
    %v1552 = vpop.permute.xlu0 %1551
    %v1554 = vadd.f32 %v1535, %v1552
    %v1555 = vxor.u32 %v1554, 2147483648
    %v1556 = vmul.f32 %v1555, 1.442695
    %v1557 = vpow.pop %v1556
    %v1558 = vadd.f32 %v1557, 1.0
    %v1559 = vrcp.pop %v1558
    %v1560 = vmul.f32 1.0, %v1559
    %v1561 = vadd.f32 %v1536, %v1552
    %v1562 = vxor.u32 %v1561, 2147483648
    %v1563 = vmul.f32 %v1562, 1.442695
    %v1564 = vpow.pop %v1563
    %v1565 = vadd.f32 %v1564, 1.0
    %v1566 = vrcp.pop %v1565
    %v1567 = vmul.f32 1.0, %v1566
    %1569 = vrot.lane.b32.xlu0 %v1549, 64
    %v1570 = vpop.permute.xlu0 %1569
    %v1572 = vadd.f32 %v1545, %v1570
    %1574 = vrot.lane.b32.xlu0 %v1572, 32
    %v1575 = vpop.permute.xlu0 %1574
    %v1577 = vmul.f32 %v1560, %v1575
    %1579 = vrot.lane.b32.xlu0 %v1577, 64
    %v1580 = vpop.permute.xlu0 %1579
    %v1582 = vadd.f32 %v1536, %v1580
    %v1583 = vtanh.pop %v1582
    %v1584 = vsub.f32 1.0, %v1567
    %1586 = vrot.lane.b32.xlu0 %v1583, 96
    %v1587 = vpop.permute.xlu0 %1586
    %v1589 = vmul.f32 %v1584, %v1587
    %v1590 = vmul.f32 %v1567, %v874
    %v1591 = vadd.f32 %v1589, %v1590
    %v1592 = vpack.c.bf16 %v1591, %v1591
    %v1593 = vld [vmem:[#allocation18] sm:$0xff]
    %v1594 = vld [vmem:[#allocation18 + $0x8] sm:$0xff]
    %v1595 = vld [vmem:[#allocation18 + $0x10] sm:$0xff]
    %v1596 = vld [vmem:[#allocation18 + $0x18] sm:$0xff]
    %v1601 = vunpack.c.l.b16 %v1593
    %v1602 = vunpack.c.h.b16 %v1593
    %v1603 = vunpack.c.l.b16 %v1594
    %v1604 = vunpack.c.h.b16 %v1594
    %v1605 = vunpack.c.l.b16 %v1595
    %v1606 = vunpack.c.h.b16 %v1595
    %v1607 = vunpack.c.l.b16 %v1596
    %v1608 = vunpack.c.h.b16 %v1596
    %v1609 = vpack.c.b16 %v1603, %v1601
    %v1610 = vpack.c.b16 %v1604, %v1602
    %v1611 = vpack.c.b16 %v1607, %v1605
    %v1612 = vpack.c.b16 %v1608, %v1606
    %v1618 = vsel %vm271, %v1592, 0
    %1620 = vmatprep.subr.bf16.mxu0 0
    %1621 = vmatpush1.bf16.msra.mxu0 0
    %1622 = vmatprep.subr.bf16.mxu0 0
    %1623 = vmatpush1.bf16.msra.mxu0 0
    %1624 = vmatprep.subr.bf16.mxu0 0
    %1625 = vmatpush1.bf16.msra.mxu0 0
    %1626 = vmatprep.subr.bf16.mxu0 0
    %1627 = vmatpush1.bf16.msra.mxu0 0
    %1628 = vmatprep.subr.bf16.mxu0 0
    %1629 = vmatpush1.bf16.msra.mxu0 0
    %1630 = vmatprep.subr.bf16.mxu0 0
    %1631 = vmatpush1.bf16.msra.mxu0 0
    %1632 = vmatprep.subr.bf16.mxu0 %v1612
    %1633 = vmatpush1.bf16.msra.mxu0 %v1611
    %1634 = vmatprep.subr.bf16.mxu0 %v1610
    %1635 = vmatpush1.bf16.msra.mxu0 %v1609
    %1636 = vmatprep.subr.bf16.mxu0 0
    %1637 = vmatpush2.bf16.msra.mxu0 0
    %1638 = vmatprep.subr.bf16.mxu0 0
    %1639 = vmatpush2.bf16.msra.mxu0 0
    %1640 = vmatprep.subr.bf16.mxu0 0
    %1641 = vmatpush2.bf16.msra.mxu0 0
    %1642 = vmatprep.subr.bf16.mxu0 0
    %1643 = vmatpush2.bf16.msra.mxu0 0
    %1644 = vmatprep.subr.bf16.mxu0 0
    %1645 = vmatpush2.bf16.msra.mxu0 0
    %1646 = vmatprep.subr.bf16.mxu0 0
    %1647 = vmatpush2.bf16.msra.mxu0 0
    %1648 = vmatprep.subr.bf16.mxu0 0
    %1649 = vmatpush2.bf16.msra.mxu0 0
    %1650 = vmatprep.subr.bf16.mxu0 0
    %1651 = vmatpush2.bf16.msra.mxu0 0
    %1652 = vmatprep.mubr.bf16.mxu0 0
    %1653 = vmatmul.mubr.bf16.gmra.mxu0 %v1618
    %v1654 = vpop.f32.mrf.mxu0
    %v1655 = vadd.f32 0.0, %v1654
    %v1656 = vpop.f32.mrf.mxu0
    %v1657 = vadd.f32 0.0, %v1656
    %v1658 = vpop.f32.mrf.mxu0
    %v1659 = vpop.f32.mrf.mxu0
    %1660 = vdwg.mxu0
    %v1661 = vpack.c.bf16 %v1068, %v1068
    %v1662 = vld [vmem:[#allocation19] sm:$0xff]
    %v1663 = vld [vmem:[#allocation19 + $0x8] sm:$0xff]
    %v1664 = vld [vmem:[#allocation19 + $0x10] sm:$0xff]
    %v1665 = vld [vmem:[#allocation19 + $0x18] sm:$0xff]
    %1667 = vrot.lane.b32.xlu0 %v1661, 96
    %v1668 = vpop.permute.xlu0 %1667
    %v1673 = vunpack.c.l.b16 %v1662
    %v1674 = vunpack.c.h.b16 %v1662
    %v1675 = vunpack.c.l.b16 %v1663
    %v1676 = vunpack.c.h.b16 %v1663
    %v1677 = vunpack.c.l.b16 %v1664
    %v1678 = vunpack.c.h.b16 %v1664
    %v1679 = vunpack.c.l.b16 %v1665
    %v1680 = vunpack.c.h.b16 %v1665
    %v1681 = vpack.c.b16 %v1675, %v1673
    %v1682 = vpack.c.b16 %v1676, %v1674
    %v1683 = vpack.c.b16 %v1679, %v1677
    %v1684 = vpack.c.b16 %v1680, %v1678
    %v1690 = vsel %vm271, %v1668, 0
    %1692 = vmatprep.subr.bf16.mxu0 0
    %1693 = vmatpush1.bf16.msra.mxu0 0
    %1694 = vmatprep.subr.bf16.mxu0 0
    %1695 = vmatpush1.bf16.msra.mxu0 0
    %1696 = vmatprep.subr.bf16.mxu0 0
    %1697 = vmatpush1.bf16.msra.mxu0 0
    %1698 = vmatprep.subr.bf16.mxu0 0
    %1699 = vmatpush1.bf16.msra.mxu0 0
    %1700 = vmatprep.subr.bf16.mxu0 0
    %1701 = vmatpush1.bf16.msra.mxu0 0
    %1702 = vmatprep.subr.bf16.mxu0 0
    %1703 = vmatpush1.bf16.msra.mxu0 0
    %1704 = vmatprep.subr.bf16.mxu0 %v1684
    %1705 = vmatpush1.bf16.msra.mxu0 %v1683
    %1706 = vmatprep.subr.bf16.mxu0 %v1682
    %1707 = vmatpush1.bf16.msra.mxu0 %v1681
    %1708 = vmatprep.subr.bf16.mxu0 0
    %1709 = vmatpush2.bf16.msra.mxu0 0
    %1710 = vmatprep.subr.bf16.mxu0 0
    %1711 = vmatpush2.bf16.msra.mxu0 0
    %1712 = vmatprep.subr.bf16.mxu0 0
    %1713 = vmatpush2.bf16.msra.mxu0 0
    %1714 = vmatprep.subr.bf16.mxu0 0
    %1715 = vmatpush2.bf16.msra.mxu0 0
    %1716 = vmatprep.subr.bf16.mxu0 0
    %1717 = vmatpush2.bf16.msra.mxu0 0
    %1718 = vmatprep.subr.bf16.mxu0 0
    %1719 = vmatpush2.bf16.msra.mxu0 0
    %1720 = vmatprep.subr.bf16.mxu0 0
    %1721 = vmatpush2.bf16.msra.mxu0 0
    %1722 = vmatprep.subr.bf16.mxu0 0
    %1723 = vmatpush2.bf16.msra.mxu0 0
    %1724 = vmatprep.mubr.bf16.mxu0 0
    %1725 = vmatmul.mubr.bf16.gmra.mxu0 %v1690
    %v1726 = vpop.f32.mrf.mxu0
    %v1727 = vadd.f32 0.0, %v1726
    %v1728 = vpop.f32.mrf.mxu0
    %v1729 = vadd.f32 0.0, %v1728
    %v1730 = vpop.f32.mrf.mxu0
    %v1731 = vpop.f32.mrf.mxu0
    %1732 = vdwg.mxu0
    %1735 = vrot.lane.b32.xlu0 %v1655, 32
    %v1736 = vpop.permute.xlu0 %1735
    %1737 = vrot.lane.b32.xlu0 %v1657, 32
    %v1738 = vpop.permute.xlu0 %1737
    %v1739 = vsel %vm271, %v1736, %v1738
    %v1741 = vsel %vm817, %v1655, %v1739
    %v1742 = vld [vmem:[%s14] sm:$0x3]
    %v1743 = vadd.f32 %v1741, %v1742
    %1746 = vrot.lane.b32.xlu0 %v1727, 32
    %v1747 = vpop.permute.xlu0 %1746
    %1748 = vrot.lane.b32.xlu0 %v1729, 32
    %v1749 = vpop.permute.xlu0 %1748
    %v1750 = vsel %vm271, %v1747, %v1749
    %v1752 = vsel %vm817, %v1727, %v1750
    %v1753 = vadd.f32 %v1743, %v1752
    %v1754 = vxor.u32 %v1753, 2147483648
    %v1755 = vmul.f32 %v1754, 1.442695
    %v1756 = vpow.pop %v1755
    %v1757 = vadd.f32 %v1756, 1.0
    %v1758 = vrcp.pop %v1757
    %v1759 = vmul.f32 1.0, %v1758
    %v1760 = vld [vmem:[%s15] sm:$0x3]
    %1762 = vrot.lane.b32.xlu0 %v1760, 64
    %v1763 = vpop.permute.xlu0 %1762
    %v1765 = vadd.f32 %v1752, %v1763
    %1767 = vrot.lane.b32.xlu0 %v1765, 64
    %v1768 = vpop.permute.xlu0 %1767
    %v1770 = vmul.f32 %v1759, %v1768
    %1772 = vrot.lane.b32.xlu0 %v1770, 64
    %v1773 = vpop.permute.xlu0 %1772
    %v1775 = vadd.f32 %v1743, %v1773
    %v1776 = vtanh.pop %v1775
    %v1777 = vsub.f32 1.0, %v1759
    %1779 = vrot.lane.b32.xlu0 %v1776, 96
    %v1780 = vpop.permute.xlu0 %1779
    %v1782 = vmul.f32 %v1777, %v1780
    %v1783 = vmul.f32 %v1759, %v1068
    %v1784 = vadd.f32 %v1782, %v1783
    %v1785 = vmul.f32 %v1462, %v1784
    %v1786 = vadd.f32 %v1785, 0.0
    %v1787 = vmul.f32 %v1494, %v1784
    %v1789 = vrot.slane %v1787, 1
    %v1791 = vadd.f32 %v1786, %v1789
    %1793 = vrot.lane.b32.xlu0 %v1791, 96
    %v1794 = vpop.permute.xlu0 %1793
    %1796 = vst.msk [vmem:[#allocation21 + $0x1] sm:$0x1] %vm469, %v1794
    %s1797 = sld [smem:[#allocation2 + $0x2]]
    %v1798 = vld [vmem:[#allocation13] sm:$0xf]
    %v1799 = vld [vmem:[#allocation13 + $0x4] sm:$0xf]
    %v1800 = vld [vmem:[#allocation13 + $0x8] sm:$0xf]
    %v1801 = vld [vmem:[#allocation13 + $0xc] sm:$0xf]
    %v1806 = vunpack.c.l.b16 %v1798
    %v1807 = vunpack.c.l.b16 %v1799
    %v1808 = vunpack.c.l.b16 %v1800
    %v1809 = vunpack.c.l.b16 %v1801
    %v1810 = vpack.c.b16 %v1807, %v1806
    %v1811 = vpack.c.b16 %v1809, %v1808
    %1814 = vmatprep.subr.bf16.mxu0 0
    %1815 = vmatpush1.bf16.msra.mxu0 0
    %1816 = vmatprep.subr.bf16.mxu0 0
    %1817 = vmatpush1.bf16.msra.mxu0 0
    %1818 = vmatprep.subr.bf16.mxu0 0
    %1819 = vmatpush1.bf16.msra.mxu0 0
    %1820 = vmatprep.subr.bf16.mxu0 0
    %1821 = vmatpush1.bf16.msra.mxu0 0
    %1822 = vmatprep.subr.bf16.mxu0 0
    %1823 = vmatpush1.bf16.msra.mxu0 0
    %1824 = vmatprep.subr.bf16.mxu0 0
    %1825 = vmatpush1.bf16.msra.mxu0 0
    %1826 = vmatprep.subr.bf16.mxu0 0
    %1827 = vmatpush1.bf16.msra.mxu0 %v1811
    %1828 = vmatprep.subr.bf16.mxu0 0
    %1829 = vmatpush1.bf16.msra.mxu0 %v1810
    %1830 = vmatprep.subr.bf16.mxu0 0
    %1831 = vmatpush2.bf16.msra.mxu0 0
    %1832 = vmatprep.subr.bf16.mxu0 0
    %1833 = vmatpush2.bf16.msra.mxu0 0
    %1834 = vmatprep.subr.bf16.mxu0 0
    %1835 = vmatpush2.bf16.msra.mxu0 0
    %1836 = vmatprep.subr.bf16.mxu0 0
    %1837 = vmatpush2.bf16.msra.mxu0 0
    %1838 = vmatprep.subr.bf16.mxu0 0
    %1839 = vmatpush2.bf16.msra.mxu0 0
    %1840 = vmatprep.subr.bf16.mxu0 0
    %1841 = vmatpush2.bf16.msra.mxu0 0
    %1842 = vmatprep.subr.bf16.mxu0 0
    %1843 = vmatpush2.bf16.msra.mxu0 0
    %1844 = vmatprep.subr.bf16.mxu0 0
    %1845 = vmatpush2.bf16.msra.mxu0 0
    %1846 = vmatprep.mubr.bf16.mxu0 0
    %1847 = vmatmul.mubr.bf16.gmra.mxu0 %v1233
    %v1848 = vpop.f32.mrf.mxu0
    %v1849 = vadd.f32 0.0, %v1848
    %v1850 = vpop.f32.mrf.mxu0
    %v1851 = vpop.f32.mrf.mxu0
    %v1852 = vpop.f32.mrf.mxu0
    %1853 = vdwg.mxu0
    %v1855 = vrot.slane %v1849, 6
    %v1857 = vadd.f32 %v310, %v1855
    %v1858 = vxor.u32 %v1857, 2147483648
    %v1859 = vmul.f32 %v1858, 1.442695
    %v1860 = vpow.pop %v1859
    %v1861 = vadd.f32 %v1860, 1.0
    %v1862 = vrcp.pop %v1861
    %v1863 = vmul.f32 1.0, %v1862
    %v1864 = vld [vmem:[%s12] sm:$0x1]
    %v1866 = vlaneseq
    %v1867 = vshrl.u32 %v1866, 7
    %v1868 = vsub.s32 0, %v1867
    %v1869 = vrot.slane %v1864, %v1868
    %1870 = vrot.lane.b32.xlu0 %v1869, 64
    %v1871 = vpop.permute.xlu0 %1870
    %v1873 = vadd.f32 %v1849, %v1871
    %v1875 = vrot.slane %v1873, 6
    %1876 = vrot.lane.b32.xlu0 %v1875, 64
    %v1877 = vpop.permute.xlu0 %1876
    %v1879 = vmul.f32 %v1863, %v1877
    %1881 = vrot.lane.b32.xlu0 %v1879, 64
    %v1882 = vpop.permute.xlu0 %1881
    %v1884 = vadd.f32 %v310, %v1882
    %v1885 = vtanh.pop %v1884
    %v1886 = vsub.f32 1.0, %v1863
    %1888 = vrot.lane.b32.xlu0 %v1885, 96
    %v1889 = vpop.permute.xlu0 %1888
    %v1891 = vmul.f32 %v1886, %v1889
    %v1892 = vrot.slane %v1179, 7
    %v1894 = vmul.f32 %v1863, %v1892
    %v1895 = vadd.f32 %v1891, %v1894
    %1897 = vrot.lane.b32.xlu0 %v1895, 96
    %v1898 = vpop.permute.xlu0 %1897
    %vm1900 = vcmask 256002
    %1901 = vst.msk [vmem:[#allocation22] sm:$0x4] %vm1900, %v1898
    %v1902 = vpack.c.bf16 %v1895, %v1895
    %v1903 = vld [vmem:[#allocation15] sm:$0xff]
    %v1904 = vld [vmem:[#allocation15 + $0x8] sm:$0xf]
    %v1905 = vld [vmem:[#allocation15 + $0xc] sm:$0xff]
    %v1906 = vld [vmem:[#allocation15 + $0x14] sm:$0xf]
    %v1907 = vld [vmem:[#allocation15 + $0x18] sm:$0xff]
    %v1908 = vld [vmem:[#allocation15 + $0x20] sm:$0xf]
    %v1909 = vld [vmem:[#allocation15 + $0x24] sm:$0xff]
    %v1910 = vld [vmem:[#allocation15 + $0x2c] sm:$0xf]
    %v1912 = vrot.slane %v1902, 1
    %1913 = vrot.lane.b32.xlu0 %v1912, 96
    %v1914 = vpop.permute.xlu0 %1913
    %v1923 = vunpack.c.l.b16 %v1903
    %v1924 = vunpack.c.h.b16 %v1903
    %v1925 = vunpack.c.l.b16 %v1904
    %v1926 = vunpack.c.l.b16 %v1905
    %v1927 = vunpack.c.h.b16 %v1905
    %v1928 = vunpack.c.l.b16 %v1906
    %v1929 = vunpack.c.l.b16 %v1907
    %v1930 = vunpack.c.h.b16 %v1907
    %v1931 = vunpack.c.l.b16 %v1908
    %v1932 = vunpack.c.l.b16 %v1909
    %v1933 = vunpack.c.h.b16 %v1909
    %v1934 = vunpack.c.l.b16 %v1910
    %v1935 = vpack.c.b16 %v1926, %v1923
    %v1936 = vpack.c.b16 %v1927, %v1924
    %v1937 = vpack.c.b16 %v1928, %v1925
    %v1938 = vpack.c.b16 %v1932, %v1929
    %v1939 = vpack.c.b16 %v1933, %v1930
    %v1940 = vpack.c.b16 %v1934, %v1931
    %v1948 = vsel %vm271, %v1914, 0
    %1950 = vmatprep.subr.bf16.mxu0 0
    %1951 = vmatpush1.bf16.msra.mxu0 0
    %1952 = vmatprep.subr.bf16.mxu0 0
    %1953 = vmatpush1.bf16.msra.mxu0 0
    %1954 = vmatprep.subr.bf16.mxu0 0
    %1955 = vmatpush1.bf16.msra.mxu0 0
    %1956 = vmatprep.subr.bf16.mxu0 0
    %1957 = vmatpush1.bf16.msra.mxu0 0
    %1958 = vmatprep.subr.bf16.mxu0 0
    %1959 = vmatpush1.bf16.msra.mxu0 0
    %1960 = vmatprep.subr.bf16.mxu0 0
    %1961 = vmatpush1.bf16.msra.mxu0 0
    %1962 = vmatprep.subr.bf16.mxu0 %v1939
    %1963 = vmatpush1.bf16.msra.mxu0 %v1938
    %1964 = vmatprep.subr.bf16.mxu0 %v1936
    %1965 = vmatpush1.bf16.msra.mxu0 %v1935
    %1966 = vmatprep.subr.bf16.mxu0 0
    %1967 = vmatpush2.bf16.msra.mxu0 0
    %1968 = vmatprep.subr.bf16.mxu0 0
    %1969 = vmatpush2.bf16.msra.mxu0 0
    %1970 = vmatprep.subr.bf16.mxu0 0
    %1971 = vmatpush2.bf16.msra.mxu0 0
    %1972 = vmatprep.subr.bf16.mxu0 0
    %1973 = vmatpush2.bf16.msra.mxu0 0
    %1974 = vmatprep.subr.bf16.mxu0 0
    %1975 = vmatpush2.bf16.msra.mxu0 0
    %1976 = vmatprep.subr.bf16.mxu0 0
    %1977 = vmatpush2.bf16.msra.mxu0 0
    %1978 = vmatprep.subr.bf16.mxu0 0
    %1979 = vmatpush2.bf16.msra.mxu0 0
    %1980 = vmatprep.subr.bf16.mxu0 0
    %1981 = vmatpush2.bf16.msra.mxu0 0
    %1982 = vmatprep.mubr.bf16.mxu0 0
    %1983 = vmatmul.mubr.bf16.gmra.mxu0 %v1948
    %v1984 = vpop.f32.mrf.mxu0
    %v1985 = vadd.f32 0.0, %v1984
    %v1986 = vpop.f32.mrf.mxu0
    %v1987 = vadd.f32 0.0, %v1986
    %v1988 = vpop.f32.mrf.mxu0
    %v1989 = vpop.f32.mrf.mxu0
    %1990 = vdwg.mxu0
    %1991 = vmatprep.subr.bf16.mxu0 0
    %1992 = vmatpush1.bf16.msra.mxu0 0
    %1993 = vmatprep.subr.bf16.mxu0 0
    %1994 = vmatpush1.bf16.msra.mxu0 0
    %1995 = vmatprep.subr.bf16.mxu0 0
    %1996 = vmatpush1.bf16.msra.mxu0 0
    %1997 = vmatprep.subr.bf16.mxu0 0
    %1998 = vmatpush1.bf16.msra.mxu0 0
    %1999 = vmatprep.subr.bf16.mxu0 0
    %2000 = vmatpush1.bf16.msra.mxu0 0
    %2001 = vmatprep.subr.bf16.mxu0 0
    %2002 = vmatpush1.bf16.msra.mxu0 0
    %2003 = vmatprep.subr.bf16.mxu0 0
    %2004 = vmatpush1.bf16.msra.mxu0 %v1940
    %2005 = vmatprep.subr.bf16.mxu0 0
    %2006 = vmatpush1.bf16.msra.mxu0 %v1937
    %2007 = vmatprep.subr.bf16.mxu0 0
    %2008 = vmatpush2.bf16.msra.mxu0 0
    %2009 = vmatprep.subr.bf16.mxu0 0
    %2010 = vmatpush2.bf16.msra.mxu0 0
    %2011 = vmatprep.subr.bf16.mxu0 0
    %2012 = vmatpush2.bf16.msra.mxu0 0
    %2013 = vmatprep.subr.bf16.mxu0 0
    %2014 = vmatpush2.bf16.msra.mxu0 0
    %2015 = vmatprep.subr.bf16.mxu0 0
    %2016 = vmatpush2.bf16.msra.mxu0 0
    %2017 = vmatprep.subr.bf16.mxu0 0
    %2018 = vmatpush2.bf16.msra.mxu0 0
    %2019 = vmatprep.subr.bf16.mxu0 0
    %2020 = vmatpush2.bf16.msra.mxu0 0
    %2021 = vmatprep.subr.bf16.mxu0 0
    %2022 = vmatpush2.bf16.msra.mxu0 0
    %2023 = vmatprep.mubr.bf16.mxu0 0
    %2024 = vmatmul.mubr.bf16.gmra.mxu0 %v1948
    %v2025 = vpop.f32.mrf.mxu0
    %v2026 = vadd.f32 0.0, %v2025
    %v2027 = vpop.f32.mrf.mxu0
    %v2028 = vpop.f32.mrf.mxu0
    %v2029 = vpop.f32.mrf.mxu0
    %2030 = vdwg.mxu0
    %v2034 = vrot.slane %v1985, 6
    %v2035 = vrot.slane %v1987, 6
    %v2036 = vrot.slane %v2026, 6
    %2037 = vrot.lane.b32.xlu0 %v2034, 96
    %v2038 = vpop.permute.xlu0 %2037
    %2039 = vrot.lane.b32.xlu0 %v2035, 96
    %v2040 = vpop.permute.xlu0 %2039
    %2041 = vrot.lane.b32.xlu0 %v2036, 96
    %v2042 = vpop.permute.xlu0 %2041
    %v2043 = vsel %vm608, %v2038, %v2040
    %v2044 = vsel %vm608, %v2040, %v2042
    %v2049 = vadd.f32 %v310, %v2038
    %v2050 = vadd.f32 %v312, %v2043
    %v2051 = vadd.f32 %v351, %v2044
    %v2052 = vadd.f32 %v353, %v2042
    %v2053 = vld [vmem:[#allocation16] sm:$0xff]
    %v2054 = vld [vmem:[#allocation16 + $0x8] sm:$0xf]
    %v2055 = vld [vmem:[#allocation16 + $0xc] sm:$0xff]
    %v2056 = vld [vmem:[#allocation16 + $0x14] sm:$0xf]
    %v2057 = vld [vmem:[#allocation16 + $0x18] sm:$0xff]
    %v2058 = vld [vmem:[#allocation16 + $0x20] sm:$0xf]
    %v2059 = vld [vmem:[#allocation16 + $0x24] sm:$0xff]
    %v2060 = vld [vmem:[#allocation16 + $0x2c] sm:$0xf]
    %v2069 = vunpack.c.l.b16 %v2053
    %v2070 = vunpack.c.h.b16 %v2053
    %v2071 = vunpack.c.l.b16 %v2054
    %v2072 = vunpack.c.l.b16 %v2055
    %v2073 = vunpack.c.h.b16 %v2055
    %v2074 = vunpack.c.l.b16 %v2056
    %v2075 = vunpack.c.l.b16 %v2057
    %v2076 = vunpack.c.h.b16 %v2057
    %v2077 = vunpack.c.l.b16 %v2058
    %v2078 = vunpack.c.l.b16 %v2059
    %v2079 = vunpack.c.h.b16 %v2059
    %v2080 = vunpack.c.l.b16 %v2060
    %v2081 = vpack.c.b16 %v2072, %v2069
    %v2082 = vpack.c.b16 %v2073, %v2070
    %v2083 = vpack.c.b16 %v2074, %v2071
    %v2084 = vpack.c.b16 %v2078, %v2075
    %v2085 = vpack.c.b16 %v2079, %v2076
    %v2086 = vpack.c.b16 %v2080, %v2077
    %2093 = vmatprep.subr.bf16.mxu0 0
    %2094 = vmatpush1.bf16.msra.mxu0 0
    %2095 = vmatprep.subr.bf16.mxu0 0
    %2096 = vmatpush1.bf16.msra.mxu0 0
    %2097 = vmatprep.subr.bf16.mxu0 0
    %2098 = vmatpush1.bf16.msra.mxu0 0
    %2099 = vmatprep.subr.bf16.mxu0 0
    %2100 = vmatpush1.bf16.msra.mxu0 0
    %2101 = vmatprep.subr.bf16.mxu0 0
    %2102 = vmatpush1.bf16.msra.mxu0 0
    %2103 = vmatprep.subr.bf16.mxu0 0
    %2104 = vmatpush1.bf16.msra.mxu0 0
    %2105 = vmatprep.subr.bf16.mxu0 %v2085
    %2106 = vmatpush1.bf16.msra.mxu0 %v2084
    %2107 = vmatprep.subr.bf16.mxu0 %v2082
    %2108 = vmatpush1.bf16.msra.mxu0 %v2081
    %2109 = vmatprep.subr.bf16.mxu0 0
    %2110 = vmatpush2.bf16.msra.mxu0 0
    %2111 = vmatprep.subr.bf16.mxu0 0
    %2112 = vmatpush2.bf16.msra.mxu0 0
    %2113 = vmatprep.subr.bf16.mxu0 0
    %2114 = vmatpush2.bf16.msra.mxu0 0
    %2115 = vmatprep.subr.bf16.mxu0 0
    %2116 = vmatpush2.bf16.msra.mxu0 0
    %2117 = vmatprep.subr.bf16.mxu0 0
    %2118 = vmatpush2.bf16.msra.mxu0 0
    %2119 = vmatprep.subr.bf16.mxu0 0
    %2120 = vmatpush2.bf16.msra.mxu0 0
    %2121 = vmatprep.subr.bf16.mxu0 0
    %2122 = vmatpush2.bf16.msra.mxu0 0
    %2123 = vmatprep.subr.bf16.mxu0 0
    %2124 = vmatpush2.bf16.msra.mxu0 0
    %2125 = vmatprep.mubr.bf16.mxu0 0
    %2126 = vmatmul.mubr.bf16.gmra.mxu0 %v1618
    %v2127 = vpop.f32.mrf.mxu0
    %v2128 = vadd.f32 0.0, %v2127
    %v2129 = vpop.f32.mrf.mxu0
    %v2130 = vadd.f32 0.0, %v2129
    %v2131 = vpop.f32.mrf.mxu0
    %v2132 = vpop.f32.mrf.mxu0
    %2133 = vdwg.mxu0
    %2134 = vmatprep.subr.bf16.mxu0 0
    %2135 = vmatpush1.bf16.msra.mxu0 0
    %2136 = vmatprep.subr.bf16.mxu0 0
    %2137 = vmatpush1.bf16.msra.mxu0 0
    %2138 = vmatprep.subr.bf16.mxu0 0
    %2139 = vmatpush1.bf16.msra.mxu0 0
    %2140 = vmatprep.subr.bf16.mxu0 0
    %2141 = vmatpush1.bf16.msra.mxu0 0
    %2142 = vmatprep.subr.bf16.mxu0 0
    %2143 = vmatpush1.bf16.msra.mxu0 0
    %2144 = vmatprep.subr.bf16.mxu0 0
    %2145 = vmatpush1.bf16.msra.mxu0 0
    %2146 = vmatprep.subr.bf16.mxu0 0
    %2147 = vmatpush1.bf16.msra.mxu0 %v2086
    %2148 = vmatprep.subr.bf16.mxu0 0
    %2149 = vmatpush1.bf16.msra.mxu0 %v2083
    %2150 = vmatprep.subr.bf16.mxu0 0
    %2151 = vmatpush2.bf16.msra.mxu0 0
    %2152 = vmatprep.subr.bf16.mxu0 0
    %2153 = vmatpush2.bf16.msra.mxu0 0
    %2154 = vmatprep.subr.bf16.mxu0 0
    %2155 = vmatpush2.bf16.msra.mxu0 0
    %2156 = vmatprep.subr.bf16.mxu0 0
    %2157 = vmatpush2.bf16.msra.mxu0 0
    %2158 = vmatprep.subr.bf16.mxu0 0
    %2159 = vmatpush2.bf16.msra.mxu0 0
    %2160 = vmatprep.subr.bf16.mxu0 0
    %2161 = vmatpush2.bf16.msra.mxu0 0
    %2162 = vmatprep.subr.bf16.mxu0 0
    %2163 = vmatpush2.bf16.msra.mxu0 0
    %2164 = vmatprep.subr.bf16.mxu0 0
    %2165 = vmatpush2.bf16.msra.mxu0 0
    %2166 = vmatprep.mubr.bf16.mxu0 0
    %2167 = vmatmul.mubr.bf16.gmra.mxu0 %v1618
    %v2168 = vpop.f32.mrf.mxu0
    %v2169 = vadd.f32 0.0, %v2168
    %v2170 = vpop.f32.mrf.mxu0
    %v2171 = vpop.f32.mrf.mxu0
    %v2172 = vpop.f32.mrf.mxu0
    %2173 = vdwg.mxu0
    %p2174 = scmp.eq.s32.totalorder %s1797, 0
    %s2175 = scalar_select %p2174, 1, 0
    %s2176 = scvt.s32.f32 %s2175
    %v2177 = vstv %s2176
    %v2178 = vmul.f32 %v2177, %v2049
    %v2179 = vmul.f32 %v2177, %v2050
    %s2180 = ssub.f32 1.0, %s2176
    %v2181 = vstv %s2180
    %v2182 = vmul.f32 %v2181, %v2051
    %2184 = vrot.lane.b32.xlu0 %v2182, 64
    %v2185 = vpop.permute.xlu0 %2184
    %v2187 = vadd.f32 %v2178, %v2185
    %v2188 = vadd.f32 %v2179, %v2185
    %v2189 = vmul.f32 %v2177, %v2128
    %v2190 = vmul.f32 %v2181, %v2130
    %v2191 = vmul.f32 %v2181, %v2169
    %2194 = vrot.lane.b32.xlu0 %v2190, 64
    %v2195 = vpop.permute.xlu0 %2194
    %2196 = vrot.lane.b32.xlu0 %v2191, 64
    %v2197 = vpop.permute.xlu0 %2196
    %v2198 = vsel %vm768, %v2195, %v2197
    %v2200 = vadd.f32 %v2189, %v2198
    %v2201 = vld [vmem:[%s13] sm:$0x1]
    %v2202 = vmul.f32 %v2177, %v2201
    %v2203 = vld [vmem:[%s13 + $0x2] sm:$0x1]
    %v2204 = vmul.f32 %v2181, %v2203
    %v2205 = vadd.f32 %v2202, %v2204
    %p2206 = scmp.eq.s32.totalorder %s1797, 1
    %s2207 = scalar_select %p2206, 1, 0
    %s2208 = scvt.s32.f32 %s2207
    %v2209 = vstv %s2208
    %v2210 = vmul.f32 %v2209, %v2050
    %v2211 = vmul.f32 %v2209, %v2051
    %s2212 = ssub.f32 1.0, %s2208
    %v2213 = vstv %s2212
    %v2214 = vmul.f32 %v2213, %v2052
    %2216 = vrot.lane.b32.xlu0 %v2214, 64
    %v2217 = vpop.permute.xlu0 %2216
    %v2219 = vadd.f32 %v2210, %v2217
    %v2220 = vadd.f32 %v2211, %v2217
    %v2221 = vmul.f32 %v2209, %v2128
    %v2222 = vmul.f32 %v2209, %v2130
    %v2223 = vmul.f32 %v2213, %v2169
    %2225 = vrot.lane.b32.xlu0 %v2223, 64
    %v2226 = vpop.permute.xlu0 %2225
    %v2228 = vadd.f32 %v2221, %v2226
    %v2229 = vadd.f32 %v2222, %v2226
    %v2230 = vld [vmem:[%s13 + $0x1] sm:$0x1]
    %v2231 = vmul.f32 %v2209, %v2230
    %v2232 = vld [vmem:[%s13 + $0x3] sm:$0x1]
    %v2233 = vmul.f32 %v2213, %v2232
    %v2234 = vadd.f32 %v2231, %v2233
    %v2237 = vrot.slane %v2187, 2
    %v2238 = vrot.slane %v2188, 2
    %v2243 = vrot.slane %v2219, 1
    %v2244 = vrot.slane %v2220, 1
    %2245 = vrot.lane.b32.xlu0 %v2243, 32
    %v2246 = vpop.permute.xlu0 %2245
    %2247 = vrot.lane.b32.xlu0 %v2244, 32
    %v2248 = vpop.permute.xlu0 %2247
    %v2249 = vsel %vm271, %v2246, %v2248
    %v2252 = vsel %vm817, %v2237, %v2246
    %v2253 = vsel %vm817, %v2238, %v2249
    %2256 = vrot.lane.b32.xlu0 %v2228, 32
    %v2257 = vpop.permute.xlu0 %2256
    %2258 = vrot.lane.b32.xlu0 %v2229, 32
    %v2259 = vpop.permute.xlu0 %2258
    %v2260 = vsel %vm271, %v2257, %v2259
    %v2262 = vsel %vm817, %v2200, %v2260
    %v2264 = vrot.slane %v2234, 7
    %v2266 = vsel %vm817, %v2205, %v2264
    %2268 = vrot.lane.b32.xlu0 %v2262, 96
    %v2269 = vpop.permute.xlu0 %2268
    %v2271 = vadd.f32 %v2252, %v2269
    %v2272 = vxor.u32 %v2271, 2147483648
    %v2273 = vmul.f32 %v2272, 1.442695
    %v2274 = vpow.pop %v2273
    %v2275 = vadd.f32 %v2274, 1.0
    %v2276 = vrcp.pop %v2275
    %v2277 = vmul.f32 1.0, %v2276
    %v2278 = vadd.f32 %v2253, %v2269
    %v2279 = vxor.u32 %v2278, 2147483648
    %v2280 = vmul.f32 %v2279, 1.442695
    %v2281 = vpow.pop %v2280
    %v2282 = vadd.f32 %v2281, 1.0
    %v2283 = vrcp.pop %v2282
    %v2284 = vmul.f32 1.0, %v2283
    %2286 = vrot.lane.b32.xlu0 %v2266, 64
    %v2287 = vpop.permute.xlu0 %2286
    %v2289 = vadd.f32 %v2262, %v2287
    %2291 = vrot.lane.b32.xlu0 %v2289, 32
    %v2292 = vpop.permute.xlu0 %2291
    %v2294 = vmul.f32 %v2277, %v2292
    %2296 = vrot.lane.b32.xlu0 %v2294, 64
    %v2297 = vpop.permute.xlu0 %2296
    %v2299 = vadd.f32 %v2253, %v2297
    %v2300 = vtanh.pop %v2299
    %v2301 = vsub.f32 1.0, %v2284
    %2303 = vrot.lane.b32.xlu0 %v2300, 96
    %v2304 = vpop.permute.xlu0 %2303
    %v2306 = vmul.f32 %v2301, %v2304
    %v2307 = vmul.f32 %v2284, %v1591
    %v2308 = vadd.f32 %v2306, %v2307
    %v2309 = vpack.c.bf16 %v2308, %v2308
    %v2310 = vld [vmem:[#allocation18] sm:$0xff]
    %v2311 = vld [vmem:[#allocation18 + $0x8] sm:$0xff]
    %v2312 = vld [vmem:[#allocation18 + $0x10] sm:$0xff]
    %v2313 = vld [vmem:[#allocation18 + $0x18] sm:$0xff]
    %v2318 = vunpack.c.l.b16 %v2310
    %v2319 = vunpack.c.h.b16 %v2310
    %v2320 = vunpack.c.l.b16 %v2311
    %v2321 = vunpack.c.h.b16 %v2311
    %v2322 = vunpack.c.l.b16 %v2312
    %v2323 = vunpack.c.h.b16 %v2312
    %v2324 = vunpack.c.l.b16 %v2313
    %v2325 = vunpack.c.h.b16 %v2313
    %v2326 = vpack.c.b16 %v2320, %v2318
    %v2327 = vpack.c.b16 %v2321, %v2319
    %v2328 = vpack.c.b16 %v2324, %v2322
    %v2329 = vpack.c.b16 %v2325, %v2323
    %v2335 = vsel %vm271, %v2309, 0
    %2337 = vmatprep.subr.bf16.mxu0 0
    %2338 = vmatpush1.bf16.msra.mxu0 0
    %2339 = vmatprep.subr.bf16.mxu0 0
    %2340 = vmatpush1.bf16.msra.mxu0 0
    %2341 = vmatprep.subr.bf16.mxu0 0
    %2342 = vmatpush1.bf16.msra.mxu0 0
    %2343 = vmatprep.subr.bf16.mxu0 0
    %2344 = vmatpush1.bf16.msra.mxu0 0
    %2345 = vmatprep.subr.bf16.mxu0 0
    %2346 = vmatpush1.bf16.msra.mxu0 0
    %2347 = vmatprep.subr.bf16.mxu0 0
    %2348 = vmatpush1.bf16.msra.mxu0 0
    %2349 = vmatprep.subr.bf16.mxu0 %v2329
    %2350 = vmatpush1.bf16.msra.mxu0 %v2328
    %2351 = vmatprep.subr.bf16.mxu0 %v2327
    %2352 = vmatpush1.bf16.msra.mxu0 %v2326
    %2353 = vmatprep.subr.bf16.mxu0 0
    %2354 = vmatpush2.bf16.msra.mxu0 0
    %2355 = vmatprep.subr.bf16.mxu0 0
    %2356 = vmatpush2.bf16.msra.mxu0 0
    %2357 = vmatprep.subr.bf16.mxu0 0
    %2358 = vmatpush2.bf16.msra.mxu0 0
    %2359 = vmatprep.subr.bf16.mxu0 0
    %2360 = vmatpush2.bf16.msra.mxu0 0
    %2361 = vmatprep.subr.bf16.mxu0 0
    %2362 = vmatpush2.bf16.msra.mxu0 0
    %2363 = vmatprep.subr.bf16.mxu0 0
    %2364 = vmatpush2.bf16.msra.mxu0 0
    %2365 = vmatprep.subr.bf16.mxu0 0
    %2366 = vmatpush2.bf16.msra.mxu0 0
    %2367 = vmatprep.subr.bf16.mxu0 0
    %2368 = vmatpush2.bf16.msra.mxu0 0
    %2369 = vmatprep.mubr.bf16.mxu0 0
    %2370 = vmatmul.mubr.bf16.gmra.mxu0 %v2335
    %v2371 = vpop.f32.mrf.mxu0
    %v2372 = vadd.f32 0.0, %v2371
    %v2373 = vpop.f32.mrf.mxu0
    %v2374 = vadd.f32 0.0, %v2373
    %v2375 = vpop.f32.mrf.mxu0
    %v2376 = vpop.f32.mrf.mxu0
    %2377 = vdwg.mxu0
    %v2378 = vpack.c.bf16 %v1784, %v1784
    %v2379 = vld [vmem:[#allocation19] sm:$0xff]
    %v2380 = vld [vmem:[#allocation19 + $0x8] sm:$0xff]
    %v2381 = vld [vmem:[#allocation19 + $0x10] sm:$0xff]
    %v2382 = vld [vmem:[#allocation19 + $0x18] sm:$0xff]
    %2384 = vrot.lane.b32.xlu0 %v2378, 96
    %v2385 = vpop.permute.xlu0 %2384
    %v2390 = vunpack.c.l.b16 %v2379
    %v2391 = vunpack.c.h.b16 %v2379
    %v2392 = vunpack.c.l.b16 %v2380
    %v2393 = vunpack.c.h.b16 %v2380
    %v2394 = vunpack.c.l.b16 %v2381
    %v2395 = vunpack.c.h.b16 %v2381
    %v2396 = vunpack.c.l.b16 %v2382
    %v2397 = vunpack.c.h.b16 %v2382
    %v2398 = vpack.c.b16 %v2392, %v2390
    %v2399 = vpack.c.b16 %v2393, %v2391
    %v2400 = vpack.c.b16 %v2396, %v2394
    %v2401 = vpack.c.b16 %v2397, %v2395
    %v2407 = vsel %vm271, %v2385, 0
    %2409 = vmatprep.subr.bf16.mxu0 0
    %2410 = vmatpush1.bf16.msra.mxu0 0
    %2411 = vmatprep.subr.bf16.mxu0 0
    %2412 = vmatpush1.bf16.msra.mxu0 0
    %2413 = vmatprep.subr.bf16.mxu0 0
    %2414 = vmatpush1.bf16.msra.mxu0 0
    %2415 = vmatprep.subr.bf16.mxu0 0
    %2416 = vmatpush1.bf16.msra.mxu0 0
    %2417 = vmatprep.subr.bf16.mxu0 0
    %2418 = vmatpush1.bf16.msra.mxu0 0
    %2419 = vmatprep.subr.bf16.mxu0 0
    %2420 = vmatpush1.bf16.msra.mxu0 0
    %2421 = vmatprep.subr.bf16.mxu0 %v2401
    %2422 = vmatpush1.bf16.msra.mxu0 %v2400
    %2423 = vmatprep.subr.bf16.mxu0 %v2399
    %2424 = vmatpush1.bf16.msra.mxu0 %v2398
    %2425 = vmatprep.subr.bf16.mxu0 0
    %2426 = vmatpush2.bf16.msra.mxu0 0
    %2427 = vmatprep.subr.bf16.mxu0 0
    %2428 = vmatpush2.bf16.msra.mxu0 0
    %2429 = vmatprep.subr.bf16.mxu0 0
    %2430 = vmatpush2.bf16.msra.mxu0 0
    %2431 = vmatprep.subr.bf16.mxu0 0
    %2432 = vmatpush2.bf16.msra.mxu0 0
    %2433 = vmatprep.subr.bf16.mxu0 0
    %2434 = vmatpush2.bf16.msra.mxu0 0
    %2435 = vmatprep.subr.bf16.mxu0 0
    %2436 = vmatpush2.bf16.msra.mxu0 0
    %2437 = vmatprep.subr.bf16.mxu0 0
    %2438 = vmatpush2.bf16.msra.mxu0 0
    %2439 = vmatprep.subr.bf16.mxu0 0
    %2440 = vmatpush2.bf16.msra.mxu0 0
    %2441 = vmatprep.mubr.bf16.mxu0 0
    %2442 = vmatmul.mubr.bf16.gmra.mxu0 %v2407
    %v2443 = vpop.f32.mrf.mxu0
    %v2444 = vadd.f32 0.0, %v2443
    %v2445 = vpop.f32.mrf.mxu0
    %v2446 = vadd.f32 0.0, %v2445
    %v2447 = vpop.f32.mrf.mxu0
    %v2448 = vpop.f32.mrf.mxu0
    %2449 = vdwg.mxu0
    %2452 = vrot.lane.b32.xlu0 %v2372, 32
    %v2453 = vpop.permute.xlu0 %2452
    %2454 = vrot.lane.b32.xlu0 %v2374, 32
    %v2455 = vpop.permute.xlu0 %2454
    %v2456 = vsel %vm271, %v2453, %v2455
    %v2458 = vsel %vm817, %v2372, %v2456
    %v2459 = vld [vmem:[%s14] sm:$0x3]
    %v2460 = vadd.f32 %v2458, %v2459
    %2463 = vrot.lane.b32.xlu0 %v2444, 32
    %v2464 = vpop.permute.xlu0 %2463
    %2465 = vrot.lane.b32.xlu0 %v2446, 32
    %v2466 = vpop.permute.xlu0 %2465
    %v2467 = vsel %vm271, %v2464, %v2466
    %v2469 = vsel %vm817, %v2444, %v2467
    %v2470 = vadd.f32 %v2460, %v2469
    %v2471 = vxor.u32 %v2470, 2147483648
    %v2472 = vmul.f32 %v2471, 1.442695
    %v2473 = vpow.pop %v2472
    %v2474 = vadd.f32 %v2473, 1.0
    %v2475 = vrcp.pop %v2474
    %v2476 = vmul.f32 1.0, %v2475
    %v2477 = vld [vmem:[%s15] sm:$0x3]
    %2479 = vrot.lane.b32.xlu0 %v2477, 64
    %v2480 = vpop.permute.xlu0 %2479
    %v2482 = vadd.f32 %v2469, %v2480
    %2484 = vrot.lane.b32.xlu0 %v2482, 64
    %v2485 = vpop.permute.xlu0 %2484
    %v2487 = vmul.f32 %v2476, %v2485
    %2489 = vrot.lane.b32.xlu0 %v2487, 64
    %v2490 = vpop.permute.xlu0 %2489
    %v2492 = vadd.f32 %v2460, %v2490
    %v2493 = vtanh.pop %v2492
    %v2494 = vsub.f32 1.0, %v2476
    %2496 = vrot.lane.b32.xlu0 %v2493, 96
    %v2497 = vpop.permute.xlu0 %2496
    %v2499 = vmul.f32 %v2494, %v2497
    %v2500 = vmul.f32 %v2476, %v1784
    %v2501 = vadd.f32 %v2499, %v2500
    %v2502 = vmul.f32 %v2177, %v2501
    %v2503 = vadd.f32 %v2502, 0.0
    %v2504 = vmul.f32 %v2209, %v2501
    %v2506 = vrot.slane %v2504, 1
    %v2508 = vadd.f32 %v2503, %v2506
    %2510 = vrot.lane.b32.xlu0 %v2508, 96
    %v2511 = vpop.permute.xlu0 %2510
    %2513 = vst.msk [vmem:[#allocation21 + $0x2] sm:$0x1] %vm469, %v2511
    %s2514 = sld [smem:[#allocation2 + $0x3]]
    %v2515 = vld [vmem:[#allocation13] sm:$0xf]
    %v2516 = vld [vmem:[#allocation13 + $0x4] sm:$0xf]
    %v2517 = vld [vmem:[#allocation13 + $0x8] sm:$0xf]
    %v2518 = vld [vmem:[#allocation13 + $0xc] sm:$0xf]
    %v2523 = vunpack.c.l.b16 %v2515
    %v2524 = vunpack.c.l.b16 %v2516
    %v2525 = vunpack.c.l.b16 %v2517
    %v2526 = vunpack.c.l.b16 %v2518
    %v2527 = vpack.c.b16 %v2524, %v2523
    %v2528 = vpack.c.b16 %v2526, %v2525
    %2531 = vmatprep.subr.bf16.mxu0 0
    %2532 = vmatpush1.bf16.msra.mxu0 0
    %2533 = vmatprep.subr.bf16.mxu0 0
    %2534 = vmatpush1.bf16.msra.mxu0 0
    %2535 = vmatprep.subr.bf16.mxu0 0
    %2536 = vmatpush1.bf16.msra.mxu0 0
    %2537 = vmatprep.subr.bf16.mxu0 0
    %2538 = vmatpush1.bf16.msra.mxu0 0
    %2539 = vmatprep.subr.bf16.mxu0 0
    %2540 = vmatpush1.bf16.msra.mxu0 0
    %2541 = vmatprep.subr.bf16.mxu0 0
    %2542 = vmatpush1.bf16.msra.mxu0 0
    %2543 = vmatprep.subr.bf16.mxu0 0
    %2544 = vmatpush1.bf16.msra.mxu0 %v2528
    %2545 = vmatprep.subr.bf16.mxu0 0
    %2546 = vmatpush1.bf16.msra.mxu0 %v2527
    %2547 = vmatprep.subr.bf16.mxu0 0
    %2548 = vmatpush2.bf16.msra.mxu0 0
    %2549 = vmatprep.subr.bf16.mxu0 0
    %2550 = vmatpush2.bf16.msra.mxu0 0
    %2551 = vmatprep.subr.bf16.mxu0 0
    %2552 = vmatpush2.bf16.msra.mxu0 0
    %2553 = vmatprep.subr.bf16.mxu0 0
    %2554 = vmatpush2.bf16.msra.mxu0 0
    %2555 = vmatprep.subr.bf16.mxu0 0
    %2556 = vmatpush2.bf16.msra.mxu0 0
    %2557 = vmatprep.subr.bf16.mxu0 0
    %2558 = vmatpush2.bf16.msra.mxu0 0
    %2559 = vmatprep.subr.bf16.mxu0 0
    %2560 = vmatpush2.bf16.msra.mxu0 0
    %2561 = vmatprep.subr.bf16.mxu0 0
    %2562 = vmatpush2.bf16.msra.mxu0 0
    %2563 = vmatprep.mubr.bf16.mxu0 0
    %2564 = vmatmul.mubr.bf16.gmra.mxu0 %v1948
    %v2565 = vpop.f32.mrf.mxu0
    %v2566 = vadd.f32 0.0, %v2565
    %v2567 = vpop.f32.mrf.mxu0
    %v2568 = vpop.f32.mrf.mxu0
    %v2569 = vpop.f32.mrf.mxu0
    %2570 = vdwg.mxu0
    %v2572 = vrot.slane %v2566, 5
    %v2574 = vadd.f32 %v310, %v2572
    %v2575 = vxor.u32 %v2574, 2147483648
    %v2576 = vmul.f32 %v2575, 1.442695
    %v2577 = vpow.pop %v2576
    %v2578 = vadd.f32 %v2577, 1.0
    %v2579 = vrcp.pop %v2578
    %v2580 = vmul.f32 1.0, %v2579
    %v2581 = vld [vmem:[%s12] sm:$0x1]
    %v2583 = vlaneseq
    %v2584 = vshrl.u32 %v2583, 7
    %v2585 = vsub.s32 0, %v2584
    %v2586 = vrot.slane %v2581, %v2585
    %2587 = vrot.lane.b32.xlu0 %v2586, 64
    %v2588 = vpop.permute.xlu0 %2587
    %v2590 = vadd.f32 %v2566, %v2588
    %v2592 = vrot.slane %v2590, 5
    %2593 = vrot.lane.b32.xlu0 %v2592, 64
    %v2594 = vpop.permute.xlu0 %2593
    %v2596 = vmul.f32 %v2580, %v2594
    %2598 = vrot.lane.b32.xlu0 %v2596, 64
    %v2599 = vpop.permute.xlu0 %2598
    %v2601 = vadd.f32 %v310, %v2599
    %v2602 = vtanh.pop %v2601
    %v2603 = vsub.f32 1.0, %v2580
    %2605 = vrot.lane.b32.xlu0 %v2602, 96
    %v2606 = vpop.permute.xlu0 %2605
    %v2608 = vmul.f32 %v2603, %v2606
    %v2609 = vrot.slane %v1895, 7
    %v2611 = vmul.f32 %v2580, %v2609
    %v2612 = vadd.f32 %v2608, %v2611
    %2614 = vrot.lane.b32.xlu0 %v2612, 96
    %v2615 = vpop.permute.xlu0 %2614
    %vm2617 = vcmask 257027
    %2618 = vst.msk [vmem:[#allocation22] sm:$0x8] %vm2617, %v2615
    %v2619 = vpack.c.bf16 %v2612, %v2612
    %v2620 = vld [vmem:[#allocation15] sm:$0xff]
    %v2621 = vld [vmem:[#allocation15 + $0x8] sm:$0xf]
    %v2622 = vld [vmem:[#allocation15 + $0xc] sm:$0xff]
    %v2623 = vld [vmem:[#allocation15 + $0x14] sm:$0xf]
    %v2624 = vld [vmem:[#allocation15 + $0x18] sm:$0xff]
    %v2625 = vld [vmem:[#allocation15 + $0x20] sm:$0xf]
    %v2626 = vld [vmem:[#allocation15 + $0x24] sm:$0xff]
    %v2627 = vld [vmem:[#allocation15 + $0x2c] sm:$0xf]
    %v2629 = vshrl.u32 %v2619, 16
    %v2631 = vrot.slane %v2629, 1
    %2632 = vrot.lane.b32.xlu0 %v2631, 96
    %v2633 = vpop.permute.xlu0 %2632
    %v2642 = vunpack.c.l.b16 %v2620
    %v2643 = vunpack.c.h.b16 %v2620
    %v2644 = vunpack.c.l.b16 %v2621
    %v2645 = vunpack.c.l.b16 %v2622
    %v2646 = vunpack.c.h.b16 %v2622
    %v2647 = vunpack.c.l.b16 %v2623
    %v2648 = vunpack.c.l.b16 %v2624
    %v2649 = vunpack.c.h.b16 %v2624
    %v2650 = vunpack.c.l.b16 %v2625
    %v2651 = vunpack.c.l.b16 %v2626
    %v2652 = vunpack.c.h.b16 %v2626
    %v2653 = vunpack.c.l.b16 %v2627
    %v2654 = vpack.c.b16 %v2645, %v2642
    %v2655 = vpack.c.b16 %v2646, %v2643
    %v2656 = vpack.c.b16 %v2647, %v2644
    %v2657 = vpack.c.b16 %v2651, %v2648
    %v2658 = vpack.c.b16 %v2652, %v2649
    %v2659 = vpack.c.b16 %v2653, %v2650
    %v2667 = vsel %vm271, %v2633, 0
    %2669 = vmatprep.subr.bf16.mxu0 0
    %2670 = vmatpush1.bf16.msra.mxu0 0
    %2671 = vmatprep.subr.bf16.mxu0 0
    %2672 = vmatpush1.bf16.msra.mxu0 0
    %2673 = vmatprep.subr.bf16.mxu0 0
    %2674 = vmatpush1.bf16.msra.mxu0 0
    %2675 = vmatprep.subr.bf16.mxu0 0
    %2676 = vmatpush1.bf16.msra.mxu0 0
    %2677 = vmatprep.subr.bf16.mxu0 0
    %2678 = vmatpush1.bf16.msra.mxu0 0
    %2679 = vmatprep.subr.bf16.mxu0 0
    %2680 = vmatpush1.bf16.msra.mxu0 0
    %2681 = vmatprep.subr.bf16.mxu0 %v2658
    %2682 = vmatpush1.bf16.msra.mxu0 %v2657
    %2683 = vmatprep.subr.bf16.mxu0 %v2655
    %2684 = vmatpush1.bf16.msra.mxu0 %v2654
    %2685 = vmatprep.subr.bf16.mxu0 0
    %2686 = vmatpush2.bf16.msra.mxu0 0
    %2687 = vmatprep.subr.bf16.mxu0 0
    %2688 = vmatpush2.bf16.msra.mxu0 0
    %2689 = vmatprep.subr.bf16.mxu0 0
    %2690 = vmatpush2.bf16.msra.mxu0 0
    %2691 = vmatprep.subr.bf16.mxu0 0
    %2692 = vmatpush2.bf16.msra.mxu0 0
    %2693 = vmatprep.subr.bf16.mxu0 0
    %2694 = vmatpush2.bf16.msra.mxu0 0
    %2695 = vmatprep.subr.bf16.mxu0 0
    %2696 = vmatpush2.bf16.msra.mxu0 0
    %2697 = vmatprep.subr.bf16.mxu0 0
    %2698 = vmatpush2.bf16.msra.mxu0 0
    %2699 = vmatprep.subr.bf16.mxu0 0
    %2700 = vmatpush2.bf16.msra.mxu0 0
    %2701 = vmatprep.mubr.bf16.mxu0 0
    %2702 = vmatmul.mubr.bf16.gmra.mxu0 %v2667
    %v2703 = vpop.f32.mrf.mxu0
    %v2704 = vadd.f32 0.0, %v2703
    %v2705 = vpop.f32.mrf.mxu0
    %v2706 = vadd.f32 0.0, %v2705
    %v2707 = vpop.f32.mrf.mxu0
    %v2708 = vpop.f32.mrf.mxu0
    %2709 = vdwg.mxu0
    %2710 = vmatprep.subr.bf16.mxu0 0
    %2711 = vmatpush1.bf16.msra.mxu0 0
    %2712 = vmatprep.subr.bf16.mxu0 0
    %2713 = vmatpush1.bf16.msra.mxu0 0
    %2714 = vmatprep.subr.bf16.mxu0 0
    %2715 = vmatpush1.bf16.msra.mxu0 0
    %2716 = vmatprep.subr.bf16.mxu0 0
    %2717 = vmatpush1.bf16.msra.mxu0 0
    %2718 = vmatprep.subr.bf16.mxu0 0
    %2719 = vmatpush1.bf16.msra.mxu0 0
    %2720 = vmatprep.subr.bf16.mxu0 0
    %2721 = vmatpush1.bf16.msra.mxu0 0
    %2722 = vmatprep.subr.bf16.mxu0 0
    %2723 = vmatpush1.bf16.msra.mxu0 %v2659
    %2724 = vmatprep.subr.bf16.mxu0 0
    %2725 = vmatpush1.bf16.msra.mxu0 %v2656
    %2726 = vmatprep.subr.bf16.mxu0 0
    %2727 = vmatpush2.bf16.msra.mxu0 0
    %2728 = vmatprep.subr.bf16.mxu0 0
    %2729 = vmatpush2.bf16.msra.mxu0 0
    %2730 = vmatprep.subr.bf16.mxu0 0
    %2731 = vmatpush2.bf16.msra.mxu0 0
    %2732 = vmatprep.subr.bf16.mxu0 0
    %2733 = vmatpush2.bf16.msra.mxu0 0
    %2734 = vmatprep.subr.bf16.mxu0 0
    %2735 = vmatpush2.bf16.msra.mxu0 0
    %2736 = vmatprep.subr.bf16.mxu0 0
    %2737 = vmatpush2.bf16.msra.mxu0 0
    %2738 = vmatprep.subr.bf16.mxu0 0
    %2739 = vmatpush2.bf16.msra.mxu0 0
    %2740 = vmatprep.subr.bf16.mxu0 0
    %2741 = vmatpush2.bf16.msra.mxu0 0
    %2742 = vmatprep.mubr.bf16.mxu0 0
    %2743 = vmatmul.mubr.bf16.gmra.mxu0 %v2667
    %v2744 = vpop.f32.mrf.mxu0
    %v2745 = vadd.f32 0.0, %v2744
    %v2746 = vpop.f32.mrf.mxu0
    %v2747 = vpop.f32.mrf.mxu0
    %v2748 = vpop.f32.mrf.mxu0
    %2749 = vdwg.mxu0
    %v2753 = vrot.slane %v2704, 5
    %v2754 = vrot.slane %v2706, 5
    %v2755 = vrot.slane %v2745, 5
    %2756 = vrot.lane.b32.xlu0 %v2753, 96
    %v2757 = vpop.permute.xlu0 %2756
    %2758 = vrot.lane.b32.xlu0 %v2754, 96
    %v2759 = vpop.permute.xlu0 %2758
    %2760 = vrot.lane.b32.xlu0 %v2755, 96
    %v2761 = vpop.permute.xlu0 %2760
    %v2762 = vsel %vm608, %v2757, %v2759
    %v2763 = vsel %vm608, %v2759, %v2761
    %v2768 = vadd.f32 %v310, %v2757
    %v2769 = vadd.f32 %v312, %v2762
    %v2770 = vadd.f32 %v351, %v2763
    %v2771 = vadd.f32 %v353, %v2761
    %v2772 = vld [vmem:[#allocation16] sm:$0xff]
    %v2773 = vld [vmem:[#allocation16 + $0x8] sm:$0xf]
    %v2774 = vld [vmem:[#allocation16 + $0xc] sm:$0xff]
    %v2775 = vld [vmem:[#allocation16 + $0x14] sm:$0xf]
    %v2776 = vld [vmem:[#allocation16 + $0x18] sm:$0xff]
    %v2777 = vld [vmem:[#allocation16 + $0x20] sm:$0xf]
    %v2778 = vld [vmem:[#allocation16 + $0x24] sm:$0xff]
    %v2779 = vld [vmem:[#allocation16 + $0x2c] sm:$0xf]
    %v2788 = vunpack.c.l.b16 %v2772
    %v2789 = vunpack.c.h.b16 %v2772
    %v2790 = vunpack.c.l.b16 %v2773
    %v2791 = vunpack.c.l.b16 %v2774
    %v2792 = vunpack.c.h.b16 %v2774
    %v2793 = vunpack.c.l.b16 %v2775
    %v2794 = vunpack.c.l.b16 %v2776
    %v2795 = vunpack.c.h.b16 %v2776
    %v2796 = vunpack.c.l.b16 %v2777
    %v2797 = vunpack.c.l.b16 %v2778
    %v2798 = vunpack.c.h.b16 %v2778
    %v2799 = vunpack.c.l.b16 %v2779
    %v2800 = vpack.c.b16 %v2791, %v2788
    %v2801 = vpack.c.b16 %v2792, %v2789
    %v2802 = vpack.c.b16 %v2793, %v2790
    %v2803 = vpack.c.b16 %v2797, %v2794
    %v2804 = vpack.c.b16 %v2798, %v2795
    %v2805 = vpack.c.b16 %v2799, %v2796
    %2812 = vmatprep.subr.bf16.mxu0 0
    %2813 = vmatpush1.bf16.msra.mxu0 0
    %2814 = vmatprep.subr.bf16.mxu0 0
    %2815 = vmatpush1.bf16.msra.mxu0 0
    %2816 = vmatprep.subr.bf16.mxu0 0
    %2817 = vmatpush1.bf16.msra.mxu0 0
    %2818 = vmatprep.subr.bf16.mxu0 0
    %2819 = vmatpush1.bf16.msra.mxu0 0
    %2820 = vmatprep.subr.bf16.mxu0 0
    %2821 = vmatpush1.bf16.msra.mxu0 0
    %2822 = vmatprep.subr.bf16.mxu0 0
    %2823 = vmatpush1.bf16.msra.mxu0 0
    %2824 = vmatprep.subr.bf16.mxu0 %v2804
    %2825 = vmatpush1.bf16.msra.mxu0 %v2803
    %2826 = vmatprep.subr.bf16.mxu0 %v2801
    %2827 = vmatpush1.bf16.msra.mxu0 %v2800
    %2828 = vmatprep.subr.bf16.mxu0 0
    %2829 = vmatpush2.bf16.msra.mxu0 0
    %2830 = vmatprep.subr.bf16.mxu0 0
    %2831 = vmatpush2.bf16.msra.mxu0 0
    %2832 = vmatprep.subr.bf16.mxu0 0
    %2833 = vmatpush2.bf16.msra.mxu0 0
    %2834 = vmatprep.subr.bf16.mxu0 0
    %2835 = vmatpush2.bf16.msra.mxu0 0
    %2836 = vmatprep.subr.bf16.mxu0 0
    %2837 = vmatpush2.bf16.msra.mxu0 0
    %2838 = vmatprep.subr.bf16.mxu0 0
    %2839 = vmatpush2.bf16.msra.mxu0 0
    %2840 = vmatprep.subr.bf16.mxu0 0
    %2841 = vmatpush2.bf16.msra.mxu0 0
    %2842 = vmatprep.subr.bf16.mxu0 0
    %2843 = vmatpush2.bf16.msra.mxu0 0
    %2844 = vmatprep.mubr.bf16.mxu0 0
    %2845 = vmatmul.mubr.bf16.gmra.mxu0 %v2335
    %v2846 = vpop.f32.mrf.mxu0
    %v2847 = vadd.f32 0.0, %v2846
    %v2848 = vpop.f32.mrf.mxu0
    %v2849 = vadd.f32 0.0, %v2848
    %v2850 = vpop.f32.mrf.mxu0
    %v2851 = vpop.f32.mrf.mxu0
    %2852 = vdwg.mxu0
    %2853 = vmatprep.subr.bf16.mxu0 0
    %2854 = vmatpush1.bf16.msra.mxu0 0
    %2855 = vmatprep.subr.bf16.mxu0 0
    %2856 = vmatpush1.bf16.msra.mxu0 0
    %2857 = vmatprep.subr.bf16.mxu0 0
    %2858 = vmatpush1.bf16.msra.mxu0 0
    %2859 = vmatprep.subr.bf16.mxu0 0
    %2860 = vmatpush1.bf16.msra.mxu0 0
    %2861 = vmatprep.subr.bf16.mxu0 0
    %2862 = vmatpush1.bf16.msra.mxu0 0
    %2863 = vmatprep.subr.bf16.mxu0 0
    %2864 = vmatpush1.bf16.msra.mxu0 0
    %2865 = vmatprep.subr.bf16.mxu0 0
    %2866 = vmatpush1.bf16.msra.mxu0 %v2805
    %2867 = vmatprep.subr.bf16.mxu0 0
    %2868 = vmatpush1.bf16.msra.mxu0 %v2802
    %2869 = vmatprep.subr.bf16.mxu0 0
    %2870 = vmatpush2.bf16.msra.mxu0 0
    %2871 = vmatprep.subr.bf16.mxu0 0
    %2872 = vmatpush2.bf16.msra.mxu0 0
    %2873 = vmatprep.subr.bf16.mxu0 0
    %2874 = vmatpush2.bf16.msra.mxu0 0
    %2875 = vmatprep.subr.bf16.mxu0 0
    %2876 = vmatpush2.bf16.msra.mxu0 0
    %2877 = vmatprep.subr.bf16.mxu0 0
    %2878 = vmatpush2.bf16.msra.mxu0 0
    %2879 = vmatprep.subr.bf16.mxu0 0
    %2880 = vmatpush2.bf16.msra.mxu0 0
    %2881 = vmatprep.subr.bf16.mxu0 0
    %2882 = vmatpush2.bf16.msra.mxu0 0
    %2883 = vmatprep.subr.bf16.mxu0 0
    %2884 = vmatpush2.bf16.msra.mxu0 0
    %2885 = vmatprep.mubr.bf16.mxu0 0
    %2886 = vmatmul.mubr.bf16.gmra.mxu0 %v2335
    %v2887 = vpop.f32.mrf.mxu0
    %v2888 = vadd.f32 0.0, %v2887
    %v2889 = vpop.f32.mrf.mxu0
    %v2890 = vpop.f32.mrf.mxu0
    %v2891 = vpop.f32.mrf.mxu0
    %2892 = vdwg.mxu0
    %p2893 = scmp.eq.s32.totalorder %s2514, 0
    %s2894 = scalar_select %p2893, 1, 0
    %s2895 = scvt.s32.f32 %s2894
    %v2896 = vstv %s2895
    %v2897 = vmul.f32 %v2896, %v2768
    %v2898 = vmul.f32 %v2896, %v2769
    %s2899 = ssub.f32 1.0, %s2895
    %v2900 = vstv %s2899
    %v2901 = vmul.f32 %v2900, %v2770
    %2903 = vrot.lane.b32.xlu0 %v2901, 64
    %v2904 = vpop.permute.xlu0 %2903
    %v2906 = vadd.f32 %v2897, %v2904
    %v2907 = vadd.f32 %v2898, %v2904
    %v2908 = vmul.f32 %v2896, %v2847
    %v2909 = vmul.f32 %v2900, %v2849
    %v2910 = vmul.f32 %v2900, %v2888
    %2913 = vrot.lane.b32.xlu0 %v2909, 64
    %v2914 = vpop.permute.xlu0 %2913
    %2915 = vrot.lane.b32.xlu0 %v2910, 64
    %v2916 = vpop.permute.xlu0 %2915
    %v2917 = vsel %vm768, %v2914, %v2916
    %v2919 = vadd.f32 %v2908, %v2917
    %v2920 = vld [vmem:[%s13] sm:$0x1]
    %v2921 = vmul.f32 %v2896, %v2920
    %v2922 = vld [vmem:[%s13 + $0x2] sm:$0x1]
    %v2923 = vmul.f32 %v2900, %v2922
    %v2924 = vadd.f32 %v2921, %v2923
    %p2925 = scmp.eq.s32.totalorder %s2514, 1
    %s2926 = scalar_select %p2925, 1, 0
    %s2927 = scvt.s32.f32 %s2926
    %v2928 = vstv %s2927
    %v2929 = vmul.f32 %v2928, %v2769
    %v2930 = vmul.f32 %v2928, %v2770
    %s2931 = ssub.f32 1.0, %s2927
    %v2932 = vstv %s2931
    %v2933 = vmul.f32 %v2932, %v2771
    %2935 = vrot.lane.b32.xlu0 %v2933, 64
    %v2936 = vpop.permute.xlu0 %2935
    %v2938 = vadd.f32 %v2929, %v2936
    %v2939 = vadd.f32 %v2930, %v2936
    %v2940 = vmul.f32 %v2928, %v2847
    %v2941 = vmul.f32 %v2928, %v2849
    %v2942 = vmul.f32 %v2932, %v2888
    %2944 = vrot.lane.b32.xlu0 %v2942, 64
    %v2945 = vpop.permute.xlu0 %2944
    %v2947 = vadd.f32 %v2940, %v2945
    %v2948 = vadd.f32 %v2941, %v2945
    %v2949 = vld [vmem:[%s13 + $0x1] sm:$0x1]
    %v2950 = vmul.f32 %v2928, %v2949
    %v2951 = vld [vmem:[%s13 + $0x3] sm:$0x1]
    %v2952 = vmul.f32 %v2932, %v2951
    %v2953 = vadd.f32 %v2950, %v2952
    %v2956 = vrot.slane %v2906, 3
    %v2957 = vrot.slane %v2907, 3
    %v2962 = vrot.slane %v2938, 2
    %v2963 = vrot.slane %v2939, 2
    %2964 = vrot.lane.b32.xlu0 %v2962, 32
    %v2965 = vpop.permute.xlu0 %2964
    %2966 = vrot.lane.b32.xlu0 %v2963, 32
    %v2967 = vpop.permute.xlu0 %2966
    %v2968 = vsel %vm271, %v2965, %v2967
    %v2971 = vsel %vm817, %v2956, %v2965
    %v2972 = vsel %vm817, %v2957, %v2968
    %2975 = vrot.lane.b32.xlu0 %v2947, 32
    %v2976 = vpop.permute.xlu0 %2975
    %2977 = vrot.lane.b32.xlu0 %v2948, 32
    %v2978 = vpop.permute.xlu0 %2977
    %v2979 = vsel %vm271, %v2976, %v2978
    %v2981 = vsel %vm817, %v2919, %v2979
    %v2983 = vrot.slane %v2953, 7
    %v2985 = vsel %vm817, %v2924, %v2983
    %2987 = vrot.lane.b32.xlu0 %v2981, 96
    %v2988 = vpop.permute.xlu0 %2987
    %v2990 = vadd.f32 %v2971, %v2988
    %v2991 = vxor.u32 %v2990, 2147483648
    %v2992 = vmul.f32 %v2991, 1.442695
    %v2993 = vpow.pop %v2992
    %v2994 = vadd.f32 %v2993, 1.0
    %v2995 = vrcp.pop %v2994
    %v2996 = vmul.f32 1.0, %v2995
    %v2997 = vadd.f32 %v2972, %v2988
    %v2998 = vxor.u32 %v2997, 2147483648
    %v2999 = vmul.f32 %v2998, 1.442695
    %v3000 = vpow.pop %v2999
    %v3001 = vadd.f32 %v3000, 1.0
    %v3002 = vrcp.pop %v3001
    %v3003 = vmul.f32 1.0, %v3002
    %3005 = vrot.lane.b32.xlu0 %v2985, 64
    %v3006 = vpop.permute.xlu0 %3005
    %v3008 = vadd.f32 %v2981, %v3006
    %3010 = vrot.lane.b32.xlu0 %v3008, 32
    %v3011 = vpop.permute.xlu0 %3010
    %v3013 = vmul.f32 %v2996, %v3011
    %3015 = vrot.lane.b32.xlu0 %v3013, 64
    %v3016 = vpop.permute.xlu0 %3015
    %v3018 = vadd.f32 %v2972, %v3016
    %v3019 = vtanh.pop %v3018
    %v3020 = vsub.f32 1.0, %v3003
    %3022 = vrot.lane.b32.xlu0 %v3019, 96
    %v3023 = vpop.permute.xlu0 %3022
    %v3025 = vmul.f32 %v3020, %v3023
    %v3026 = vmul.f32 %v3003, %v2308
    %v3027 = vadd.f32 %v3025, %v3026
    %v3028 = vpack.c.bf16 %v3027, %v3027
    %v3029 = vld [vmem:[#allocation18] sm:$0xff]
    %v3030 = vld [vmem:[#allocation18 + $0x8] sm:$0xff]
    %v3031 = vld [vmem:[#allocation18 + $0x10] sm:$0xff]
    %v3032 = vld [vmem:[#allocation18 + $0x18] sm:$0xff]
    %v3037 = vunpack.c.l.b16 %v3029
    %v3038 = vunpack.c.h.b16 %v3029
    %v3039 = vunpack.c.l.b16 %v3030
    %v3040 = vunpack.c.h.b16 %v3030
    %v3041 = vunpack.c.l.b16 %v3031
    %v3042 = vunpack.c.h.b16 %v3031
    %v3043 = vunpack.c.l.b16 %v3032
    %v3044 = vunpack.c.h.b16 %v3032
    %v3045 = vpack.c.b16 %v3039, %v3037
    %v3046 = vpack.c.b16 %v3040, %v3038
    %v3047 = vpack.c.b16 %v3043, %v3041
    %v3048 = vpack.c.b16 %v3044, %v3042
    %v3054 = vsel %vm271, %v3028, 0
    %3056 = vmatprep.subr.bf16.mxu0 0
    %3057 = vmatpush1.bf16.msra.mxu0 0
    %3058 = vmatprep.subr.bf16.mxu0 0
    %3059 = vmatpush1.bf16.msra.mxu0 0
    %3060 = vmatprep.subr.bf16.mxu0 0
    %3061 = vmatpush1.bf16.msra.mxu0 0
    %3062 = vmatprep.subr.bf16.mxu0 0
    %3063 = vmatpush1.bf16.msra.mxu0 0
    %3064 = vmatprep.subr.bf16.mxu0 0
    %3065 = vmatpush1.bf16.msra.mxu0 0
    %3066 = vmatprep.subr.bf16.mxu0 0
    %3067 = vmatpush1.bf16.msra.mxu0 0
    %3068 = vmatprep.subr.bf16.mxu0 %v3048
    %3069 = vmatpush1.bf16.msra.mxu0 %v3047
    %3070 = vmatprep.subr.bf16.mxu0 %v3046
    %3071 = vmatpush1.bf16.msra.mxu0 %v3045
    %3072 = vmatprep.subr.bf16.mxu0 0
    %3073 = vmatpush2.bf16.msra.mxu0 0
    %3074 = vmatprep.subr.bf16.mxu0 0
    %3075 = vmatpush2.bf16.msra.mxu0 0
    %3076 = vmatprep.subr.bf16.mxu0 0
    %3077 = vmatpush2.bf16.msra.mxu0 0
    %3078 = vmatprep.subr.bf16.mxu0 0
    %3079 = vmatpush2.bf16.msra.mxu0 0
    %3080 = vmatprep.subr.bf16.mxu0 0
    %3081 = vmatpush2.bf16.msra.mxu0 0
    %3082 = vmatprep.subr.bf16.mxu0 0
    %3083 = vmatpush2.bf16.msra.mxu0 0
    %3084 = vmatprep.subr.bf16.mxu0 0
    %3085 = vmatpush2.bf16.msra.mxu0 0
    %3086 = vmatprep.subr.bf16.mxu0 0
    %3087 = vmatpush2.bf16.msra.mxu0 0
    %3088 = vmatprep.mubr.bf16.mxu0 0
    %3089 = vmatmul.mubr.bf16.gmra.mxu0 %v3054
    %v3090 = vpop.f32.mrf.mxu0
    %v3091 = vadd.f32 0.0, %v3090
    %v3092 = vpop.f32.mrf.mxu0
    %v3093 = vadd.f32 0.0, %v3092
    %v3094 = vpop.f32.mrf.mxu0
    %v3095 = vpop.f32.mrf.mxu0
    %3096 = vdwg.mxu0
    %v3097 = vpack.c.bf16 %v2501, %v2501
    %v3098 = vld [vmem:[#allocation19] sm:$0xff]
    %v3099 = vld [vmem:[#allocation19 + $0x8] sm:$0xff]
    %v3100 = vld [vmem:[#allocation19 + $0x10] sm:$0xff]
    %v3101 = vld [vmem:[#allocation19 + $0x18] sm:$0xff]
    %3103 = vrot.lane.b32.xlu0 %v3097, 96
    %v3104 = vpop.permute.xlu0 %3103
    %v3109 = vunpack.c.l.b16 %v3098
    %v3110 = vunpack.c.h.b16 %v3098
    %v3111 = vunpack.c.l.b16 %v3099
    %v3112 = vunpack.c.h.b16 %v3099
    %v3113 = vunpack.c.l.b16 %v3100
    %v3114 = vunpack.c.h.b16 %v3100
    %v3115 = vunpack.c.l.b16 %v3101
    %v3116 = vunpack.c.h.b16 %v3101
    %v3117 = vpack.c.b16 %v3111, %v3109
    %v3118 = vpack.c.b16 %v3112, %v3110
    %v3119 = vpack.c.b16 %v3115, %v3113
    %v3120 = vpack.c.b16 %v3116, %v3114
    %v3126 = vsel %vm271, %v3104, 0
    %3128 = vmatprep.subr.bf16.mxu0 0
    %3129 = vmatpush1.bf16.msra.mxu0 0
    %3130 = vmatprep.subr.bf16.mxu0 0
    %3131 = vmatpush1.bf16.msra.mxu0 0
    %3132 = vmatprep.subr.bf16.mxu0 0
    %3133 = vmatpush1.bf16.msra.mxu0 0
    %3134 = vmatprep.subr.bf16.mxu0 0
    %3135 = vmatpush1.bf16.msra.mxu0 0
    %3136 = vmatprep.subr.bf16.mxu0 0
    %3137 = vmatpush1.bf16.msra.mxu0 0
    %3138 = vmatprep.subr.bf16.mxu0 0
    %3139 = vmatpush1.bf16.msra.mxu0 0
    %3140 = vmatprep.subr.bf16.mxu0 %v3120
    %3141 = vmatpush1.bf16.msra.mxu0 %v3119
    %3142 = vmatprep.subr.bf16.mxu0 %v3118
    %3143 = vmatpush1.bf16.msra.mxu0 %v3117
    %3144 = vmatprep.subr.bf16.mxu0 0
    %3145 = vmatpush2.bf16.msra.mxu0 0
    %3146 = vmatprep.subr.bf16.mxu0 0
    %3147 = vmatpush2.bf16.msra.mxu0 0
    %3148 = vmatprep.subr.bf16.mxu0 0
    %3149 = vmatpush2.bf16.msra.mxu0 0
    %3150 = vmatprep.subr.bf16.mxu0 0
    %3151 = vmatpush2.bf16.msra.mxu0 0
    %3152 = vmatprep.subr.bf16.mxu0 0
    %3153 = vmatpush2.bf16.msra.mxu0 0
    %3154 = vmatprep.subr.bf16.mxu0 0
    %3155 = vmatpush2.bf16.msra.mxu0 0
    %3156 = vmatprep.subr.bf16.mxu0 0
    %3157 = vmatpush2.bf16.msra.mxu0 0
    %3158 = vmatprep.subr.bf16.mxu0 0
    %3159 = vmatpush2.bf16.msra.mxu0 0
    %3160 = vmatprep.mubr.bf16.mxu0 0
    %3161 = vmatmul.mubr.bf16.gmra.mxu0 %v3126
    %v3162 = vpop.f32.mrf.mxu0
    %v3163 = vadd.f32 0.0, %v3162
    %v3164 = vpop.f32.mrf.mxu0
    %v3165 = vadd.f32 0.0, %v3164
    %v3166 = vpop.f32.mrf.mxu0
    %v3167 = vpop.f32.mrf.mxu0
    %3168 = vdwg.mxu0
    %3171 = vrot.lane.b32.xlu0 %v3091, 32
    %v3172 = vpop.permute.xlu0 %3171
    %3173 = vrot.lane.b32.xlu0 %v3093, 32
    %v3174 = vpop.permute.xlu0 %3173
    %v3175 = vsel %vm271, %v3172, %v3174
    %v3177 = vsel %vm817, %v3091, %v3175
    %v3178 = vld [vmem:[%s14] sm:$0x3]
    %v3179 = vadd.f32 %v3177, %v3178
    %3182 = vrot.lane.b32.xlu0 %v3163, 32
    %v3183 = vpop.permute.xlu0 %3182
    %3184 = vrot.lane.b32.xlu0 %v3165, 32
    %v3185 = vpop.permute.xlu0 %3184
    %v3186 = vsel %vm271, %v3183, %v3185
    %v3188 = vsel %vm817, %v3163, %v3186
    %v3189 = vadd.f32 %v3179, %v3188
    %v3190 = vxor.u32 %v3189, 2147483648
    %v3191 = vmul.f32 %v3190, 1.442695
    %v3192 = vpow.pop %v3191
    %v3193 = vadd.f32 %v3192, 1.0
    %v3194 = vrcp.pop %v3193
    %v3195 = vmul.f32 1.0, %v3194
    %v3196 = vld [vmem:[%s15] sm:$0x3]
    %3198 = vrot.lane.b32.xlu0 %v3196, 64
    %v3199 = vpop.permute.xlu0 %3198
    %v3201 = vadd.f32 %v3188, %v3199
    %3203 = vrot.lane.b32.xlu0 %v3201, 64
    %v3204 = vpop.permute.xlu0 %3203
    %v3206 = vmul.f32 %v3195, %v3204
    %3208 = vrot.lane.b32.xlu0 %v3206, 64
    %v3209 = vpop.permute.xlu0 %3208
    %v3211 = vadd.f32 %v3179, %v3209
    %v3212 = vtanh.pop %v3211
    %v3213 = vsub.f32 1.0, %v3195
    %3215 = vrot.lane.b32.xlu0 %v3212, 96
    %v3216 = vpop.permute.xlu0 %3215
    %v3218 = vmul.f32 %v3213, %v3216
    %v3219 = vmul.f32 %v3195, %v2501
    %v3220 = vadd.f32 %v3218, %v3219
    %v3221 = vmul.f32 %v2896, %v3220
    %v3222 = vadd.f32 %v3221, 0.0
    %v3223 = vmul.f32 %v2928, %v3220
    %v3225 = vrot.slane %v3223, 1
    %v3227 = vadd.f32 %v3222, %v3225
    %3229 = vrot.lane.b32.xlu0 %v3227, 96
    %v3230 = vpop.permute.xlu0 %3229
    %3232 = vst.msk [vmem:[#allocation21 + $0x3] sm:$0x1] %vm469, %v3230
    %s3233 = sld [smem:[#allocation2 + $0x4]]
    %v3234 = vld [vmem:[#allocation13] sm:$0xf]
    %v3235 = vld [vmem:[#allocation13 + $0x4] sm:$0xf]
    %v3236 = vld [vmem:[#allocation13 + $0x8] sm:$0xf]
    %v3237 = vld [vmem:[#allocation13 + $0xc] sm:$0xf]
    %v3242 = vunpack.c.l.b16 %v3234
    %v3243 = vunpack.c.l.b16 %v3235
    %v3244 = vunpack.c.l.b16 %v3236
    %v3245 = vunpack.c.l.b16 %v3237
    %v3246 = vpack.c.b16 %v3243, %v3242
    %v3247 = vpack.c.b16 %v3245, %v3244
    %3250 = vmatprep.subr.bf16.mxu0 0
    %3251 = vmatpush1.bf16.msra.mxu0 0
    %3252 = vmatprep.subr.bf16.mxu0 0
    %3253 = vmatpush1.bf16.msra.mxu0 0
    %3254 = vmatprep.subr.bf16.mxu0 0
    %3255 = vmatpush1.bf16.msra.mxu0 0
    %3256 = vmatprep.subr.bf16.mxu0 0
    %3257 = vmatpush1.bf16.msra.mxu0 0
    %3258 = vmatprep.subr.bf16.mxu0 0
    %3259 = vmatpush1.bf16.msra.mxu0 0
    %3260 = vmatprep.subr.bf16.mxu0 0
    %3261 = vmatpush1.bf16.msra.mxu0 0
    %3262 = vmatprep.subr.bf16.mxu0 0
    %3263 = vmatpush1.bf16.msra.mxu0 %v3247
    %3264 = vmatprep.subr.bf16.mxu0 0
    %3265 = vmatpush1.bf16.msra.mxu0 %v3246
    %3266 = vmatprep.subr.bf16.mxu0 0
    %3267 = vmatpush2.bf16.msra.mxu0 0
    %3268 = vmatprep.subr.bf16.mxu0 0
    %3269 = vmatpush2.bf16.msra.mxu0 0
    %3270 = vmatprep.subr.bf16.mxu0 0
    %3271 = vmatpush2.bf16.msra.mxu0 0
    %3272 = vmatprep.subr.bf16.mxu0 0
    %3273 = vmatpush2.bf16.msra.mxu0 0
    %3274 = vmatprep.subr.bf16.mxu0 0
    %3275 = vmatpush2.bf16.msra.mxu0 0
    %3276 = vmatprep.subr.bf16.mxu0 0
    %3277 = vmatpush2.bf16.msra.mxu0 0
    %3278 = vmatprep.subr.bf16.mxu0 0
    %3279 = vmatpush2.bf16.msra.mxu0 0
    %3280 = vmatprep.subr.bf16.mxu0 0
    %3281 = vmatpush2.bf16.msra.mxu0 0
    %3282 = vmatprep.mubr.bf16.mxu0 0
    %3283 = vmatmul.mubr.bf16.gmra.mxu0 %v2667
    %v3284 = vpop.f32.mrf.mxu0
    %v3285 = vadd.f32 0.0, %v3284
    %v3286 = vpop.f32.mrf.mxu0
    %v3287 = vpop.f32.mrf.mxu0
    %v3288 = vpop.f32.mrf.mxu0
    %3289 = vdwg.mxu0
    %v3291 = vrot.slane %v3285, 4
    %v3293 = vadd.f32 %v310, %v3291
    %v3294 = vxor.u32 %v3293, 2147483648
    %v3295 = vmul.f32 %v3294, 1.442695
    %v3296 = vpow.pop %v3295
    %v3297 = vadd.f32 %v3296, 1.0
    %v3298 = vrcp.pop %v3297
    %v3299 = vmul.f32 1.0, %v3298
    %v3300 = vld [vmem:[%s12] sm:$0x1]
    %v3302 = vlaneseq
    %v3303 = vshrl.u32 %v3302, 7
    %v3304 = vsub.s32 0, %v3303
    %v3305 = vrot.slane %v3300, %v3304
    %3306 = vrot.lane.b32.xlu0 %v3305, 64
    %v3307 = vpop.permute.xlu0 %3306
    %v3309 = vadd.f32 %v3285, %v3307
    %v3311 = vrot.slane %v3309, 4
    %3312 = vrot.lane.b32.xlu0 %v3311, 64
    %v3313 = vpop.permute.xlu0 %3312
    %v3315 = vmul.f32 %v3299, %v3313
    %3317 = vrot.lane.b32.xlu0 %v3315, 64
    %v3318 = vpop.permute.xlu0 %3317
    %v3320 = vadd.f32 %v310, %v3318
    %v3321 = vtanh.pop %v3320
    %v3322 = vsub.f32 1.0, %v3299
    %3324 = vrot.lane.b32.xlu0 %v3321, 96
    %v3325 = vpop.permute.xlu0 %3324
    %v3327 = vmul.f32 %v3322, %v3325
    %v3328 = vrot.slane %v2612, 7
    %v3330 = vmul.f32 %v3299, %v3328
    %v3331 = vadd.f32 %v3327, %v3330
    %3333 = vrot.lane.b32.xlu0 %v3331, 96
    %v3334 = vpop.permute.xlu0 %3333
    %vm3336 = vcmask 258052
    %3337 = vst.msk [vmem:[#allocation22] sm:$0x10] %vm3336, %v3334
    %v3338 = vpack.c.bf16 %v3331, %v3331
    %v3339 = vld [vmem:[#allocation15] sm:$0xff]
    %v3340 = vld [vmem:[#allocation15 + $0x8] sm:$0xf]
    %v3341 = vld [vmem:[#allocation15 + $0xc] sm:$0xff]
    %v3342 = vld [vmem:[#allocation15 + $0x14] sm:$0xf]
    %v3343 = vld [vmem:[#allocation15 + $0x18] sm:$0xff]
    %v3344 = vld [vmem:[#allocation15 + $0x20] sm:$0xf]
    %v3345 = vld [vmem:[#allocation15 + $0x24] sm:$0xff]
    %v3346 = vld [vmem:[#allocation15 + $0x2c] sm:$0xf]
    %v3348 = vrot.slane %v3338, 2
    %3349 = vrot.lane.b32.xlu0 %v3348, 96
    %v3350 = vpop.permute.xlu0 %3349
    %v3359 = vunpack.c.l.b16 %v3339
    %v3360 = vunpack.c.h.b16 %v3339
    %v3361 = vunpack.c.l.b16 %v3340
    %v3362 = vunpack.c.l.b16 %v3341
    %v3363 = vunpack.c.h.b16 %v3341
    %v3364 = vunpack.c.l.b16 %v3342
    %v3365 = vunpack.c.l.b16 %v3343
    %v3366 = vunpack.c.h.b16 %v3343
    %v3367 = vunpack.c.l.b16 %v3344
    %v3368 = vunpack.c.l.b16 %v3345
    %v3369 = vunpack.c.h.b16 %v3345
    %v3370 = vunpack.c.l.b16 %v3346
    %v3371 = vpack.c.b16 %v3362, %v3359
    %v3372 = vpack.c.b16 %v3363, %v3360
    %v3373 = vpack.c.b16 %v3364, %v3361
    %v3374 = vpack.c.b16 %v3368, %v3365
    %v3375 = vpack.c.b16 %v3369, %v3366
    %v3376 = vpack.c.b16 %v3370, %v3367
    %v3384 = vsel %vm271, %v3350, 0
    %3386 = vmatprep.subr.bf16.mxu0 0
    %3387 = vmatpush1.bf16.msra.mxu0 0
    %3388 = vmatprep.subr.bf16.mxu0 0
    %3389 = vmatpush1.bf16.msra.mxu0 0
    %3390 = vmatprep.subr.bf16.mxu0 0
    %3391 = vmatpush1.bf16.msra.mxu0 0
    %3392 = vmatprep.subr.bf16.mxu0 0
    %3393 = vmatpush1.bf16.msra.mxu0 0
    %3394 = vmatprep.subr.bf16.mxu0 0
    %3395 = vmatpush1.bf16.msra.mxu0 0
    %3396 = vmatprep.subr.bf16.mxu0 0
    %3397 = vmatpush1.bf16.msra.mxu0 0
    %3398 = vmatprep.subr.bf16.mxu0 %v3375
    %3399 = vmatpush1.bf16.msra.mxu0 %v3374
    %3400 = vmatprep.subr.bf16.mxu0 %v3372
    %3401 = vmatpush1.bf16.msra.mxu0 %v3371
    %3402 = vmatprep.subr.bf16.mxu0 0
    %3403 = vmatpush2.bf16.msra.mxu0 0
    %3404 = vmatprep.subr.bf16.mxu0 0
    %3405 = vmatpush2.bf16.msra.mxu0 0
    %3406 = vmatprep.subr.bf16.mxu0 0
    %3407 = vmatpush2.bf16.msra.mxu0 0
    %3408 = vmatprep.subr.bf16.mxu0 0
    %3409 = vmatpush2.bf16.msra.mxu0 0
    %3410 = vmatprep.subr.bf16.mxu0 0
    %3411 = vmatpush2.bf16.msra.mxu0 0
    %3412 = vmatprep.subr.bf16.mxu0 0
    %3413 = vmatpush2.bf16.msra.mxu0 0
    %3414 = vmatprep.subr.bf16.mxu0 0
    %3415 = vmatpush2.bf16.msra.mxu0 0
    %3416 = vmatprep.subr.bf16.mxu0 0
    %3417 = vmatpush2.bf16.msra.mxu0 0
    %3418 = vmatprep.mubr.bf16.mxu0 0
    %3419 = vmatmul.mubr.bf16.gmra.mxu0 %v3384
    %v3420 = vpop.f32.mrf.mxu0
    %v3421 = vadd.f32 0.0, %v3420
    %v3422 = vpop.f32.mrf.mxu0
    %v3423 = vadd.f32 0.0, %v3422
    %v3424 = vpop.f32.mrf.mxu0
    %v3425 = vpop.f32.mrf.mxu0
    %3426 = vdwg.mxu0
    %3427 = vmatprep.subr.bf16.mxu0 0
    %3428 = vmatpush1.bf16.msra.mxu0 0
    %3429 = vmatprep.subr.bf16.mxu0 0
    %3430 = vmatpush1.bf16.msra.mxu0 0
    %3431 = vmatprep.subr.bf16.mxu0 0
    %3432 = vmatpush1.bf16.msra.mxu0 0
    %3433 = vmatprep.subr.bf16.mxu0 0
    %3434 = vmatpush1.bf16.msra.mxu0 0
    %3435 = vmatprep.subr.bf16.mxu0 0
    %3436 = vmatpush1.bf16.msra.mxu0 0
    %3437 = vmatprep.subr.bf16.mxu0 0
    %3438 = vmatpush1.bf16.msra.mxu0 0
    %3439 = vmatprep.subr.bf16.mxu0 0
    %3440 = vmatpush1.bf16.msra.mxu0 %v3376
    %3441 = vmatprep.subr.bf16.mxu0 0
    %3442 = vmatpush1.bf16.msra.mxu0 %v3373
    %3443 = vmatprep.subr.bf16.mxu0 0
    %3444 = vmatpush2.bf16.msra.mxu0 0
    %3445 = vmatprep.subr.bf16.mxu0 0
    %3446 = vmatpush2.bf16.msra.mxu0 0
    %3447 = vmatprep.subr.bf16.mxu0 0
    %3448 = vmatpush2.bf16.msra.mxu0 0
    %3449 = vmatprep.subr.bf16.mxu0 0
    %3450 = vmatpush2.bf16.msra.mxu0 0
    %3451 = vmatprep.subr.bf16.mxu0 0
    %3452 = vmatpush2.bf16.msra.mxu0 0
    %3453 = vmatprep.subr.bf16.mxu0 0
    %3454 = vmatpush2.bf16.msra.mxu0 0
    %3455 = vmatprep.subr.bf16.mxu0 0
    %3456 = vmatpush2.bf16.msra.mxu0 0
    %3457 = vmatprep.subr.bf16.mxu0 0
    %3458 = vmatpush2.bf16.msra.mxu0 0
    %3459 = vmatprep.mubr.bf16.mxu0 0
    %3460 = vmatmul.mubr.bf16.gmra.mxu0 %v3384
    %v3461 = vpop.f32.mrf.mxu0
    %v3462 = vadd.f32 0.0, %v3461
    %v3463 = vpop.f32.mrf.mxu0
    %v3464 = vpop.f32.mrf.mxu0
    %v3465 = vpop.f32.mrf.mxu0
    %3466 = vdwg.mxu0
    %v3470 = vrot.slane %v3421, 4
    %v3471 = vrot.slane %v3423, 4
    %v3472 = vrot.slane %v3462, 4
    %3473 = vrot.lane.b32.xlu0 %v3470, 96
    %v3474 = vpop.permute.xlu0 %3473
    %3475 = vrot.lane.b32.xlu0 %v3471, 96
    %v3476 = vpop.permute.xlu0 %3475
    %3477 = vrot.lane.b32.xlu0 %v3472, 96
    %v3478 = vpop.permute.xlu0 %3477
    %v3479 = vsel %vm608, %v3474, %v3476
    %v3480 = vsel %vm608, %v3476, %v3478
    %v3485 = vadd.f32 %v310, %v3474
    %v3486 = vadd.f32 %v312, %v3479
    %v3487 = vadd.f32 %v351, %v3480
    %v3488 = vadd.f32 %v353, %v3478
    %v3489 = vld [vmem:[#allocation16] sm:$0xff]
    %v3490 = vld [vmem:[#allocation16 + $0x8] sm:$0xf]
    %v3491 = vld [vmem:[#allocation16 + $0xc] sm:$0xff]
    %v3492 = vld [vmem:[#allocation16 + $0x14] sm:$0xf]
    %v3493 = vld [vmem:[#allocation16 + $0x18] sm:$0xff]
    %v3494 = vld [vmem:[#allocation16 + $0x20] sm:$0xf]
    %v3495 = vld [vmem:[#allocation16 + $0x24] sm:$0xff]
    %v3496 = vld [vmem:[#allocation16 + $0x2c] sm:$0xf]
    %v3505 = vunpack.c.l.b16 %v3489
    %v3506 = vunpack.c.h.b16 %v3489
    %v3507 = vunpack.c.l.b16 %v3490
    %v3508 = vunpack.c.l.b16 %v3491
    %v3509 = vunpack.c.h.b16 %v3491
    %v3510 = vunpack.c.l.b16 %v3492
    %v3511 = vunpack.c.l.b16 %v3493
    %v3512 = vunpack.c.h.b16 %v3493
    %v3513 = vunpack.c.l.b16 %v3494
    %v3514 = vunpack.c.l.b16 %v3495
    %v3515 = vunpack.c.h.b16 %v3495
    %v3516 = vunpack.c.l.b16 %v3496
    %v3517 = vpack.c.b16 %v3508, %v3505
    %v3518 = vpack.c.b16 %v3509, %v3506
    %v3519 = vpack.c.b16 %v3510, %v3507
    %v3520 = vpack.c.b16 %v3514, %v3511
    %v3521 = vpack.c.b16 %v3515, %v3512
    %v3522 = vpack.c.b16 %v3516, %v3513
    %3529 = vmatprep.subr.bf16.mxu0 0
    %3530 = vmatpush1.bf16.msra.mxu0 0
    %3531 = vmatprep.subr.bf16.mxu0 0
    %3532 = vmatpush1.bf16.msra.mxu0 0
    %3533 = vmatprep.subr.bf16.mxu0 0
    %3534 = vmatpush1.bf16.msra.mxu0 0
    %3535 = vmatprep.subr.bf16.mxu0 0
    %3536 = vmatpush1.bf16.msra.mxu0 0
    %3537 = vmatprep.subr.bf16.mxu0 0
    %3538 = vmatpush1.bf16.msra.mxu0 0
    %3539 = vmatprep.subr.bf16.mxu0 0
    %3540 = vmatpush1.bf16.msra.mxu0 0
    %3541 = vmatprep.subr.bf16.mxu0 %v3521
    %3542 = vmatpush1.bf16.msra.mxu0 %v3520
    %3543 = vmatprep.subr.bf16.mxu0 %v3518
    %3544 = vmatpush1.bf16.msra.mxu0 %v3517
    %3545 = vmatprep.subr.bf16.mxu0 0
    %3546 = vmatpush2.bf16.msra.mxu0 0
    %3547 = vmatprep.subr.bf16.mxu0 0
    %3548 = vmatpush2.bf16.msra.mxu0 0
    %3549 = vmatprep.subr.bf16.mxu0 0
    %3550 = vmatpush2.bf16.msra.mxu0 0
    %3551 = vmatprep.subr.bf16.mxu0 0
    %3552 = vmatpush2.bf16.msra.mxu0 0
    %3553 = vmatprep.subr.bf16.mxu0 0
    %3554 = vmatpush2.bf16.msra.mxu0 0
    %3555 = vmatprep.subr.bf16.mxu0 0
    %3556 = vmatpush2.bf16.msra.mxu0 0
    %3557 = vmatprep.subr.bf16.mxu0 0
    %3558 = vmatpush2.bf16.msra.mxu0 0
    %3559 = vmatprep.subr.bf16.mxu0 0
    %3560 = vmatpush2.bf16.msra.mxu0 0
    %3561 = vmatprep.mubr.bf16.mxu0 0
    %3562 = vmatmul.mubr.bf16.gmra.mxu0 %v3054
    %v3563 = vpop.f32.mrf.mxu0
    %v3564 = vadd.f32 0.0, %v3563
    %v3565 = vpop.f32.mrf.mxu0
    %v3566 = vadd.f32 0.0, %v3565
    %v3567 = vpop.f32.mrf.mxu0
    %v3568 = vpop.f32.mrf.mxu0
    %3569 = vdwg.mxu0
    %3570 = vmatprep.subr.bf16.mxu0 0
    %3571 = vmatpush1.bf16.msra.mxu0 0
    %3572 = vmatprep.subr.bf16.mxu0 0
    %3573 = vmatpush1.bf16.msra.mxu0 0
    %3574 = vmatprep.subr.bf16.mxu0 0
    %3575 = vmatpush1.bf16.msra.mxu0 0
    %3576 = vmatprep.subr.bf16.mxu0 0
    %3577 = vmatpush1.bf16.msra.mxu0 0
    %3578 = vmatprep.subr.bf16.mxu0 0
    %3579 = vmatpush1.bf16.msra.mxu0 0
    %3580 = vmatprep.subr.bf16.mxu0 0
    %3581 = vmatpush1.bf16.msra.mxu0 0
    %3582 = vmatprep.subr.bf16.mxu0 0
    %3583 = vmatpush1.bf16.msra.mxu0 %v3522
    %3584 = vmatprep.subr.bf16.mxu0 0
    %3585 = vmatpush1.bf16.msra.mxu0 %v3519
    %3586 = vmatprep.subr.bf16.mxu0 0
    %3587 = vmatpush2.bf16.msra.mxu0 0
    %3588 = vmatprep.subr.bf16.mxu0 0
    %3589 = vmatpush2.bf16.msra.mxu0 0
    %3590 = vmatprep.subr.bf16.mxu0 0
    %3591 = vmatpush2.bf16.msra.mxu0 0
    %3592 = vmatprep.subr.bf16.mxu0 0
    %3593 = vmatpush2.bf16.msra.mxu0 0
    %3594 = vmatprep.subr.bf16.mxu0 0
    %3595 = vmatpush2.bf16.msra.mxu0 0
    %3596 = vmatprep.subr.bf16.mxu0 0
    %3597 = vmatpush2.bf16.msra.mxu0 0
    %3598 = vmatprep.subr.bf16.mxu0 0
    %3599 = vmatpush2.bf16.msra.mxu0 0
    %3600 = vmatprep.subr.bf16.mxu0 0
    %3601 = vmatpush2.bf16.msra.mxu0 0
    %3602 = vmatprep.mubr.bf16.mxu0 0
    %3603 = vmatmul.mubr.bf16.gmra.mxu0 %v3054
    %v3604 = vpop.f32.mrf.mxu0
    %v3605 = vadd.f32 0.0, %v3604
    %v3606 = vpop.f32.mrf.mxu0
    %v3607 = vpop.f32.mrf.mxu0
    %v3608 = vpop.f32.mrf.mxu0
    %3609 = vdwg.mxu0
    %p3610 = scmp.eq.s32.totalorder %s3233, 0
    %s3611 = scalar_select %p3610, 1, 0
    %s3612 = scvt.s32.f32 %s3611
    %v3613 = vstv %s3612
    %v3614 = vmul.f32 %v3613, %v3485
    %v3615 = vmul.f32 %v3613, %v3486
    %s3616 = ssub.f32 1.0, %s3612
    %v3617 = vstv %s3616
    %v3618 = vmul.f32 %v3617, %v3487
    %3620 = vrot.lane.b32.xlu0 %v3618, 64
    %v3621 = vpop.permute.xlu0 %3620
    %v3623 = vadd.f32 %v3614, %v3621
    %v3624 = vadd.f32 %v3615, %v3621
    %v3625 = vmul.f32 %v3613, %v3564
    %v3626 = vmul.f32 %v3617, %v3566
    %v3627 = vmul.f32 %v3617, %v3605
    %3630 = vrot.lane.b32.xlu0 %v3626, 64
    %v3631 = vpop.permute.xlu0 %3630
    %3632 = vrot.lane.b32.xlu0 %v3627, 64
    %v3633 = vpop.permute.xlu0 %3632
    %v3634 = vsel %vm768, %v3631, %v3633
    %v3636 = vadd.f32 %v3625, %v3634
    %v3637 = vld [vmem:[%s13] sm:$0x1]
    %v3638 = vmul.f32 %v3613, %v3637
    %v3639 = vld [vmem:[%s13 + $0x2] sm:$0x1]
    %v3640 = vmul.f32 %v3617, %v3639
    %v3641 = vadd.f32 %v3638, %v3640
    %p3642 = scmp.eq.s32.totalorder %s3233, 1
    %s3643 = scalar_select %p3642, 1, 0
    %s3644 = scvt.s32.f32 %s3643
    %v3645 = vstv %s3644
    %v3646 = vmul.f32 %v3645, %v3486
    %v3647 = vmul.f32 %v3645, %v3487
    %s3648 = ssub.f32 1.0, %s3644
    %v3649 = vstv %s3648
    %v3650 = vmul.f32 %v3649, %v3488
    %3652 = vrot.lane.b32.xlu0 %v3650, 64
    %v3653 = vpop.permute.xlu0 %3652
    %v3655 = vadd.f32 %v3646, %v3653
    %v3656 = vadd.f32 %v3647, %v3653
    %v3657 = vmul.f32 %v3645, %v3564
    %v3658 = vmul.f32 %v3645, %v3566
    %v3659 = vmul.f32 %v3649, %v3605
    %3661 = vrot.lane.b32.xlu0 %v3659, 64
    %v3662 = vpop.permute.xlu0 %3661
    %v3664 = vadd.f32 %v3657, %v3662
    %v3665 = vadd.f32 %v3658, %v3662
    %v3666 = vld [vmem:[%s13 + $0x1] sm:$0x1]
    %v3667 = vmul.f32 %v3645, %v3666
    %v3668 = vld [vmem:[%s13 + $0x3] sm:$0x1]
    %v3669 = vmul.f32 %v3649, %v3668
    %v3670 = vadd.f32 %v3667, %v3669
    %v3673 = vrot.slane %v3623, 4
    %v3674 = vrot.slane %v3624, 4
    %v3679 = vrot.slane %v3655, 3
    %v3680 = vrot.slane %v3656, 3
    %3681 = vrot.lane.b32.xlu0 %v3679, 32
    %v3682 = vpop.permute.xlu0 %3681
    %3683 = vrot.lane.b32.xlu0 %v3680, 32
    %v3684 = vpop.permute.xlu0 %3683
    %v3685 = vsel %vm271, %v3682, %v3684
    %v3688 = vsel %vm817, %v3673, %v3682
    %v3689 = vsel %vm817, %v3674, %v3685
    %3692 = vrot.lane.b32.xlu0 %v3664, 32
    %v3693 = vpop.permute.xlu0 %3692
    %3694 = vrot.lane.b32.xlu0 %v3665, 32
    %v3695 = vpop.permute.xlu0 %3694
    %v3696 = vsel %vm271, %v3693, %v3695
    %v3698 = vsel %vm817, %v3636, %v3696
    %v3700 = vrot.slane %v3670, 7
    %v3702 = vsel %vm817, %v3641, %v3700
    %3704 = vrot.lane.b32.xlu0 %v3698, 96
    %v3705 = vpop.permute.xlu0 %3704
    %v3707 = vadd.f32 %v3688, %v3705
    %v3708 = vxor.u32 %v3707, 2147483648
    %v3709 = vmul.f32 %v3708, 1.442695
    %v3710 = vpow.pop %v3709
    %v3711 = vadd.f32 %v3710, 1.0
    %v3712 = vrcp.pop %v3711
    %v3713 = vmul.f32 1.0, %v3712
    %v3714 = vadd.f32 %v3689, %v3705
    %v3715 = vxor.u32 %v3714, 2147483648
    %v3716 = vmul.f32 %v3715, 1.442695
    %v3717 = vpow.pop %v3716
    %v3718 = vadd.f32 %v3717, 1.0
    %v3719 = vrcp.pop %v3718
    %v3720 = vmul.f32 1.0, %v3719
    %3722 = vrot.lane.b32.xlu0 %v3702, 64
    %v3723 = vpop.permute.xlu0 %3722
    %v3725 = vadd.f32 %v3698, %v3723
    %3727 = vrot.lane.b32.xlu0 %v3725, 32
    %v3728 = vpop.permute.xlu0 %3727
    %v3730 = vmul.f32 %v3713, %v3728
    %3732 = vrot.lane.b32.xlu0 %v3730, 64
    %v3733 = vpop.permute.xlu0 %3732
    %v3735 = vadd.f32 %v3689, %v3733
    %v3736 = vtanh.pop %v3735
    %v3737 = vsub.f32 1.0, %v3720
    %3739 = vrot.lane.b32.xlu0 %v3736, 96
    %v3740 = vpop.permute.xlu0 %3739
    %v3742 = vmul.f32 %v3737, %v3740
    %v3743 = vmul.f32 %v3720, %v3027
    %v3744 = vadd.f32 %v3742, %v3743
    %v3745 = vpack.c.bf16 %v3744, %v3744
    %v3746 = vld [vmem:[#allocation18] sm:$0xff]
    %v3747 = vld [vmem:[#allocation18 + $0x8] sm:$0xff]
    %v3748 = vld [vmem:[#allocation18 + $0x10] sm:$0xff]
    %v3749 = vld [vmem:[#allocation18 + $0x18] sm:$0xff]
    %v3754 = vunpack.c.l.b16 %v3746
    %v3755 = vunpack.c.h.b16 %v3746
    %v3756 = vunpack.c.l.b16 %v3747
    %v3757 = vunpack.c.h.b16 %v3747
    %v3758 = vunpack.c.l.b16 %v3748
    %v3759 = vunpack.c.h.b16 %v3748
    %v3760 = vunpack.c.l.b16 %v3749
    %v3761 = vunpack.c.h.b16 %v3749
    %v3762 = vpack.c.b16 %v3756, %v3754
    %v3763 = vpack.c.b16 %v3757, %v3755
    %v3764 = vpack.c.b16 %v3760, %v3758
    %v3765 = vpack.c.b16 %v3761, %v3759
    %v3771 = vsel %vm271, %v3745, 0
    %3773 = vmatprep.subr.bf16.mxu0 0
    %3774 = vmatpush1.bf16.msra.mxu0 0
    %3775 = vmatprep.subr.bf16.mxu0 0
    %3776 = vmatpush1.bf16.msra.mxu0 0
    %3777 = vmatprep.subr.bf16.mxu0 0
    %3778 = vmatpush1.bf16.msra.mxu0 0
    %3779 = vmatprep.subr.bf16.mxu0 0
    %3780 = vmatpush1.bf16.msra.mxu0 0
    %3781 = vmatprep.subr.bf16.mxu0 0
    %3782 = vmatpush1.bf16.msra.mxu0 0
    %3783 = vmatprep.subr.bf16.mxu0 0
    %3784 = vmatpush1.bf16.msra.mxu0 0
    %3785 = vmatprep.subr.bf16.mxu0 %v3765
    %3786 = vmatpush1.bf16.msra.mxu0 %v3764
    %3787 = vmatprep.subr.bf16.mxu0 %v3763
    %3788 = vmatpush1.bf16.msra.mxu0 %v3762
    %3789 = vmatprep.subr.bf16.mxu0 0
    %3790 = vmatpush2.bf16.msra.mxu0 0
    %3791 = vmatprep.subr.bf16.mxu0 0
    %3792 = vmatpush2.bf16.msra.mxu0 0
    %3793 = vmatprep.subr.bf16.mxu0 0
    %3794 = vmatpush2.bf16.msra.mxu0 0
    %3795 = vmatprep.subr.bf16.mxu0 0
    %3796 = vmatpush2.bf16.msra.mxu0 0
    %3797 = vmatprep.subr.bf16.mxu0 0
    %3798 = vmatpush2.bf16.msra.mxu0 0
    %3799 = vmatprep.subr.bf16.mxu0 0
    %3800 = vmatpush2.bf16.msra.mxu0 0
    %3801 = vmatprep.subr.bf16.mxu0 0
    %3802 = vmatpush2.bf16.msra.mxu0 0
    %3803 = vmatprep.subr.bf16.mxu0 0
    %3804 = vmatpush2.bf16.msra.mxu0 0
    %3805 = vmatprep.mubr.bf16.mxu0 0
    %3806 = vmatmul.mubr.bf16.gmra.mxu0 %v3771
    %v3807 = vpop.f32.mrf.mxu0
    %v3808 = vadd.f32 0.0, %v3807
    %v3809 = vpop.f32.mrf.mxu0
    %v3810 = vadd.f32 0.0, %v3809
    %v3811 = vpop.f32.mrf.mxu0
    %v3812 = vpop.f32.mrf.mxu0
    %3813 = vdwg.mxu0
    %v3814 = vpack.c.bf16 %v3220, %v3220
    %v3815 = vld [vmem:[#allocation19] sm:$0xff]
    %v3816 = vld [vmem:[#allocation19 + $0x8] sm:$0xff]
    %v3817 = vld [vmem:[#allocation19 + $0x10] sm:$0xff]
    %v3818 = vld [vmem:[#allocation19 + $0x18] sm:$0xff]
    %3820 = vrot.lane.b32.xlu0 %v3814, 96
    %v3821 = vpop.permute.xlu0 %3820
    %v3826 = vunpack.c.l.b16 %v3815
    %v3827 = vunpack.c.h.b16 %v3815
    %v3828 = vunpack.c.l.b16 %v3816
    %v3829 = vunpack.c.h.b16 %v3816
    %v3830 = vunpack.c.l.b16 %v3817
    %v3831 = vunpack.c.h.b16 %v3817
    %v3832 = vunpack.c.l.b16 %v3818
    %v3833 = vunpack.c.h.b16 %v3818
    %v3834 = vpack.c.b16 %v3828, %v3826
    %v3835 = vpack.c.b16 %v3829, %v3827
    %v3836 = vpack.c.b16 %v3832, %v3830
    %v3837 = vpack.c.b16 %v3833, %v3831
    %v3843 = vsel %vm271, %v3821, 0
    %3845 = vmatprep.subr.bf16.mxu0 0
    %3846 = vmatpush1.bf16.msra.mxu0 0
    %3847 = vmatprep.subr.bf16.mxu0 0
    %3848 = vmatpush1.bf16.msra.mxu0 0
    %3849 = vmatprep.subr.bf16.mxu0 0
    %3850 = vmatpush1.bf16.msra.mxu0 0
    %3851 = vmatprep.subr.bf16.mxu0 0
    %3852 = vmatpush1.bf16.msra.mxu0 0
    %3853 = vmatprep.subr.bf16.mxu0 0
    %3854 = vmatpush1.bf16.msra.mxu0 0
    %3855 = vmatprep.subr.bf16.mxu0 0
    %3856 = vmatpush1.bf16.msra.mxu0 0
    %3857 = vmatprep.subr.bf16.mxu0 %v3837
    %3858 = vmatpush1.bf16.msra.mxu0 %v3836
    %3859 = vmatprep.subr.bf16.mxu0 %v3835
    %3860 = vmatpush1.bf16.msra.mxu0 %v3834
    %3861 = vmatprep.subr.bf16.mxu0 0
    %3862 = vmatpush2.bf16.msra.mxu0 0
    %3863 = vmatprep.subr.bf16.mxu0 0
    %3864 = vmatpush2.bf16.msra.mxu0 0
    %3865 = vmatprep.subr.bf16.mxu0 0
    %3866 = vmatpush2.bf16.msra.mxu0 0
    %3867 = vmatprep.subr.bf16.mxu0 0
    %3868 = vmatpush2.bf16.msra.mxu0 0
    %3869 = vmatprep.subr.bf16.mxu0 0
    %3870 = vmatpush2.bf16.msra.mxu0 0
    %3871 = vmatprep.subr.bf16.mxu0 0
    %3872 = vmatpush2.bf16.msra.mxu0 0
    %3873 = vmatprep.subr.bf16.mxu0 0
    %3874 = vmatpush2.bf16.msra.mxu0 0
    %3875 = vmatprep.subr.bf16.mxu0 0
    %3876 = vmatpush2.bf16.msra.mxu0 0
    %3877 = vmatprep.mubr.bf16.mxu0 0
    %3878 = vmatmul.mubr.bf16.gmra.mxu0 %v3843
    %v3879 = vpop.f32.mrf.mxu0
    %v3880 = vadd.f32 0.0, %v3879
    %v3881 = vpop.f32.mrf.mxu0
    %v3882 = vadd.f32 0.0, %v3881
    %v3883 = vpop.f32.mrf.mxu0
    %v3884 = vpop.f32.mrf.mxu0
    %3885 = vdwg.mxu0
    %3888 = vrot.lane.b32.xlu0 %v3808, 32
    %v3889 = vpop.permute.xlu0 %3888
    %3890 = vrot.lane.b32.xlu0 %v3810, 32
    %v3891 = vpop.permute.xlu0 %3890
    %v3892 = vsel %vm271, %v3889, %v3891
    %v3894 = vsel %vm817, %v3808, %v3892
    %v3895 = vld [vmem:[%s14] sm:$0x3]
    %v3896 = vadd.f32 %v3894, %v3895
    %3899 = vrot.lane.b32.xlu0 %v3880, 32
    %v3900 = vpop.permute.xlu0 %3899
    %3901 = vrot.lane.b32.xlu0 %v3882, 32
    %v3902 = vpop.permute.xlu0 %3901
    %v3903 = vsel %vm271, %v3900, %v3902
    %v3905 = vsel %vm817, %v3880, %v3903
    %v3906 = vadd.f32 %v3896, %v3905
    %v3907 = vxor.u32 %v3906, 2147483648
    %v3908 = vmul.f32 %v3907, 1.442695
    %v3909 = vpow.pop %v3908
    %v3910 = vadd.f32 %v3909, 1.0
    %v3911 = vrcp.pop %v3910
    %v3912 = vmul.f32 1.0, %v3911
    %v3913 = vld [vmem:[%s15] sm:$0x3]
    %3915 = vrot.lane.b32.xlu0 %v3913, 64
    %v3916 = vpop.permute.xlu0 %3915
    %v3918 = vadd.f32 %v3905, %v3916
    %3920 = vrot.lane.b32.xlu0 %v3918, 64
    %v3921 = vpop.permute.xlu0 %3920
    %v3923 = vmul.f32 %v3912, %v3921
    %3925 = vrot.lane.b32.xlu0 %v3923, 64
    %v3926 = vpop.permute.xlu0 %3925
    %v3928 = vadd.f32 %v3896, %v3926
    %v3929 = vtanh.pop %v3928
    %v3930 = vsub.f32 1.0, %v3912
    %3932 = vrot.lane.b32.xlu0 %v3929, 96
    %v3933 = vpop.permute.xlu0 %3932
    %v3935 = vmul.f32 %v3930, %v3933
    %v3936 = vmul.f32 %v3912, %v3220
    %v3937 = vadd.f32 %v3935, %v3936
    %v3938 = vmul.f32 %v3613, %v3937
    %v3939 = vadd.f32 %v3938, 0.0
    %v3940 = vmul.f32 %v3645, %v3937
    %v3942 = vrot.slane %v3940, 1
    %v3944 = vadd.f32 %v3939, %v3942
    %3946 = vrot.lane.b32.xlu0 %v3944, 96
    %v3947 = vpop.permute.xlu0 %3946
    %3949 = vst.msk [vmem:[#allocation21 + $0x4] sm:$0x1] %vm469, %v3947
    %s3950 = sld [smem:[#allocation2 + $0x5]]
    %v3951 = vld [vmem:[#allocation13] sm:$0xf]
    %v3952 = vld [vmem:[#allocation13 + $0x4] sm:$0xf]
    %v3953 = vld [vmem:[#allocation13 + $0x8] sm:$0xf]
    %v3954 = vld [vmem:[#allocation13 + $0xc] sm:$0xf]
    %v3959 = vunpack.c.l.b16 %v3951
    %v3960 = vunpack.c.l.b16 %v3952
    %v3961 = vunpack.c.l.b16 %v3953
    %v3962 = vunpack.c.l.b16 %v3954
    %v3963 = vpack.c.b16 %v3960, %v3959
    %v3964 = vpack.c.b16 %v3962, %v3961
    %3967 = vmatprep.subr.bf16.mxu0 0
    %3968 = vmatpush1.bf16.msra.mxu0 0
    %3969 = vmatprep.subr.bf16.mxu0 0
    %3970 = vmatpush1.bf16.msra.mxu0 0
    %3971 = vmatprep.subr.bf16.mxu0 0
    %3972 = vmatpush1.bf16.msra.mxu0 0
    %3973 = vmatprep.subr.bf16.mxu0 0
    %3974 = vmatpush1.bf16.msra.mxu0 0
    %3975 = vmatprep.subr.bf16.mxu0 0
    %3976 = vmatpush1.bf16.msra.mxu0 0
    %3977 = vmatprep.subr.bf16.mxu0 0
    %3978 = vmatpush1.bf16.msra.mxu0 0
    %3979 = vmatprep.subr.bf16.mxu0 0
    %3980 = vmatpush1.bf16.msra.mxu0 %v3964
    %3981 = vmatprep.subr.bf16.mxu0 0
    %3982 = vmatpush1.bf16.msra.mxu0 %v3963
    %3983 = vmatprep.subr.bf16.mxu0 0
    %3984 = vmatpush2.bf16.msra.mxu0 0
    %3985 = vmatprep.subr.bf16.mxu0 0
    %3986 = vmatpush2.bf16.msra.mxu0 0
    %3987 = vmatprep.subr.bf16.mxu0 0
    %3988 = vmatpush2.bf16.msra.mxu0 0
    %3989 = vmatprep.subr.bf16.mxu0 0
    %3990 = vmatpush2.bf16.msra.mxu0 0
    %3991 = vmatprep.subr.bf16.mxu0 0
    %3992 = vmatpush2.bf16.msra.mxu0 0
    %3993 = vmatprep.subr.bf16.mxu0 0
    %3994 = vmatpush2.bf16.msra.mxu0 0
    %3995 = vmatprep.subr.bf16.mxu0 0
    %3996 = vmatpush2.bf16.msra.mxu0 0
    %3997 = vmatprep.subr.bf16.mxu0 0
    %3998 = vmatpush2.bf16.msra.mxu0 0
    %3999 = vmatprep.mubr.bf16.mxu0 0
    %4000 = vmatmul.mubr.bf16.gmra.mxu0 %v3384
    %v4001 = vpop.f32.mrf.mxu0
    %v4002 = vadd.f32 0.0, %v4001
    %v4003 = vpop.f32.mrf.mxu0
    %v4004 = vpop.f32.mrf.mxu0
    %v4005 = vpop.f32.mrf.mxu0
    %4006 = vdwg.mxu0
    %v4008 = vrot.slane %v4002, 3
    %v4010 = vadd.f32 %v310, %v4008
    %v4011 = vxor.u32 %v4010, 2147483648
    %v4012 = vmul.f32 %v4011, 1.442695
    %v4013 = vpow.pop %v4012
    %v4014 = vadd.f32 %v4013, 1.0
    %v4015 = vrcp.pop %v4014
    %v4016 = vmul.f32 1.0, %v4015
    %v4017 = vld [vmem:[%s12] sm:$0x1]
    %v4019 = vlaneseq
    %v4020 = vshrl.u32 %v4019, 7
    %v4021 = vsub.s32 0, %v4020
    %v4022 = vrot.slane %v4017, %v4021
    %4023 = vrot.lane.b32.xlu0 %v4022, 64
    %v4024 = vpop.permute.xlu0 %4023
    %v4026 = vadd.f32 %v4002, %v4024
    %v4028 = vrot.slane %v4026, 3
    %4029 = vrot.lane.b32.xlu0 %v4028, 64
    %v4030 = vpop.permute.xlu0 %4029
    %v4032 = vmul.f32 %v4016, %v4030
    %4034 = vrot.lane.b32.xlu0 %v4032, 64
    %v4035 = vpop.permute.xlu0 %4034
    %v4037 = vadd.f32 %v310, %v4035
    %v4038 = vtanh.pop %v4037
    %v4039 = vsub.f32 1.0, %v4016
    %4041 = vrot.lane.b32.xlu0 %v4038, 96
    %v4042 = vpop.permute.xlu0 %4041
    %v4044 = vmul.f32 %v4039, %v4042
    %v4045 = vrot.slane %v3331, 7
    %v4047 = vmul.f32 %v4016, %v4045
    %v4048 = vadd.f32 %v4044, %v4047
    %4050 = vrot.lane.b32.xlu0 %v4048, 96
    %v4051 = vpop.permute.xlu0 %4050
    %vm4053 = vcmask 259077
    %4054 = vst.msk [vmem:[#allocation22] sm:$0x20] %vm4053, %v4051
    %v4055 = vpack.c.bf16 %v4048, %v4048
    %v4056 = vld [vmem:[#allocation15] sm:$0xff]
    %v4057 = vld [vmem:[#allocation15 + $0x8] sm:$0xf]
    %v4058 = vld [vmem:[#allocation15 + $0xc] sm:$0xff]
    %v4059 = vld [vmem:[#allocation15 + $0x14] sm:$0xf]
    %v4060 = vld [vmem:[#allocation15 + $0x18] sm:$0xff]
    %v4061 = vld [vmem:[#allocation15 + $0x20] sm:$0xf]
    %v4062 = vld [vmem:[#allocation15 + $0x24] sm:$0xff]
    %v4063 = vld [vmem:[#allocation15 + $0x2c] sm:$0xf]
    %v4065 = vshrl.u32 %v4055, 16
    %v4067 = vrot.slane %v4065, 2
    %4068 = vrot.lane.b32.xlu0 %v4067, 96
    %v4069 = vpop.permute.xlu0 %4068
    %v4078 = vunpack.c.l.b16 %v4056
    %v4079 = vunpack.c.h.b16 %v4056
    %v4080 = vunpack.c.l.b16 %v4057
    %v4081 = vunpack.c.l.b16 %v4058
    %v4082 = vunpack.c.h.b16 %v4058
    %v4083 = vunpack.c.l.b16 %v4059
    %v4084 = vunpack.c.l.b16 %v4060
    %v4085 = vunpack.c.h.b16 %v4060
    %v4086 = vunpack.c.l.b16 %v4061
    %v4087 = vunpack.c.l.b16 %v4062
    %v4088 = vunpack.c.h.b16 %v4062
    %v4089 = vunpack.c.l.b16 %v4063
    %v4090 = vpack.c.b16 %v4081, %v4078
    %v4091 = vpack.c.b16 %v4082, %v4079
    %v4092 = vpack.c.b16 %v4083, %v4080
    %v4093 = vpack.c.b16 %v4087, %v4084
    %v4094 = vpack.c.b16 %v4088, %v4085
    %v4095 = vpack.c.b16 %v4089, %v4086
    %v4103 = vsel %vm271, %v4069, 0
    %4105 = vmatprep.subr.bf16.mxu0 0
    %4106 = vmatpush1.bf16.msra.mxu0 0
    %4107 = vmatprep.subr.bf16.mxu0 0
    %4108 = vmatpush1.bf16.msra.mxu0 0
    %4109 = vmatprep.subr.bf16.mxu0 0
    %4110 = vmatpush1.bf16.msra.mxu0 0
    %4111 = vmatprep.subr.bf16.mxu0 0
    %4112 = vmatpush1.bf16.msra.mxu0 0
    %4113 = vmatprep.subr.bf16.mxu0 0
    %4114 = vmatpush1.bf16.msra.mxu0 0
    %4115 = vmatprep.subr.bf16.mxu0 0
    %4116 = vmatpush1.bf16.msra.mxu0 0
    %4117 = vmatprep.subr.bf16.mxu0 %v4094
    %4118 = vmatpush1.bf16.msra.mxu0 %v4093
    %4119 = vmatprep.subr.bf16.mxu0 %v4091
    %4120 = vmatpush1.bf16.msra.mxu0 %v4090
    %4121 = vmatprep.subr.bf16.mxu0 0
    %4122 = vmatpush2.bf16.msra.mxu0 0
    %4123 = vmatprep.subr.bf16.mxu0 0
    %4124 = vmatpush2.bf16.msra.mxu0 0
    %4125 = vmatprep.subr.bf16.mxu0 0
    %4126 = vmatpush2.bf16.msra.mxu0 0
    %4127 = vmatprep.subr.bf16.mxu0 0
    %4128 = vmatpush2.bf16.msra.mxu0 0
    %4129 = vmatprep.subr.bf16.mxu0 0
    %4130 = vmatpush2.bf16.msra.mxu0 0
    %4131 = vmatprep.subr.bf16.mxu0 0
    %4132 = vmatpush2.bf16.msra.mxu0 0
    %4133 = vmatprep.subr.bf16.mxu0 0
    %4134 = vmatpush2.bf16.msra.mxu0 0
    %4135 = vmatprep.subr.bf16.mxu0 0
    %4136 = vmatpush2.bf16.msra.mxu0 0
    %4137 = vmatprep.mubr.bf16.mxu0 0
    %4138 = vmatmul.mubr.bf16.gmra.mxu0 %v4103
    %v4139 = vpop.f32.mrf.mxu0
    %v4140 = vadd.f32 0.0, %v4139
    %v4141 = vpop.f32.mrf.mxu0
    %v4142 = vadd.f32 0.0, %v4141
    %v4143 = vpop.f32.mrf.mxu0
    %v4144 = vpop.f32.mrf.mxu0
    %4145 = vdwg.mxu0
    %4146 = vmatprep.subr.bf16.mxu0 0
    %4147 = vmatpush1.bf16.msra.mxu0 0
    %4148 = vmatprep.subr.bf16.mxu0 0
    %4149 = vmatpush1.bf16.msra.mxu0 0
    %4150 = vmatprep.subr.bf16.mxu0 0
    %4151 = vmatpush1.bf16.msra.mxu0 0
    %4152 = vmatprep.subr.bf16.mxu0 0
    %4153 = vmatpush1.bf16.msra.mxu0 0
    %4154 = vmatprep.subr.bf16.mxu0 0
    %4155 = vmatpush1.bf16.msra.mxu0 0
    %4156 = vmatprep.subr.bf16.mxu0 0
    %4157 = vmatpush1.bf16.msra.mxu0 0
    %4158 = vmatprep.subr.bf16.mxu0 0
    %4159 = vmatpush1.bf16.msra.mxu0 %v4095
    %4160 = vmatprep.subr.bf16.mxu0 0
    %4161 = vmatpush1.bf16.msra.mxu0 %v4092
    %4162 = vmatprep.subr.bf16.mxu0 0
    %4163 = vmatpush2.bf16.msra.mxu0 0
    %4164 = vmatprep.subr.bf16.mxu0 0
    %4165 = vmatpush2.bf16.msra.mxu0 0
    %4166 = vmatprep.subr.bf16.mxu0 0
    %4167 = vmatpush2.bf16.msra.mxu0 0
    %4168 = vmatprep.subr.bf16.mxu0 0
    %4169 = vmatpush2.bf16.msra.mxu0 0
    %4170 = vmatprep.subr.bf16.mxu0 0
    %4171 = vmatpush2.bf16.msra.mxu0 0
    %4172 = vmatprep.subr.bf16.mxu0 0
    %4173 = vmatpush2.bf16.msra.mxu0 0
    %4174 = vmatprep.subr.bf16.mxu0 0
    %4175 = vmatpush2.bf16.msra.mxu0 0
    %4176 = vmatprep.subr.bf16.mxu0 0
    %4177 = vmatpush2.bf16.msra.mxu0 0
    %4178 = vmatprep.mubr.bf16.mxu0 0
    %4179 = vmatmul.mubr.bf16.gmra.mxu0 %v4103
    %v4180 = vpop.f32.mrf.mxu0
    %v4181 = vadd.f32 0.0, %v4180
    %v4182 = vpop.f32.mrf.mxu0
    %v4183 = vpop.f32.mrf.mxu0
    %v4184 = vpop.f32.mrf.mxu0
    %4185 = vdwg.mxu0
    %v4189 = vrot.slane %v4140, 3
    %v4190 = vrot.slane %v4142, 3
    %v4191 = vrot.slane %v4181, 3
    %4192 = vrot.lane.b32.xlu0 %v4189, 96
    %v4193 = vpop.permute.xlu0 %4192
    %4194 = vrot.lane.b32.xlu0 %v4190, 96
    %v4195 = vpop.permute.xlu0 %4194
    %4196 = vrot.lane.b32.xlu0 %v4191, 96
    %v4197 = vpop.permute.xlu0 %4196
    %v4198 = vsel %vm608, %v4193, %v4195
    %v4199 = vsel %vm608, %v4195, %v4197
    %v4204 = vadd.f32 %v310, %v4193
    %v4205 = vadd.f32 %v312, %v4198
    %v4206 = vadd.f32 %v351, %v4199
    %v4207 = vadd.f32 %v353, %v4197
    %v4208 = vld [vmem:[#allocation16] sm:$0xff]
    %v4209 = vld [vmem:[#allocation16 + $0x8] sm:$0xf]
    %v4210 = vld [vmem:[#allocation16 + $0xc] sm:$0xff]
    %v4211 = vld [vmem:[#allocation16 + $0x14] sm:$0xf]
    %v4212 = vld [vmem:[#allocation16 + $0x18] sm:$0xff]
    %v4213 = vld [vmem:[#allocation16 + $0x20] sm:$0xf]
    %v4214 = vld [vmem:[#allocation16 + $0x24] sm:$0xff]
    %v4215 = vld [vmem:[#allocation16 + $0x2c] sm:$0xf]
    %v4224 = vunpack.c.l.b16 %v4208
    %v4225 = vunpack.c.h.b16 %v4208
    %v4226 = vunpack.c.l.b16 %v4209
    %v4227 = vunpack.c.l.b16 %v4210
    %v4228 = vunpack.c.h.b16 %v4210
    %v4229 = vunpack.c.l.b16 %v4211
    %v4230 = vunpack.c.l.b16 %v4212
    %v4231 = vunpack.c.h.b16 %v4212
    %v4232 = vunpack.c.l.b16 %v4213
    %v4233 = vunpack.c.l.b16 %v4214
    %v4234 = vunpack.c.h.b16 %v4214
    %v4235 = vunpack.c.l.b16 %v4215
    %v4236 = vpack.c.b16 %v4227, %v4224
    %v4237 = vpack.c.b16 %v4228, %v4225
    %v4238 = vpack.c.b16 %v4229, %v4226
    %v4239 = vpack.c.b16 %v4233, %v4230
    %v4240 = vpack.c.b16 %v4234, %v4231
    %v4241 = vpack.c.b16 %v4235, %v4232
    %4248 = vmatprep.subr.bf16.mxu0 0
    %4249 = vmatpush1.bf16.msra.mxu0 0
    %4250 = vmatprep.subr.bf16.mxu0 0
    %4251 = vmatpush1.bf16.msra.mxu0 0
    %4252 = vmatprep.subr.bf16.mxu0 0
    %4253 = vmatpush1.bf16.msra.mxu0 0
    %4254 = vmatprep.subr.bf16.mxu0 0
    %4255 = vmatpush1.bf16.msra.mxu0 0
    %4256 = vmatprep.subr.bf16.mxu0 0
    %4257 = vmatpush1.bf16.msra.mxu0 0
    %4258 = vmatprep.subr.bf16.mxu0 0
    %4259 = vmatpush1.bf16.msra.mxu0 0
    %4260 = vmatprep.subr.bf16.mxu0 %v4240
    %4261 = vmatpush1.bf16.msra.mxu0 %v4239
    %4262 = vmatprep.subr.bf16.mxu0 %v4237
    %4263 = vmatpush1.bf16.msra.mxu0 %v4236
    %4264 = vmatprep.subr.bf16.mxu0 0
    %4265 = vmatpush2.bf16.msra.mxu0 0
    %4266 = vmatprep.subr.bf16.mxu0 0
    %4267 = vmatpush2.bf16.msra.mxu0 0
    %4268 = vmatprep.subr.bf16.mxu0 0
    %4269 = vmatpush2.bf16.msra.mxu0 0
    %4270 = vmatprep.subr.bf16.mxu0 0
    %4271 = vmatpush2.bf16.msra.mxu0 0
    %4272 = vmatprep.subr.bf16.mxu0 0
    %4273 = vmatpush2.bf16.msra.mxu0 0
    %4274 = vmatprep.subr.bf16.mxu0 0
    %4275 = vmatpush2.bf16.msra.mxu0 0
    %4276 = vmatprep.subr.bf16.mxu0 0
    %4277 = vmatpush2.bf16.msra.mxu0 0
    %4278 = vmatprep.subr.bf16.mxu0 0
    %4279 = vmatpush2.bf16.msra.mxu0 0
    %4280 = vmatprep.mubr.bf16.mxu0 0
    %4281 = vmatmul.mubr.bf16.gmra.mxu0 %v3771
    %v4282 = vpop.f32.mrf.mxu0
    %v4283 = vadd.f32 0.0, %v4282
    %v4284 = vpop.f32.mrf.mxu0
    %v4285 = vadd.f32 0.0, %v4284
    %v4286 = vpop.f32.mrf.mxu0
    %v4287 = vpop.f32.mrf.mxu0
    %4288 = vdwg.mxu0
    %4289 = vmatprep.subr.bf16.mxu0 0
    %4290 = vmatpush1.bf16.msra.mxu0 0
    %4291 = vmatprep.subr.bf16.mxu0 0
    %4292 = vmatpush1.bf16.msra.mxu0 0
    %4293 = vmatprep.subr.bf16.mxu0 0
    %4294 = vmatpush1.bf16.msra.mxu0 0
    %4295 = vmatprep.subr.bf16.mxu0 0
    %4296 = vmatpush1.bf16.msra.mxu0 0
    %4297 = vmatprep.subr.bf16.mxu0 0
    %4298 = vmatpush1.bf16.msra.mxu0 0
    %4299 = vmatprep.subr.bf16.mxu0 0
    %4300 = vmatpush1.bf16.msra.mxu0 0
    %4301 = vmatprep.subr.bf16.mxu0 0
    %4302 = vmatpush1.bf16.msra.mxu0 %v4241
    %4303 = vmatprep.subr.bf16.mxu0 0
    %4304 = vmatpush1.bf16.msra.mxu0 %v4238
    %4305 = vmatprep.subr.bf16.mxu0 0
    %4306 = vmatpush2.bf16.msra.mxu0 0
    %4307 = vmatprep.subr.bf16.mxu0 0
    %4308 = vmatpush2.bf16.msra.mxu0 0
    %4309 = vmatprep.subr.bf16.mxu0 0
    %4310 = vmatpush2.bf16.msra.mxu0 0
    %4311 = vmatprep.subr.bf16.mxu0 0
    %4312 = vmatpush2.bf16.msra.mxu0 0
    %4313 = vmatprep.subr.bf16.mxu0 0
    %4314 = vmatpush2.bf16.msra.mxu0 0
    %4315 = vmatprep.subr.bf16.mxu0 0
    %4316 = vmatpush2.bf16.msra.mxu0 0
    %4317 = vmatprep.subr.bf16.mxu0 0
    %4318 = vmatpush2.bf16.msra.mxu0 0
    %4319 = vmatprep.subr.bf16.mxu0 0
    %4320 = vmatpush2.bf16.msra.mxu0 0
    %4321 = vmatprep.mubr.bf16.mxu0 0
    %4322 = vmatmul.mubr.bf16.gmra.mxu0 %v3771
    %v4323 = vpop.f32.mrf.mxu0
    %v4324 = vadd.f32 0.0, %v4323
    %v4325 = vpop.f32.mrf.mxu0
    %v4326 = vpop.f32.mrf.mxu0
    %v4327 = vpop.f32.mrf.mxu0
    %4328 = vdwg.mxu0
    %p4329 = scmp.eq.s32.totalorder %s3950, 0
    %s4330 = scalar_select %p4329, 1, 0
    %s4331 = scvt.s32.f32 %s4330
    %v4332 = vstv %s4331
    %v4333 = vmul.f32 %v4332, %v4204
    %v4334 = vmul.f32 %v4332, %v4205
    %s4335 = ssub.f32 1.0, %s4331
    %v4336 = vstv %s4335
    %v4337 = vmul.f32 %v4336, %v4206
    %4339 = vrot.lane.b32.xlu0 %v4337, 64
    %v4340 = vpop.permute.xlu0 %4339
    %v4342 = vadd.f32 %v4333, %v4340
    %v4343 = vadd.f32 %v4334, %v4340
    %v4344 = vmul.f32 %v4332, %v4283
    %v4345 = vmul.f32 %v4336, %v4285
    %v4346 = vmul.f32 %v4336, %v4324
    %4349 = vrot.lane.b32.xlu0 %v4345, 64
    %v4350 = vpop.permute.xlu0 %4349
    %4351 = vrot.lane.b32.xlu0 %v4346, 64
    %v4352 = vpop.permute.xlu0 %4351
    %v4353 = vsel %vm768, %v4350, %v4352
    %v4355 = vadd.f32 %v4344, %v4353
    %v4356 = vld [vmem:[%s13] sm:$0x1]
    %v4357 = vmul.f32 %v4332, %v4356
    %v4358 = vld [vmem:[%s13 + $0x2] sm:$0x1]
    %v4359 = vmul.f32 %v4336, %v4358
    %v4360 = vadd.f32 %v4357, %v4359
    %p4361 = scmp.eq.s32.totalorder %s3950, 1
    %s4362 = scalar_select %p4361, 1, 0
    %s4363 = scvt.s32.f32 %s4362
    %v4364 = vstv %s4363
    %v4365 = vmul.f32 %v4364, %v4205
    %v4366 = vmul.f32 %v4364, %v4206
    %s4367 = ssub.f32 1.0, %s4363
    %v4368 = vstv %s4367
    %v4369 = vmul.f32 %v4368, %v4207
    %4371 = vrot.lane.b32.xlu0 %v4369, 64
    %v4372 = vpop.permute.xlu0 %4371
    %v4374 = vadd.f32 %v4365, %v4372
    %v4375 = vadd.f32 %v4366, %v4372
    %v4376 = vmul.f32 %v4364, %v4283
    %v4377 = vmul.f32 %v4364, %v4285
    %v4378 = vmul.f32 %v4368, %v4324
    %4380 = vrot.lane.b32.xlu0 %v4378, 64
    %v4381 = vpop.permute.xlu0 %4380
    %v4383 = vadd.f32 %v4376, %v4381
    %v4384 = vadd.f32 %v4377, %v4381
    %v4385 = vld [vmem:[%s13 + $0x1] sm:$0x1]
    %v4386 = vmul.f32 %v4364, %v4385
    %v4387 = vld [vmem:[%s13 + $0x3] sm:$0x1]
    %v4388 = vmul.f32 %v4368, %v4387
    %v4389 = vadd.f32 %v4386, %v4388
    %v4392 = vrot.slane %v4342, 5
    %v4393 = vrot.slane %v4343, 5
    %v4398 = vrot.slane %v4374, 4
    %v4399 = vrot.slane %v4375, 4
    %4400 = vrot.lane.b32.xlu0 %v4398, 32
    %v4401 = vpop.permute.xlu0 %4400
    %4402 = vrot.lane.b32.xlu0 %v4399, 32
    %v4403 = vpop.permute.xlu0 %4402
    %v4404 = vsel %vm271, %v4401, %v4403
    %v4407 = vsel %vm817, %v4392, %v4401
    %v4408 = vsel %vm817, %v4393, %v4404
    %4411 = vrot.lane.b32.xlu0 %v4383, 32
    %v4412 = vpop.permute.xlu0 %4411
    %4413 = vrot.lane.b32.xlu0 %v4384, 32
    %v4414 = vpop.permute.xlu0 %4413
    %v4415 = vsel %vm271, %v4412, %v4414
    %v4417 = vsel %vm817, %v4355, %v4415
    %v4419 = vrot.slane %v4389, 7
    %v4421 = vsel %vm817, %v4360, %v4419
    %4423 = vrot.lane.b32.xlu0 %v4417, 96
    %v4424 = vpop.permute.xlu0 %4423
    %v4426 = vadd.f32 %v4407, %v4424
    %v4427 = vxor.u32 %v4426, 2147483648
    %v4428 = vmul.f32 %v4427, 1.442695
    %v4429 = vpow.pop %v4428
    %v4430 = vadd.f32 %v4429, 1.0
    %v4431 = vrcp.pop %v4430
    %v4432 = vmul.f32 1.0, %v4431
    %v4433 = vadd.f32 %v4408, %v4424
    %v4434 = vxor.u32 %v4433, 2147483648
    %v4435 = vmul.f32 %v4434, 1.442695
    %v4436 = vpow.pop %v4435
    %v4437 = vadd.f32 %v4436, 1.0
    %v4438 = vrcp.pop %v4437
    %v4439 = vmul.f32 1.0, %v4438
    %4441 = vrot.lane.b32.xlu0 %v4421, 64
    %v4442 = vpop.permute.xlu0 %4441
    %v4444 = vadd.f32 %v4417, %v4442
    %4446 = vrot.lane.b32.xlu0 %v4444, 32
    %v4447 = vpop.permute.xlu0 %4446
    %v4449 = vmul.f32 %v4432, %v4447
    %4451 = vrot.lane.b32.xlu0 %v4449, 64
    %v4452 = vpop.permute.xlu0 %4451
    %v4454 = vadd.f32 %v4408, %v4452
    %v4455 = vtanh.pop %v4454
    %v4456 = vsub.f32 1.0, %v4439
    %4458 = vrot.lane.b32.xlu0 %v4455, 96
    %v4459 = vpop.permute.xlu0 %4458
    %v4461 = vmul.f32 %v4456, %v4459
    %v4462 = vmul.f32 %v4439, %v3744
    %v4463 = vadd.f32 %v4461, %v4462
    %v4464 = vpack.c.bf16 %v4463, %v4463
    %v4465 = vld [vmem:[#allocation18] sm:$0xff]
    %v4466 = vld [vmem:[#allocation18 + $0x8] sm:$0xff]
    %v4467 = vld [vmem:[#allocation18 + $0x10] sm:$0xff]
    %v4468 = vld [vmem:[#allocation18 + $0x18] sm:$0xff]
    %v4473 = vunpack.c.l.b16 %v4465
    %v4474 = vunpack.c.h.b16 %v4465
    %v4475 = vunpack.c.l.b16 %v4466
    %v4476 = vunpack.c.h.b16 %v4466
    %v4477 = vunpack.c.l.b16 %v4467
    %v4478 = vunpack.c.h.b16 %v4467
    %v4479 = vunpack.c.l.b16 %v4468
    %v4480 = vunpack.c.h.b16 %v4468
    %v4481 = vpack.c.b16 %v4475, %v4473
    %v4482 = vpack.c.b16 %v4476, %v4474
    %v4483 = vpack.c.b16 %v4479, %v4477
    %v4484 = vpack.c.b16 %v4480, %v4478
    %v4490 = vsel %vm271, %v4464, 0
    %4492 = vmatprep.subr.bf16.mxu0 0
    %4493 = vmatpush1.bf16.msra.mxu0 0
    %4494 = vmatprep.subr.bf16.mxu0 0
    %4495 = vmatpush1.bf16.msra.mxu0 0
    %4496 = vmatprep.subr.bf16.mxu0 0
    %4497 = vmatpush1.bf16.msra.mxu0 0
    %4498 = vmatprep.subr.bf16.mxu0 0
    %4499 = vmatpush1.bf16.msra.mxu0 0
    %4500 = vmatprep.subr.bf16.mxu0 0
    %4501 = vmatpush1.bf16.msra.mxu0 0
    %4502 = vmatprep.subr.bf16.mxu0 0
    %4503 = vmatpush1.bf16.msra.mxu0 0
    %4504 = vmatprep.subr.bf16.mxu0 %v4484
    %4505 = vmatpush1.bf16.msra.mxu0 %v4483
    %4506 = vmatprep.subr.bf16.mxu0 %v4482
    %4507 = vmatpush1.bf16.msra.mxu0 %v4481
    %4508 = vmatprep.subr.bf16.mxu0 0
    %4509 = vmatpush2.bf16.msra.mxu0 0
    %4510 = vmatprep.subr.bf16.mxu0 0
    %4511 = vmatpush2.bf16.msra.mxu0 0
    %4512 = vmatprep.subr.bf16.mxu0 0
    %4513 = vmatpush2.bf16.msra.mxu0 0
    %4514 = vmatprep.subr.bf16.mxu0 0
    %4515 = vmatpush2.bf16.msra.mxu0 0
    %4516 = vmatprep.subr.bf16.mxu0 0
    %4517 = vmatpush2.bf16.msra.mxu0 0
    %4518 = vmatprep.subr.bf16.mxu0 0
    %4519 = vmatpush2.bf16.msra.mxu0 0
    %4520 = vmatprep.subr.bf16.mxu0 0
    %4521 = vmatpush2.bf16.msra.mxu0 0
    %4522 = vmatprep.subr.bf16.mxu0 0
    %4523 = vmatpush2.bf16.msra.mxu0 0
    %4524 = vmatprep.mubr.bf16.mxu0 0
    %4525 = vmatmul.mubr.bf16.gmra.mxu0 %v4490
    %v4526 = vpop.f32.mrf.mxu0
    %v4527 = vadd.f32 0.0, %v4526
    %v4528 = vpop.f32.mrf.mxu0
    %v4529 = vadd.f32 0.0, %v4528
    %v4530 = vpop.f32.mrf.mxu0
    %v4531 = vpop.f32.mrf.mxu0
    %4532 = vdwg.mxu0
    %v4533 = vpack.c.bf16 %v3937, %v3937
    %v4534 = vld [vmem:[#allocation19] sm:$0xff]
    %v4535 = vld [vmem:[#allocation19 + $0x8] sm:$0xff]
    %v4536 = vld [vmem:[#allocation19 + $0x10] sm:$0xff]
    %v4537 = vld [vmem:[#allocation19 + $0x18] sm:$0xff]
    %4539 = vrot.lane.b32.xlu0 %v4533, 96
    %v4540 = vpop.permute.xlu0 %4539
    %v4545 = vunpack.c.l.b16 %v4534
    %v4546 = vunpack.c.h.b16 %v4534
    %v4547 = vunpack.c.l.b16 %v4535
    %v4548 = vunpack.c.h.b16 %v4535
    %v4549 = vunpack.c.l.b16 %v4536
    %v4550 = vunpack.c.h.b16 %v4536
    %v4551 = vunpack.c.l.b16 %v4537
    %v4552 = vunpack.c.h.b16 %v4537
    %v4553 = vpack.c.b16 %v4547, %v4545
    %v4554 = vpack.c.b16 %v4548, %v4546
    %v4555 = vpack.c.b16 %v4551, %v4549
    %v4556 = vpack.c.b16 %v4552, %v4550
    %v4562 = vsel %vm271, %v4540, 0
    %4564 = vmatprep.subr.bf16.mxu0 0
    %4565 = vmatpush1.bf16.msra.mxu0 0
    %4566 = vmatprep.subr.bf16.mxu0 0
    %4567 = vmatpush1.bf16.msra.mxu0 0
    %4568 = vmatprep.subr.bf16.mxu0 0
    %4569 = vmatpush1.bf16.msra.mxu0 0
    %4570 = vmatprep.subr.bf16.mxu0 0
    %4571 = vmatpush1.bf16.msra.mxu0 0
    %4572 = vmatprep.subr.bf16.mxu0 0
    %4573 = vmatpush1.bf16.msra.mxu0 0
    %4574 = vmatprep.subr.bf16.mxu0 0
    %4575 = vmatpush1.bf16.msra.mxu0 0
    %4576 = vmatprep.subr.bf16.mxu0 %v4556
    %4577 = vmatpush1.bf16.msra.mxu0 %v4555
    %4578 = vmatprep.subr.bf16.mxu0 %v4554
    %4579 = vmatpush1.bf16.msra.mxu0 %v4553
    %4580 = vmatprep.subr.bf16.mxu0 0
    %4581 = vmatpush2.bf16.msra.mxu0 0
    %4582 = vmatprep.subr.bf16.mxu0 0
    %4583 = vmatpush2.bf16.msra.mxu0 0
    %4584 = vmatprep.subr.bf16.mxu0 0
    %4585 = vmatpush2.bf16.msra.mxu0 0
    %4586 = vmatprep.subr.bf16.mxu0 0
    %4587 = vmatpush2.bf16.msra.mxu0 0
    %4588 = vmatprep.subr.bf16.mxu0 0
    %4589 = vmatpush2.bf16.msra.mxu0 0
    %4590 = vmatprep.subr.bf16.mxu0 0
    %4591 = vmatpush2.bf16.msra.mxu0 0
    %4592 = vmatprep.subr.bf16.mxu0 0
    %4593 = vmatpush2.bf16.msra.mxu0 0
    %4594 = vmatprep.subr.bf16.mxu0 0
    %4595 = vmatpush2.bf16.msra.mxu0 0
    %4596 = vmatprep.mubr.bf16.mxu0 0
    %4597 = vmatmul.mubr.bf16.gmra.mxu0 %v4562
    %v4598 = vpop.f32.mrf.mxu0
    %v4599 = vadd.f32 0.0, %v4598
    %v4600 = vpop.f32.mrf.mxu0
    %v4601 = vadd.f32 0.0, %v4600
    %v4602 = vpop.f32.mrf.mxu0
    %v4603 = vpop.f32.mrf.mxu0
    %4604 = vdwg.mxu0
    %4607 = vrot.lane.b32.xlu0 %v4527, 32
    %v4608 = vpop.permute.xlu0 %4607
    %4609 = vrot.lane.b32.xlu0 %v4529, 32
    %v4610 = vpop.permute.xlu0 %4609
    %v4611 = vsel %vm271, %v4608, %v4610
    %v4613 = vsel %vm817, %v4527, %v4611
    %v4614 = vld [vmem:[%s14] sm:$0x3]
    %v4615 = vadd.f32 %v4613, %v4614
    %4618 = vrot.lane.b32.xlu0 %v4599, 32
    %v4619 = vpop.permute.xlu0 %4618
    %4620 = vrot.lane.b32.xlu0 %v4601, 32
    %v4621 = vpop.permute.xlu0 %4620
    %v4622 = vsel %vm271, %v4619, %v4621
    %v4624 = vsel %vm817, %v4599, %v4622
    %v4625 = vadd.f32 %v4615, %v4624
    %v4626 = vxor.u32 %v4625, 2147483648
    %v4627 = vmul.f32 %v4626, 1.442695
    %v4628 = vpow.pop %v4627
    %v4629 = vadd.f32 %v4628, 1.0
    %v4630 = vrcp.pop %v4629
    %v4631 = vmul.f32 1.0, %v4630
    %v4632 = vld [vmem:[%s15] sm:$0x3]
    %4634 = vrot.lane.b32.xlu0 %v4632, 64
    %v4635 = vpop.permute.xlu0 %4634
    %v4637 = vadd.f32 %v4624, %v4635
    %4639 = vrot.lane.b32.xlu0 %v4637, 64
    %v4640 = vpop.permute.xlu0 %4639
    %v4642 = vmul.f32 %v4631, %v4640
    %4644 = vrot.lane.b32.xlu0 %v4642, 64
    %v4645 = vpop.permute.xlu0 %4644
    %v4647 = vadd.f32 %v4615, %v4645
    %v4648 = vtanh.pop %v4647
    %v4649 = vsub.f32 1.0, %v4631
    %4651 = vrot.lane.b32.xlu0 %v4648, 96
    %v4652 = vpop.permute.xlu0 %4651
    %v4654 = vmul.f32 %v4649, %v4652
    %v4655 = vmul.f32 %v4631, %v3937
    %v4656 = vadd.f32 %v4654, %v4655
    %v4657 = vmul.f32 %v4332, %v4656
    %v4658 = vadd.f32 %v4657, 0.0
    %v4659 = vmul.f32 %v4364, %v4656
    %v4661 = vrot.slane %v4659, 1
    %v4663 = vadd.f32 %v4658, %v4661
    %4665 = vrot.lane.b32.xlu0 %v4663, 96
    %v4666 = vpop.permute.xlu0 %4665
    %4668 = vst.msk [vmem:[#allocation21 + $0x5] sm:$0x1] %vm469, %v4666
    %s4669 = sld [smem:[#allocation2 + $0x6]]
    %v4670 = vld [vmem:[#allocation13] sm:$0xf]
    %v4671 = vld [vmem:[#allocation13 + $0x4] sm:$0xf]
    %v4672 = vld [vmem:[#allocation13 + $0x8] sm:$0xf]
    %v4673 = vld [vmem:[#allocation13 + $0xc] sm:$0xf]
    %v4678 = vunpack.c.l.b16 %v4670
    %v4679 = vunpack.c.l.b16 %v4671
    %v4680 = vunpack.c.l.b16 %v4672
    %v4681 = vunpack.c.l.b16 %v4673
    %v4682 = vpack.c.b16 %v4679, %v4678
    %v4683 = vpack.c.b16 %v4681, %v4680
    %4686 = vmatprep.subr.bf16.mxu0 0
    %4687 = vmatpush1.bf16.msra.mxu0 0
    %4688 = vmatprep.subr.bf16.mxu0 0
    %4689 = vmatpush1.bf16.msra.mxu0 0
    %4690 = vmatprep.subr.bf16.mxu0 0
    %4691 = vmatpush1.bf16.msra.mxu0 0
    %4692 = vmatprep.subr.bf16.mxu0 0
    %4693 = vmatpush1.bf16.msra.mxu0 0
    %4694 = vmatprep.subr.bf16.mxu0 0
    %4695 = vmatpush1.bf16.msra.mxu0 0
    %4696 = vmatprep.subr.bf16.mxu0 0
    %4697 = vmatpush1.bf16.msra.mxu0 0
    %4698 = vmatprep.subr.bf16.mxu0 0
    %4699 = vmatpush1.bf16.msra.mxu0 %v4683
    %4700 = vmatprep.subr.bf16.mxu0 0
    %4701 = vmatpush1.bf16.msra.mxu0 %v4682
    %4702 = vmatprep.subr.bf16.mxu0 0
    %4703 = vmatpush2.bf16.msra.mxu0 0
    %4704 = vmatprep.subr.bf16.mxu0 0
    %4705 = vmatpush2.bf16.msra.mxu0 0
    %4706 = vmatprep.subr.bf16.mxu0 0
    %4707 = vmatpush2.bf16.msra.mxu0 0
    %4708 = vmatprep.subr.bf16.mxu0 0
    %4709 = vmatpush2.bf16.msra.mxu0 0
    %4710 = vmatprep.subr.bf16.mxu0 0
    %4711 = vmatpush2.bf16.msra.mxu0 0
    %4712 = vmatprep.subr.bf16.mxu0 0
    %4713 = vmatpush2.bf16.msra.mxu0 0
    %4714 = vmatprep.subr.bf16.mxu0 0
    %4715 = vmatpush2.bf16.msra.mxu0 0
    %4716 = vmatprep.subr.bf16.mxu0 0
    %4717 = vmatpush2.bf16.msra.mxu0 0
    %4718 = vmatprep.mubr.bf16.mxu0 0
    %4719 = vmatmul.mubr.bf16.gmra.mxu0 %v4103
    %v4720 = vpop.f32.mrf.mxu0
    %v4721 = vadd.f32 0.0, %v4720
    %v4722 = vpop.f32.mrf.mxu0
    %v4723 = vpop.f32.mrf.mxu0
    %v4724 = vpop.f32.mrf.mxu0
    %4725 = vdwg.mxu0
    %v4727 = vrot.slane %v4721, 2
    %v4729 = vadd.f32 %v310, %v4727
    %v4730 = vxor.u32 %v4729, 2147483648
    %v4731 = vmul.f32 %v4730, 1.442695
    %v4732 = vpow.pop %v4731
    %v4733 = vadd.f32 %v4732, 1.0
    %v4734 = vrcp.pop %v4733
    %v4735 = vmul.f32 1.0, %v4734
    %v4736 = vld [vmem:[%s12] sm:$0x1]
    %v4738 = vlaneseq
    %v4739 = vshrl.u32 %v4738, 7
    %v4740 = vsub.s32 0, %v4739
    %v4741 = vrot.slane %v4736, %v4740
    %4742 = vrot.lane.b32.xlu0 %v4741, 64
    %v4743 = vpop.permute.xlu0 %4742
    %v4745 = vadd.f32 %v4721, %v4743
    %v4747 = vrot.slane %v4745, 2
    %4748 = vrot.lane.b32.xlu0 %v4747, 64
    %v4749 = vpop.permute.xlu0 %4748
    %v4751 = vmul.f32 %v4735, %v4749
    %4753 = vrot.lane.b32.xlu0 %v4751, 64
    %v4754 = vpop.permute.xlu0 %4753
    %v4756 = vadd.f32 %v310, %v4754
    %v4757 = vtanh.pop %v4756
    %v4758 = vsub.f32 1.0, %v4735
    %4760 = vrot.lane.b32.xlu0 %v4757, 96
    %v4761 = vpop.permute.xlu0 %4760
    %v4763 = vmul.f32 %v4758, %v4761
    %v4764 = vrot.slane %v4048, 7
    %v4766 = vmul.f32 %v4735, %v4764
    %v4767 = vadd.f32 %v4763, %v4766
    %4769 = vrot.lane.b32.xlu0 %v4767, 96
    %v4770 = vpop.permute.xlu0 %4769
    %vm4772 = vcmask 260102
    %4773 = vst.msk [vmem:[#allocation22] sm:$0x40] %vm4772, %v4770
    %v4774 = vpack.c.bf16 %v4767, %v4767
    %v4775 = vld [vmem:[#allocation15] sm:$0xff]
    %v4776 = vld [vmem:[#allocation15 + $0x8] sm:$0xf]
    %v4777 = vld [vmem:[#allocation15 + $0xc] sm:$0xff]
    %v4778 = vld [vmem:[#allocation15 + $0x14] sm:$0xf]
    %v4779 = vld [vmem:[#allocation15 + $0x18] sm:$0xff]
    %v4780 = vld [vmem:[#allocation15 + $0x20] sm:$0xf]
    %v4781 = vld [vmem:[#allocation15 + $0x24] sm:$0xff]
    %v4782 = vld [vmem:[#allocation15 + $0x2c] sm:$0xf]
    %v4784 = vrot.slane %v4774, 3
    %4785 = vrot.lane.b32.xlu0 %v4784, 96
    %v4786 = vpop.permute.xlu0 %4785
    %v4795 = vunpack.c.l.b16 %v4775
    %v4796 = vunpack.c.h.b16 %v4775
    %v4797 = vunpack.c.l.b16 %v4776
    %v4798 = vunpack.c.l.b16 %v4777
    %v4799 = vunpack.c.h.b16 %v4777
    %v4800 = vunpack.c.l.b16 %v4778
    %v4801 = vunpack.c.l.b16 %v4779
    %v4802 = vunpack.c.h.b16 %v4779
    %v4803 = vunpack.c.l.b16 %v4780
    %v4804 = vunpack.c.l.b16 %v4781
    %v4805 = vunpack.c.h.b16 %v4781
    %v4806 = vunpack.c.l.b16 %v4782
    %v4807 = vpack.c.b16 %v4798, %v4795
    %v4808 = vpack.c.b16 %v4799, %v4796
    %v4809 = vpack.c.b16 %v4800, %v4797
    %v4810 = vpack.c.b16 %v4804, %v4801
    %v4811 = vpack.c.b16 %v4805, %v4802
    %v4812 = vpack.c.b16 %v4806, %v4803
    %v4820 = vsel %vm271, %v4786, 0
    %4822 = vmatprep.subr.bf16.mxu0 0
    %4823 = vmatpush1.bf16.msra.mxu0 0
    %4824 = vmatprep.subr.bf16.mxu0 0
    %4825 = vmatpush1.bf16.msra.mxu0 0
    %4826 = vmatprep.subr.bf16.mxu0 0
    %4827 = vmatpush1.bf16.msra.mxu0 0
    %4828 = vmatprep.subr.bf16.mxu0 0
    %4829 = vmatpush1.bf16.msra.mxu0 0
    %4830 = vmatprep.subr.bf16.mxu0 0
    %4831 = vmatpush1.bf16.msra.mxu0 0
    %4832 = vmatprep.subr.bf16.mxu0 0
    %4833 = vmatpush1.bf16.msra.mxu0 0
    %4834 = vmatprep.subr.bf16.mxu0 %v4811
    %4835 = vmatpush1.bf16.msra.mxu0 %v4810
    %4836 = vmatprep.subr.bf16.mxu0 %v4808
    %4837 = vmatpush1.bf16.msra.mxu0 %v4807
    %4838 = vmatprep.subr.bf16.mxu0 0
    %4839 = vmatpush2.bf16.msra.mxu0 0
    %4840 = vmatprep.subr.bf16.mxu0 0
    %4841 = vmatpush2.bf16.msra.mxu0 0
    %4842 = vmatprep.subr.bf16.mxu0 0
    %4843 = vmatpush2.bf16.msra.mxu0 0
    %4844 = vmatprep.subr.bf16.mxu0 0
    %4845 = vmatpush2.bf16.msra.mxu0 0
    %4846 = vmatprep.subr.bf16.mxu0 0
    %4847 = vmatpush2.bf16.msra.mxu0 0
    %4848 = vmatprep.subr.bf16.mxu0 0
    %4849 = vmatpush2.bf16.msra.mxu0 0
    %4850 = vmatprep.subr.bf16.mxu0 0
    %4851 = vmatpush2.bf16.msra.mxu0 0
    %4852 = vmatprep.subr.bf16.mxu0 0
    %4853 = vmatpush2.bf16.msra.mxu0 0
    %4854 = vmatprep.mubr.bf16.mxu0 0
    %4855 = vmatmul.mubr.bf16.gmra.mxu0 %v4820
    %v4856 = vpop.f32.mrf.mxu0
    %v4857 = vadd.f32 0.0, %v4856
    %v4858 = vpop.f32.mrf.mxu0
    %v4859 = vadd.f32 0.0, %v4858
    %v4860 = vpop.f32.mrf.mxu0
    %v4861 = vpop.f32.mrf.mxu0
    %4862 = vdwg.mxu0
    %4863 = vmatprep.subr.bf16.mxu0 0
    %4864 = vmatpush1.bf16.msra.mxu0 0
    %4865 = vmatprep.subr.bf16.mxu0 0
    %4866 = vmatpush1.bf16.msra.mxu0 0
    %4867 = vmatprep.subr.bf16.mxu0 0
    %4868 = vmatpush1.bf16.msra.mxu0 0
    %4869 = vmatprep.subr.bf16.mxu0 0
    %4870 = vmatpush1.bf16.msra.mxu0 0
    %4871 = vmatprep.subr.bf16.mxu0 0
    %4872 = vmatpush1.bf16.msra.mxu0 0
    %4873 = vmatprep.subr.bf16.mxu0 0
    %4874 = vmatpush1.bf16.msra.mxu0 0
    %4875 = vmatprep.subr.bf16.mxu0 0
    %4876 = vmatpush1.bf16.msra.mxu0 %v4812
    %4877 = vmatprep.subr.bf16.mxu0 0
    %4878 = vmatpush1.bf16.msra.mxu0 %v4809
    %4879 = vmatprep.subr.bf16.mxu0 0
    %4880 = vmatpush2.bf16.msra.mxu0 0
    %4881 = vmatprep.subr.bf16.mxu0 0
    %4882 = vmatpush2.bf16.msra.mxu0 0
    %4883 = vmatprep.subr.bf16.mxu0 0
    %4884 = vmatpush2.bf16.msra.mxu0 0
    %4885 = vmatprep.subr.bf16.mxu0 0
    %4886 = vmatpush2.bf16.msra.mxu0 0
    %4887 = vmatprep.subr.bf16.mxu0 0
    %4888 = vmatpush2.bf16.msra.mxu0 0
    %4889 = vmatprep.subr.bf16.mxu0 0
    %4890 = vmatpush2.bf16.msra.mxu0 0
    %4891 = vmatprep.subr.bf16.mxu0 0
    %4892 = vmatpush2.bf16.msra.mxu0 0
    %4893 = vmatprep.subr.bf16.mxu0 0
    %4894 = vmatpush2.bf16.msra.mxu0 0
    %4895 = vmatprep.mubr.bf16.mxu0 0
    %4896 = vmatmul.mubr.bf16.gmra.mxu0 %v4820
    %v4897 = vpop.f32.mrf.mxu0
    %v4898 = vadd.f32 0.0, %v4897
    %v4899 = vpop.f32.mrf.mxu0
    %v4900 = vpop.f32.mrf.mxu0
    %v4901 = vpop.f32.mrf.mxu0
    %4902 = vdwg.mxu0
    %v4906 = vrot.slane %v4857, 2
    %v4907 = vrot.slane %v4859, 2
    %v4908 = vrot.slane %v4898, 2
    %4909 = vrot.lane.b32.xlu0 %v4906, 96
    %v4910 = vpop.permute.xlu0 %4909
    %4911 = vrot.lane.b32.xlu0 %v4907, 96
    %v4912 = vpop.permute.xlu0 %4911
    %4913 = vrot.lane.b32.xlu0 %v4908, 96
    %v4914 = vpop.permute.xlu0 %4913
    %v4915 = vsel %vm608, %v4910, %v4912
    %v4916 = vsel %vm608, %v4912, %v4914
    %v4921 = vadd.f32 %v310, %v4910
    %v4922 = vadd.f32 %v312, %v4915
    %v4923 = vadd.f32 %v351, %v4916
    %v4924 = vadd.f32 %v353, %v4914
    %v4925 = vld [vmem:[#allocation16] sm:$0xff]
    %v4926 = vld [vmem:[#allocation16 + $0x8] sm:$0xf]
    %v4927 = vld [vmem:[#allocation16 + $0xc] sm:$0xff]
    %v4928 = vld [vmem:[#allocation16 + $0x14] sm:$0xf]
    %v4929 = vld [vmem:[#allocation16 + $0x18] sm:$0xff]
    %v4930 = vld [vmem:[#allocation16 + $0x20] sm:$0xf]
    %v4931 = vld [vmem:[#allocation16 + $0x24] sm:$0xff]
    %v4932 = vld [vmem:[#allocation16 + $0x2c] sm:$0xf]
    %v4941 = vunpack.c.l.b16 %v4925
    %v4942 = vunpack.c.h.b16 %v4925
    %v4943 = vunpack.c.l.b16 %v4926
    %v4944 = vunpack.c.l.b16 %v4927
    %v4945 = vunpack.c.h.b16 %v4927
    %v4946 = vunpack.c.l.b16 %v4928
    %v4947 = vunpack.c.l.b16 %v4929
    %v4948 = vunpack.c.h.b16 %v4929
    %v4949 = vunpack.c.l.b16 %v4930
    %v4950 = vunpack.c.l.b16 %v4931
    %v4951 = vunpack.c.h.b16 %v4931
    %v4952 = vunpack.c.l.b16 %v4932
    %v4953 = vpack.c.b16 %v4944, %v4941
    %v4954 = vpack.c.b16 %v4945, %v4942
    %v4955 = vpack.c.b16 %v4946, %v4943
    %v4956 = vpack.c.b16 %v4950, %v4947
    %v4957 = vpack.c.b16 %v4951, %v4948
    %v4958 = vpack.c.b16 %v4952, %v4949
    %4965 = vmatprep.subr.bf16.mxu0 0
    %4966 = vmatpush1.bf16.msra.mxu0 0
    %4967 = vmatprep.subr.bf16.mxu0 0
    %4968 = vmatpush1.bf16.msra.mxu0 0
    %4969 = vmatprep.subr.bf16.mxu0 0
    %4970 = vmatpush1.bf16.msra.mxu0 0
    %4971 = vmatprep.subr.bf16.mxu0 0
    %4972 = vmatpush1.bf16.msra.mxu0 0
    %4973 = vmatprep.subr.bf16.mxu0 0
    %4974 = vmatpush1.bf16.msra.mxu0 0
    %4975 = vmatprep.subr.bf16.mxu0 0
    %4976 = vmatpush1.bf16.msra.mxu0 0
    %4977 = vmatprep.subr.bf16.mxu0 %v4957
    %4978 = vmatpush1.bf16.msra.mxu0 %v4956
    %4979 = vmatprep.subr.bf16.mxu0 %v4954
    %4980 = vmatpush1.bf16.msra.mxu0 %v4953
    %4981 = vmatprep.subr.bf16.mxu0 0
    %4982 = vmatpush2.bf16.msra.mxu0 0
    %4983 = vmatprep.subr.bf16.mxu0 0
    %4984 = vmatpush2.bf16.msra.mxu0 0
    %4985 = vmatprep.subr.bf16.mxu0 0
    %4986 = vmatpush2.bf16.msra.mxu0 0
    %4987 = vmatprep.subr.bf16.mxu0 0
    %4988 = vmatpush2.bf16.msra.mxu0 0
    %4989 = vmatprep.subr.bf16.mxu0 0
    %4990 = vmatpush2.bf16.msra.mxu0 0
    %4991 = vmatprep.subr.bf16.mxu0 0
    %4992 = vmatpush2.bf16.msra.mxu0 0
    %4993 = vmatprep.subr.bf16.mxu0 0
    %4994 = vmatpush2.bf16.msra.mxu0 0
    %4995 = vmatprep.subr.bf16.mxu0 0
    %4996 = vmatpush2.bf16.msra.mxu0 0
    %4997 = vmatprep.mubr.bf16.mxu0 0
    %4998 = vmatmul.mubr.bf16.gmra.mxu0 %v4490
    %v4999 = vpop.f32.mrf.mxu0
    %v5000 = vadd.f32 0.0, %v4999
    %v5001 = vpop.f32.mrf.mxu0
    %v5002 = vadd.f32 0.0, %v5001
    %v5003 = vpop.f32.mrf.mxu0
    %v5004 = vpop.f32.mrf.mxu0
    %5005 = vdwg.mxu0
    %5006 = vmatprep.subr.bf16.mxu0 0
    %5007 = vmatpush1.bf16.msra.mxu0 0
    %5008 = vmatprep.subr.bf16.mxu0 0
    %5009 = vmatpush1.bf16.msra.mxu0 0
    %5010 = vmatprep.subr.bf16.mxu0 0
    %5011 = vmatpush1.bf16.msra.mxu0 0
    %5012 = vmatprep.subr.bf16.mxu0 0
    %5013 = vmatpush1.bf16.msra.mxu0 0
    %5014 = vmatprep.subr.bf16.mxu0 0
    %5015 = vmatpush1.bf16.msra.mxu0 0
    %5016 = vmatprep.subr.bf16.mxu0 0
    %5017 = vmatpush1.bf16.msra.mxu0 0
    %5018 = vmatprep.subr.bf16.mxu0 0
    %5019 = vmatpush1.bf16.msra.mxu0 %v4958
    %5020 = vmatprep.subr.bf16.mxu0 0
    %5021 = vmatpush1.bf16.msra.mxu0 %v4955
    %5022 = vmatprep.subr.bf16.mxu0 0
    %5023 = vmatpush2.bf16.msra.mxu0 0
    %5024 = vmatprep.subr.bf16.mxu0 0
    %5025 = vmatpush2.bf16.msra.mxu0 0
    %5026 = vmatprep.subr.bf16.mxu0 0
    %5027 = vmatpush2.bf16.msra.mxu0 0
    %5028 = vmatprep.subr.bf16.mxu0 0
    %5029 = vmatpush2.bf16.msra.mxu0 0
    %5030 = vmatprep.subr.bf16.mxu0 0
    %5031 = vmatpush2.bf16.msra.mxu0 0
    %5032 = vmatprep.subr.bf16.mxu0 0
    %5033 = vmatpush2.bf16.msra.mxu0 0
    %5034 = vmatprep.subr.bf16.mxu0 0
    %5035 = vmatpush2.bf16.msra.mxu0 0
    %5036 = vmatprep.subr.bf16.mxu0 0
    %5037 = vmatpush2.bf16.msra.mxu0 0
    %5038 = vmatprep.mubr.bf16.mxu0 0
    %5039 = vmatmul.mubr.bf16.gmra.mxu0 %v4490
    %v5040 = vpop.f32.mrf.mxu0
    %v5041 = vadd.f32 0.0, %v5040
    %v5042 = vpop.f32.mrf.mxu0
    %v5043 = vpop.f32.mrf.mxu0
    %v5044 = vpop.f32.mrf.mxu0
    %5045 = vdwg.mxu0
    %p5046 = scmp.eq.s32.totalorder %s4669, 0
    %s5047 = scalar_select %p5046, 1, 0
    %s5048 = scvt.s32.f32 %s5047
    %v5049 = vstv %s5048
    %v5050 = vmul.f32 %v5049, %v4921
    %v5051 = vmul.f32 %v5049, %v4922
    %s5052 = ssub.f32 1.0, %s5048
    %v5053 = vstv %s5052
    %v5054 = vmul.f32 %v5053, %v4923
    %5056 = vrot.lane.b32.xlu0 %v5054, 64
    %v5057 = vpop.permute.xlu0 %5056
    %v5059 = vadd.f32 %v5050, %v5057
    %v5060 = vadd.f32 %v5051, %v5057
    %v5061 = vmul.f32 %v5049, %v5000
    %v5062 = vmul.f32 %v5053, %v5002
    %v5063 = vmul.f32 %v5053, %v5041
    %5066 = vrot.lane.b32.xlu0 %v5062, 64
    %v5067 = vpop.permute.xlu0 %5066
    %5068 = vrot.lane.b32.xlu0 %v5063, 64
    %v5069 = vpop.permute.xlu0 %5068
    %v5070 = vsel %vm768, %v5067, %v5069
    %v5072 = vadd.f32 %v5061, %v5070
    %v5073 = vld [vmem:[%s13] sm:$0x1]
    %v5074 = vmul.f32 %v5049, %v5073
    %v5075 = vld [vmem:[%s13 + $0x2] sm:$0x1]
    %v5076 = vmul.f32 %v5053, %v5075
    %v5077 = vadd.f32 %v5074, %v5076
    %p5078 = scmp.eq.s32.totalorder %s4669, 1
    %s5079 = scalar_select %p5078, 1, 0
    %s5080 = scvt.s32.f32 %s5079
    %v5081 = vstv %s5080
    %v5082 = vmul.f32 %v5081, %v4922
    %v5083 = vmul.f32 %v5081, %v4923
    %s5084 = ssub.f32 1.0, %s5080
    %v5085 = vstv %s5084
    %v5086 = vmul.f32 %v5085, %v4924
    %5088 = vrot.lane.b32.xlu0 %v5086, 64
    %v5089 = vpop.permute.xlu0 %5088
    %v5091 = vadd.f32 %v5082, %v5089
    %v5092 = vadd.f32 %v5083, %v5089
    %v5093 = vmul.f32 %v5081, %v5000
    %v5094 = vmul.f32 %v5081, %v5002
    %v5095 = vmul.f32 %v5085, %v5041
    %5097 = vrot.lane.b32.xlu0 %v5095, 64
    %v5098 = vpop.permute.xlu0 %5097
    %v5100 = vadd.f32 %v5093, %v5098
    %v5101 = vadd.f32 %v5094, %v5098
    %v5102 = vld [vmem:[%s13 + $0x1] sm:$0x1]
    %v5103 = vmul.f32 %v5081, %v5102
    %v5104 = vld [vmem:[%s13 + $0x3] sm:$0x1]
    %v5105 = vmul.f32 %v5085, %v5104
    %v5106 = vadd.f32 %v5103, %v5105
    %v5109 = vrot.slane %v5059, 6
    %v5110 = vrot.slane %v5060, 6
    %v5115 = vrot.slane %v5091, 5
    %v5116 = vrot.slane %v5092, 5
    %5117 = vrot.lane.b32.xlu0 %v5115, 32
    %v5118 = vpop.permute.xlu0 %5117
    %5119 = vrot.lane.b32.xlu0 %v5116, 32
    %v5120 = vpop.permute.xlu0 %5119
    %v5121 = vsel %vm271, %v5118, %v5120
    %v5124 = vsel %vm817, %v5109, %v5118
    %v5125 = vsel %vm817, %v5110, %v5121
    %5128 = vrot.lane.b32.xlu0 %v5100, 32
    %v5129 = vpop.permute.xlu0 %5128
    %5130 = vrot.lane.b32.xlu0 %v5101, 32
    %v5131 = vpop.permute.xlu0 %5130
    %v5132 = vsel %vm271, %v5129, %v5131
    %v5134 = vsel %vm817, %v5072, %v5132
    %v5136 = vrot.slane %v5106, 7
    %v5138 = vsel %vm817, %v5077, %v5136
    %5140 = vrot.lane.b32.xlu0 %v5134, 96
    %v5141 = vpop.permute.xlu0 %5140
    %v5143 = vadd.f32 %v5124, %v5141
    %v5144 = vxor.u32 %v5143, 2147483648
    %v5145 = vmul.f32 %v5144, 1.442695
    %v5146 = vpow.pop %v5145
    %v5147 = vadd.f32 %v5146, 1.0
    %v5148 = vrcp.pop %v5147
    %v5149 = vmul.f32 1.0, %v5148
    %v5150 = vadd.f32 %v5125, %v5141
    %v5151 = vxor.u32 %v5150, 2147483648
    %v5152 = vmul.f32 %v5151, 1.442695
    %v5153 = vpow.pop %v5152
    %v5154 = vadd.f32 %v5153, 1.0
    %v5155 = vrcp.pop %v5154
    %v5156 = vmul.f32 1.0, %v5155
    %5158 = vrot.lane.b32.xlu0 %v5138, 64
    %v5159 = vpop.permute.xlu0 %5158
    %v5161 = vadd.f32 %v5134, %v5159
    %5163 = vrot.lane.b32.xlu0 %v5161, 32
    %v5164 = vpop.permute.xlu0 %5163
    %v5166 = vmul.f32 %v5149, %v5164
    %5168 = vrot.lane.b32.xlu0 %v5166, 64
    %v5169 = vpop.permute.xlu0 %5168
    %v5171 = vadd.f32 %v5125, %v5169
    %v5172 = vtanh.pop %v5171
    %v5173 = vsub.f32 1.0, %v5156
    %5175 = vrot.lane.b32.xlu0 %v5172, 96
    %v5176 = vpop.permute.xlu0 %5175
    %v5178 = vmul.f32 %v5173, %v5176
    %v5179 = vmul.f32 %v5156, %v4463
    %v5180 = vadd.f32 %v5178, %v5179
    %v5181 = vpack.c.bf16 %v5180, %v5180
    %v5182 = vld [vmem:[#allocation18] sm:$0xff]
    %v5183 = vld [vmem:[#allocation18 + $0x8] sm:$0xff]
    %v5184 = vld [vmem:[#allocation18 + $0x10] sm:$0xff]
    %v5185 = vld [vmem:[#allocation18 + $0x18] sm:$0xff]
    %v5190 = vunpack.c.l.b16 %v5182
    %v5191 = vunpack.c.h.b16 %v5182
    %v5192 = vunpack.c.l.b16 %v5183
    %v5193 = vunpack.c.h.b16 %v5183
    %v5194 = vunpack.c.l.b16 %v5184
    %v5195 = vunpack.c.h.b16 %v5184
    %v5196 = vunpack.c.l.b16 %v5185
    %v5197 = vunpack.c.h.b16 %v5185
    %v5198 = vpack.c.b16 %v5192, %v5190
    %v5199 = vpack.c.b16 %v5193, %v5191
    %v5200 = vpack.c.b16 %v5196, %v5194
    %v5201 = vpack.c.b16 %v5197, %v5195
    %v5207 = vsel %vm271, %v5181, 0
    %5209 = vmatprep.subr.bf16.mxu0 0
    %5210 = vmatpush1.bf16.msra.mxu0 0
    %5211 = vmatprep.subr.bf16.mxu0 0
    %5212 = vmatpush1.bf16.msra.mxu0 0
    %5213 = vmatprep.subr.bf16.mxu0 0
    %5214 = vmatpush1.bf16.msra.mxu0 0
    %5215 = vmatprep.subr.bf16.mxu0 0
    %5216 = vmatpush1.bf16.msra.mxu0 0
    %5217 = vmatprep.subr.bf16.mxu0 0
    %5218 = vmatpush1.bf16.msra.mxu0 0
    %5219 = vmatprep.subr.bf16.mxu0 0
    %5220 = vmatpush1.bf16.msra.mxu0 0
    %5221 = vmatprep.subr.bf16.mxu0 %v5201
    %5222 = vmatpush1.bf16.msra.mxu0 %v5200
    %5223 = vmatprep.subr.bf16.mxu0 %v5199
    %5224 = vmatpush1.bf16.msra.mxu0 %v5198
    %5225 = vmatprep.subr.bf16.mxu0 0
    %5226 = vmatpush2.bf16.msra.mxu0 0
    %5227 = vmatprep.subr.bf16.mxu0 0
    %5228 = vmatpush2.bf16.msra.mxu0 0
    %5229 = vmatprep.subr.bf16.mxu0 0
    %5230 = vmatpush2.bf16.msra.mxu0 0
    %5231 = vmatprep.subr.bf16.mxu0 0
    %5232 = vmatpush2.bf16.msra.mxu0 0
    %5233 = vmatprep.subr.bf16.mxu0 0
    %5234 = vmatpush2.bf16.msra.mxu0 0
    %5235 = vmatprep.subr.bf16.mxu0 0
    %5236 = vmatpush2.bf16.msra.mxu0 0
    %5237 = vmatprep.subr.bf16.mxu0 0
    %5238 = vmatpush2.bf16.msra.mxu0 0
    %5239 = vmatprep.subr.bf16.mxu0 0
    %5240 = vmatpush2.bf16.msra.mxu0 0
    %5241 = vmatprep.mubr.bf16.mxu0 0
    %5242 = vmatmul.mubr.bf16.gmra.mxu0 %v5207
    %v5243 = vpop.f32.mrf.mxu0
    %v5244 = vadd.f32 0.0, %v5243
    %v5245 = vpop.f32.mrf.mxu0
    %v5246 = vadd.f32 0.0, %v5245
    %v5247 = vpop.f32.mrf.mxu0
    %v5248 = vpop.f32.mrf.mxu0
    %5249 = vdwg.mxu0
    %v5250 = vpack.c.bf16 %v4656, %v4656
    %v5251 = vld [vmem:[#allocation19] sm:$0xff]
    %v5252 = vld [vmem:[#allocation19 + $0x8] sm:$0xff]
    %v5253 = vld [vmem:[#allocation19 + $0x10] sm:$0xff]
    %v5254 = vld [vmem:[#allocation19 + $0x18] sm:$0xff]
    %5256 = vrot.lane.b32.xlu0 %v5250, 96
    %v5257 = vpop.permute.xlu0 %5256
    %v5262 = vunpack.c.l.b16 %v5251
    %v5263 = vunpack.c.h.b16 %v5251
    %v5264 = vunpack.c.l.b16 %v5252
    %v5265 = vunpack.c.h.b16 %v5252
    %v5266 = vunpack.c.l.b16 %v5253
    %v5267 = vunpack.c.h.b16 %v5253
    %v5268 = vunpack.c.l.b16 %v5254
    %v5269 = vunpack.c.h.b16 %v5254
    %v5270 = vpack.c.b16 %v5264, %v5262
    %v5271 = vpack.c.b16 %v5265, %v5263
    %v5272 = vpack.c.b16 %v5268, %v5266
    %v5273 = vpack.c.b16 %v5269, %v5267
    %v5279 = vsel %vm271, %v5257, 0
    %5281 = vmatprep.subr.bf16.mxu0 0
    %5282 = vmatpush1.bf16.msra.mxu0 0
    %5283 = vmatprep.subr.bf16.mxu0 0
    %5284 = vmatpush1.bf16.msra.mxu0 0
    %5285 = vmatprep.subr.bf16.mxu0 0
    %5286 = vmatpush1.bf16.msra.mxu0 0
    %5287 = vmatprep.subr.bf16.mxu0 0
    %5288 = vmatpush1.bf16.msra.mxu0 0
    %5289 = vmatprep.subr.bf16.mxu0 0
    %5290 = vmatpush1.bf16.msra.mxu0 0
    %5291 = vmatprep.subr.bf16.mxu0 0
    %5292 = vmatpush1.bf16.msra.mxu0 0
    %5293 = vmatprep.subr.bf16.mxu0 %v5273
    %5294 = vmatpush1.bf16.msra.mxu0 %v5272
    %5295 = vmatprep.subr.bf16.mxu0 %v5271
    %5296 = vmatpush1.bf16.msra.mxu0 %v5270
    %5297 = vmatprep.subr.bf16.mxu0 0
    %5298 = vmatpush2.bf16.msra.mxu0 0
    %5299 = vmatprep.subr.bf16.mxu0 0
    %5300 = vmatpush2.bf16.msra.mxu0 0
    %5301 = vmatprep.subr.bf16.mxu0 0
    %5302 = vmatpush2.bf16.msra.mxu0 0
    %5303 = vmatprep.subr.bf16.mxu0 0
    %5304 = vmatpush2.bf16.msra.mxu0 0
    %5305 = vmatprep.subr.bf16.mxu0 0
    %5306 = vmatpush2.bf16.msra.mxu0 0
    %5307 = vmatprep.subr.bf16.mxu0 0
    %5308 = vmatpush2.bf16.msra.mxu0 0
    %5309 = vmatprep.subr.bf16.mxu0 0
    %5310 = vmatpush2.bf16.msra.mxu0 0
    %5311 = vmatprep.subr.bf16.mxu0 0
    %5312 = vmatpush2.bf16.msra.mxu0 0
    %5313 = vmatprep.mubr.bf16.mxu0 0
    %5314 = vmatmul.mubr.bf16.gmra.mxu0 %v5279
    %v5315 = vpop.f32.mrf.mxu0
    %v5316 = vadd.f32 0.0, %v5315
    %v5317 = vpop.f32.mrf.mxu0
    %v5318 = vadd.f32 0.0, %v5317
    %v5319 = vpop.f32.mrf.mxu0
    %v5320 = vpop.f32.mrf.mxu0
    %5321 = vdwg.mxu0
    %5324 = vrot.lane.b32.xlu0 %v5244, 32
    %v5325 = vpop.permute.xlu0 %5324
    %5326 = vrot.lane.b32.xlu0 %v5246, 32
    %v5327 = vpop.permute.xlu0 %5326
    %v5328 = vsel %vm271, %v5325, %v5327
    %v5330 = vsel %vm817, %v5244, %v5328
    %v5331 = vld [vmem:[%s14] sm:$0x3]
    %v5332 = vadd.f32 %v5330, %v5331
    %5335 = vrot.lane.b32.xlu0 %v5316, 32
    %v5336 = vpop.permute.xlu0 %5335
    %5337 = vrot.lane.b32.xlu0 %v5318, 32
    %v5338 = vpop.permute.xlu0 %5337
    %v5339 = vsel %vm271, %v5336, %v5338
    %v5341 = vsel %vm817, %v5316, %v5339
    %v5342 = vadd.f32 %v5332, %v5341
    %v5343 = vxor.u32 %v5342, 2147483648
    %v5344 = vmul.f32 %v5343, 1.442695
    %v5345 = vpow.pop %v5344
    %v5346 = vadd.f32 %v5345, 1.0
    %v5347 = vrcp.pop %v5346
    %v5348 = vmul.f32 1.0, %v5347
    %v5349 = vld [vmem:[%s15] sm:$0x3]
    %5351 = vrot.lane.b32.xlu0 %v5349, 64
    %v5352 = vpop.permute.xlu0 %5351
    %v5354 = vadd.f32 %v5341, %v5352
    %5356 = vrot.lane.b32.xlu0 %v5354, 64
    %v5357 = vpop.permute.xlu0 %5356
    %v5359 = vmul.f32 %v5348, %v5357
    %5361 = vrot.lane.b32.xlu0 %v5359, 64
    %v5362 = vpop.permute.xlu0 %5361
    %v5364 = vadd.f32 %v5332, %v5362
    %v5365 = vtanh.pop %v5364
    %v5366 = vsub.f32 1.0, %v5348
    %5368 = vrot.lane.b32.xlu0 %v5365, 96
    %v5369 = vpop.permute.xlu0 %5368
    %v5371 = vmul.f32 %v5366, %v5369
    %v5372 = vmul.f32 %v5348, %v4656
    %v5373 = vadd.f32 %v5371, %v5372
    %v5374 = vmul.f32 %v5049, %v5373
    %v5375 = vadd.f32 %v5374, 0.0
    %v5376 = vmul.f32 %v5081, %v5373
    %v5378 = vrot.slane %v5376, 1
    %v5380 = vadd.f32 %v5375, %v5378
    %5382 = vrot.lane.b32.xlu0 %v5380, 96
    %v5383 = vpop.permute.xlu0 %5382
    %5385 = vst.msk [vmem:[#allocation21 + $0x6] sm:$0x1] %vm469, %v5383
    %s5386 = sld [smem:[#allocation2 + $0x7]]
    %v5387 = vld [vmem:[#allocation13] sm:$0xf]
    %v5388 = vld [vmem:[#allocation13 + $0x4] sm:$0xf]
    %v5389 = vld [vmem:[#allocation13 + $0x8] sm:$0xf]
    %v5390 = vld [vmem:[#allocation13 + $0xc] sm:$0xf]
    %v5395 = vunpack.c.l.b16 %v5387
    %v5396 = vunpack.c.l.b16 %v5388
    %v5397 = vunpack.c.l.b16 %v5389
    %v5398 = vunpack.c.l.b16 %v5390
    %v5399 = vpack.c.b16 %v5396, %v5395
    %v5400 = vpack.c.b16 %v5398, %v5397
    %5403 = vmatprep.subr.bf16.mxu0 0
    %5404 = vmatpush1.bf16.msra.mxu0 0
    %5405 = vmatprep.subr.bf16.mxu0 0
    %5406 = vmatpush1.bf16.msra.mxu0 0
    %5407 = vmatprep.subr.bf16.mxu0 0
    %5408 = vmatpush1.bf16.msra.mxu0 0
    %5409 = vmatprep.subr.bf16.mxu0 0
    %5410 = vmatpush1.bf16.msra.mxu0 0
    %5411 = vmatprep.subr.bf16.mxu0 0
    %5412 = vmatpush1.bf16.msra.mxu0 0
    %5413 = vmatprep.subr.bf16.mxu0 0
    %5414 = vmatpush1.bf16.msra.mxu0 0
    %5415 = vmatprep.subr.bf16.mxu0 0
    %5416 = vmatpush1.bf16.msra.mxu0 %v5400
    %5417 = vmatprep.subr.bf16.mxu0 0
    %5418 = vmatpush1.bf16.msra.mxu0 %v5399
    %5419 = vmatprep.subr.bf16.mxu0 0
    %5420 = vmatpush2.bf16.msra.mxu0 0
    %5421 = vmatprep.subr.bf16.mxu0 0
    %5422 = vmatpush2.bf16.msra.mxu0 0
    %5423 = vmatprep.subr.bf16.mxu0 0
    %5424 = vmatpush2.bf16.msra.mxu0 0
    %5425 = vmatprep.subr.bf16.mxu0 0
    %5426 = vmatpush2.bf16.msra.mxu0 0
    %5427 = vmatprep.subr.bf16.mxu0 0
    %5428 = vmatpush2.bf16.msra.mxu0 0
    %5429 = vmatprep.subr.bf16.mxu0 0
    %5430 = vmatpush2.bf16.msra.mxu0 0
    %5431 = vmatprep.subr.bf16.mxu0 0
    %5432 = vmatpush2.bf16.msra.mxu0 0
    %5433 = vmatprep.subr.bf16.mxu0 0
    %5434 = vmatpush2.bf16.msra.mxu0 0
    %5435 = vmatprep.mubr.bf16.mxu0 0
    %5436 = vmatmul.mubr.bf16.gmra.mxu0 %v4820
    %v5437 = vpop.f32.mrf.mxu0
    %v5438 = vadd.f32 0.0, %v5437
    %v5439 = vpop.f32.mrf.mxu0
    %v5440 = vpop.f32.mrf.mxu0
    %v5441 = vpop.f32.mrf.mxu0
    %5442 = vdwg.mxu0
    %v5444 = vrot.slane %v5438, 1
    %v5446 = vadd.f32 %v310, %v5444
    %v5447 = vxor.u32 %v5446, 2147483648
    %v5448 = vmul.f32 %v5447, 1.442695
    %v5449 = vpow.pop %v5448
    %v5450 = vadd.f32 %v5449, 1.0
    %v5451 = vrcp.pop %v5450
    %v5452 = vmul.f32 1.0, %v5451
    %v5453 = vld [vmem:[%s12] sm:$0x1]
    %v5455 = vlaneseq
    %v5456 = vshrl.u32 %v5455, 7
    %v5457 = vsub.s32 0, %v5456
    %v5458 = vrot.slane %v5453, %v5457
    %5459 = vrot.lane.b32.xlu0 %v5458, 64
    %v5460 = vpop.permute.xlu0 %5459
    %v5462 = vadd.f32 %v5438, %v5460
    %v5464 = vrot.slane %v5462, 1
    %5465 = vrot.lane.b32.xlu0 %v5464, 64
    %v5466 = vpop.permute.xlu0 %5465
    %v5468 = vmul.f32 %v5452, %v5466
    %5470 = vrot.lane.b32.xlu0 %v5468, 64
    %v5471 = vpop.permute.xlu0 %5470
    %v5473 = vadd.f32 %v310, %v5471
    %v5474 = vtanh.pop %v5473
    %v5475 = vsub.f32 1.0, %v5452
    %5477 = vrot.lane.b32.xlu0 %v5474, 96
    %v5478 = vpop.permute.xlu0 %5477
    %v5480 = vmul.f32 %v5475, %v5478
    %v5481 = vrot.slane %v4767, 7
    %v5483 = vmul.f32 %v5452, %v5481
    %v5484 = vadd.f32 %v5480, %v5483
    %5486 = vrot.lane.b32.xlu0 %v5484, 96
    %v5487 = vpop.permute.xlu0 %5486
    %vm5489 = vcmask 261127
    %5490 = vst.msk [vmem:[#allocation22] sm:$0x80] %vm5489, %v5487
    %v5491 = vpack.c.bf16 %v5484, %v5484
    %v5492 = vld [vmem:[#allocation15] sm:$0xff]
    %v5493 = vld [vmem:[#allocation15 + $0x8] sm:$0xf]
    %v5494 = vld [vmem:[#allocation15 + $0xc] sm:$0xff]
    %v5495 = vld [vmem:[#allocation15 + $0x14] sm:$0xf]
    %v5496 = vld [vmem:[#allocation15 + $0x18] sm:$0xff]
    %v5497 = vld [vmem:[#allocation15 + $0x20] sm:$0xf]
    %v5498 = vld [vmem:[#allocation15 + $0x24] sm:$0xff]
    %v5499 = vld [vmem:[#allocation15 + $0x2c] sm:$0xf]
    %v5501 = vshrl.u32 %v5491, 16
    %v5503 = vrot.slane %v5501, 3
    %5504 = vrot.lane.b32.xlu0 %v5503, 96
    %v5505 = vpop.permute.xlu0 %5504
    %v5514 = vunpack.c.l.b16 %v5492
    %v5515 = vunpack.c.h.b16 %v5492
    %v5516 = vunpack.c.l.b16 %v5493
    %v5517 = vunpack.c.l.b16 %v5494
    %v5518 = vunpack.c.h.b16 %v5494
    %v5519 = vunpack.c.l.b16 %v5495
    %v5520 = vunpack.c.l.b16 %v5496
    %v5521 = vunpack.c.h.b16 %v5496
    %v5522 = vunpack.c.l.b16 %v5497
    %v5523 = vunpack.c.l.b16 %v5498
    %v5524 = vunpack.c.h.b16 %v5498
    %v5525 = vunpack.c.l.b16 %v5499
    %v5526 = vpack.c.b16 %v5517, %v5514
    %v5527 = vpack.c.b16 %v5518, %v5515
    %v5528 = vpack.c.b16 %v5519, %v5516
    %v5529 = vpack.c.b16 %v5523, %v5520
    %v5530 = vpack.c.b16 %v5524, %v5521
    %v5531 = vpack.c.b16 %v5525, %v5522
    %v5539 = vsel %vm271, %v5505, 0
    %5541 = vmatprep.subr.bf16.mxu0 0
    %5542 = vmatpush1.bf16.msra.mxu0 0
    %5543 = vmatprep.subr.bf16.mxu0 0
    %5544 = vmatpush1.bf16.msra.mxu0 0
    %5545 = vmatprep.subr.bf16.mxu0 0
    %5546 = vmatpush1.bf16.msra.mxu0 0
    %5547 = vmatprep.subr.bf16.mxu0 0
    %5548 = vmatpush1.bf16.msra.mxu0 0
    %5549 = vmatprep.subr.bf16.mxu0 0
    %5550 = vmatpush1.bf16.msra.mxu0 0
    %5551 = vmatprep.subr.bf16.mxu0 0
    %5552 = vmatpush1.bf16.msra.mxu0 0
    %5553 = vmatprep.subr.bf16.mxu0 %v5530
    %5554 = vmatpush1.bf16.msra.mxu0 %v5529
    %5555 = vmatprep.subr.bf16.mxu0 %v5527
    %5556 = vmatpush1.bf16.msra.mxu0 %v5526
    %5557 = vmatprep.subr.bf16.mxu0 0
    %5558 = vmatpush2.bf16.msra.mxu0 0
    %5559 = vmatprep.subr.bf16.mxu0 0
    %5560 = vmatpush2.bf16.msra.mxu0 0
    %5561 = vmatprep.subr.bf16.mxu0 0
    %5562 = vmatpush2.bf16.msra.mxu0 0
    %5563 = vmatprep.subr.bf16.mxu0 0
    %5564 = vmatpush2.bf16.msra.mxu0 0
    %5565 = vmatprep.subr.bf16.mxu0 0
    %5566 = vmatpush2.bf16.msra.mxu0 0
    %5567 = vmatprep.subr.bf16.mxu0 0
    %5568 = vmatpush2.bf16.msra.mxu0 0
    %5569 = vmatprep.subr.bf16.mxu0 0
    %5570 = vmatpush2.bf16.msra.mxu0 0
    %5571 = vmatprep.subr.bf16.mxu0 0
    %5572 = vmatpush2.bf16.msra.mxu0 0
    %5573 = vmatprep.mubr.bf16.mxu0 0
    %5574 = vmatmul.mubr.bf16.gmra.mxu0 %v5539
    %v5575 = vpop.f32.mrf.mxu0
    %v5576 = vadd.f32 0.0, %v5575
    %v5577 = vpop.f32.mrf.mxu0
    %v5578 = vadd.f32 0.0, %v5577
    %v5579 = vpop.f32.mrf.mxu0
    %v5580 = vpop.f32.mrf.mxu0
    %5581 = vdwg.mxu0
    %5582 = vmatprep.subr.bf16.mxu0 0
    %5583 = vmatpush1.bf16.msra.mxu0 0
    %5584 = vmatprep.subr.bf16.mxu0 0
    %5585 = vmatpush1.bf16.msra.mxu0 0
    %5586 = vmatprep.subr.bf16.mxu0 0
    %5587 = vmatpush1.bf16.msra.mxu0 0
    %5588 = vmatprep.subr.bf16.mxu0 0
    %5589 = vmatpush1.bf16.msra.mxu0 0
    %5590 = vmatprep.subr.bf16.mxu0 0
    %5591 = vmatpush1.bf16.msra.mxu0 0
    %5592 = vmatprep.subr.bf16.mxu0 0
    %5593 = vmatpush1.bf16.msra.mxu0 0
    %5594 = vmatprep.subr.bf16.mxu0 0
    %5595 = vmatpush1.bf16.msra.mxu0 %v5531
    %5596 = vmatprep.subr.bf16.mxu0 0
    %5597 = vmatpush1.bf16.msra.mxu0 %v5528
    %5598 = vmatprep.subr.bf16.mxu0 0
    %5599 = vmatpush2.bf16.msra.mxu0 0
    %5600 = vmatprep.subr.bf16.mxu0 0
    %5601 = vmatpush2.bf16.msra.mxu0 0
    %5602 = vmatprep.subr.bf16.mxu0 0
    %5603 = vmatpush2.bf16.msra.mxu0 0
    %5604 = vmatprep.subr.bf16.mxu0 0
    %5605 = vmatpush2.bf16.msra.mxu0 0
    %5606 = vmatprep.subr.bf16.mxu0 0
    %5607 = vmatpush2.bf16.msra.mxu0 0
    %5608 = vmatprep.subr.bf16.mxu0 0
    %5609 = vmatpush2.bf16.msra.mxu0 0
    %5610 = vmatprep.subr.bf16.mxu0 0
    %5611 = vmatpush2.bf16.msra.mxu0 0
    %5612 = vmatprep.subr.bf16.mxu0 0
    %5613 = vmatpush2.bf16.msra.mxu0 0
    %5614 = vmatprep.mubr.bf16.mxu0 0
    %5615 = vmatmul.mubr.bf16.gmra.mxu0 %v5539
    %v5616 = vpop.f32.mrf.mxu0
    %v5617 = vadd.f32 0.0, %v5616
    %v5618 = vpop.f32.mrf.mxu0
    %v5619 = vpop.f32.mrf.mxu0
    %v5620 = vpop.f32.mrf.mxu0
    %5621 = vdwg.mxu0
    %v5625 = vrot.slane %v5576, 1
    %v5626 = vrot.slane %v5578, 1
    %v5627 = vrot.slane %v5617, 1
    %5628 = vrot.lane.b32.xlu0 %v5625, 96
    %v5629 = vpop.permute.xlu0 %5628
    %5630 = vrot.lane.b32.xlu0 %v5626, 96
    %v5631 = vpop.permute.xlu0 %5630
    %5632 = vrot.lane.b32.xlu0 %v5627, 96
    %v5633 = vpop.permute.xlu0 %5632
    %v5634 = vsel %vm608, %v5629, %v5631
    %v5635 = vsel %vm608, %v5631, %v5633
    %v5640 = vadd.f32 %v310, %v5629
    %v5641 = vadd.f32 %v312, %v5634
    %v5642 = vadd.f32 %v351, %v5635
    %v5643 = vadd.f32 %v353, %v5633
    %v5644 = vld [vmem:[#allocation16] sm:$0xff]
    %v5645 = vld [vmem:[#allocation16 + $0x8] sm:$0xf]
    %v5646 = vld [vmem:[#allocation16 + $0xc] sm:$0xff]
    %v5647 = vld [vmem:[#allocation16 + $0x14] sm:$0xf]
    %v5648 = vld [vmem:[#allocation16 + $0x18] sm:$0xff]
    %v5649 = vld [vmem:[#allocation16 + $0x20] sm:$0xf]
    %v5650 = vld [vmem:[#allocation16 + $0x24] sm:$0xff]
    %v5651 = vld [vmem:[#allocation16 + $0x2c] sm:$0xf]
    %v5660 = vunpack.c.l.b16 %v5644
    %v5661 = vunpack.c.h.b16 %v5644
    %v5662 = vunpack.c.l.b16 %v5645
    %v5663 = vunpack.c.l.b16 %v5646
    %v5664 = vunpack.c.h.b16 %v5646
    %v5665 = vunpack.c.l.b16 %v5647
    %v5666 = vunpack.c.l.b16 %v5648
    %v5667 = vunpack.c.h.b16 %v5648
    %v5668 = vunpack.c.l.b16 %v5649
    %v5669 = vunpack.c.l.b16 %v5650
    %v5670 = vunpack.c.h.b16 %v5650
    %v5671 = vunpack.c.l.b16 %v5651
    %v5672 = vpack.c.b16 %v5663, %v5660
    %v5673 = vpack.c.b16 %v5664, %v5661
    %v5674 = vpack.c.b16 %v5665, %v5662
    %v5675 = vpack.c.b16 %v5669, %v5666
    %v5676 = vpack.c.b16 %v5670, %v5667
    %v5677 = vpack.c.b16 %v5671, %v5668
    %5684 = vmatprep.subr.bf16.mxu0 0
    %5685 = vmatpush1.bf16.msra.mxu0 0
    %5686 = vmatprep.subr.bf16.mxu0 0
    %5687 = vmatpush1.bf16.msra.mxu0 0
    %5688 = vmatprep.subr.bf16.mxu0 0
    %5689 = vmatpush1.bf16.msra.mxu0 0
    %5690 = vmatprep.subr.bf16.mxu0 0
    %5691 = vmatpush1.bf16.msra.mxu0 0
    %5692 = vmatprep.subr.bf16.mxu0 0
    %5693 = vmatpush1.bf16.msra.mxu0 0
    %5694 = vmatprep.subr.bf16.mxu0 0
    %5695 = vmatpush1.bf16.msra.mxu0 0
    %5696 = vmatprep.subr.bf16.mxu0 %v5676
    %5697 = vmatpush1.bf16.msra.mxu0 %v5675
    %5698 = vmatprep.subr.bf16.mxu0 %v5673
    %5699 = vmatpush1.bf16.msra.mxu0 %v5672
    %5700 = vmatprep.subr.bf16.mxu0 0
    %5701 = vmatpush2.bf16.msra.mxu0 0
    %5702 = vmatprep.subr.bf16.mxu0 0
    %5703 = vmatpush2.bf16.msra.mxu0 0
    %5704 = vmatprep.subr.bf16.mxu0 0
    %5705 = vmatpush2.bf16.msra.mxu0 0
    %5706 = vmatprep.subr.bf16.mxu0 0
    %5707 = vmatpush2.bf16.msra.mxu0 0
    %5708 = vmatprep.subr.bf16.mxu0 0
    %5709 = vmatpush2.bf16.msra.mxu0 0
    %5710 = vmatprep.subr.bf16.mxu0 0
    %5711 = vmatpush2.bf16.msra.mxu0 0
    %5712 = vmatprep.subr.bf16.mxu0 0
    %5713 = vmatpush2.bf16.msra.mxu0 0
    %5714 = vmatprep.subr.bf16.mxu0 0
    %5715 = vmatpush2.bf16.msra.mxu0 0
    %5716 = vmatprep.mubr.bf16.mxu0 0
    %5717 = vmatmul.mubr.bf16.gmra.mxu0 %v5207
    %v5718 = vpop.f32.mrf.mxu0
    %v5719 = vadd.f32 0.0, %v5718
    %v5720 = vpop.f32.mrf.mxu0
    %v5721 = vadd.f32 0.0, %v5720
    %v5722 = vpop.f32.mrf.mxu0
    %v5723 = vpop.f32.mrf.mxu0
    %5724 = vdwg.mxu0
    %5725 = vmatprep.subr.bf16.mxu0 0
    %5726 = vmatpush1.bf16.msra.mxu0 0
    %5727 = vmatprep.subr.bf16.mxu0 0
    %5728 = vmatpush1.bf16.msra.mxu0 0
    %5729 = vmatprep.subr.bf16.mxu0 0
    %5730 = vmatpush1.bf16.msra.mxu0 0
    %5731 = vmatprep.subr.bf16.mxu0 0
    %5732 = vmatpush1.bf16.msra.mxu0 0
    %5733 = vmatprep.subr.bf16.mxu0 0
    %5734 = vmatpush1.bf16.msra.mxu0 0
    %5735 = vmatprep.subr.bf16.mxu0 0
    %5736 = vmatpush1.bf16.msra.mxu0 0
    %5737 = vmatprep.subr.bf16.mxu0 0
    %5738 = vmatpush1.bf16.msra.mxu0 %v5677
    %5739 = vmatprep.subr.bf16.mxu0 0
    %5740 = vmatpush1.bf16.msra.mxu0 %v5674
    %5741 = vmatprep.subr.bf16.mxu0 0
    %5742 = vmatpush2.bf16.msra.mxu0 0
    %5743 = vmatprep.subr.bf16.mxu0 0
    %5744 = vmatpush2.bf16.msra.mxu0 0
    %5745 = vmatprep.subr.bf16.mxu0 0
    %5746 = vmatpush2.bf16.msra.mxu0 0
    %5747 = vmatprep.subr.bf16.mxu0 0
    %5748 = vmatpush2.bf16.msra.mxu0 0
    %5749 = vmatprep.subr.bf16.mxu0 0
    %5750 = vmatpush2.bf16.msra.mxu0 0
    %5751 = vmatprep.subr.bf16.mxu0 0
    %5752 = vmatpush2.bf16.msra.mxu0 0
    %5753 = vmatprep.subr.bf16.mxu0 0
    %5754 = vmatpush2.bf16.msra.mxu0 0
    %5755 = vmatprep.subr.bf16.mxu0 0
    %5756 = vmatpush2.bf16.msra.mxu0 0
    %5757 = vmatprep.mubr.bf16.mxu0 0
    %5758 = vmatmul.mubr.bf16.gmra.mxu0 %v5207
    %v5759 = vpop.f32.mrf.mxu0
    %v5760 = vadd.f32 0.0, %v5759
    %v5761 = vpop.f32.mrf.mxu0
    %v5762 = vpop.f32.mrf.mxu0
    %v5763 = vpop.f32.mrf.mxu0
    %5764 = vdwg.mxu0
    %p5765 = scmp.eq.s32.totalorder %s5386, 0
    %s5766 = scalar_select %p5765, 1, 0
    %s5767 = scvt.s32.f32 %s5766
    %v5768 = vstv %s5767
    %v5769 = vmul.f32 %v5768, %v5640
    %v5770 = vmul.f32 %v5768, %v5641
    %s5771 = ssub.f32 1.0, %s5767
    %v5772 = vstv %s5771
    %v5773 = vmul.f32 %v5772, %v5642
    %5775 = vrot.lane.b32.xlu0 %v5773, 64
    %v5776 = vpop.permute.xlu0 %5775
    %v5778 = vadd.f32 %v5769, %v5776
    %v5779 = vadd.f32 %v5770, %v5776
    %v5780 = vmul.f32 %v5768, %v5719
    %v5781 = vmul.f32 %v5772, %v5721
    %v5782 = vmul.f32 %v5772, %v5760
    %5785 = vrot.lane.b32.xlu0 %v5781, 64
    %v5786 = vpop.permute.xlu0 %5785
    %5787 = vrot.lane.b32.xlu0 %v5782, 64
    %v5788 = vpop.permute.xlu0 %5787
    %v5789 = vsel %vm768, %v5786, %v5788
    %v5791 = vadd.f32 %v5780, %v5789
    %v5792 = vld [vmem:[%s13] sm:$0x1]
    %v5793 = vmul.f32 %v5768, %v5792
    %v5794 = vld [vmem:[%s13 + $0x2] sm:$0x1]
    %v5795 = vmul.f32 %v5772, %v5794
    %v5796 = vadd.f32 %v5793, %v5795
    %p5797 = scmp.eq.s32.totalorder %s5386, 1
    %s5798 = scalar_select %p5797, 1, 0
    %s5799 = scvt.s32.f32 %s5798
    %v5800 = vstv %s5799
    %v5801 = vmul.f32 %v5800, %v5641
    %v5802 = vmul.f32 %v5800, %v5642
    %s5803 = ssub.f32 1.0, %s5799
    %v5804 = vstv %s5803
    %v5805 = vmul.f32 %v5804, %v5643
    %5807 = vrot.lane.b32.xlu0 %v5805, 64
    %v5808 = vpop.permute.xlu0 %5807
    %v5810 = vadd.f32 %v5801, %v5808
    %v5811 = vadd.f32 %v5802, %v5808
    %v5812 = vmul.f32 %v5800, %v5719
    %v5813 = vmul.f32 %v5800, %v5721
    %v5814 = vmul.f32 %v5804, %v5760
    %5816 = vrot.lane.b32.xlu0 %v5814, 64
    %v5817 = vpop.permute.xlu0 %5816
    %v5819 = vadd.f32 %v5812, %v5817
    %v5820 = vadd.f32 %v5813, %v5817
    %v5821 = vld [vmem:[%s13 + $0x1] sm:$0x1]
    %v5822 = vmul.f32 %v5800, %v5821
    %v5823 = vld [vmem:[%s13 + $0x3] sm:$0x1]
    %v5824 = vmul.f32 %v5804, %v5823
    %v5825 = vadd.f32 %v5822, %v5824
    %v5828 = vrot.slane %v5778, 7
    %v5829 = vrot.slane %v5779, 7
    %v5834 = vrot.slane %v5810, 6
    %v5835 = vrot.slane %v5811, 6
    %5836 = vrot.lane.b32.xlu0 %v5834, 32
    %v5837 = vpop.permute.xlu0 %5836
    %5838 = vrot.lane.b32.xlu0 %v5835, 32
    %v5839 = vpop.permute.xlu0 %5838
    %v5840 = vsel %vm271, %v5837, %v5839
    %v5843 = vsel %vm817, %v5828, %v5837
    %v5844 = vsel %vm817, %v5829, %v5840
    %5847 = vrot.lane.b32.xlu0 %v5819, 32
    %v5848 = vpop.permute.xlu0 %5847
    %5849 = vrot.lane.b32.xlu0 %v5820, 32
    %v5850 = vpop.permute.xlu0 %5849
    %v5851 = vsel %vm271, %v5848, %v5850
    %v5853 = vsel %vm817, %v5791, %v5851
    %v5855 = vrot.slane %v5825, 7
    %v5857 = vsel %vm817, %v5796, %v5855
    %5859 = vrot.lane.b32.xlu0 %v5853, 96
    %v5860 = vpop.permute.xlu0 %5859
    %v5862 = vadd.f32 %v5843, %v5860
    %v5863 = vxor.u32 %v5862, 2147483648
    %v5864 = vmul.f32 %v5863, 1.442695
    %v5865 = vpow.pop %v5864
    %v5866 = vadd.f32 %v5865, 1.0
    %v5867 = vrcp.pop %v5866
    %v5868 = vmul.f32 1.0, %v5867
    %v5869 = vadd.f32 %v5844, %v5860
    %v5870 = vxor.u32 %v5869, 2147483648
    %v5871 = vmul.f32 %v5870, 1.442695
    %v5872 = vpow.pop %v5871
    %v5873 = vadd.f32 %v5872, 1.0
    %v5874 = vrcp.pop %v5873
    %v5875 = vmul.f32 1.0, %v5874
    %5877 = vrot.lane.b32.xlu0 %v5857, 64
    %v5878 = vpop.permute.xlu0 %5877
    %v5880 = vadd.f32 %v5853, %v5878
    %5882 = vrot.lane.b32.xlu0 %v5880, 32
    %v5883 = vpop.permute.xlu0 %5882
    %v5885 = vmul.f32 %v5868, %v5883
    %5887 = vrot.lane.b32.xlu0 %v5885, 64
    %v5888 = vpop.permute.xlu0 %5887
    %v5890 = vadd.f32 %v5844, %v5888
    %v5891 = vtanh.pop %v5890
    %v5892 = vsub.f32 1.0, %v5875
    %5894 = vrot.lane.b32.xlu0 %v5891, 96
    %v5895 = vpop.permute.xlu0 %5894
    %v5897 = vmul.f32 %v5892, %v5895
    %v5898 = vmul.f32 %v5875, %v5180
    %v5899 = vadd.f32 %v5897, %v5898
    %v5900 = vpack.c.bf16 %v5899, %v5899
    %v5901 = vld [vmem:[#allocation18] sm:$0xff]
    %v5902 = vld [vmem:[#allocation18 + $0x8] sm:$0xff]
    %v5903 = vld [vmem:[#allocation18 + $0x10] sm:$0xff]
    %v5904 = vld [vmem:[#allocation18 + $0x18] sm:$0xff]
    %v5909 = vunpack.c.l.b16 %v5901
    %v5910 = vunpack.c.h.b16 %v5901
    %v5911 = vunpack.c.l.b16 %v5902
    %v5912 = vunpack.c.h.b16 %v5902
    %v5913 = vunpack.c.l.b16 %v5903
    %v5914 = vunpack.c.h.b16 %v5903
    %v5915 = vunpack.c.l.b16 %v5904
    %v5916 = vunpack.c.h.b16 %v5904
    %v5917 = vpack.c.b16 %v5911, %v5909
    %v5918 = vpack.c.b16 %v5912, %v5910
    %v5919 = vpack.c.b16 %v5915, %v5913
    %v5920 = vpack.c.b16 %v5916, %v5914
    %v5926 = vsel %vm271, %v5900, 0
    %5928 = vmatprep.subr.bf16.mxu0 0
    %5929 = vmatpush1.bf16.msra.mxu0 0
    %5930 = vmatprep.subr.bf16.mxu0 0
    %5931 = vmatpush1.bf16.msra.mxu0 0
    %5932 = vmatprep.subr.bf16.mxu0 0
    %5933 = vmatpush1.bf16.msra.mxu0 0
    %5934 = vmatprep.subr.bf16.mxu0 0
    %5935 = vmatpush1.bf16.msra.mxu0 0
    %5936 = vmatprep.subr.bf16.mxu0 0
    %5937 = vmatpush1.bf16.msra.mxu0 0
    %5938 = vmatprep.subr.bf16.mxu0 0
    %5939 = vmatpush1.bf16.msra.mxu0 0
    %5940 = vmatprep.subr.bf16.mxu0 %v5920
    %5941 = vmatpush1.bf16.msra.mxu0 %v5919
    %5942 = vmatprep.subr.bf16.mxu0 %v5918
    %5943 = vmatpush1.bf16.msra.mxu0 %v5917
    %5944 = vmatprep.subr.bf16.mxu0 0
    %5945 = vmatpush2.bf16.msra.mxu0 0
    %5946 = vmatprep.subr.bf16.mxu0 0
    %5947 = vmatpush2.bf16.msra.mxu0 0
    %5948 = vmatprep.subr.bf16.mxu0 0
    %5949 = vmatpush2.bf16.msra.mxu0 0
    %5950 = vmatprep.subr.bf16.mxu0 0
    %5951 = vmatpush2.bf16.msra.mxu0 0
    %5952 = vmatprep.subr.bf16.mxu0 0
    %5953 = vmatpush2.bf16.msra.mxu0 0
    %5954 = vmatprep.subr.bf16.mxu0 0
    %5955 = vmatpush2.bf16.msra.mxu0 0
    %5956 = vmatprep.subr.bf16.mxu0 0
    %5957 = vmatpush2.bf16.msra.mxu0 0
    %5958 = vmatprep.subr.bf16.mxu0 0
    %5959 = vmatpush2.bf16.msra.mxu0 0
    %5960 = vmatprep.mubr.bf16.mxu0 0
    %5961 = vmatmul.mubr.bf16.gmra.mxu0 %v5926
    %v5962 = vpop.f32.mrf.mxu0
    %v5963 = vadd.f32 0.0, %v5962
    %v5964 = vpop.f32.mrf.mxu0
    %v5965 = vadd.f32 0.0, %v5964
    %v5966 = vpop.f32.mrf.mxu0
    %v5967 = vpop.f32.mrf.mxu0
    %5968 = vdwg.mxu0
    %v5969 = vpack.c.bf16 %v5373, %v5373
    %v5970 = vld [vmem:[#allocation19] sm:$0xff]
    %v5971 = vld [vmem:[#allocation19 + $0x8] sm:$0xff]
    %v5972 = vld [vmem:[#allocation19 + $0x10] sm:$0xff]
    %v5973 = vld [vmem:[#allocation19 + $0x18] sm:$0xff]
    %5975 = vrot.lane.b32.xlu0 %v5969, 96
    %v5976 = vpop.permute.xlu0 %5975
    %v5981 = vunpack.c.l.b16 %v5970
    %v5982 = vunpack.c.h.b16 %v5970
    %v5983 = vunpack.c.l.b16 %v5971
    %v5984 = vunpack.c.h.b16 %v5971
    %v5985 = vunpack.c.l.b16 %v5972
    %v5986 = vunpack.c.h.b16 %v5972
    %v5987 = vunpack.c.l.b16 %v5973
    %v5988 = vunpack.c.h.b16 %v5973
    %v5989 = vpack.c.b16 %v5983, %v5981
    %v5990 = vpack.c.b16 %v5984, %v5982
    %v5991 = vpack.c.b16 %v5987, %v5985
    %v5992 = vpack.c.b16 %v5988, %v5986
    %v5998 = vsel %vm271, %v5976, 0
    %6000 = vmatprep.subr.bf16.mxu0 0
    %6001 = vmatpush1.bf16.msra.mxu0 0
    %6002 = vmatprep.subr.bf16.mxu0 0
    %6003 = vmatpush1.bf16.msra.mxu0 0
    %6004 = vmatprep.subr.bf16.mxu0 0
    %6005 = vmatpush1.bf16.msra.mxu0 0
    %6006 = vmatprep.subr.bf16.mxu0 0
    %6007 = vmatpush1.bf16.msra.mxu0 0
    %6008 = vmatprep.subr.bf16.mxu0 0
    %6009 = vmatpush1.bf16.msra.mxu0 0
    %6010 = vmatprep.subr.bf16.mxu0 0
    %6011 = vmatpush1.bf16.msra.mxu0 0
    %6012 = vmatprep.subr.bf16.mxu0 %v5992
    %6013 = vmatpush1.bf16.msra.mxu0 %v5991
    %6014 = vmatprep.subr.bf16.mxu0 %v5990
    %6015 = vmatpush1.bf16.msra.mxu0 %v5989
    %6016 = vmatprep.subr.bf16.mxu0 0
    %6017 = vmatpush2.bf16.msra.mxu0 0
    %6018 = vmatprep.subr.bf16.mxu0 0
    %6019 = vmatpush2.bf16.msra.mxu0 0
    %6020 = vmatprep.subr.bf16.mxu0 0
    %6021 = vmatpush2.bf16.msra.mxu0 0
    %6022 = vmatprep.subr.bf16.mxu0 0
    %6023 = vmatpush2.bf16.msra.mxu0 0
    %6024 = vmatprep.subr.bf16.mxu0 0
    %6025 = vmatpush2.bf16.msra.mxu0 0
    %6026 = vmatprep.subr.bf16.mxu0 0
    %6027 = vmatpush2.bf16.msra.mxu0 0
    %6028 = vmatprep.subr.bf16.mxu0 0
    %6029 = vmatpush2.bf16.msra.mxu0 0
    %6030 = vmatprep.subr.bf16.mxu0 0
    %6031 = vmatpush2.bf16.msra.mxu0 0
    %6032 = vmatprep.mubr.bf16.mxu0 0
    %6033 = vmatmul.mubr.bf16.gmra.mxu0 %v5998
    %v6034 = vpop.f32.mrf.mxu0
    %v6035 = vadd.f32 0.0, %v6034
    %v6036 = vpop.f32.mrf.mxu0
    %v6037 = vadd.f32 0.0, %v6036
    %v6038 = vpop.f32.mrf.mxu0
    %v6039 = vpop.f32.mrf.mxu0
    %6040 = vdwg.mxu0
    %6043 = vrot.lane.b32.xlu0 %v5963, 32
    %v6044 = vpop.permute.xlu0 %6043
    %6045 = vrot.lane.b32.xlu0 %v5965, 32
    %v6046 = vpop.permute.xlu0 %6045
    %v6047 = vsel %vm271, %v6044, %v6046
    %v6049 = vsel %vm817, %v5963, %v6047
    %v6050 = vld [vmem:[%s14] sm:$0x3]
    %v6051 = vadd.f32 %v6049, %v6050
    %6054 = vrot.lane.b32.xlu0 %v6035, 32
    %v6055 = vpop.permute.xlu0 %6054
    %6056 = vrot.lane.b32.xlu0 %v6037, 32
    %v6057 = vpop.permute.xlu0 %6056
    %v6058 = vsel %vm271, %v6055, %v6057
    %v6060 = vsel %vm817, %v6035, %v6058
    %v6061 = vadd.f32 %v6051, %v6060
    %v6062 = vxor.u32 %v6061, 2147483648
    %v6063 = vmul.f32 %v6062, 1.442695
    %v6064 = vpow.pop %v6063
    %v6065 = vadd.f32 %v6064, 1.0
    %v6066 = vrcp.pop %v6065
    %v6067 = vmul.f32 1.0, %v6066
    %v6068 = vld [vmem:[%s15] sm:$0x3]
    %6070 = vrot.lane.b32.xlu0 %v6068, 64
    %v6071 = vpop.permute.xlu0 %6070
    %v6073 = vadd.f32 %v6060, %v6071
    %6075 = vrot.lane.b32.xlu0 %v6073, 64
    %v6076 = vpop.permute.xlu0 %6075
    %v6078 = vmul.f32 %v6067, %v6076
    %6080 = vrot.lane.b32.xlu0 %v6078, 64
    %v6081 = vpop.permute.xlu0 %6080
    %v6083 = vadd.f32 %v6051, %v6081
    %v6084 = vtanh.pop %v6083
    %v6085 = vsub.f32 1.0, %v6067
    %6087 = vrot.lane.b32.xlu0 %v6084, 96
    %v6088 = vpop.permute.xlu0 %6087
    %v6090 = vmul.f32 %v6085, %v6088
    %v6091 = vmul.f32 %v6067, %v5373
    %v6092 = vadd.f32 %v6090, %v6091
    %v6093 = vmul.f32 %v5768, %v6092
    %v6094 = vadd.f32 %v6093, 0.0
    %v6095 = vmul.f32 %v5800, %v6092
    %v6097 = vrot.slane %v6095, 1
    %v6099 = vadd.f32 %v6094, %v6097
    %6101 = vrot.lane.b32.xlu0 %v6099, 96
    %v6102 = vpop.permute.xlu0 %6101
    %6104 = vst.msk [vmem:[#allocation21 + $0x7] sm:$0x1] %vm469, %v6102
    %vm6105 = vcmask 254976
    %6106 = vst.msk [vmem:[#allocation24] sm:$0x3] %vm6105, %v5899
    %6108 = vrot.lane.b32.xlu0 %v6092, 96
    %v6109 = vpop.permute.xlu0 %6108
    %6111 = vst.msk [vmem:[#allocation25] sm:$0x3] %vm6105, %v6109
    // Predicated region
    $region110: #{tpu_custom_call.1} parent=1 // pred_check
      _
    $region111: #{tpu_custom_call.1} parent=1 // pred_check_branch
      %6113 = sbr.rel (0) target = $region113
    $region112: #{tpu_custom_call.1} parent=1 // pred_region
      %s6115 = ssub.s32 128, 128
      %6116 = vsyncadd [#allocation4], %s6115
      %s6118 = sshll.u32 [#allocation21], 4
      %s6119 = int_to_ptr.vmem [resolvable:$true] %s6118
      %6121 = dma.vmem_to_hbm [thread:$0]  %s6119, 128, %s16, [#allocation4]
    $region113: #{tpu_custom_call.1} parent=1 // pred_fallthru
      _
    // Predicated region
    $region114: #{tpu_custom_call.1} parent=1 // pred_check
      _
    $region115: #{tpu_custom_call.1} parent=1 // pred_check_branch
      %6123 = sbr.rel (0) target = $region117
    $region116: #{tpu_custom_call.1} parent=1 // pred_region
      %s6125 = ssub.s32 128, 128
      %6126 = vsyncadd [#allocation23], %s6125
      %s6128 = sshll.u32 [#allocation22], 4
      %s6129 = int_to_ptr.vmem [resolvable:$true] %s6128
      %6131 = dma.vmem_to_hbm [thread:$0]  %s6129, 128, %s17, [#allocation23]
    $region117: #{tpu_custom_call.1} parent=1 // pred_fallthru
      _
    // Predicated region
    $region118: #{tpu_custom_call.1} parent=1 // pred_check
      _
    $region119: #{tpu_custom_call.1} parent=1 // pred_check_branch
      %6133 = sbr.rel (0) target = $region121
    $region120: #{tpu_custom_call.1} parent=1 // pred_region
      %s6135 = ssub.s32 32, 32
      %6136 = vsyncadd [#allocation23], %s6135
      %s6138 = sshll.u32 [#allocation24], 4
      %s6139 = int_to_ptr.vmem [resolvable:$true] %s6138
      %6141 = dma.vmem_to_hbm [thread:$0]  %s6139, 32, %s18, [#allocation23]
    $region121: #{tpu_custom_call.1} parent=1 // pred_fallthru
      _
    // Predicated region
    $region122: #{tpu_custom_call.1} parent=1 // pred_check
      _
    $region123: #{tpu_custom_call.1} parent=1 // pred_check_branch
      %6143 = sbr.rel (0) target = $region125
    $region124: #{tpu_custom_call.1} parent=1 // pred_region
      %s6145 = ssub.s32 32, 32
      %6146 = vsyncadd [#allocation26], %s6145
      %s6148 = sshll.u32 [#allocation25], 4
      %s6149 = int_to_ptr.vmem [resolvable:$true] %s6148
      %6151 = dma.vmem_to_hbm [thread:$0]  %s6149, 32, %s19, [#allocation26]
    $region125: #{tpu_custom_call.1} parent=1 // pred_fallthru
      _
    // Predicated region
    $region126: #{tpu_custom_call.1} parent=1 // pred_check
      _
    $region127: #{tpu_custom_call.1} parent=1 // pred_check_branch
      %6153 = sbr.rel (0) target = $region129
    $region128: #{tpu_custom_call.1} parent=1 // pred_region
      %6154 = dma.done [#allocation4], 128
    $region129: #{tpu_custom_call.1} parent=1 // pred_fallthru
      _
    // Predicated region
    $region130: #{tpu_custom_call.1} parent=1 // pred_check
      _
    $region131: #{tpu_custom_call.1} parent=1 // pred_check_branch
      %6156 = sbr.rel (0) target = $region133
    $region132: #{tpu_custom_call.1} parent=1 // pred_region
      %6157 = dma.done [#allocation23], 128
    $region133: #{tpu_custom_call.1} parent=1 // pred_fallthru
      _
    // Predicated region
    $region134: #{tpu_custom_call.1} parent=1 // pred_check
      _
    $region135: #{tpu_custom_call.1} parent=1 // pred_check_branch
      %6159 = sbr.rel (0) target = $region137
    $region136: #{tpu_custom_call.1} parent=1 // pred_region
      %6160 = dma.done [#allocation23], 32
    $region137: #{tpu_custom_call.1} parent=1 // pred_fallthru
      _
    // Predicated region
    $region138: #{tpu_custom_call.1} parent=1 // pred_check
      _
    $region139: #{tpu_custom_call.1} parent=1 // pred_check_branch
      %6162 = sbr.rel (0) target = $region141
    $region140: #{tpu_custom_call.1} parent=1 // pred_region
      %6163 = dma.done [#allocation26], 32
    $region141: #{tpu_custom_call.1} parent=1 // pred_fallthru
      _
    %6164 = vsyncpa [#allocation3], 1
    %6165 = vsyncpa [#allocation8], 1
    %6166 = vsyncpa [#allocation11], 1
    %6167 = vsyncpa [#allocation14], 1
    %6168 = vsyncpa [#allocation17], 1
    %6169 = vsyncpa [#allocation20], 1
    %6170 = vsyncpa [#allocation4], 1
    %6171 = vsyncpa [#allocation23], 1
    %6172 = vsyncpa [#allocation26], 1
    %6173 = vsyncpa [#allocation5], 1

</llo_original>
